<compile_context>
chip_gen: v7x
topology: tpu7x:2x2x1
jax: 0.10.0
libtpu: 0.0.40
codegen_flags: <defaults>
</compile_context>

<pallas_src>
import math
from functools import partial

import jax
import jax.numpy as jnp
from jax import lax
from jax.experimental import pallas as pl
from jax.experimental.pallas import tpu as pltpu

_SQRT2 = math.sqrt(2.0)
_PAD = 16          # sublane-aligned halo for the 3x3 conv staging buffer (needs >= W+1)


def _gelu(x):
    # exact (erf-based) GELU, matching torch.nn.GELU() default
    return 0.5 * x * (1.0 + lax.erf(x / _SQRT2))


def _ln_rows(v, g, b, eps=1e-5):
    # LayerNorm over the last (channel / lane) axis, per row
    mu = jnp.mean(v, axis=-1, keepdims=True)
    var = jnp.mean((v - mu) ** 2, axis=-1, keepdims=True)
    return (v - mu) * lax.rsqrt(var + eps) * g + b


# ------------------------------ the fused kernel ------------------------------

def _encoder_block_kernel(
        cols_ref, attn_bias_ref, conv_mask_ref,
        olm_w_ref, olm_b_ref, olm_g_ref, olm_beta_ref,
        ln1_g_ref, ln1_b_ref, ln2_g_ref, ln2_b_ref,
        w_red_ref, w_q_ref, w_k_ref, w_v_ref, w_o_ref,
        fln_g_ref, fln_b_ref, w1_ref, b1_ref, wc9_ref, bc_ref, w2_ref, b2_ref,
        o_ref,
        stage_ref, grp_ref, pad_ref, taps_ref,
        *, L, N, C, r, W, scale):
    bf = jnp.bfloat16
    Sr = N // r

    # zero-pad halo for the 3x3 conv staging buffer; the pad rows are never
    # overwritten, so this single init serves every layer in this grid step.
    pad_ref[...] = jnp.zeros_like(pad_ref)

    attn_bias = attn_bias_ref[...]          # (N, Sr) f32 additive head mask
    conv_mask = conv_mask_ref[...]          # (N, 9*C) f32 tap validity mask

    # -------- OverlappatchMerging: im2col conv + bias + LayerNorm --------
    x = jnp.dot(cols_ref[...].astype(bf), olm_w_ref[...],
                preferred_element_type=jnp.float32) + olm_b_ref[...]
    x = _ln_rows(x, olm_g_ref[...], olm_beta_ref[...])                    # (N, C) f32

    for l in range(L):
        # ===================== MultiHeadAttention =====================
        x_ln = _ln_rows(x, ln1_g_ref[l], ln1_b_ref[l])                    # (N, C)

        # group r consecutive tokens onto the lane axis: (N, C) -> (N/r, r*C)
        # (strided ref reads through a VMEM staging copy; no value reshapes)
        stage_ref[...] = x_ln
        for j in range(r):
            grp_ref[:, j * C:(j + 1) * C] = stage_ref[pl.ds(j, Sr, stride=r), :]
        red = jnp.dot(grp_ref[...].astype(bf), w_red_ref[l],
                      preferred_element_type=jnp.float32)                 # (N/r, 2C)
        k_red = _ln_rows(red[:, :C], ln2_g_ref[l], ln2_b_ref[l])
        v_red = _ln_rows(red[:, C:], ln2_g_ref[l], ln2_b_ref[l])

        # spatial-axis projections as left-multiplications (stay channels-last)
        q = jnp.dot(w_q_ref[l], x_ln.astype(bf), preferred_element_type=jnp.float32)
        k = jnp.dot(w_k_ref[l], k_red.astype(bf), preferred_element_type=jnp.float32)
        v = jnp.dot(w_v_ref[l], v_red.astype(bf), preferred_element_type=jnp.float32)

        # all heads at once: block-diagonal additive mask + masked softmax
        s = lax.dot_general(q.astype(bf), k.astype(bf), (((1,), (1,)), ((), ())),
                            preferred_element_type=jnp.float32) * scale + attn_bias
        s = s - jnp.max(s, axis=-1, keepdims=True)
        p = jnp.exp(s)
        p = p * pl.reciprocal(jnp.sum(p, axis=-1, keepdims=True), approx=True)
        # TODO(synk): nn.Dropout(0.1) on the attention probs is eval-mode identity.
        av = jnp.dot(p.astype(bf), v.astype(bf), preferred_element_type=jnp.float32)
        x = jnp.dot(w_o_ref[l], av.astype(bf),
                    preferred_element_type=jnp.float32) + x               # residual

        # =========================== MixFFN ===========================
        y = _ln_rows(x, fln_g_ref[l], fln_b_ref[l])
        y = jnp.dot(y.astype(bf), w1_ref[l],
                    preferred_element_type=jnp.float32) + b1_ref[l]
        y = _gelu(y)                                                      # (N, C)

        # 3x3 'same' conv (eval-BN folded into wc9/bc): build the 9 shifted taps
        # from the zero-padded staging buffer and do ONE K=9*C matmul.
        pad_ref[_PAD:_PAD + N, :] = y
        for ky in range(3):
            for kx in range(3):
                kk = ky * 3 + kx
                sft = (ky - 1) * W + (kx - 1)
                taps_ref[:, kk * C:(kk + 1) * C] = pad_ref[pl.ds(_PAD + sft, N), :]
        z = jnp.dot((taps_ref[...] * conv_mask).astype(bf), wc9_ref[l],
                    preferred_element_type=jnp.float32) + bc_ref[l]
        z = _gelu(z)                                                      # (N, C*e)
        x = jnp.dot(z.astype(bf), w2_ref[l],
                    preferred_element_type=jnp.float32) + b2_ref[l] + x   # residual

    # TODO(synk): a lane-dense (rows*C/128, 128) store would avoid masked 32-wide
    # vst's; kept (N, C) since it is a single ~8 KiB store per grid step.
    o_ref[...] = x


# ------------------------------- host-side glue -------------------------------

def im2col(x, kh, kw, stride, pad):
    # x: NCHW -> (B*Ho*Wo, C*kh*kw) with torch conv (c, ky, kx) feature ordering
    B, Cc, H, W = x.shape
    xp = jnp.pad(x, ((0, 0), (0, 0), (pad, pad), (pad, pad)))
    Ho = (H + 2 * pad - kh) // stride + 1
    Wo = (W + 2 * pad - kw) // stride + 1
    cols = []
    for i in range(kh):
        for j in range(kw):
            cols.append(xp[:, :, i:i + stride * Ho:stride, j:j + stride * Wo:stride])
    st = jnp.stack(cols, axis=0)                  # (kh*kw, B, C, Ho, Wo)
    st = st.transpose(1, 3, 4, 2, 0)              # (B, Ho, Wo, C, kh*kw)
    return st.reshape(B * Ho * Wo, Cc * kh * kw), Ho, Wo


def prepare_params(params, cfg):
    """One-time host-side weight permutation / folding / casting (hoisted out of
    the per-step jit).  All matmul weights are pre-cast to bf16."""
    C = cfg["out_channels"]
    N = cfg["input_dim"]
    h = cfg["head_num"]
    e = cfg["expansion"]
    r = 8                       # the reference hardcodes reduction_ratio=8
    Ce = C * e
    side = int(round(math.sqrt(N)))
    bf = jnp.bfloat16

    olm = params["olm"]
    Cout = olm["w"].shape[0]
    prep = {
        "olm_w": olm["w"].reshape(Cout, -1).T.astype(bf),
        "olm_b": olm["b"].reshape(1, Cout),
        "olm_g": olm["ln_g"].reshape(1, Cout),
        "olm_beta": olm["ln_b"].reshape(1, Cout),
    }

    def stack(fn):
        return jnp.stack([fn(lp) for lp in params["layers"]], axis=0)

    # ---- MHA weights ----
    def red_w(lp):
        # torch grouped feature index is c*r + j ('(b r)'); flatten to j*C + c
        wk = lp["mha"]["w_rk"].reshape(C, C, r).transpose(2, 1, 0).reshape(r * C, C)
        wv = lp["mha"]["w_rv"].reshape(C, C, r).transpose(2, 1, 0).reshape(r * C, C)
        return jnp.concatenate([wk, wv], axis=1)              # (r*C, 2C)  K | V

    prep["ln1_g"] = stack(lambda lp: lp["mha"]["ln1_g"].reshape(1, C))
    prep["ln1_b"] = stack(lambda lp: lp["mha"]["ln1_b"].reshape(1, C))
    prep["ln2_g"] = stack(lambda lp: lp["mha"]["ln2_g"].reshape(1, C))
    prep["ln2_b"] = stack(lambda lp: lp["mha"]["ln2_b"].reshape(1, C))
    prep["w_red"] = stack(red_w).astype(bf)
    prep["w_q"] = stack(lambda lp: lp["mha"]["w_q"]).astype(bf)
    prep["w_k"] = stack(lambda lp: lp["mha"]["w_k"]).astype(bf)
    prep["w_v"] = stack(lambda lp: lp["mha"]["w_v"]).astype(bf)
    prep["w_o"] = stack(lambda lp: lp["mha"]["w_o"]).astype(bf)

    # ---- MixFFN weights (eval-BN folded into the 3x3 conv) ----
    def conv_w(lp):
        f = lp["ffn"]
        s = f["bn_w"] / jnp.sqrt(f["bn_rv"] + 1e-5)
        return f["wc"].transpose(2, 3, 1, 0).reshape(9 * C, Ce) * s[None, :]

    def conv_b(lp):
        f = lp["ffn"]
        s = f["bn_w"] / jnp.sqrt(f["bn_rv"] + 1e-5)
        return ((f["bc"] - f["bn_rm"]) * s + f["bn_b"]).reshape(1, Ce)

    prep["fln_g"] = stack(lambda lp: lp["ffn"]["ln_g"].reshape(1, C))
    prep["fln_b"] = stack(lambda lp: lp["ffn"]["ln_b"].reshape(1, C))
    prep["w1"] = stack(lambda lp: lp["ffn"]["w1"].T).astype(bf)
    prep["b1"] = stack(lambda lp: lp["ffn"]["b1"].reshape(1, C))
    prep["wc9"] = stack(conv_w).astype(bf)
    prep["bc"] = stack(conv_b)
    prep["w2"] = stack(lambda lp: lp["ffn"]["w2"].T).astype(bf)
    prep["b2"] = stack(lambda lp: lp["ffn"]["b2"].reshape(1, C))

    # ---- block-diagonal head mask (additive softmax bias), shared by all layers
    Sr, Mh, Nh = N // r, N // h, (N // r) // h
    rows = jnp.arange(N)[:, None] // Mh
    colsv = jnp.arange(Sr)[None, :] // Nh
    prep["attn_bias"] = jnp.where(rows == colsv, 0.0, -1e30).astype(jnp.float32)

    # ---- 3x3 'same' conv tap validity mask, shared by all layers
    ii = jnp.arange(N) // side
    jj = jnp.arange(N) % side
    masks = []
    for ky in range(3):
        for kx in range(3):
            dy, dx = ky - 1, kx - 1
            v = (ii + dy >= 0) & (ii + dy < side) & (jj + dx >= 0) & (jj + dx < side)
            masks.append(jnp.broadcast_to(v[:, None], (N, C)))
    prep["conv_mask"] = jnp.concatenate(masks, axis=1).astype(jnp.float32)
    return prep


def encoder_block1_forward(x, prep, cfg):
    B = x.shape[0]
    ksz, stride = cfg["kernel_size"], cfg["stride"]
    C, e, L, h, r = (cfg["out_channels"], cfg["expansion"], cfg["enclayer_num"],
                     cfg["head_num"], 8)

    cols, Ho, Wo = im2col(x, ksz, ksz, stride, ksz // 2)      # host-side patch gather
    N = Ho * Wo
    assert N == cfg["input_dim"]
    assert Wo + 1 <= _PAD
    scale = 1.0 / math.sqrt(N // h)

    kern = partial(_encoder_block_kernel, L=L, N=N, C=C, r=r, W=Wo, scale=scale)

    inputs = [cols, prep["attn_bias"], prep["conv_mask"],
              prep["olm_w"], prep["olm_b"], prep["olm_g"], prep["olm_beta"],
              prep["ln1_g"], prep["ln1_b"], prep["ln2_g"], prep["ln2_b"],
              prep["w_red"], prep["w_q"], prep["w_k"], prep["w_v"], prep["w_o"],
              prep["fln_g"], prep["fln_b"], prep["w1"], prep["b1"],
              prep["wc9"], prep["bc"], prep["w2"], prep["b2"]]

    in_specs = [pl.BlockSpec((N, cols.shape[1]), lambda b: (b, 0))]
    for a in inputs[1:]:
        in_specs.append(pl.BlockSpec(a.shape, lambda b, nd=a.ndim: (0,) * nd))

    out = pl.pallas_call(
        kern,
        out_shape=jax.ShapeDtypeStruct((B * N, C), jnp.float32),
        grid_spec=pltpu.PrefetchScalarGridSpec(
            num_scalar_prefetch=0,
            grid=(B,),                                   # batch elements independent
            in_specs=in_specs,
            out_specs=pl.BlockSpec((N, C), lambda b: (b, 0)),
            scratch_shapes=[
                pltpu.VMEM((N, C), jnp.float32),          # x_ln staging (strided reads)
                pltpu.VMEM((N // r, r * C), jnp.float32),  # grouped tokens (K/V reduce)
                pltpu.VMEM((2 * _PAD + N, C), jnp.float32),  # zero-padded conv staging
                pltpu.VMEM((N, 9 * C), jnp.float32),       # conv taps (K=9*C matmul lhs)
            ]),
        compiler_params=pltpu.CompilerParams(
            dimension_semantics=("parallel",)),           # v7x: one batch per core
    )(*inputs)

    return out.reshape(B, Ho, Wo, C).transpose(0, 3, 1, 2)    # back to NCHW


# ------------------------------- parameter init -------------------------------

def init_params(key, cfg):
    Cin, C = cfg["in_channels"], cfg["out_channels"]
    ksz, dim, e, r = cfg["kernel_size"], cfg["input_dim"], cfg["expansion"], 8
    Ce = C * e
    keys = iter(jax.random.split(key, 128))

    def nrm(shape, std=0.05):
        return std * jax.random.normal(next(keys), shape, dtype=jnp.float32)

    params = {
        "olm": {
            "w": nrm((C, Cin, ksz, ksz)), "b": nrm((C,), 0.01),
            "ln_g": jnp.ones((C,), jnp.float32), "ln_b": jnp.zeros((C,), jnp.float32),
        },
        "layers": [],
    }
    for _ in range(cfg["enclayer_num"]):
        mha = {
            "ln1_g": jnp.ones((C,), jnp.float32), "ln1_b": jnp.zeros((C,), jnp.float32),
            "ln2_g": jnp.ones((C,), jnp.float32), "ln2_b": jnp.zeros((C,), jnp.float32),
            # torch nn.Linear weight layout: (out_features, in_features)
            "w_rk": nrm((C, C * r)), "w_rv": nrm((C, C * r)),
            "w_q": nrm((dim, dim)),
            "w_k": nrm((dim // r, dim // r)), "w_v": nrm((dim // r, dim // r)),
            "w_o": nrm((dim, dim)),
        }
        ffn = {
            "ln_g": jnp.ones((C,), jnp.float32), "ln_b": jnp.zeros((C,), jnp.float32),
            "w1": nrm((C, C)), "b1": nrm((C,), 0.01),            # 1x1 conv (out,in)
            "wc": nrm((Ce, C, 3, 3)), "bc": nrm((Ce,), 0.01),    # 3x3 conv
            "bn_w": jnp.ones((Ce,), jnp.float32), "bn_b": jnp.zeros((Ce,), jnp.float32),
            "bn_rm": nrm((Ce,), 0.01), "bn_rv": jnp.ones((Ce,), jnp.float32),
            "w2": nrm((C, Ce)), "b2": nrm((C,), 0.01),           # 1x1 conv (out,in)
        }
        params["layers"].append({"mha": mha, "ffn": ffn})
    return params


if __name__ == "__main__":
    cfg = dict(
        in_channels=4, out_channels=32, kernel_size=3, stride=2,
        input_dim=64,          # = (16/2) * (16/2), spatial tokens after patch merging
        head_num=2, reduction_ratio=8, expansion=2, enclayer_num=2,
    )
    key = jax.random.PRNGKey(0)
    kx, kp = jax.random.split(key)
    x = jax.random.normal(kx, (2, cfg["in_channels"], 16, 16), dtype=jnp.float32)
    params = init_params(kp, cfg)
    prep = prepare_params(params, cfg)      # host-side weight prep, done ONCE

    fwd = jax.jit(lambda xx, pp: encoder_block1_forward(xx, pp, cfg))
    out = jax.block_until_ready(fwd(x, prep))

    assert out.shape == (2, cfg["out_channels"], 8, 8), out.shape
    assert bool(jnp.all(jnp.isfinite(out)))
    print("KERNEL_OK")
</pallas_src>

<mosaic_0001>
module attributes {stable_mosaic.version = 11 : i64} {
  func.func @_encoder_block_kernel(%arg0: i32, %arg1: memref<64x36xf32, #tpu.memory_space<vmem>>, %arg2: memref<64x8xf32, #tpu.memory_space<vmem>>, %arg3: memref<64x288xf32, #tpu.memory_space<vmem>>, %arg4: memref<36x32xbf16, #tpu.memory_space<vmem>>, %arg5: memref<1x32xf32, #tpu.memory_space<vmem>>, %arg6: memref<1x32xf32, #tpu.memory_space<vmem>>, %arg7: memref<1x32xf32, #tpu.memory_space<vmem>>, %arg8: memref<2x1x32xf32, #tpu.memory_space<vmem>>, %arg9: memref<2x1x32xf32, #tpu.memory_space<vmem>>, %arg10: memref<2x1x32xf32, #tpu.memory_space<vmem>>, %arg11: memref<2x1x32xf32, #tpu.memory_space<vmem>>, %arg12: memref<2x256x64xbf16, #tpu.memory_space<vmem>>, %arg13: memref<2x64x64xbf16, #tpu.memory_space<vmem>>, %arg14: memref<2x8x8xbf16, #tpu.memory_space<vmem>>, %arg15: memref<2x8x8xbf16, #tpu.memory_space<vmem>>, %arg16: memref<2x64x64xbf16, #tpu.memory_space<vmem>>, %arg17: memref<2x1x32xf32, #tpu.memory_space<vmem>>, %arg18: memref<2x1x32xf32, #tpu.memory_space<vmem>>, %arg19: memref<2x32x32xbf16, #tpu.memory_space<vmem>>, %arg20: memref<2x1x32xf32, #tpu.memory_space<vmem>>, %arg21: memref<2x288x64xbf16, #tpu.memory_space<vmem>>, %arg22: memref<2x1x64xf32, #tpu.memory_space<vmem>>, %arg23: memref<2x64x32xbf16, #tpu.memory_space<vmem>>, %arg24: memref<2x1x32xf32, #tpu.memory_space<vmem>>, %arg25: memref<64x32xf32, #tpu.memory_space<vmem>>, %arg26: memref<64x32xf32, #tpu.memory_space<vmem>>, %arg27: memref<8x256xf32, #tpu.memory_space<vmem>>, %arg28: memref<96x32xf32, #tpu.memory_space<vmem>>, %arg29: memref<64x288xf32, #tpu.memory_space<vmem>>) attributes {dimension_semantics = [#tpu.dimension_semantics<parallel>], iteration_bounds = array<i64: 2>, scalar_prefetch = 0 : i64, scratch_operands = 4 : i64, tpu.core_type = #tpu.core_type<tc>, window_params = [{transform_indices = @transform_0, window_bounds = array<i64: 64, 36>}, {pipeline_mode = #tpu.pipeline_mode<synchronous>, transform_indices = @transform_1, window_bounds = array<i64: 64, 8>}, {pipeline_mode = #tpu.pipeline_mode<synchronous>, transform_indices = @transform_2, window_bounds = array<i64: 64, 288>}, {pipeline_mode = #tpu.pipeline_mode<synchronous>, transform_indices = @transform_3, window_bounds = array<i64: 36, 32>}, {pipeline_mode = #tpu.pipeline_mode<synchronous>, transform_indices = @transform_4, window_bounds = array<i64: 1, 32>}, {pipeline_mode = #tpu.pipeline_mode<synchronous>, transform_indices = @transform_5, window_bounds = array<i64: 1, 32>}, {pipeline_mode = #tpu.pipeline_mode<synchronous>, transform_indices = @transform_6, window_bounds = array<i64: 1, 32>}, {pipeline_mode = #tpu.pipeline_mode<synchronous>, transform_indices = @transform_7, window_bounds = array<i64: 2, 1, 32>}, {pipeline_mode = #tpu.pipeline_mode<synchronous>, transform_indices = @transform_8, window_bounds = array<i64: 2, 1, 32>}, {pipeline_mode = #tpu.pipeline_mode<synchronous>, transform_indices = @transform_9, window_bounds = array<i64: 2, 1, 32>}, {pipeline_mode = #tpu.pipeline_mode<synchronous>, transform_indices = @transform_10, window_bounds = array<i64: 2, 1, 32>}, {pipeline_mode = #tpu.pipeline_mode<synchronous>, transform_indices = @transform_11, window_bounds = array<i64: 2, 256, 64>}, {pipeline_mode = #tpu.pipeline_mode<synchronous>, transform_indices = @transform_12, window_bounds = array<i64: 2, 64, 64>}, {pipeline_mode = #tpu.pipeline_mode<synchronous>, transform_indices = @transform_13, window_bounds = array<i64: 2, 8, 8>}, {pipeline_mode = #tpu.pipeline_mode<synchronous>, transform_indices = @transform_14, window_bounds = array<i64: 2, 8, 8>}, {pipeline_mode = #tpu.pipeline_mode<synchronous>, transform_indices = @transform_15, window_bounds = array<i64: 2, 64, 64>}, {pipeline_mode = #tpu.pipeline_mode<synchronous>, transform_indices = @transform_16, window_bounds = array<i64: 2, 1, 32>}, {pipeline_mode = #tpu.pipeline_mode<synchronous>, transform_indices = @transform_17, window_bounds = array<i64: 2, 1, 32>}, {pipeline_mode = #tpu.pipeline_mode<synchronous>, transform_indices = @transform_18, window_bounds = array<i64: 2, 32, 32>}, {pipeline_mode = #tpu.pipeline_mode<synchronous>, transform_indices = @transform_19, window_bounds = array<i64: 2, 1, 32>}, {pipeline_mode = #tpu.pipeline_mode<synchronous>, transform_indices = @transform_20, window_bounds = array<i64: 2, 288, 64>}, {pipeline_mode = #tpu.pipeline_mode<synchronous>, transform_indices = @transform_21, window_bounds = array<i64: 2, 1, 64>}, {pipeline_mode = #tpu.pipeline_mode<synchronous>, transform_indices = @transform_22, window_bounds = array<i64: 2, 64, 32>}, {pipeline_mode = #tpu.pipeline_mode<synchronous>, transform_indices = @transform_23, window_bounds = array<i64: 2, 1, 32>}, {transform_indices = @transform_24, window_bounds = array<i64: 64, 32>}]} {
    %cst = arith.constant 0.000000e+00 : f32
    %0 = vector.broadcast %cst : f32 to vector<96x32xf32>
    %c0 = arith.constant 0 : index
    %c0_0 = arith.constant 0 : index
    %1 = vector.load %arg28[%c0, %c0_0] : memref<96x32xf32, #tpu.memory_space<vmem>>, vector<96x32xf32>
    tpu.vector_store %arg28[%c0, %c0_0], %0 {strides = array<i32>} : memref<96x32xf32, #tpu.memory_space<vmem>>, vector<96x32xf32>,
    %c0_1 = arith.constant 0 : index
    %c0_2 = arith.constant 0 : index
    %2 = vector.load %arg2[%c0_1, %c0_2] : memref<64x8xf32, #tpu.memory_space<vmem>>, vector<64x8xf32>
    %c0_3 = arith.constant 0 : index
    %c0_4 = arith.constant 0 : index
    %3 = vector.load %arg3[%c0_3, %c0_4] : memref<64x288xf32, #tpu.memory_space<vmem>>, vector<64x288xf32>
    %c0_5 = arith.constant 0 : index
    %c0_6 = arith.constant 0 : index
    %4 = vector.load %arg1[%c0_5, %c0_6] : memref<64x36xf32, #tpu.memory_space<vmem>>, vector<64x36xf32>
    %5 = arith.truncf %4 : vector<64x36xf32> to vector<64x36xbf16>
    %c0_7 = arith.constant 0 : index
    %c0_8 = arith.constant 0 : index
    %6 = vector.load %arg4[%c0_7, %c0_8] : memref<36x32xbf16, #tpu.memory_space<vmem>>, vector<36x32xbf16>
    %cst_9 = arith.constant dense<0.000000e+00> : vector<64x32xf32>
    %7 = tpu.matmul %5, %6, %cst_9 {dimension_numbers = #tpu.dot_dimension_numbers<[1], [0], [0], [1], [0, 0, 1, 1], [], []>} : vector<64x36xbf16>, vector<36x32xbf16>, vector<64x32xf32> -> vector<64x32xf32>
    %c0_10 = arith.constant 0 : index
    %c0_11 = arith.constant 0 : index
    %8 = vector.load %arg5[%c0_10, %c0_11] : memref<1x32xf32, #tpu.memory_space<vmem>>, vector<1x32xf32>
    %9 = vector.broadcast %8 : vector<1x32xf32> to vector<64x32xf32>
    %10 = arith.addf %7, %9 : vector<64x32xf32>
    %c0_12 = arith.constant 0 : index
    %c0_13 = arith.constant 0 : index
    %11 = vector.load %arg6[%c0_12, %c0_13] : memref<1x32xf32, #tpu.memory_space<vmem>>, vector<1x32xf32>
    %c0_14 = arith.constant 0 : index
    %c0_15 = arith.constant 0 : index
    %12 = vector.load %arg7[%c0_14, %c0_15] : memref<1x32xf32, #tpu.memory_space<vmem>>, vector<1x32xf32>
    %cst_16 = arith.constant dense<0.000000e+00> : vector<64xf32>
    %13 = vector.multi_reduction <add>, %10, %cst_16 [1] : vector<64x32xf32> to vector<64xf32>
    %14 = vector.shape_cast %13 : vector<64xf32> to vector<64x1xf32>
    %cst_17 = arith.constant 3.200000e+01 : f32
    %15 = vector.broadcast %cst_17 : f32 to vector<64x1xf32>
    %16 = arith.divf %14, %15 : vector<64x1xf32>
    %17 = vector.broadcast %16 : vector<64x1xf32> to vector<64x32xf32>
    %18 = arith.subf %10, %17 : vector<64x32xf32>
    %19 = arith.mulf %18, %18 : vector<64x32xf32>
    %cst_18 = arith.constant dense<0.000000e+00> : vector<64xf32>
    %20 = vector.multi_reduction <add>, %19, %cst_18 [1] : vector<64x32xf32> to vector<64xf32>
    %21 = vector.shape_cast %20 : vector<64xf32> to vector<64x1xf32>
    %cst_19 = arith.constant 3.200000e+01 : f32
    %22 = vector.broadcast %cst_19 : f32 to vector<64x1xf32>
    %23 = arith.divf %21, %22 : vector<64x1xf32>
    %24 = vector.broadcast %16 : vector<64x1xf32> to vector<64x32xf32>
    %25 = arith.subf %10, %24 : vector<64x32xf32>
    %cst_20 = arith.constant 9.99999974E-6 : f32
    %26 = vector.broadcast %cst_20 : f32 to vector<64x1xf32>
    %27 = arith.addf %23, %26 : vector<64x1xf32>
    %28 = math.rsqrt %27 : vector<64x1xf32>
    %29 = vector.broadcast %28 : vector<64x1xf32> to vector<64x32xf32>
    %30 = arith.mulf %25, %29 : vector<64x32xf32>
    %31 = vector.broadcast %11 : vector<1x32xf32> to vector<64x32xf32>
    %32 = arith.mulf %30, %31 : vector<64x32xf32>
    %33 = vector.broadcast %12 : vector<1x32xf32> to vector<64x32xf32>
    %34 = arith.addf %32, %33 : vector<64x32xf32>
    %c0_21 = arith.constant 0 : index
    %c0_22 = arith.constant 0 : index
    %c0_23 = arith.constant 0 : index
    %35 = vector.load %arg8[%c0_21, %c0_22, %c0_23] : memref<2x1x32xf32, #tpu.memory_space<vmem>>, vector<1x1x32xf32>
    %36 = vector.shape_cast %35 : vector<1x1x32xf32> to vector<1x32xf32>
    %c0_24 = arith.constant 0 : index
    %c0_25 = arith.constant 0 : index
    %c0_26 = arith.constant 0 : index
    %37 = vector.load %arg9[%c0_24, %c0_25, %c0_26] : memref<2x1x32xf32, #tpu.memory_space<vmem>>, vector<1x1x32xf32>
    %38 = vector.shape_cast %37 : vector<1x1x32xf32> to vector<1x32xf32>
    %cst_27 = arith.constant dense<0.000000e+00> : vector<64xf32>
    %39 = vector.multi_reduction <add>, %34, %cst_27 [1] : vector<64x32xf32> to vector<64xf32>
    %40 = vector.shape_cast %39 : vector<64xf32> to vector<64x1xf32>
    %cst_28 = arith.constant 3.200000e+01 : f32
    %41 = vector.broadcast %cst_28 : f32 to vector<64x1xf32>
    %42 = arith.divf %40, %41 : vector<64x1xf32>
    %43 = vector.broadcast %42 : vector<64x1xf32> to vector<64x32xf32>
    %44 = arith.subf %34, %43 : vector<64x32xf32>
    %45 = arith.mulf %44, %44 : vector<64x32xf32>
    %cst_29 = arith.constant dense<0.000000e+00> : vector<64xf32>
    %46 = vector.multi_reduction <add>, %45, %cst_29 [1] : vector<64x32xf32> to vector<64xf32>
    %47 = vector.shape_cast %46 : vector<64xf32> to vector<64x1xf32>
    %cst_30 = arith.constant 3.200000e+01 : f32
    %48 = vector.broadcast %cst_30 : f32 to vector<64x1xf32>
    %49 = arith.divf %47, %48 : vector<64x1xf32>
    %50 = vector.broadcast %42 : vector<64x1xf32> to vector<64x32xf32>
    %51 = arith.subf %34, %50 : vector<64x32xf32>
    %cst_31 = arith.constant 9.99999974E-6 : f32
    %52 = vector.broadcast %cst_31 : f32 to vector<64x1xf32>
    %53 = arith.addf %49, %52 : vector<64x1xf32>
    %54 = math.rsqrt %53 : vector<64x1xf32>
    %55 = vector.broadcast %54 : vector<64x1xf32> to vector<64x32xf32>
    %56 = arith.mulf %51, %55 : vector<64x32xf32>
    %57 = vector.broadcast %36 : vector<1x32xf32> to vector<64x32xf32>
    %58 = arith.mulf %56, %57 : vector<64x32xf32>
    %59 = vector.broadcast %38 : vector<1x32xf32> to vector<64x32xf32>
    %60 = arith.addf %58, %59 : vector<64x32xf32>
    %c0_32 = arith.constant 0 : index
    %c0_33 = arith.constant 0 : index
    %61 = vector.load %arg26[%c0_32, %c0_33] : memref<64x32xf32, #tpu.memory_space<vmem>>, vector<64x32xf32>
    tpu.vector_store %arg26[%c0_32, %c0_33], %60 {strides = array<i32>} : memref<64x32xf32, #tpu.memory_space<vmem>>, vector<64x32xf32>,
    %c0_34 = arith.constant 0 : index
    %c0_35 = arith.constant 0 : index
    %62 = tpu.strided_load %arg26[%c0_34, %c0_35] {strides = array<i32: 8, 1>} : memref<64x32xf32, #tpu.memory_space<vmem>>, vector<8x32xf32>
    %c0_36 = arith.constant 0 : index
    %c0_37 = arith.constant 0 : index
    %63 = vector.load %arg27[%c0_36, %c0_37] : memref<8x256xf32, #tpu.memory_space<vmem>>, vector<8x32xf32>
    tpu.vector_store %arg27[%c0_36, %c0_37], %62 {strides = array<i32>} : memref<8x256xf32, #tpu.memory_space<vmem>>, vector<8x32xf32>,
    %c1 = arith.constant 1 : index
    %c0_38 = arith.constant 0 : index
    %64 = tpu.strided_load %arg26[%c1, %c0_38] {strides = array<i32: 8, 1>} : memref<64x32xf32, #tpu.memory_space<vmem>>, vector<8x32xf32>
    %c0_39 = arith.constant 0 : index
    %c32 = arith.constant 32 : index
    %65 = vector.load %arg27[%c0_39, %c32] : memref<8x256xf32, #tpu.memory_space<vmem>>, vector<8x32xf32>
    tpu.vector_store %arg27[%c0_39, %c32], %64 {strides = array<i32>} : memref<8x256xf32, #tpu.memory_space<vmem>>, vector<8x32xf32>,
    %c2 = arith.constant 2 : index
    %c0_40 = arith.constant 0 : index
    %66 = tpu.strided_load %arg26[%c2, %c0_40] {strides = array<i32: 8, 1>} : memref<64x32xf32, #tpu.memory_space<vmem>>, vector<8x32xf32>
    %c0_41 = arith.constant 0 : index
    %c64 = arith.constant 64 : index
    %67 = vector.load %arg27[%c0_41, %c64] : memref<8x256xf32, #tpu.memory_space<vmem>>, vector<8x32xf32>
    tpu.vector_store %arg27[%c0_41, %c64], %66 {strides = array<i32>} : memref<8x256xf32, #tpu.memory_space<vmem>>, vector<8x32xf32>,
    %c3 = arith.constant 3 : index
    %c0_42 = arith.constant 0 : index
    %68 = tpu.strided_load %arg26[%c3, %c0_42] {strides = array<i32: 8, 1>} : memref<64x32xf32, #tpu.memory_space<vmem>>, vector<8x32xf32>
    %c0_43 = arith.constant 0 : index
    %c96 = arith.constant 96 : index
    %69 = vector.load %arg27[%c0_43, %c96] : memref<8x256xf32, #tpu.memory_space<vmem>>, vector<8x32xf32>
    tpu.vector_store %arg27[%c0_43, %c96], %68 {strides = array<i32>} : memref<8x256xf32, #tpu.memory_space<vmem>>, vector<8x32xf32>,
    %c4 = arith.constant 4 : index
    %c0_44 = arith.constant 0 : index
    %70 = tpu.strided_load %arg26[%c4, %c0_44] {strides = array<i32: 8, 1>} : memref<64x32xf32, #tpu.memory_space<vmem>>, vector<8x32xf32>
    %c0_45 = arith.constant 0 : index
    %c128 = arith.constant 128 : index
    %71 = vector.load %arg27[%c0_45, %c128] : memref<8x256xf32, #tpu.memory_space<vmem>>, vector<8x32xf32>
    tpu.vector_store %arg27[%c0_45, %c128], %70 {strides = array<i32>} : memref<8x256xf32, #tpu.memory_space<vmem>>, vector<8x32xf32>,
    %c5 = arith.constant 5 : index
    %c0_46 = arith.constant 0 : index
    %72 = tpu.strided_load %arg26[%c5, %c0_46] {strides = array<i32: 8, 1>} : memref<64x32xf32, #tpu.memory_space<vmem>>, vector<8x32xf32>
    %c0_47 = arith.constant 0 : index
    %c160 = arith.constant 160 : index
    %73 = vector.load %arg27[%c0_47, %c160] : memref<8x256xf32, #tpu.memory_space<vmem>>, vector<8x32xf32>
    tpu.vector_store %arg27[%c0_47, %c160], %72 {strides = array<i32>} : memref<8x256xf32, #tpu.memory_space<vmem>>, vector<8x32xf32>,
    %c6 = arith.constant 6 : index
    %c0_48 = arith.constant 0 : index
    %74 = tpu.strided_load %arg26[%c6, %c0_48] {strides = array<i32: 8, 1>} : memref<64x32xf32, #tpu.memory_space<vmem>>, vector<8x32xf32>
    %c0_49 = arith.constant 0 : index
    %c192 = arith.constant 192 : index
    %75 = vector.load %arg27[%c0_49, %c192] : memref<8x256xf32, #tpu.memory_space<vmem>>, vector<8x32xf32>
    tpu.vector_store %arg27[%c0_49, %c192], %74 {strides = array<i32>} : memref<8x256xf32, #tpu.memory_space<vmem>>, vector<8x32xf32>,
    %c7 = arith.constant 7 : index
    %c0_50 = arith.constant 0 : index
    %76 = tpu.strided_load %arg26[%c7, %c0_50] {strides = array<i32: 8, 1>} : memref<64x32xf32, #tpu.memory_space<vmem>>, vector<8x32xf32>
    %c0_51 = arith.constant 0 : index
    %c224 = arith.constant 224 : index
    %77 = vector.load %arg27[%c0_51, %c224] : memref<8x256xf32, #tpu.memory_space<vmem>>, vector<8x32xf32>
    tpu.vector_store %arg27[%c0_51, %c224], %76 {strides = array<i32>} : memref<8x256xf32, #tpu.memory_space<vmem>>, vector<8x32xf32>,
    %c0_52 = arith.constant 0 : index
    %c0_53 = arith.constant 0 : index
    %78 = vector.load %arg27[%c0_52, %c0_53] : memref<8x256xf32, #tpu.memory_space<vmem>>, vector<8x256xf32>
    %79 = arith.truncf %78 : vector<8x256xf32> to vector<8x256xbf16>
    %c0_54 = arith.constant 0 : index
    %c0_55 = arith.constant 0 : index
    %c0_56 = arith.constant 0 : index
    %80 = vector.load %arg12[%c0_54, %c0_55, %c0_56] : memref<2x256x64xbf16, #tpu.memory_space<vmem>>, vector<1x256x64xbf16>
    %81 = vector.shape_cast %80 : vector<1x256x64xbf16> to vector<256x64xbf16>
    %cst_57 = arith.constant dense<0.000000e+00> : vector<8x64xf32>
    %82 = tpu.matmul %79, %81, %cst_57 {dimension_numbers = #tpu.dot_dimension_numbers<[1], [0], [0], [1], [0, 0, 1, 1], [], []>} : vector<8x256xbf16>, vector<256x64xbf16>, vector<8x64xf32> -> vector<8x64xf32>
    %83 = vector.extract_strided_slice %82 {offsets = [0, 0], sizes = [8, 32], strides = [1, 1]} : vector<8x64xf32> to vector<8x32xf32>
    %c0_58 = arith.constant 0 : index
    %c0_59 = arith.constant 0 : index
    %c0_60 = arith.constant 0 : index
    %84 = vector.load %arg10[%c0_58, %c0_59, %c0_60] : memref<2x1x32xf32, #tpu.memory_space<vmem>>, vector<1x1x32xf32>
    %85 = vector.shape_cast %84 : vector<1x1x32xf32> to vector<1x32xf32>
    %c0_61 = arith.constant 0 : index
    %c0_62 = arith.constant 0 : index
    %c0_63 = arith.constant 0 : index
    %86 = vector.load %arg11[%c0_61, %c0_62, %c0_63] : memref<2x1x32xf32, #tpu.memory_space<vmem>>, vector<1x1x32xf32>
    %87 = vector.shape_cast %86 : vector<1x1x32xf32> to vector<1x32xf32>
    %cst_64 = arith.constant dense<0.000000e+00> : vector<8xf32>
    %88 = vector.multi_reduction <add>, %83, %cst_64 [1] : vector<8x32xf32> to vector<8xf32>
    %89 = vector.shape_cast %88 : vector<8xf32> to vector<8x1xf32>
    %cst_65 = arith.constant 3.200000e+01 : f32
    %90 = vector.broadcast %cst_65 : f32 to vector<8x1xf32>
    %91 = arith.divf %89, %90 : vector<8x1xf32>
    %92 = vector.broadcast %91 : vector<8x1xf32> to vector<8x32xf32>
    %93 = arith.subf %83, %92 : vector<8x32xf32>
    %94 = arith.mulf %93, %93 : vector<8x32xf32>
    %cst_66 = arith.constant dense<0.000000e+00> : vector<8xf32>
    %95 = vector.multi_reduction <add>, %94, %cst_66 [1] : vector<8x32xf32> to vector<8xf32>
    %96 = vector.shape_cast %95 : vector<8xf32> to vector<8x1xf32>
    %cst_67 = arith.constant 3.200000e+01 : f32
    %97 = vector.broadcast %cst_67 : f32 to vector<8x1xf32>
    %98 = arith.divf %96, %97 : vector<8x1xf32>
    %99 = vector.broadcast %91 : vector<8x1xf32> to vector<8x32xf32>
    %100 = arith.subf %83, %99 : vector<8x32xf32>
    %cst_68 = arith.constant 9.99999974E-6 : f32
    %101 = vector.broadcast %cst_68 : f32 to vector<8x1xf32>
    %102 = arith.addf %98, %101 : vector<8x1xf32>
    %103 = math.rsqrt %102 : vector<8x1xf32>
    %104 = vector.broadcast %103 : vector<8x1xf32> to vector<8x32xf32>
    %105 = arith.mulf %100, %104 : vector<8x32xf32>
    %106 = vector.broadcast %85 : vector<1x32xf32> to vector<8x32xf32>
    %107 = arith.mulf %105, %106 : vector<8x32xf32>
    %108 = vector.broadcast %87 : vector<1x32xf32> to vector<8x32xf32>
    %109 = arith.addf %107, %108 : vector<8x32xf32>
    %110 = vector.extract_strided_slice %82 {offsets = [0, 32], sizes = [8, 32], strides = [1, 1]} : vector<8x64xf32> to vector<8x32xf32>
    %c0_69 = arith.constant 0 : index
    %c0_70 = arith.constant 0 : index
    %c0_71 = arith.constant 0 : index
    %111 = vector.load %arg10[%c0_69, %c0_70, %c0_71] : memref<2x1x32xf32, #tpu.memory_space<vmem>>, vector<1x1x32xf32>
    %112 = vector.shape_cast %111 : vector<1x1x32xf32> to vector<1x32xf32>
    %c0_72 = arith.constant 0 : index
    %c0_73 = arith.constant 0 : index
    %c0_74 = arith.constant 0 : index
    %113 = vector.load %arg11[%c0_72, %c0_73, %c0_74] : memref<2x1x32xf32, #tpu.memory_space<vmem>>, vector<1x1x32xf32>
    %114 = vector.shape_cast %113 : vector<1x1x32xf32> to vector<1x32xf32>
    %cst_75 = arith.constant dense<0.000000e+00> : vector<8xf32>
    %115 = vector.multi_reduction <add>, %110, %cst_75 [1] : vector<8x32xf32> to vector<8xf32>
    %116 = vector.shape_cast %115 : vector<8xf32> to vector<8x1xf32>
    %cst_76 = arith.constant 3.200000e+01 : f32
    %117 = vector.broadcast %cst_76 : f32 to vector<8x1xf32>
    %118 = arith.divf %116, %117 : vector<8x1xf32>
    %119 = vector.broadcast %118 : vector<8x1xf32> to vector<8x32xf32>
    %120 = arith.subf %110, %119 : vector<8x32xf32>
    %121 = arith.mulf %120, %120 : vector<8x32xf32>
    %cst_77 = arith.constant dense<0.000000e+00> : vector<8xf32>
    %122 = vector.multi_reduction <add>, %121, %cst_77 [1] : vector<8x32xf32> to vector<8xf32>
    %123 = vector.shape_cast %122 : vector<8xf32> to vector<8x1xf32>
    %cst_78 = arith.constant 3.200000e+01 : f32
    %124 = vector.broadcast %cst_78 : f32 to vector<8x1xf32>
    %125 = arith.divf %123, %124 : vector<8x1xf32>
    %126 = vector.broadcast %118 : vector<8x1xf32> to vector<8x32xf32>
    %127 = arith.subf %110, %126 : vector<8x32xf32>
    %cst_79 = arith.constant 9.99999974E-6 : f32
    %128 = vector.broadcast %cst_79 : f32 to vector<8x1xf32>
    %129 = arith.addf %125, %128 : vector<8x1xf32>
    %130 = math.rsqrt %129 : vector<8x1xf32>
    %131 = vector.broadcast %130 : vector<8x1xf32> to vector<8x32xf32>
    %132 = arith.mulf %127, %131 : vector<8x32xf32>
    %133 = vector.broadcast %112 : vector<1x32xf32> to vector<8x32xf32>
    %134 = arith.mulf %132, %133 : vector<8x32xf32>
    %135 = vector.broadcast %114 : vector<1x32xf32> to vector<8x32xf32>
    %136 = arith.addf %134, %135 : vector<8x32xf32>
    %c0_80 = arith.constant 0 : index
    %c0_81 = arith.constant 0 : index
    %c0_82 = arith.constant 0 : index
    %137 = vector.load %arg13[%c0_80, %c0_81, %c0_82] : memref<2x64x64xbf16, #tpu.memory_space<vmem>>, vector<1x64x64xbf16>
    %138 = vector.shape_cast %137 : vector<1x64x64xbf16> to vector<64x64xbf16>
    %139 = arith.truncf %60 : vector<64x32xf32> to vector<64x32xbf16>
    %cst_83 = arith.constant dense<0.000000e+00> : vector<64x32xf32>
    %140 = tpu.matmul %138, %139, %cst_83 {dimension_numbers = #tpu.dot_dimension_numbers<[1], [0], [0], [1], [0, 0, 1, 1], [], []>} : vector<64x64xbf16>, vector<64x32xbf16>, vector<64x32xf32> -> vector<64x32xf32>
    %c0_84 = arith.constant 0 : index
    %c0_85 = arith.constant 0 : index
    %c0_86 = arith.constant 0 : index
    %141 = vector.load %arg14[%c0_84, %c0_85, %c0_86] : memref<2x8x8xbf16, #tpu.memory_space<vmem>>, vector<1x8x8xbf16>
    %142 = vector.shape_cast %141 : vector<1x8x8xbf16> to vector<8x8xbf16>
    %143 = arith.truncf %109 : vector<8x32xf32> to vector<8x32xbf16>
    %cst_87 = arith.constant dense<0.000000e+00> : vector<8x32xf32>
    %144 = tpu.matmul %142, %143, %cst_87 {dimension_numbers = #tpu.dot_dimension_numbers<[1], [0], [0], [1], [0, 0, 1, 1], [], []>} : vector<8x8xbf16>, vector<8x32xbf16>, vector<8x32xf32> -> vector<8x32xf32>
    %c0_88 = arith.constant 0 : index
    %c0_89 = arith.constant 0 : index
    %c0_90 = arith.constant 0 : index
    %145 = vector.load %arg15[%c0_88, %c0_89, %c0_90] : memref<2x8x8xbf16, #tpu.memory_space<vmem>>, vector<1x8x8xbf16>
    %146 = vector.shape_cast %145 : vector<1x8x8xbf16> to vector<8x8xbf16>
    %147 = arith.truncf %136 : vector<8x32xf32> to vector<8x32xbf16>
    %cst_91 = arith.constant dense<0.000000e+00> : vector<8x32xf32>
    %148 = tpu.matmul %146, %147, %cst_91 {dimension_numbers = #tpu.dot_dimension_numbers<[1], [0], [0], [1], [0, 0, 1, 1], [], []>} : vector<8x8xbf16>, vector<8x32xbf16>, vector<8x32xf32> -> vector<8x32xf32>
    %149 = arith.truncf %140 : vector<64x32xf32> to vector<64x32xbf16>
    %150 = arith.truncf %144 : vector<8x32xf32> to vector<8x32xbf16>
    %cst_92 = arith.constant dense<0.000000e+00> : vector<64x8xf32>
    %151 = tpu.matmul %149, %150, %cst_92 {dimension_numbers = #tpu.dot_dimension_numbers<[1], [1], [0], [0], [0, 0, 1, 0], [], []>} : vector<64x32xbf16>, vector<8x32xbf16>, vector<64x8xf32> -> vector<64x8xf32>
    %cst_93 = arith.constant 0.176776692 : f32
    %152 = vector.broadcast %cst_93 : f32 to vector<64x8xf32>
    %153 = arith.mulf %151, %152 : vector<64x8xf32>
    %154 = arith.addf %153, %2 : vector<64x8xf32>
    %cst_94 = arith.constant dense<0xFF800000> : vector<64xf32>
    %155 = vector.multi_reduction <maximumf>, %154, %cst_94 [1] : vector<64x8xf32> to vector<64xf32>
    %156 = vector.shape_cast %155 : vector<64xf32> to vector<64x1xf32>
    %157 = vector.broadcast %156 : vector<64x1xf32> to vector<64x8xf32>
    %158 = arith.subf %154, %157 : vector<64x8xf32>
    %159 = math.exp %158 : vector<64x8xf32>
    %cst_95 = arith.constant dense<0.000000e+00> : vector<64xf32>
    %160 = vector.multi_reduction <add>, %159, %cst_95 [1] : vector<64x8xf32> to vector<64xf32>
    %161 = vector.shape_cast %160 : vector<64xf32> to vector<64x1xf32>
    %162 = tpu.reciprocal %161 {approx = true} : vector<64x1xf32> -> vector<64x1xf32>
    %163 = vector.broadcast %162 : vector<64x1xf32> to vector<64x8xf32>
    %164 = arith.mulf %159, %163 : vector<64x8xf32>
    %165 = arith.truncf %164 : vector<64x8xf32> to vector<64x8xbf16>
    %166 = arith.truncf %148 : vector<8x32xf32> to vector<8x32xbf16>
    %cst_96 = arith.constant dense<0.000000e+00> : vector<64x32xf32>
    %167 = tpu.matmul %165, %166, %cst_96 {dimension_numbers = #tpu.dot_dimension_numbers<[1], [0], [0], [1], [0, 0, 1, 1], [], []>} : vector<64x8xbf16>, vector<8x32xbf16>, vector<64x32xf32> -> vector<64x32xf32>
    %c0_97 = arith.constant 0 : index
    %c0_98 = arith.constant 0 : index
    %c0_99 = arith.constant 0 : index
    %168 = vector.load %arg16[%c0_97, %c0_98, %c0_99] : memref<2x64x64xbf16, #tpu.memory_space<vmem>>, vector<1x64x64xbf16>
    %169 = vector.shape_cast %168 : vector<1x64x64xbf16> to vector<64x64xbf16>
    %170 = arith.truncf %167 : vector<64x32xf32> to vector<64x32xbf16>
    %cst_100 = arith.constant dense<0.000000e+00> : vector<64x32xf32>
    %171 = tpu.matmul %169, %170, %cst_100 {dimension_numbers = #tpu.dot_dimension_numbers<[1], [0], [0], [1], [0, 0, 1, 1], [], []>} : vector<64x64xbf16>, vector<64x32xbf16>, vector<64x32xf32> -> vector<64x32xf32>
    %172 = arith.addf %171, %34 : vector<64x32xf32>
    %c0_101 = arith.constant 0 : index
    %c0_102 = arith.constant 0 : index
    %c0_103 = arith.constant 0 : index
    %173 = vector.load %arg17[%c0_101, %c0_102, %c0_103] : memref<2x1x32xf32, #tpu.memory_space<vmem>>, vector<1x1x32xf32>
    %174 = vector.shape_cast %173 : vector<1x1x32xf32> to vector<1x32xf32>
    %c0_104 = arith.constant 0 : index
    %c0_105 = arith.constant 0 : index
    %c0_106 = arith.constant 0 : index
    %175 = vector.load %arg18[%c0_104, %c0_105, %c0_106] : memref<2x1x32xf32, #tpu.memory_space<vmem>>, vector<1x1x32xf32>
    %176 = vector.shape_cast %175 : vector<1x1x32xf32> to vector<1x32xf32>
    %cst_107 = arith.constant dense<0.000000e+00> : vector<64xf32>
    %177 = vector.multi_reduction <add>, %172, %cst_107 [1] : vector<64x32xf32> to vector<64xf32>
    %178 = vector.shape_cast %177 : vector<64xf32> to vector<64x1xf32>
    %cst_108 = arith.constant 3.200000e+01 : f32
    %179 = vector.broadcast %cst_108 : f32 to vector<64x1xf32>
    %180 = arith.divf %178, %179 : vector<64x1xf32>
    %181 = vector.broadcast %180 : vector<64x1xf32> to vector<64x32xf32>
    %182 = arith.subf %172, %181 : vector<64x32xf32>
    %183 = arith.mulf %182, %182 : vector<64x32xf32>
    %cst_109 = arith.constant dense<0.000000e+00> : vector<64xf32>
    %184 = vector.multi_reduction <add>, %183, %cst_109 [1] : vector<64x32xf32> to vector<64xf32>
    %185 = vector.shape_cast %184 : vector<64xf32> to vector<64x1xf32>
    %cst_110 = arith.constant 3.200000e+01 : f32
    %186 = vector.broadcast %cst_110 : f32 to vector<64x1xf32>
    %187 = arith.divf %185, %186 : vector<64x1xf32>
    %188 = vector.broadcast %180 : vector<64x1xf32> to vector<64x32xf32>
    %189 = arith.subf %172, %188 : vector<64x32xf32>
    %cst_111 = arith.constant 9.99999974E-6 : f32
    %190 = vector.broadcast %cst_111 : f32 to vector<64x1xf32>
    %191 = arith.addf %187, %190 : vector<64x1xf32>
    %192 = math.rsqrt %191 : vector<64x1xf32>
    %193 = vector.broadcast %192 : vector<64x1xf32> to vector<64x32xf32>
    %194 = arith.mulf %189, %193 : vector<64x32xf32>
    %195 = vector.broadcast %174 : vector<1x32xf32> to vector<64x32xf32>
    %196 = arith.mulf %194, %195 : vector<64x32xf32>
    %197 = vector.broadcast %176 : vector<1x32xf32> to vector<64x32xf32>
    %198 = arith.addf %196, %197 : vector<64x32xf32>
    %199 = arith.truncf %198 : vector<64x32xf32> to vector<64x32xbf16>
    %c0_112 = arith.constant 0 : index
    %c0_113 = arith.constant 0 : index
    %c0_114 = arith.constant 0 : index
    %200 = vector.load %arg19[%c0_112, %c0_113, %c0_114] : memref<2x32x32xbf16, #tpu.memory_space<vmem>>, vector<1x32x32xbf16>
    %201 = vector.shape_cast %200 : vector<1x32x32xbf16> to vector<32x32xbf16>
    %cst_115 = arith.constant dense<0.000000e+00> : vector<64x32xf32>
    %202 = tpu.matmul %199, %201, %cst_115 {dimension_numbers = #tpu.dot_dimension_numbers<[1], [0], [0], [1], [0, 0, 1, 1], [], []>} : vector<64x32xbf16>, vector<32x32xbf16>, vector<64x32xf32> -> vector<64x32xf32>
    %c0_116 = arith.constant 0 : index
    %c0_117 = arith.constant 0 : index
    %c0_118 = arith.constant 0 : index
    %203 = vector.load %arg20[%c0_116, %c0_117, %c0_118] : memref<2x1x32xf32, #tpu.memory_space<vmem>>, vector<1x1x32xf32>
    %204 = vector.shape_cast %203 : vector<1x1x32xf32> to vector<1x32xf32>
    %205 = vector.broadcast %204 : vector<1x32xf32> to vector<64x32xf32>
    %206 = arith.addf %202, %205 : vector<64x32xf32>
    %cst_119 = arith.constant 5.000000e-01 : f32
    %207 = vector.broadcast %cst_119 : f32 to vector<64x32xf32>
    %208 = arith.mulf %207, %206 : vector<64x32xf32>
    %cst_120 = arith.constant 1.41421354 : f32
    %209 = vector.broadcast %cst_120 : f32 to vector<64x32xf32>
    %210 = arith.divf %206, %209 : vector<64x32xf32>
    %211 = math.erf %210 : vector<64x32xf32>
    %cst_121 = arith.constant 1.000000e+00 : f32
    %212 = vector.broadcast %cst_121 : f32 to vector<64x32xf32>
    %213 = arith.addf %212, %211 : vector<64x32xf32>
    %214 = arith.mulf %208, %213 : vector<64x32xf32>
    %c16 = arith.constant 16 : index
    %c0_122 = arith.constant 0 : index
    %215 = vector.load %arg28[%c16, %c0_122] : memref<96x32xf32, #tpu.memory_space<vmem>>, vector<64x32xf32>
    tpu.vector_store %arg28[%c16, %c0_122], %214 {strides = array<i32>} : memref<96x32xf32, #tpu.memory_space<vmem>>, vector<64x32xf32>,
    %c7_123 = arith.constant 7 : index
    %c0_124 = arith.constant 0 : index
    %216 = vector.load %arg28[%c7_123, %c0_124] : memref<96x32xf32, #tpu.memory_space<vmem>>, vector<64x32xf32>
    %c0_125 = arith.constant 0 : index
    %c0_126 = arith.constant 0 : index
    %217 = vector.load %arg29[%c0_125, %c0_126] : memref<64x288xf32, #tpu.memory_space<vmem>>, vector<64x32xf32>
    tpu.vector_store %arg29[%c0_125, %c0_126], %216 {strides = array<i32>} : memref<64x288xf32, #tpu.memory_space<vmem>>, vector<64x32xf32>,
    %c8 = arith.constant 8 : index
    %c0_127 = arith.constant 0 : index
    %218 = vector.load %arg28[%c8, %c0_127] : memref<96x32xf32, #tpu.memory_space<vmem>>, vector<64x32xf32>
    %c0_128 = arith.constant 0 : index
    %c32_129 = arith.constant 32 : index
    %219 = vector.load %arg29[%c0_128, %c32_129] : memref<64x288xf32, #tpu.memory_space<vmem>>, vector<64x32xf32>
    tpu.vector_store %arg29[%c0_128, %c32_129], %218 {strides = array<i32>} : memref<64x288xf32, #tpu.memory_space<vmem>>, vector<64x32xf32>,
    %c9 = arith.constant 9 : index
    %c0_130 = arith.constant 0 : index
    %220 = vector.load %arg28[%c9, %c0_130] : memref<96x32xf32, #tpu.memory_space<vmem>>, vector<64x32xf32>
    %c0_131 = arith.constant 0 : index
    %c64_132 = arith.constant 64 : index
    %221 = vector.load %arg29[%c0_131, %c64_132] : memref<64x288xf32, #tpu.memory_space<vmem>>, vector<64x32xf32>
    tpu.vector_store %arg29[%c0_131, %c64_132], %220 {strides = array<i32>} : memref<64x288xf32, #tpu.memory_space<vmem>>, vector<64x32xf32>,
    %c15 = arith.constant 15 : index
    %c0_133 = arith.constant 0 : index
    %222 = vector.load %arg28[%c15, %c0_133] : memref<96x32xf32, #tpu.memory_space<vmem>>, vector<64x32xf32>
    %c0_134 = arith.constant 0 : index
    %c96_135 = arith.constant 96 : index
    %223 = vector.load %arg29[%c0_134, %c96_135] : memref<64x288xf32, #tpu.memory_space<vmem>>, vector<64x32xf32>
    tpu.vector_store %arg29[%c0_134, %c96_135], %222 {strides = array<i32>} : memref<64x288xf32, #tpu.memory_space<vmem>>, vector<64x32xf32>,
    %c16_136 = arith.constant 16 : index
    %c0_137 = arith.constant 0 : index
    %224 = vector.load %arg28[%c16_136, %c0_137] : memref<96x32xf32, #tpu.memory_space<vmem>>, vector<64x32xf32>
    %c0_138 = arith.constant 0 : index
    %c128_139 = arith.constant 128 : index
    %225 = vector.load %arg29[%c0_138, %c128_139] : memref<64x288xf32, #tpu.memory_space<vmem>>, vector<64x32xf32>
    tpu.vector_store %arg29[%c0_138, %c128_139], %224 {strides = array<i32>} : memref<64x288xf32, #tpu.memory_space<vmem>>, vector<64x32xf32>,
    %c17 = arith.constant 17 : index
    %c0_140 = arith.constant 0 : index
    %226 = vector.load %arg28[%c17, %c0_140] : memref<96x32xf32, #tpu.memory_space<vmem>>, vector<64x32xf32>
    %c0_141 = arith.constant 0 : index
    %c160_142 = arith.constant 160 : index
    %227 = vector.load %arg29[%c0_141, %c160_142] : memref<64x288xf32, #tpu.memory_space<vmem>>, vector<64x32xf32>
    tpu.vector_store %arg29[%c0_141, %c160_142], %226 {strides = array<i32>} : memref<64x288xf32, #tpu.memory_space<vmem>>, vector<64x32xf32>,
    %c23 = arith.constant 23 : index
    %c0_143 = arith.constant 0 : index
    %228 = vector.load %arg28[%c23, %c0_143] : memref<96x32xf32, #tpu.memory_space<vmem>>, vector<64x32xf32>
    %c0_144 = arith.constant 0 : index
    %c192_145 = arith.constant 192 : index
    %229 = vector.load %arg29[%c0_144, %c192_145] : memref<64x288xf32, #tpu.memory_space<vmem>>, vector<64x32xf32>
    tpu.vector_store %arg29[%c0_144, %c192_145], %228 {strides = array<i32>} : memref<64x288xf32, #tpu.memory_space<vmem>>, vector<64x32xf32>,
    %c24 = arith.constant 24 : index
    %c0_146 = arith.constant 0 : index
    %230 = vector.load %arg28[%c24, %c0_146] : memref<96x32xf32, #tpu.memory_space<vmem>>, vector<64x32xf32>
    %c0_147 = arith.constant 0 : index
    %c224_148 = arith.constant 224 : index
    %231 = vector.load %arg29[%c0_147, %c224_148] : memref<64x288xf32, #tpu.memory_space<vmem>>, vector<64x32xf32>
    tpu.vector_store %arg29[%c0_147, %c224_148], %230 {strides = array<i32>} : memref<64x288xf32, #tpu.memory_space<vmem>>, vector<64x32xf32>,
    %c25 = arith.constant 25 : index
    %c0_149 = arith.constant 0 : index
    %232 = vector.load %arg28[%c25, %c0_149] : memref<96x32xf32, #tpu.memory_space<vmem>>, vector<64x32xf32>
    %c0_150 = arith.constant 0 : index
    %c256 = arith.constant 256 : index
    %233 = vector.load %arg29[%c0_150, %c256] : memref<64x288xf32, #tpu.memory_space<vmem>>, vector<64x32xf32>
    tpu.vector_store %arg29[%c0_150, %c256], %232 {strides = array<i32>} : memref<64x288xf32, #tpu.memory_space<vmem>>, vector<64x32xf32>,
    %c0_151 = arith.constant 0 : index
    %c0_152 = arith.constant 0 : index
    %234 = vector.load %arg29[%c0_151, %c0_152] : memref<64x288xf32, #tpu.memory_space<vmem>>, vector<64x288xf32>
    %235 = arith.mulf %234, %3 : vector<64x288xf32>
    %236 = arith.truncf %235 : vector<64x288xf32> to vector<64x288xbf16>
    %c0_153 = arith.constant 0 : index
    %c0_154 = arith.constant 0 : index
    %c0_155 = arith.constant 0 : index
    %237 = vector.load %arg21[%c0_153, %c0_154, %c0_155] : memref<2x288x64xbf16, #tpu.memory_space<vmem>>, vector<1x288x64xbf16>
    %238 = vector.shape_cast %237 : vector<1x288x64xbf16> to vector<288x64xbf16>
    %cst_156 = arith.constant dense<0.000000e+00> : vector<64x64xf32>
    %239 = tpu.matmul %236, %238, %cst_156 {dimension_numbers = #tpu.dot_dimension_numbers<[1], [0], [0], [1], [0, 0, 1, 1], [], []>} : vector<64x288xbf16>, vector<288x64xbf16>, vector<64x64xf32> -> vector<64x64xf32>
    %c0_157 = arith.constant 0 : index
    %c0_158 = arith.constant 0 : index
    %c0_159 = arith.constant 0 : index
    %240 = vector.load %arg22[%c0_157, %c0_158, %c0_159] : memref<2x1x64xf32, #tpu.memory_space<vmem>>, vector<1x1x64xf32>
    %241 = vector.shape_cast %240 : vector<1x1x64xf32> to vector<1x64xf32>
    %242 = vector.broadcast %241 : vector<1x64xf32> to vector<64x64xf32>
    %243 = arith.addf %239, %242 : vector<64x64xf32>
    %cst_160 = arith.constant 5.000000e-01 : f32
    %244 = vector.broadcast %cst_160 : f32 to vector<64x64xf32>
    %245 = arith.mulf %244, %243 : vector<64x64xf32>
    %cst_161 = arith.constant 1.41421354 : f32
    %246 = vector.broadcast %cst_161 : f32 to vector<64x64xf32>
    %247 = arith.divf %243, %246 : vector<64x64xf32>
    %248 = math.erf %247 : vector<64x64xf32>
    %cst_162 = arith.constant 1.000000e+00 : f32
    %249 = vector.broadcast %cst_162 : f32 to vector<64x64xf32>
    %250 = arith.addf %249, %248 : vector<64x64xf32>
    %251 = arith.mulf %245, %250 : vector<64x64xf32>
    %252 = arith.truncf %251 : vector<64x64xf32> to vector<64x64xbf16>
    %c0_163 = arith.constant 0 : index
    %c0_164 = arith.constant 0 : index
    %c0_165 = arith.constant 0 : index
    %253 = vector.load %arg23[%c0_163, %c0_164, %c0_165] : memref<2x64x32xbf16, #tpu.memory_space<vmem>>, vector<1x64x32xbf16>
    %254 = vector.shape_cast %253 : vector<1x64x32xbf16> to vector<64x32xbf16>
    %cst_166 = arith.constant dense<0.000000e+00> : vector<64x32xf32>
    %255 = tpu.matmul %252, %254, %cst_166 {dimension_numbers = #tpu.dot_dimension_numbers<[1], [0], [0], [1], [0, 0, 1, 1], [], []>} : vector<64x64xbf16>, vector<64x32xbf16>, vector<64x32xf32> -> vector<64x32xf32>
    %c0_167 = arith.constant 0 : index
    %c0_168 = arith.constant 0 : index
    %c0_169 = arith.constant 0 : index
    %256 = vector.load %arg24[%c0_167, %c0_168, %c0_169] : memref<2x1x32xf32, #tpu.memory_space<vmem>>, vector<1x1x32xf32>
    %257 = vector.shape_cast %256 : vector<1x1x32xf32> to vector<1x32xf32>
    %258 = vector.broadcast %257 : vector<1x32xf32> to vector<64x32xf32>
    %259 = arith.addf %255, %258 : vector<64x32xf32>
    %260 = arith.addf %259, %172 : vector<64x32xf32>
    %c1_170 = arith.constant 1 : index
    %c0_171 = arith.constant 0 : index
    %c0_172 = arith.constant 0 : index
    %261 = vector.load %arg8[%c1_170, %c0_171, %c0_172] : memref<2x1x32xf32, #tpu.memory_space<vmem>>, vector<1x1x32xf32>
    %262 = vector.shape_cast %261 : vector<1x1x32xf32> to vector<1x32xf32>
    %c1_173 = arith.constant 1 : index
    %c0_174 = arith.constant 0 : index
    %c0_175 = arith.constant 0 : index
    %263 = vector.load %arg9[%c1_173, %c0_174, %c0_175] : memref<2x1x32xf32, #tpu.memory_space<vmem>>, vector<1x1x32xf32>
    %264 = vector.shape_cast %263 : vector<1x1x32xf32> to vector<1x32xf32>
    %cst_176 = arith.constant dense<0.000000e+00> : vector<64xf32>
    %265 = vector.multi_reduction <add>, %260, %cst_176 [1] : vector<64x32xf32> to vector<64xf32>
    %266 = vector.shape_cast %265 : vector<64xf32> to vector<64x1xf32>
    %cst_177 = arith.constant 3.200000e+01 : f32
    %267 = vector.broadcast %cst_177 : f32 to vector<64x1xf32>
    %268 = arith.divf %266, %267 : vector<64x1xf32>
    %269 = vector.broadcast %268 : vector<64x1xf32> to vector<64x32xf32>
    %270 = arith.subf %260, %269 : vector<64x32xf32>
    %271 = arith.mulf %270, %270 : vector<64x32xf32>
    %cst_178 = arith.constant dense<0.000000e+00> : vector<64xf32>
    %272 = vector.multi_reduction <add>, %271, %cst_178 [1] : vector<64x32xf32> to vector<64xf32>
    %273 = vector.shape_cast %272 : vector<64xf32> to vector<64x1xf32>
    %cst_179 = arith.constant 3.200000e+01 : f32
    %274 = vector.broadcast %cst_179 : f32 to vector<64x1xf32>
    %275 = arith.divf %273, %274 : vector<64x1xf32>
    %276 = vector.broadcast %268 : vector<64x1xf32> to vector<64x32xf32>
    %277 = arith.subf %260, %276 : vector<64x32xf32>
    %cst_180 = arith.constant 9.99999974E-6 : f32
    %278 = vector.broadcast %cst_180 : f32 to vector<64x1xf32>
    %279 = arith.addf %275, %278 : vector<64x1xf32>
    %280 = math.rsqrt %279 : vector<64x1xf32>
    %281 = vector.broadcast %280 : vector<64x1xf32> to vector<64x32xf32>
    %282 = arith.mulf %277, %281 : vector<64x32xf32>
    %283 = vector.broadcast %262 : vector<1x32xf32> to vector<64x32xf32>
    %284 = arith.mulf %282, %283 : vector<64x32xf32>
    %285 = vector.broadcast %264 : vector<1x32xf32> to vector<64x32xf32>
    %286 = arith.addf %284, %285 : vector<64x32xf32>
    %c0_181 = arith.constant 0 : index
    %c0_182 = arith.constant 0 : index
    %287 = vector.load %arg26[%c0_181, %c0_182] : memref<64x32xf32, #tpu.memory_space<vmem>>, vector<64x32xf32>
    tpu.vector_store %arg26[%c0_181, %c0_182], %286 {strides = array<i32>} : memref<64x32xf32, #tpu.memory_space<vmem>>, vector<64x32xf32>,
    %c0_183 = arith.constant 0 : index
    %c0_184 = arith.constant 0 : index
    %288 = tpu.strided_load %arg26[%c0_183, %c0_184] {strides = array<i32: 8, 1>} : memref<64x32xf32, #tpu.memory_space<vmem>>, vector<8x32xf32>
    %c0_185 = arith.constant 0 : index
    %c0_186 = arith.constant 0 : index
    %289 = vector.load %arg27[%c0_185, %c0_186] : memref<8x256xf32, #tpu.memory_space<vmem>>, vector<8x32xf32>
    tpu.vector_store %arg27[%c0_185, %c0_186], %288 {strides = array<i32>} : memref<8x256xf32, #tpu.memory_space<vmem>>, vector<8x32xf32>,
    %c1_187 = arith.constant 1 : index
    %c0_188 = arith.constant 0 : index
    %290 = tpu.strided_load %arg26[%c1_187, %c0_188] {strides = array<i32: 8, 1>} : memref<64x32xf32, #tpu.memory_space<vmem>>, vector<8x32xf32>
    %c0_189 = arith.constant 0 : index
    %c32_190 = arith.constant 32 : index
    %291 = vector.load %arg27[%c0_189, %c32_190] : memref<8x256xf32, #tpu.memory_space<vmem>>, vector<8x32xf32>
    tpu.vector_store %arg27[%c0_189, %c32_190], %290 {strides = array<i32>} : memref<8x256xf32, #tpu.memory_space<vmem>>, vector<8x32xf32>,
    %c2_191 = arith.constant 2 : index
    %c0_192 = arith.constant 0 : index
    %292 = tpu.strided_load %arg26[%c2_191, %c0_192] {strides = array<i32: 8, 1>} : memref<64x32xf32, #tpu.memory_space<vmem>>, vector<8x32xf32>
    %c0_193 = arith.constant 0 : index
    %c64_194 = arith.constant 64 : index
    %293 = vector.load %arg27[%c0_193, %c64_194] : memref<8x256xf32, #tpu.memory_space<vmem>>, vector<8x32xf32>
    tpu.vector_store %arg27[%c0_193, %c64_194], %292 {strides = array<i32>} : memref<8x256xf32, #tpu.memory_space<vmem>>, vector<8x32xf32>,
    %c3_195 = arith.constant 3 : index
    %c0_196 = arith.constant 0 : index
    %294 = tpu.strided_load %arg26[%c3_195, %c0_196] {strides = array<i32: 8, 1>} : memref<64x32xf32, #tpu.memory_space<vmem>>, vector<8x32xf32>
    %c0_197 = arith.constant 0 : index
    %c96_198 = arith.constant 96 : index
    %295 = vector.load %arg27[%c0_197, %c96_198] : memref<8x256xf32, #tpu.memory_space<vmem>>, vector<8x32xf32>
    tpu.vector_store %arg27[%c0_197, %c96_198], %294 {strides = array<i32>} : memref<8x256xf32, #tpu.memory_space<vmem>>, vector<8x32xf32>,
    %c4_199 = arith.constant 4 : index
    %c0_200 = arith.constant 0 : index
    %296 = tpu.strided_load %arg26[%c4_199, %c0_200] {strides = array<i32: 8, 1>} : memref<64x32xf32, #tpu.memory_space<vmem>>, vector<8x32xf32>
    %c0_201 = arith.constant 0 : index
    %c128_202 = arith.constant 128 : index
    %297 = vector.load %arg27[%c0_201, %c128_202] : memref<8x256xf32, #tpu.memory_space<vmem>>, vector<8x32xf32>
    tpu.vector_store %arg27[%c0_201, %c128_202], %296 {strides = array<i32>} : memref<8x256xf32, #tpu.memory_space<vmem>>, vector<8x32xf32>,
    %c5_203 = arith.constant 5 : index
    %c0_204 = arith.constant 0 : index
    %298 = tpu.strided_load %arg26[%c5_203, %c0_204] {strides = array<i32: 8, 1>} : memref<64x32xf32, #tpu.memory_space<vmem>>, vector<8x32xf32>
    %c0_205 = arith.constant 0 : index
    %c160_206 = arith.constant 160 : index
    %299 = vector.load %arg27[%c0_205, %c160_206] : memref<8x256xf32, #tpu.memory_space<vmem>>, vector<8x32xf32>
    tpu.vector_store %arg27[%c0_205, %c160_206], %298 {strides = array<i32>} : memref<8x256xf32, #tpu.memory_space<vmem>>, vector<8x32xf32>,
    %c6_207 = arith.constant 6 : index
    %c0_208 = arith.constant 0 : index
    %300 = tpu.strided_load %arg26[%c6_207, %c0_208] {strides = array<i32: 8, 1>} : memref<64x32xf32, #tpu.memory_space<vmem>>, vector<8x32xf32>
    %c0_209 = arith.constant 0 : index
    %c192_210 = arith.constant 192 : index
    %301 = vector.load %arg27[%c0_209, %c192_210] : memref<8x256xf32, #tpu.memory_space<vmem>>, vector<8x32xf32>
    tpu.vector_store %arg27[%c0_209, %c192_210], %300 {strides = array<i32>} : memref<8x256xf32, #tpu.memory_space<vmem>>, vector<8x32xf32>,
    %c7_211 = arith.constant 7 : index
    %c0_212 = arith.constant 0 : index
    %302 = tpu.strided_load %arg26[%c7_211, %c0_212] {strides = array<i32: 8, 1>} : memref<64x32xf32, #tpu.memory_space<vmem>>, vector<8x32xf32>
    %c0_213 = arith.constant 0 : index
    %c224_214 = arith.constant 224 : index
    %303 = vector.load %arg27[%c0_213, %c224_214] : memref<8x256xf32, #tpu.memory_space<vmem>>, vector<8x32xf32>
    tpu.vector_store %arg27[%c0_213, %c224_214], %302 {strides = array<i32>} : memref<8x256xf32, #tpu.memory_space<vmem>>, vector<8x32xf32>,
    %c0_215 = arith.constant 0 : index
    %c0_216 = arith.constant 0 : index
    %304 = vector.load %arg27[%c0_215, %c0_216] : memref<8x256xf32, #tpu.memory_space<vmem>>, vector<8x256xf32>
    %305 = arith.truncf %304 : vector<8x256xf32> to vector<8x256xbf16>
    %c1_217 = arith.constant 1 : index
    %c0_218 = arith.constant 0 : index
    %c0_219 = arith.constant 0 : index
    %306 = vector.load %arg12[%c1_217, %c0_218, %c0_219] : memref<2x256x64xbf16, #tpu.memory_space<vmem>>, vector<1x256x64xbf16>
    %307 = vector.shape_cast %306 : vector<1x256x64xbf16> to vector<256x64xbf16>
    %cst_220 = arith.constant dense<0.000000e+00> : vector<8x64xf32>
    %308 = tpu.matmul %305, %307, %cst_220 {dimension_numbers = #tpu.dot_dimension_numbers<[1], [0], [0], [1], [0, 0, 1, 1], [], []>} : vector<8x256xbf16>, vector<256x64xbf16>, vector<8x64xf32> -> vector<8x64xf32>
    %309 = vector.extract_strided_slice %308 {offsets = [0, 0], sizes = [8, 32], strides = [1, 1]} : vector<8x64xf32> to vector<8x32xf32>
    %c1_221 = arith.constant 1 : index
    %c0_222 = arith.constant 0 : index
    %c0_223 = arith.constant 0 : index
    %310 = vector.load %arg10[%c1_221, %c0_222, %c0_223] : memref<2x1x32xf32, #tpu.memory_space<vmem>>, vector<1x1x32xf32>
    %311 = vector.shape_cast %310 : vector<1x1x32xf32> to vector<1x32xf32>
    %c1_224 = arith.constant 1 : index
    %c0_225 = arith.constant 0 : index
    %c0_226 = arith.constant 0 : index
    %312 = vector.load %arg11[%c1_224, %c0_225, %c0_226] : memref<2x1x32xf32, #tpu.memory_space<vmem>>, vector<1x1x32xf32>
    %313 = vector.shape_cast %312 : vector<1x1x32xf32> to vector<1x32xf32>
    %cst_227 = arith.constant dense<0.000000e+00> : vector<8xf32>
    %314 = vector.multi_reduction <add>, %309, %cst_227 [1] : vector<8x32xf32> to vector<8xf32>
    %315 = vector.shape_cast %314 : vector<8xf32> to vector<8x1xf32>
    %cst_228 = arith.constant 3.200000e+01 : f32
    %316 = vector.broadcast %cst_228 : f32 to vector<8x1xf32>
    %317 = arith.divf %315, %316 : vector<8x1xf32>
    %318 = vector.broadcast %317 : vector<8x1xf32> to vector<8x32xf32>
    %319 = arith.subf %309, %318 : vector<8x32xf32>
    %320 = arith.mulf %319, %319 : vector<8x32xf32>
    %cst_229 = arith.constant dense<0.000000e+00> : vector<8xf32>
    %321 = vector.multi_reduction <add>, %320, %cst_229 [1] : vector<8x32xf32> to vector<8xf32>
    %322 = vector.shape_cast %321 : vector<8xf32> to vector<8x1xf32>
    %cst_230 = arith.constant 3.200000e+01 : f32
    %323 = vector.broadcast %cst_230 : f32 to vector<8x1xf32>
    %324 = arith.divf %322, %323 : vector<8x1xf32>
    %325 = vector.broadcast %317 : vector<8x1xf32> to vector<8x32xf32>
    %326 = arith.subf %309, %325 : vector<8x32xf32>
    %cst_231 = arith.constant 9.99999974E-6 : f32
    %327 = vector.broadcast %cst_231 : f32 to vector<8x1xf32>
    %328 = arith.addf %324, %327 : vector<8x1xf32>
    %329 = math.rsqrt %328 : vector<8x1xf32>
    %330 = vector.broadcast %329 : vector<8x1xf32> to vector<8x32xf32>
    %331 = arith.mulf %326, %330 : vector<8x32xf32>
    %332 = vector.broadcast %311 : vector<1x32xf32> to vector<8x32xf32>
    %333 = arith.mulf %331, %332 : vector<8x32xf32>
    %334 = vector.broadcast %313 : vector<1x32xf32> to vector<8x32xf32>
    %335 = arith.addf %333, %334 : vector<8x32xf32>
    %336 = vector.extract_strided_slice %308 {offsets = [0, 32], sizes = [8, 32], strides = [1, 1]} : vector<8x64xf32> to vector<8x32xf32>
    %c1_232 = arith.constant 1 : index
    %c0_233 = arith.constant 0 : index
    %c0_234 = arith.constant 0 : index
    %337 = vector.load %arg10[%c1_232, %c0_233, %c0_234] : memref<2x1x32xf32, #tpu.memory_space<vmem>>, vector<1x1x32xf32>
    %338 = vector.shape_cast %337 : vector<1x1x32xf32> to vector<1x32xf32>
    %c1_235 = arith.constant 1 : index
    %c0_236 = arith.constant 0 : index
    %c0_237 = arith.constant 0 : index
    %339 = vector.load %arg11[%c1_235, %c0_236, %c0_237] : memref<2x1x32xf32, #tpu.memory_space<vmem>>, vector<1x1x32xf32>
    %340 = vector.shape_cast %339 : vector<1x1x32xf32> to vector<1x32xf32>
    %cst_238 = arith.constant dense<0.000000e+00> : vector<8xf32>
    %341 = vector.multi_reduction <add>, %336, %cst_238 [1] : vector<8x32xf32> to vector<8xf32>
    %342 = vector.shape_cast %341 : vector<8xf32> to vector<8x1xf32>
    %cst_239 = arith.constant 3.200000e+01 : f32
    %343 = vector.broadcast %cst_239 : f32 to vector<8x1xf32>
    %344 = arith.divf %342, %343 : vector<8x1xf32>
    %345 = vector.broadcast %344 : vector<8x1xf32> to vector<8x32xf32>
    %346 = arith.subf %336, %345 : vector<8x32xf32>
    %347 = arith.mulf %346, %346 : vector<8x32xf32>
    %cst_240 = arith.constant dense<0.000000e+00> : vector<8xf32>
    %348 = vector.multi_reduction <add>, %347, %cst_240 [1] : vector<8x32xf32> to vector<8xf32>
    %349 = vector.shape_cast %348 : vector<8xf32> to vector<8x1xf32>
    %cst_241 = arith.constant 3.200000e+01 : f32
    %350 = vector.broadcast %cst_241 : f32 to vector<8x1xf32>
    %351 = arith.divf %349, %350 : vector<8x1xf32>
    %352 = vector.broadcast %344 : vector<8x1xf32> to vector<8x32xf32>
    %353 = arith.subf %336, %352 : vector<8x32xf32>
    %cst_242 = arith.constant 9.99999974E-6 : f32
    %354 = vector.broadcast %cst_242 : f32 to vector<8x1xf32>
    %355 = arith.addf %351, %354 : vector<8x1xf32>
    %356 = math.rsqrt %355 : vector<8x1xf32>
    %357 = vector.broadcast %356 : vector<8x1xf32> to vector<8x32xf32>
    %358 = arith.mulf %353, %357 : vector<8x32xf32>
    %359 = vector.broadcast %338 : vector<1x32xf32> to vector<8x32xf32>
    %360 = arith.mulf %358, %359 : vector<8x32xf32>
    %361 = vector.broadcast %340 : vector<1x32xf32> to vector<8x32xf32>
    %362 = arith.addf %360, %361 : vector<8x32xf32>
    %c1_243 = arith.constant 1 : index
    %c0_244 = arith.constant 0 : index
    %c0_245 = arith.constant 0 : index
    %363 = vector.load %arg13[%c1_243, %c0_244, %c0_245] : memref<2x64x64xbf16, #tpu.memory_space<vmem>>, vector<1x64x64xbf16>
    %364 = vector.shape_cast %363 : vector<1x64x64xbf16> to vector<64x64xbf16>
    %365 = arith.truncf %286 : vector<64x32xf32> to vector<64x32xbf16>
    %cst_246 = arith.constant dense<0.000000e+00> : vector<64x32xf32>
    %366 = tpu.matmul %364, %365, %cst_246 {dimension_numbers = #tpu.dot_dimension_numbers<[1], [0], [0], [1], [0, 0, 1, 1], [], []>} : vector<64x64xbf16>, vector<64x32xbf16>, vector<64x32xf32> -> vector<64x32xf32>
    %c1_247 = arith.constant 1 : index
    %c0_248 = arith.constant 0 : index
    %c0_249 = arith.constant 0 : index
    %367 = vector.load %arg14[%c1_247, %c0_248, %c0_249] : memref<2x8x8xbf16, #tpu.memory_space<vmem>>, vector<1x8x8xbf16>
    %368 = vector.shape_cast %367 : vector<1x8x8xbf16> to vector<8x8xbf16>
    %369 = arith.truncf %335 : vector<8x32xf32> to vector<8x32xbf16>
    %cst_250 = arith.constant dense<0.000000e+00> : vector<8x32xf32>
    %370 = tpu.matmul %368, %369, %cst_250 {dimension_numbers = #tpu.dot_dimension_numbers<[1], [0], [0], [1], [0, 0, 1, 1], [], []>} : vector<8x8xbf16>, vector<8x32xbf16>, vector<8x32xf32> -> vector<8x32xf32>
    %c1_251 = arith.constant 1 : index
    %c0_252 = arith.constant 0 : index
    %c0_253 = arith.constant 0 : index
    %371 = vector.load %arg15[%c1_251, %c0_252, %c0_253] : memref<2x8x8xbf16, #tpu.memory_space<vmem>>, vector<1x8x8xbf16>
    %372 = vector.shape_cast %371 : vector<1x8x8xbf16> to vector<8x8xbf16>
    %373 = arith.truncf %362 : vector<8x32xf32> to vector<8x32xbf16>
    %cst_254 = arith.constant dense<0.000000e+00> : vector<8x32xf32>
    %374 = tpu.matmul %372, %373, %cst_254 {dimension_numbers = #tpu.dot_dimension_numbers<[1], [0], [0], [1], [0, 0, 1, 1], [], []>} : vector<8x8xbf16>, vector<8x32xbf16>, vector<8x32xf32> -> vector<8x32xf32>
    %375 = arith.truncf %366 : vector<64x32xf32> to vector<64x32xbf16>
    %376 = arith.truncf %370 : vector<8x32xf32> to vector<8x32xbf16>
    %cst_255 = arith.constant dense<0.000000e+00> : vector<64x8xf32>
    %377 = tpu.matmul %375, %376, %cst_255 {dimension_numbers = #tpu.dot_dimension_numbers<[1], [1], [0], [0], [0, 0, 1, 0], [], []>} : vector<64x32xbf16>, vector<8x32xbf16>, vector<64x8xf32> -> vector<64x8xf32>
    %cst_256 = arith.constant 0.176776692 : f32
    %378 = vector.broadcast %cst_256 : f32 to vector<64x8xf32>
    %379 = arith.mulf %377, %378 : vector<64x8xf32>
    %380 = arith.addf %379, %2 : vector<64x8xf32>
    %cst_257 = arith.constant dense<0xFF800000> : vector<64xf32>
    %381 = vector.multi_reduction <maximumf>, %380, %cst_257 [1] : vector<64x8xf32> to vector<64xf32>
    %382 = vector.shape_cast %381 : vector<64xf32> to vector<64x1xf32>
    %383 = vector.broadcast %382 : vector<64x1xf32> to vector<64x8xf32>
    %384 = arith.subf %380, %383 : vector<64x8xf32>
    %385 = math.exp %384 : vector<64x8xf32>
    %cst_258 = arith.constant dense<0.000000e+00> : vector<64xf32>
    %386 = vector.multi_reduction <add>, %385, %cst_258 [1] : vector<64x8xf32> to vector<64xf32>
    %387 = vector.shape_cast %386 : vector<64xf32> to vector<64x1xf32>
    %388 = tpu.reciprocal %387 {approx = true} : vector<64x1xf32> -> vector<64x1xf32>
    %389 = vector.broadcast %388 : vector<64x1xf32> to vector<64x8xf32>
    %390 = arith.mulf %385, %389 : vector<64x8xf32>
    %391 = arith.truncf %390 : vector<64x8xf32> to vector<64x8xbf16>
    %392 = arith.truncf %374 : vector<8x32xf32> to vector<8x32xbf16>
    %cst_259 = arith.constant dense<0.000000e+00> : vector<64x32xf32>
    %393 = tpu.matmul %391, %392, %cst_259 {dimension_numbers = #tpu.dot_dimension_numbers<[1], [0], [0], [1], [0, 0, 1, 1], [], []>} : vector<64x8xbf16>, vector<8x32xbf16>, vector<64x32xf32> -> vector<64x32xf32>
    %c1_260 = arith.constant 1 : index
    %c0_261 = arith.constant 0 : index
    %c0_262 = arith.constant 0 : index
    %394 = vector.load %arg16[%c1_260, %c0_261, %c0_262] : memref<2x64x64xbf16, #tpu.memory_space<vmem>>, vector<1x64x64xbf16>
    %395 = vector.shape_cast %394 : vector<1x64x64xbf16> to vector<64x64xbf16>
    %396 = arith.truncf %393 : vector<64x32xf32> to vector<64x32xbf16>
    %cst_263 = arith.constant dense<0.000000e+00> : vector<64x32xf32>
    %397 = tpu.matmul %395, %396, %cst_263 {dimension_numbers = #tpu.dot_dimension_numbers<[1], [0], [0], [1], [0, 0, 1, 1], [], []>} : vector<64x64xbf16>, vector<64x32xbf16>, vector<64x32xf32> -> vector<64x32xf32>
    %398 = arith.addf %397, %260 : vector<64x32xf32>
    %c1_264 = arith.constant 1 : index
    %c0_265 = arith.constant 0 : index
    %c0_266 = arith.constant 0 : index
    %399 = vector.load %arg17[%c1_264, %c0_265, %c0_266] : memref<2x1x32xf32, #tpu.memory_space<vmem>>, vector<1x1x32xf32>
    %400 = vector.shape_cast %399 : vector<1x1x32xf32> to vector<1x32xf32>
    %c1_267 = arith.constant 1 : index
    %c0_268 = arith.constant 0 : index
    %c0_269 = arith.constant 0 : index
    %401 = vector.load %arg18[%c1_267, %c0_268, %c0_269] : memref<2x1x32xf32, #tpu.memory_space<vmem>>, vector<1x1x32xf32>
    %402 = vector.shape_cast %401 : vector<1x1x32xf32> to vector<1x32xf32>
    %cst_270 = arith.constant dense<0.000000e+00> : vector<64xf32>
    %403 = vector.multi_reduction <add>, %398, %cst_270 [1] : vector<64x32xf32> to vector<64xf32>
    %404 = vector.shape_cast %403 : vector<64xf32> to vector<64x1xf32>
    %cst_271 = arith.constant 3.200000e+01 : f32
    %405 = vector.broadcast %cst_271 : f32 to vector<64x1xf32>
    %406 = arith.divf %404, %405 : vector<64x1xf32>
    %407 = vector.broadcast %406 : vector<64x1xf32> to vector<64x32xf32>
    %408 = arith.subf %398, %407 : vector<64x32xf32>
    %409 = arith.mulf %408, %408 : vector<64x32xf32>
    %cst_272 = arith.constant dense<0.000000e+00> : vector<64xf32>
    %410 = vector.multi_reduction <add>, %409, %cst_272 [1] : vector<64x32xf32> to vector<64xf32>
    %411 = vector.shape_cast %410 : vector<64xf32> to vector<64x1xf32>
    %cst_273 = arith.constant 3.200000e+01 : f32
    %412 = vector.broadcast %cst_273 : f32 to vector<64x1xf32>
    %413 = arith.divf %411, %412 : vector<64x1xf32>
    %414 = vector.broadcast %406 : vector<64x1xf32> to vector<64x32xf32>
    %415 = arith.subf %398, %414 : vector<64x32xf32>
    %cst_274 = arith.constant 9.99999974E-6 : f32
    %416 = vector.broadcast %cst_274 : f32 to vector<64x1xf32>
    %417 = arith.addf %413, %416 : vector<64x1xf32>
    %418 = math.rsqrt %417 : vector<64x1xf32>
    %419 = vector.broadcast %418 : vector<64x1xf32> to vector<64x32xf32>
    %420 = arith.mulf %415, %419 : vector<64x32xf32>
    %421 = vector.broadcast %400 : vector<1x32xf32> to vector<64x32xf32>
    %422 = arith.mulf %420, %421 : vector<64x32xf32>
    %423 = vector.broadcast %402 : vector<1x32xf32> to vector<64x32xf32>
    %424 = arith.addf %422, %423 : vector<64x32xf32>
    %425 = arith.truncf %424 : vector<64x32xf32> to vector<64x32xbf16>
    %c1_275 = arith.constant 1 : index
    %c0_276 = arith.constant 0 : index
    %c0_277 = arith.constant 0 : index
    %426 = vector.load %arg19[%c1_275, %c0_276, %c0_277] : memref<2x32x32xbf16, #tpu.memory_space<vmem>>, vector<1x32x32xbf16>
    %427 = vector.shape_cast %426 : vector<1x32x32xbf16> to vector<32x32xbf16>
    %cst_278 = arith.constant dense<0.000000e+00> : vector<64x32xf32>
    %428 = tpu.matmul %425, %427, %cst_278 {dimension_numbers = #tpu.dot_dimension_numbers<[1], [0], [0], [1], [0, 0, 1, 1], [], []>} : vector<64x32xbf16>, vector<32x32xbf16>, vector<64x32xf32> -> vector<64x32xf32>
    %c1_279 = arith.constant 1 : index
    %c0_280 = arith.constant 0 : index
    %c0_281 = arith.constant 0 : index
    %429 = vector.load %arg20[%c1_279, %c0_280, %c0_281] : memref<2x1x32xf32, #tpu.memory_space<vmem>>, vector<1x1x32xf32>
    %430 = vector.shape_cast %429 : vector<1x1x32xf32> to vector<1x32xf32>
    %431 = vector.broadcast %430 : vector<1x32xf32> to vector<64x32xf32>
    %432 = arith.addf %428, %431 : vector<64x32xf32>
    %cst_282 = arith.constant 5.000000e-01 : f32
    %433 = vector.broadcast %cst_282 : f32 to vector<64x32xf32>
    %434 = arith.mulf %433, %432 : vector<64x32xf32>
    %cst_283 = arith.constant 1.41421354 : f32
    %435 = vector.broadcast %cst_283 : f32 to vector<64x32xf32>
    %436 = arith.divf %432, %435 : vector<64x32xf32>
    %437 = math.erf %436 : vector<64x32xf32>
    %cst_284 = arith.constant 1.000000e+00 : f32
    %438 = vector.broadcast %cst_284 : f32 to vector<64x32xf32>
    %439 = arith.addf %438, %437 : vector<64x32xf32>
    %440 = arith.mulf %434, %439 : vector<64x32xf32>
    %c16_285 = arith.constant 16 : index
    %c0_286 = arith.constant 0 : index
    %441 = vector.load %arg28[%c16_285, %c0_286] : memref<96x32xf32, #tpu.memory_space<vmem>>, vector<64x32xf32>
    tpu.vector_store %arg28[%c16_285, %c0_286], %440 {strides = array<i32>} : memref<96x32xf32, #tpu.memory_space<vmem>>, vector<64x32xf32>,
    %c7_287 = arith.constant 7 : index
    %c0_288 = arith.constant 0 : index
    %442 = vector.load %arg28[%c7_287, %c0_288] : memref<96x32xf32, #tpu.memory_space<vmem>>, vector<64x32xf32>
    %c0_289 = arith.constant 0 : index
    %c0_290 = arith.constant 0 : index
    %443 = vector.load %arg29[%c0_289, %c0_290] : memref<64x288xf32, #tpu.memory_space<vmem>>, vector<64x32xf32>
    tpu.vector_store %arg29[%c0_289, %c0_290], %442 {strides = array<i32>} : memref<64x288xf32, #tpu.memory_space<vmem>>, vector<64x32xf32>,
    %c8_291 = arith.constant 8 : index
    %c0_292 = arith.constant 0 : index
    %444 = vector.load %arg28[%c8_291, %c0_292] : memref<96x32xf32, #tpu.memory_space<vmem>>, vector<64x32xf32>
    %c0_293 = arith.constant 0 : index
    %c32_294 = arith.constant 32 : index
    %445 = vector.load %arg29[%c0_293, %c32_294] : memref<64x288xf32, #tpu.memory_space<vmem>>, vector<64x32xf32>
    tpu.vector_store %arg29[%c0_293, %c32_294], %444 {strides = array<i32>} : memref<64x288xf32, #tpu.memory_space<vmem>>, vector<64x32xf32>,
    %c9_295 = arith.constant 9 : index
    %c0_296 = arith.constant 0 : index
    %446 = vector.load %arg28[%c9_295, %c0_296] : memref<96x32xf32, #tpu.memory_space<vmem>>, vector<64x32xf32>
    %c0_297 = arith.constant 0 : index
    %c64_298 = arith.constant 64 : index
    %447 = vector.load %arg29[%c0_297, %c64_298] : memref<64x288xf32, #tpu.memory_space<vmem>>, vector<64x32xf32>
    tpu.vector_store %arg29[%c0_297, %c64_298], %446 {strides = array<i32>} : memref<64x288xf32, #tpu.memory_space<vmem>>, vector<64x32xf32>,
    %c15_299 = arith.constant 15 : index
    %c0_300 = arith.constant 0 : index
    %448 = vector.load %arg28[%c15_299, %c0_300] : memref<96x32xf32, #tpu.memory_space<vmem>>, vector<64x32xf32>
    %c0_301 = arith.constant 0 : index
    %c96_302 = arith.constant 96 : index
    %449 = vector.load %arg29[%c0_301, %c96_302] : memref<64x288xf32, #tpu.memory_space<vmem>>, vector<64x32xf32>
    tpu.vector_store %arg29[%c0_301, %c96_302], %448 {strides = array<i32>} : memref<64x288xf32, #tpu.memory_space<vmem>>, vector<64x32xf32>,
    %c16_303 = arith.constant 16 : index
    %c0_304 = arith.constant 0 : index
    %450 = vector.load %arg28[%c16_303, %c0_304] : memref<96x32xf32, #tpu.memory_space<vmem>>, vector<64x32xf32>
    %c0_305 = arith.constant 0 : index
    %c128_306 = arith.constant 128 : index
    %451 = vector.load %arg29[%c0_305, %c128_306] : memref<64x288xf32, #tpu.memory_space<vmem>>, vector<64x32xf32>
    tpu.vector_store %arg29[%c0_305, %c128_306], %450 {strides = array<i32>} : memref<64x288xf32, #tpu.memory_space<vmem>>, vector<64x32xf32>,
    %c17_307 = arith.constant 17 : index
    %c0_308 = arith.constant 0 : index
    %452 = vector.load %arg28[%c17_307, %c0_308] : memref<96x32xf32, #tpu.memory_space<vmem>>, vector<64x32xf32>
    %c0_309 = arith.constant 0 : index
    %c160_310 = arith.constant 160 : index
    %453 = vector.load %arg29[%c0_309, %c160_310] : memref<64x288xf32, #tpu.memory_space<vmem>>, vector<64x32xf32>
    tpu.vector_store %arg29[%c0_309, %c160_310], %452 {strides = array<i32>} : memref<64x288xf32, #tpu.memory_space<vmem>>, vector<64x32xf32>,
    %c23_311 = arith.constant 23 : index
    %c0_312 = arith.constant 0 : index
    %454 = vector.load %arg28[%c23_311, %c0_312] : memref<96x32xf32, #tpu.memory_space<vmem>>, vector<64x32xf32>
    %c0_313 = arith.constant 0 : index
    %c192_314 = arith.constant 192 : index
    %455 = vector.load %arg29[%c0_313, %c192_314] : memref<64x288xf32, #tpu.memory_space<vmem>>, vector<64x32xf32>
    tpu.vector_store %arg29[%c0_313, %c192_314], %454 {strides = array<i32>} : memref<64x288xf32, #tpu.memory_space<vmem>>, vector<64x32xf32>,
    %c24_315 = arith.constant 24 : index
    %c0_316 = arith.constant 0 : index
    %456 = vector.load %arg28[%c24_315, %c0_316] : memref<96x32xf32, #tpu.memory_space<vmem>>, vector<64x32xf32>
    %c0_317 = arith.constant 0 : index
    %c224_318 = arith.constant 224 : index
    %457 = vector.load %arg29[%c0_317, %c224_318] : memref<64x288xf32, #tpu.memory_space<vmem>>, vector<64x32xf32>
    tpu.vector_store %arg29[%c0_317, %c224_318], %456 {strides = array<i32>} : memref<64x288xf32, #tpu.memory_space<vmem>>, vector<64x32xf32>,
    %c25_319 = arith.constant 25 : index
    %c0_320 = arith.constant 0 : index
    %458 = vector.load %arg28[%c25_319, %c0_320] : memref<96x32xf32, #tpu.memory_space<vmem>>, vector<64x32xf32>
    %c0_321 = arith.constant 0 : index
    %c256_322 = arith.constant 256 : index
    %459 = vector.load %arg29[%c0_321, %c256_322] : memref<64x288xf32, #tpu.memory_space<vmem>>, vector<64x32xf32>
    tpu.vector_store %arg29[%c0_321, %c256_322], %458 {strides = array<i32>} : memref<64x288xf32, #tpu.memory_space<vmem>>, vector<64x32xf32>,
    %c0_323 = arith.constant 0 : index
    %c0_324 = arith.constant 0 : index
    %460 = vector.load %arg29[%c0_323, %c0_324] : memref<64x288xf32, #tpu.memory_space<vmem>>, vector<64x288xf32>
    %461 = arith.mulf %460, %3 : vector<64x288xf32>
    %462 = arith.truncf %461 : vector<64x288xf32> to vector<64x288xbf16>
    %c1_325 = arith.constant 1 : index
    %c0_326 = arith.constant 0 : index
    %c0_327 = arith.constant 0 : index
    %463 = vector.load %arg21[%c1_325, %c0_326, %c0_327] : memref<2x288x64xbf16, #tpu.memory_space<vmem>>, vector<1x288x64xbf16>
    %464 = vector.shape_cast %463 : vector<1x288x64xbf16> to vector<288x64xbf16>
    %cst_328 = arith.constant dense<0.000000e+00> : vector<64x64xf32>
    %465 = tpu.matmul %462, %464, %cst_328 {dimension_numbers = #tpu.dot_dimension_numbers<[1], [0], [0], [1], [0, 0, 1, 1], [], []>} : vector<64x288xbf16>, vector<288x64xbf16>, vector<64x64xf32> -> vector<64x64xf32>
    %c1_329 = arith.constant 1 : index
    %c0_330 = arith.constant 0 : index
    %c0_331 = arith.constant 0 : index
    %466 = vector.load %arg22[%c1_329, %c0_330, %c0_331] : memref<2x1x64xf32, #tpu.memory_space<vmem>>, vector<1x1x64xf32>
    %467 = vector.shape_cast %466 : vector<1x1x64xf32> to vector<1x64xf32>
    %468 = vector.broadcast %467 : vector<1x64xf32> to vector<64x64xf32>
    %469 = arith.addf %465, %468 : vector<64x64xf32>
    %cst_332 = arith.constant 5.000000e-01 : f32
    %470 = vector.broadcast %cst_332 : f32 to vector<64x64xf32>
    %471 = arith.mulf %470, %469 : vector<64x64xf32>
    %cst_333 = arith.constant 1.41421354 : f32
    %472 = vector.broadcast %cst_333 : f32 to vector<64x64xf32>
    %473 = arith.divf %469, %472 : vector<64x64xf32>
    %474 = math.erf %473 : vector<64x64xf32>
    %cst_334 = arith.constant 1.000000e+00 : f32
    %475 = vector.broadcast %cst_334 : f32 to vector<64x64xf32>
    %476 = arith.addf %475, %474 : vector<64x64xf32>
    %477 = arith.mulf %471, %476 : vector<64x64xf32>
    %478 = arith.truncf %477 : vector<64x64xf32> to vector<64x64xbf16>
    %c1_335 = arith.constant 1 : index
    %c0_336 = arith.constant 0 : index
    %c0_337 = arith.constant 0 : index
    %479 = vector.load %arg23[%c1_335, %c0_336, %c0_337] : memref<2x64x32xbf16, #tpu.memory_space<vmem>>, vector<1x64x32xbf16>
    %480 = vector.shape_cast %479 : vector<1x64x32xbf16> to vector<64x32xbf16>
    %cst_338 = arith.constant dense<0.000000e+00> : vector<64x32xf32>
    %481 = tpu.matmul %478, %480, %cst_338 {dimension_numbers = #tpu.dot_dimension_numbers<[1], [0], [0], [1], [0, 0, 1, 1], [], []>} : vector<64x64xbf16>, vector<64x32xbf16>, vector<64x32xf32> -> vector<64x32xf32>
    %c1_339 = arith.constant 1 : index
    %c0_340 = arith.constant 0 : index
    %c0_341 = arith.constant 0 : index
    %482 = vector.load %arg24[%c1_339, %c0_340, %c0_341] : memref<2x1x32xf32, #tpu.memory_space<vmem>>, vector<1x1x32xf32>
    %483 = vector.shape_cast %482 : vector<1x1x32xf32> to vector<1x32xf32>
    %484 = vector.broadcast %483 : vector<1x32xf32> to vector<64x32xf32>
    %485 = arith.addf %481, %484 : vector<64x32xf32>
    %486 = arith.addf %485, %398 : vector<64x32xf32>
    %c0_342 = arith.constant 0 : index
    %c0_343 = arith.constant 0 : index
    %487 = vector.load %arg25[%c0_342, %c0_343] : memref<64x32xf32, #tpu.memory_space<vmem>>, vector<64x32xf32>
    tpu.vector_store %arg25[%c0_342, %c0_343], %486 {strides = array<i32>} : memref<64x32xf32, #tpu.memory_space<vmem>>, vector<64x32xf32>,
    return
  }
  func.func @transform_0(%arg0: i32) -> (i32, i32) {
    %c0_i32 = arith.constant 0 : i32
    %c0_i32_0 = arith.constant 0 : i32
    return %arg0, %c0_i32 : i32, i32
  }
  func.func @transform_1(%arg0: i32) -> (i32, i32) {
    %c0_i32 = arith.constant 0 : i32
    %c0_i32_0 = arith.constant 0 : i32
    %c0_i32_1 = arith.constant 0 : i32
    return %c0_i32, %c0_i32_0 : i32, i32
  }
  func.func @transform_2(%arg0: i32) -> (i32, i32) {
    %c0_i32 = arith.constant 0 : i32
    %c0_i32_0 = arith.constant 0 : i32
    %c0_i32_1 = arith.constant 0 : i32
    return %c0_i32, %c0_i32_0 : i32, i32
  }
  func.func @transform_3(%arg0: i32) -> (i32, i32) {
    %c0_i32 = arith.constant 0 : i32
    %c0_i32_0 = arith.constant 0 : i32
    %c0_i32_1 = arith.constant 0 : i32
    return %c0_i32, %c0_i32_0 : i32, i32
  }
  func.func @transform_4(%arg0: i32) -> (i32, i32) {
    %c0_i32 = arith.constant 0 : i32
    %c0_i32_0 = arith.constant 0 : i32
    %c0_i32_1 = arith.constant 0 : i32
    return %c0_i32, %c0_i32_0 : i32, i32
  }
  func.func @transform_5(%arg0: i32) -> (i32, i32) {
    %c0_i32 = arith.constant 0 : i32
    %c0_i32_0 = arith.constant 0 : i32
    %c0_i32_1 = arith.constant 0 : i32
    return %c0_i32, %c0_i32_0 : i32, i32
  }
  func.func @transform_6(%arg0: i32) -> (i32, i32) {
    %c0_i32 = arith.constant 0 : i32
    %c0_i32_0 = arith.constant 0 : i32
    %c0_i32_1 = arith.constant 0 : i32
    return %c0_i32, %c0_i32_0 : i32, i32
  }
  func.func @transform_7(%arg0: i32) -> (i32, i32, i32) {
    %c0_i32 = arith.constant 0 : i32
    %c0_i32_0 = arith.constant 0 : i32
    %c0_i32_1 = arith.constant 0 : i32
    %c0_i32_2 = arith.constant 0 : i32
    return %c0_i32, %c0_i32_0, %c0_i32_1 : i32, i32, i32
  }
  func.func @transform_8(%arg0: i32) -> (i32, i32, i32) {
    %c0_i32 = arith.constant 0 : i32
    %c0_i32_0 = arith.constant 0 : i32
    %c0_i32_1 = arith.constant 0 : i32
    %c0_i32_2 = arith.constant 0 : i32
    return %c0_i32, %c0_i32_0, %c0_i32_1 : i32, i32, i32
  }
  func.func @transform_9(%arg0: i32) -> (i32, i32, i32) {
    %c0_i32 = arith.constant 0 : i32
    %c0_i32_0 = arith.constant 0 : i32
    %c0_i32_1 = arith.constant 0 : i32
    %c0_i32_2 = arith.constant 0 : i32
    return %c0_i32, %c0_i32_0, %c0_i32_1 : i32, i32, i32
  }
  func.func @transform_10(%arg0: i32) -> (i32, i32, i32) {
    %c0_i32 = arith.constant 0 : i32
    %c0_i32_0 = arith.constant 0 : i32
    %c0_i32_1 = arith.constant 0 : i32
    %c0_i32_2 = arith.constant 0 : i32
    return %c0_i32, %c0_i32_0, %c0_i32_1 : i32, i32, i32
  }
  func.func @transform_11(%arg0: i32) -> (i32, i32, i32) {
    %c0_i32 = arith.constant 0 : i32
    %c0_i32_0 = arith.constant 0 : i32
    %c0_i32_1 = arith.constant 0 : i32
    %c0_i32_2 = arith.constant 0 : i32
    return %c0_i32, %c0_i32_0, %c0_i32_1 : i32, i32, i32
  }
  func.func @transform_12(%arg0: i32) -> (i32, i32, i32) {
    %c0_i32 = arith.constant 0 : i32
    %c0_i32_0 = arith.constant 0 : i32
    %c0_i32_1 = arith.constant 0 : i32
    %c0_i32_2 = arith.constant 0 : i32
    return %c0_i32, %c0_i32_0, %c0_i32_1 : i32, i32, i32
  }
  func.func @transform_13(%arg0: i32) -> (i32, i32, i32) {
    %c0_i32 = arith.constant 0 : i32
    %c0_i32_0 = arith.constant 0 : i32
    %c0_i32_1 = arith.constant 0 : i32
    %c0_i32_2 = arith.constant 0 : i32
    return %c0_i32, %c0_i32_0, %c0_i32_1 : i32, i32, i32
  }
  func.func @transform_14(%arg0: i32) -> (i32, i32, i32) {
    %c0_i32 = arith.constant 0 : i32
    %c0_i32_0 = arith.constant 0 : i32
    %c0_i32_1 = arith.constant 0 : i32
    %c0_i32_2 = arith.constant 0 : i32
    return %c0_i32, %c0_i32_0, %c0_i32_1 : i32, i32, i32
  }
  func.func @transform_15(%arg0: i32) -> (i32, i32, i32) {
    %c0_i32 = arith.constant 0 : i32
    %c0_i32_0 = arith.constant 0 : i32
    %c0_i32_1 = arith.constant 0 : i32
    %c0_i32_2 = arith.constant 0 : i32
    return %c0_i32, %c0_i32_0, %c0_i32_1 : i32, i32, i32
  }
  func.func @transform_16(%arg0: i32) -> (i32, i32, i32) {
    %c0_i32 = arith.constant 0 : i32
    %c0_i32_0 = arith.constant 0 : i32
    %c0_i32_1 = arith.constant 0 : i32
    %c0_i32_2 = arith.constant 0 : i32
    return %c0_i32, %c0_i32_0, %c0_i32_1 : i32, i32, i32
  }
  func.func @transform_17(%arg0: i32) -> (i32, i32, i32) {
    %c0_i32 = arith.constant 0 : i32
    %c0_i32_0 = arith.constant 0 : i32
    %c0_i32_1 = arith.constant 0 : i32
    %c0_i32_2 = arith.constant 0 : i32
    return %c0_i32, %c0_i32_0, %c0_i32_1 : i32, i32, i32
  }
  func.func @transform_18(%arg0: i32) -> (i32, i32, i32) {
    %c0_i32 = arith.constant 0 : i32
    %c0_i32_0 = arith.constant 0 : i32
    %c0_i32_1 = arith.constant 0 : i32
    %c0_i32_2 = arith.constant 0 : i32
    return %c0_i32, %c0_i32_0, %c0_i32_1 : i32, i32, i32
  }
  func.func @transform_19(%arg0: i32) -> (i32, i32, i32) {
    %c0_i32 = arith.constant 0 : i32
    %c0_i32_0 = arith.constant 0 : i32
    %c0_i32_1 = arith.constant 0 : i32
    %c0_i32_2 = arith.constant 0 : i32
    return %c0_i32, %c0_i32_0, %c0_i32_1 : i32, i32, i32
  }
  func.func @transform_20(%arg0: i32) -> (i32, i32, i32) {
    %c0_i32 = arith.constant 0 : i32
    %c0_i32_0 = arith.constant 0 : i32
    %c0_i32_1 = arith.constant 0 : i32
    %c0_i32_2 = arith.constant 0 : i32
    return %c0_i32, %c0_i32_0, %c0_i32_1 : i32, i32, i32
  }
  func.func @transform_21(%arg0: i32) -> (i32, i32, i32) {
    %c0_i32 = arith.constant 0 : i32
    %c0_i32_0 = arith.constant 0 : i32
    %c0_i32_1 = arith.constant 0 : i32
    %c0_i32_2 = arith.constant 0 : i32
    return %c0_i32, %c0_i32_0, %c0_i32_1 : i32, i32, i32
  }
  func.func @transform_22(%arg0: i32) -> (i32, i32, i32) {
    %c0_i32 = arith.constant 0 : i32
    %c0_i32_0 = arith.constant 0 : i32
    %c0_i32_1 = arith.constant 0 : i32
    %c0_i32_2 = arith.constant 0 : i32
    return %c0_i32, %c0_i32_0, %c0_i32_1 : i32, i32, i32
  }
  func.func @transform_23(%arg0: i32) -> (i32, i32, i32) {
    %c0_i32 = arith.constant 0 : i32
    %c0_i32_0 = arith.constant 0 : i32
    %c0_i32_1 = arith.constant 0 : i32
    %c0_i32_2 = arith.constant 0 : i32
    return %c0_i32, %c0_i32_0, %c0_i32_1 : i32, i32, i32
  }
  func.func @transform_24(%arg0: i32) -> (i32, i32) {
    %c0_i32 = arith.constant 0 : i32
    %c0_i32_0 = arith.constant 0 : i32
    return %arg0, %c0_i32 : i32, i32
  }
}

</mosaic_0001>

<llo_original>
// kernel: _lambda_.1
$region0: #{_lambda_.1}
  #allocation0 [shape = 'u32[]', space=smem, size = 0x4, offset = 0x4, fixed_abs, tag = 'smem constant byte address 0x4 - core index']
  #allocation1 [shape = 'u32[144,128]{1,0:T(1,128)}', space=vmem, size = 0x12000, scoped, tag = 'internal scratch']
  #allocation2 [shape = 'f32[64,32]{1,0:T(8,128)}', space=vmem, size = 0x8000, scoped, tag = 'scratch operand']
  #allocation3 [shape = 'f32[8,256]{1,0:T(8,128)}', space=vmem, size = 0x2000, scoped, tag = 'scratch operand']
  #allocation4 [shape = 'f32[96,32]{1,0:T(8,128)}', space=vmem, size = 0xc000, scoped, tag = 'scratch operand']
  #allocation5 [shape = 'f32[64,288]{1,0:T(8,128)}', space=vmem, size = 0x18000, scoped, tag = 'scratch operand']
  %s0 = inlined_call_operand.vmem [shape: f32[128,36], index: 0, kind: input, shape index: {}]
  %s1 = inlined_call_operand.vmem [shape: f32[64,8], index: 1, kind: input, shape index: {}]
  %s2 = inlined_call_operand.vmem [shape: f32[64,288], index: 2, kind: input, shape index: {}]
  %s3 = inlined_call_operand.vmem [shape: bf16[36,32], index: 3, kind: input, shape index: {}]
  %s4 = inlined_call_operand.vmem [shape: f32[1,32], index: 4, kind: input, shape index: {}]
  %s5 = inlined_call_operand.vmem [shape: f32[1,32], index: 5, kind: input, shape index: {}]
  %s6 = inlined_call_operand.vmem [shape: f32[1,32], index: 6, kind: input, shape index: {}]
  %s7 = inlined_call_operand.vmem [shape: f32[2,1,32], index: 7, kind: input, shape index: {}]
  %s8 = inlined_call_operand.vmem [shape: f32[2,1,32], index: 8, kind: input, shape index: {}]
  %s9 = inlined_call_operand.vmem [shape: f32[2,1,32], index: 9, kind: input, shape index: {}]
  %s10 = inlined_call_operand.vmem [shape: f32[2,1,32], index: 10, kind: input, shape index: {}]
  %s11 = inlined_call_operand.vmem [shape: bf16[2,256,64], index: 11, kind: input, shape index: {}]
  %s12 = inlined_call_operand.vmem [shape: bf16[2,64,64], index: 12, kind: input, shape index: {}]
  %s13 = inlined_call_operand.vmem [shape: bf16[2,8,8], index: 13, kind: input, shape index: {}]
  %s14 = inlined_call_operand.vmem [shape: bf16[2,8,8], index: 14, kind: input, shape index: {}]
  %s15 = inlined_call_operand.vmem [shape: bf16[2,64,64], index: 15, kind: input, shape index: {}]
  %s16 = inlined_call_operand.vmem [shape: f32[2,1,32], index: 16, kind: input, shape index: {}]
  %s17 = inlined_call_operand.vmem [shape: f32[2,1,32], index: 17, kind: input, shape index: {}]
  %s18 = inlined_call_operand.vmem [shape: bf16[2,32,32], index: 18, kind: input, shape index: {}]
  %s19 = inlined_call_operand.vmem [shape: f32[2,1,32], index: 19, kind: input, shape index: {}]
  %s20 = inlined_call_operand.vmem [shape: bf16[2,288,64], index: 20, kind: input, shape index: {}]
  %s21 = inlined_call_operand.vmem [shape: f32[2,1,64], index: 21, kind: input, shape index: {}]
  %s22 = inlined_call_operand.vmem [shape: bf16[2,64,32], index: 22, kind: input, shape index: {}]
  %s23 = inlined_call_operand.vmem [shape: f32[2,1,32], index: 23, kind: input, shape index: {}]
  %s24 = inlined_call_operand.hbm [shape: f32[128,32], index: 24, kind: output, shape index: {}]
  %s25 = sld [smem:[#allocation0]]
  $region129: #{_lambda_.1} parent=0
    _
  %s27 = ssub.s32 1, %s25
  %s28 = scalar_select 0, %s27, %s25
  $region1: #{_lambda_.1} parent=0
    #allocation6 [shape = 'u8[65536]{0}', space=vmem, size = 0x10000, scoped, tag = 'output window, operand 0']
    #allocation7 [shape = 's32[2]{0}', space=sflag, size = 0x8, scoped, tag = 'scoped memory for _lambda_.1']
    %29 = vsyncpa [#allocation7], 0
    %s30 = scalar_lea.sflag [#allocation7], 1
    %31 = vsyncpa %s30, 0
    loop: start=0, step=1, limit=4
    $region2: #{_lambda_.1} parent=1 // loop_pre_header
      _
    $region3: #{_lambda_.1} parent=1 // loop_header
      %s33 = sphi 0, %s37
      %p34 = scmp.ge.s32.totalorder %s33, 4
      %s43 = sphi 0, %s45
      %s46 = sphi 0, %s43
      %s47 = sphi 0, %s46
      %s63 = sphi 0, %s47
      %s67 = sphi 0, %s67
      %s69 = sphi 0, %s67
      %s70 = sphi 0, %s69
      %s84 = sphi 0, %s70
      %s88 = sphi 0, %s88
      %s90 = sphi 0, %s88
      %s91 = sphi 0, %s90
      %s105 = sphi 0, %s91
      %s109 = sphi 0, %s109
      %s111 = sphi 0, %s109
      %s112 = sphi 0, %s111
      %s126 = sphi 0, %s112
      %s130 = sphi 0, %s130
      %s132 = sphi 0, %s130
      %s133 = sphi 0, %s132
      %s147 = sphi 0, %s133
      %s151 = sphi 0, %s151
      %s153 = sphi 0, %s151
      %s154 = sphi 0, %s153
      %s168 = sphi 0, %s154
      %s172 = sphi 0, %s172
      %s174 = sphi 0, %s172
      %s175 = sphi 0, %s174
      %s189 = sphi 0, %s175
      %s193 = sphi 0, %s193
      %s195 = sphi 0, %s193
      %s196 = sphi 0, %s195
      %s210 = sphi 0, %s196
      %s214 = sphi 0, %s214
      %s216 = sphi 0, %s214
      %s217 = sphi 0, %s216
      %s231 = sphi 0, %s217
      %s235 = sphi 0, %s235
      %s237 = sphi 0, %s235
      %s238 = sphi 0, %s237
      %s252 = sphi 0, %s238
      %s256 = sphi 0, %s256
      %s258 = sphi 0, %s256
      %s259 = sphi 0, %s258
      %s273 = sphi 0, %s259
      %s277 = sphi 0, %s277
      %s279 = sphi 0, %s277
      %s280 = sphi 0, %s279
      %s294 = sphi 0, %s280
      %s298 = sphi 0, %s298
      %s300 = sphi 0, %s298
      %s301 = sphi 0, %s300
      %s315 = sphi 0, %s301
      %s319 = sphi 0, %s319
      %s321 = sphi 0, %s319
      %s322 = sphi 0, %s321
      %s336 = sphi 0, %s322
      %s340 = sphi 0, %s340
      %s342 = sphi 0, %s340
      %s343 = sphi 0, %s342
      %s357 = sphi 0, %s343
      %s361 = sphi 0, %s361
      %s363 = sphi 0, %s361
      %s364 = sphi 0, %s363
      %s378 = sphi 0, %s364
      %s382 = sphi 0, %s382
      %s384 = sphi 0, %s382
      %s385 = sphi 0, %s384
      %s399 = sphi 0, %s385
      %s403 = sphi 0, %s403
      %s405 = sphi 0, %s403
      %s406 = sphi 0, %s405
      %s420 = sphi 0, %s406
      %s424 = sphi 0, %s424
      %s426 = sphi 0, %s424
      %s427 = sphi 0, %s426
      %s441 = sphi 0, %s427
      %s445 = sphi 0, %s445
      %s447 = sphi 0, %s445
      %s448 = sphi 0, %s447
      %s462 = sphi 0, %s448
      %s466 = sphi 0, %s466
      %s468 = sphi 0, %s466
      %s469 = sphi 0, %s468
      %s483 = sphi 0, %s469
      %s487 = sphi 0, %s487
      %s489 = sphi 0, %s487
      %s490 = sphi 0, %s489
      %s504 = sphi 0, %s490
      %s508 = sphi 0, %s508
      %s510 = sphi 0, %s508
      %s511 = sphi 0, %s510
      %s525 = sphi 0, %s511
      %s529 = sphi 0, %s529
      %s531 = sphi 0, %s529
      %s532 = sphi 0, %s531
      %s546 = sphi 0, %s532
      %s552 = sphi 0, %s554
      %s555 = sphi 0, %s552
      %s556 = sphi 0, %s555
      %s572 = sphi 0, %s556
    $region4: #{_lambda_.1} parent=1 // loop_header_branch
      %36 = sbr.rel (%p34) target = $region8
    $region5: #{_lambda_.1} parent=1 // loop_body
      %s38 = ssub.s32 %s33, 1
      %s39 = ssub.s32 %s33, 2
      %s40 = sadd.s32 %s33, 1
      %s41 = ssub.s32 %s33, %s40
      %p42 = scmp.eq.s32.totalorder %s41, 0
      %s44 = sadd.s32 %s43, 1
      %s45 = scalar_select %p42, %s43, %s44
      %p48 = pneg %p42
      %p49 = scmp.eq.s32.totalorder %s33, 1
      %p50 = por %p48, %p49
      %p51 = scmp.ne.s32.totalorder %s43, %s46
      %p52 = scmp.eq.s32.totalorder %s33, 0
      %p53 = por %p51, %p52
      %p54 = scmp.ne.s32.totalorder %s43, %s46
      %p55 = scmp.eq.s32.totalorder %s38, 1
      %p56 = por %p54, %p55
      %p57 = scmp.ne.s32.totalorder %s46, %s47
      %p58 = scmp.eq.s32.totalorder %s38, 0
      %p59 = por %p57, %p58
      %p60 = scmp.ne.s32.totalorder %s46, %s47
      %p61 = scmp.eq.s32.totalorder %s39, 1
      %p62 = por %p60, %p61
      %p64 = scmp.ne.s32.totalorder %s47, %s63
      %p65 = scmp.eq.s32.totalorder %s39, 0
      %p66 = por %p64, %p65
      %s68 = sadd.s32 %s67, 1
      %p71 = scmp.eq.s32.totalorder %s33, 1
      %p72 = scmp.ne.s32.totalorder %s67, %s69
      %p73 = scmp.eq.s32.totalorder %s33, 0
      %p74 = por %p72, %p73
      %p75 = scmp.ne.s32.totalorder %s67, %s69
      %p76 = scmp.eq.s32.totalorder %s38, 1
      %p77 = por %p75, %p76
      %p78 = scmp.ne.s32.totalorder %s69, %s70
      %p79 = scmp.eq.s32.totalorder %s38, 0
      %p80 = por %p78, %p79
      %p81 = scmp.ne.s32.totalorder %s69, %s70
      %p82 = scmp.eq.s32.totalorder %s39, 1
      %p83 = por %p81, %p82
      %p85 = scmp.ne.s32.totalorder %s70, %s84
      %p86 = scmp.eq.s32.totalorder %s39, 0
      %p87 = por %p85, %p86
      %s89 = sadd.s32 %s88, 1
      %p92 = scmp.eq.s32.totalorder %s33, 1
      %p93 = scmp.ne.s32.totalorder %s88, %s90
      %p94 = scmp.eq.s32.totalorder %s33, 0
      %p95 = por %p93, %p94
      %p96 = scmp.ne.s32.totalorder %s88, %s90
      %p97 = scmp.eq.s32.totalorder %s38, 1
      %p98 = por %p96, %p97
      %p99 = scmp.ne.s32.totalorder %s90, %s91
      %p100 = scmp.eq.s32.totalorder %s38, 0
      %p101 = por %p99, %p100
      %p102 = scmp.ne.s32.totalorder %s90, %s91
      %p103 = scmp.eq.s32.totalorder %s39, 1
      %p104 = por %p102, %p103
      %p106 = scmp.ne.s32.totalorder %s91, %s105
      %p107 = scmp.eq.s32.totalorder %s39, 0
      %p108 = por %p106, %p107
      %s110 = sadd.s32 %s109, 1
      %p113 = scmp.eq.s32.totalorder %s33, 1
      %p114 = scmp.ne.s32.totalorder %s109, %s111
      %p115 = scmp.eq.s32.totalorder %s33, 0
      %p116 = por %p114, %p115
      %p117 = scmp.ne.s32.totalorder %s109, %s111
      %p118 = scmp.eq.s32.totalorder %s38, 1
      %p119 = por %p117, %p118
      %p120 = scmp.ne.s32.totalorder %s111, %s112
      %p121 = scmp.eq.s32.totalorder %s38, 0
      %p122 = por %p120, %p121
      %p123 = scmp.ne.s32.totalorder %s111, %s112
      %p124 = scmp.eq.s32.totalorder %s39, 1
      %p125 = por %p123, %p124
      %p127 = scmp.ne.s32.totalorder %s112, %s126
      %p128 = scmp.eq.s32.totalorder %s39, 0
      %p129 = por %p127, %p128
      %s131 = sadd.s32 %s130, 1
      %p134 = scmp.eq.s32.totalorder %s33, 1
      %p135 = scmp.ne.s32.totalorder %s130, %s132
      %p136 = scmp.eq.s32.totalorder %s33, 0
      %p137 = por %p135, %p136
      %p138 = scmp.ne.s32.totalorder %s130, %s132
      %p139 = scmp.eq.s32.totalorder %s38, 1
      %p140 = por %p138, %p139
      %p141 = scmp.ne.s32.totalorder %s132, %s133
      %p142 = scmp.eq.s32.totalorder %s38, 0
      %p143 = por %p141, %p142
      %p144 = scmp.ne.s32.totalorder %s132, %s133
      %p145 = scmp.eq.s32.totalorder %s39, 1
      %p146 = por %p144, %p145
      %p148 = scmp.ne.s32.totalorder %s133, %s147
      %p149 = scmp.eq.s32.totalorder %s39, 0
      %p150 = por %p148, %p149
      %s152 = sadd.s32 %s151, 1
      %p155 = scmp.eq.s32.totalorder %s33, 1
      %p156 = scmp.ne.s32.totalorder %s151, %s153
      %p157 = scmp.eq.s32.totalorder %s33, 0
      %p158 = por %p156, %p157
      %p159 = scmp.ne.s32.totalorder %s151, %s153
      %p160 = scmp.eq.s32.totalorder %s38, 1
      %p161 = por %p159, %p160
      %p162 = scmp.ne.s32.totalorder %s153, %s154
      %p163 = scmp.eq.s32.totalorder %s38, 0
      %p164 = por %p162, %p163
      %p165 = scmp.ne.s32.totalorder %s153, %s154
      %p166 = scmp.eq.s32.totalorder %s39, 1
      %p167 = por %p165, %p166
      %p169 = scmp.ne.s32.totalorder %s154, %s168
      %p170 = scmp.eq.s32.totalorder %s39, 0
      %p171 = por %p169, %p170
      %s173 = sadd.s32 %s172, 1
      %p176 = scmp.eq.s32.totalorder %s33, 1
      %p177 = scmp.ne.s32.totalorder %s172, %s174
      %p178 = scmp.eq.s32.totalorder %s33, 0
      %p179 = por %p177, %p178
      %p180 = scmp.ne.s32.totalorder %s172, %s174
      %p181 = scmp.eq.s32.totalorder %s38, 1
      %p182 = por %p180, %p181
      %p183 = scmp.ne.s32.totalorder %s174, %s175
      %p184 = scmp.eq.s32.totalorder %s38, 0
      %p185 = por %p183, %p184
      %p186 = scmp.ne.s32.totalorder %s174, %s175
      %p187 = scmp.eq.s32.totalorder %s39, 1
      %p188 = por %p186, %p187
      %p190 = scmp.ne.s32.totalorder %s175, %s189
      %p191 = scmp.eq.s32.totalorder %s39, 0
      %p192 = por %p190, %p191
      %s194 = sadd.s32 %s193, 1
      %p197 = scmp.eq.s32.totalorder %s33, 1
      %p198 = scmp.ne.s32.totalorder %s193, %s195
      %p199 = scmp.eq.s32.totalorder %s33, 0
      %p200 = por %p198, %p199
      %p201 = scmp.ne.s32.totalorder %s193, %s195
      %p202 = scmp.eq.s32.totalorder %s38, 1
      %p203 = por %p201, %p202
      %p204 = scmp.ne.s32.totalorder %s195, %s196
      %p205 = scmp.eq.s32.totalorder %s38, 0
      %p206 = por %p204, %p205
      %p207 = scmp.ne.s32.totalorder %s195, %s196
      %p208 = scmp.eq.s32.totalorder %s39, 1
      %p209 = por %p207, %p208
      %p211 = scmp.ne.s32.totalorder %s196, %s210
      %p212 = scmp.eq.s32.totalorder %s39, 0
      %p213 = por %p211, %p212
      %s215 = sadd.s32 %s214, 1
      %p218 = scmp.eq.s32.totalorder %s33, 1
      %p219 = scmp.ne.s32.totalorder %s214, %s216
      %p220 = scmp.eq.s32.totalorder %s33, 0
      %p221 = por %p219, %p220
      %p222 = scmp.ne.s32.totalorder %s214, %s216
      %p223 = scmp.eq.s32.totalorder %s38, 1
      %p224 = por %p222, %p223
      %p225 = scmp.ne.s32.totalorder %s216, %s217
      %p226 = scmp.eq.s32.totalorder %s38, 0
      %p227 = por %p225, %p226
      %p228 = scmp.ne.s32.totalorder %s216, %s217
      %p229 = scmp.eq.s32.totalorder %s39, 1
      %p230 = por %p228, %p229
      %p232 = scmp.ne.s32.totalorder %s217, %s231
      %p233 = scmp.eq.s32.totalorder %s39, 0
      %p234 = por %p232, %p233
      %s236 = sadd.s32 %s235, 1
      %p239 = scmp.eq.s32.totalorder %s33, 1
      %p240 = scmp.ne.s32.totalorder %s235, %s237
      %p241 = scmp.eq.s32.totalorder %s33, 0
      %p242 = por %p240, %p241
      %p243 = scmp.ne.s32.totalorder %s235, %s237
      %p244 = scmp.eq.s32.totalorder %s38, 1
      %p245 = por %p243, %p244
      %p246 = scmp.ne.s32.totalorder %s237, %s238
      %p247 = scmp.eq.s32.totalorder %s38, 0
      %p248 = por %p246, %p247
      %p249 = scmp.ne.s32.totalorder %s237, %s238
      %p250 = scmp.eq.s32.totalorder %s39, 1
      %p251 = por %p249, %p250
      %p253 = scmp.ne.s32.totalorder %s238, %s252
      %p254 = scmp.eq.s32.totalorder %s39, 0
      %p255 = por %p253, %p254
      %s257 = sadd.s32 %s256, 1
      %p260 = scmp.eq.s32.totalorder %s33, 1
      %p261 = scmp.ne.s32.totalorder %s256, %s258
      %p262 = scmp.eq.s32.totalorder %s33, 0
      %p263 = por %p261, %p262
      %p264 = scmp.ne.s32.totalorder %s256, %s258
      %p265 = scmp.eq.s32.totalorder %s38, 1
      %p266 = por %p264, %p265
      %p267 = scmp.ne.s32.totalorder %s258, %s259
      %p268 = scmp.eq.s32.totalorder %s38, 0
      %p269 = por %p267, %p268
      %p270 = scmp.ne.s32.totalorder %s258, %s259
      %p271 = scmp.eq.s32.totalorder %s39, 1
      %p272 = por %p270, %p271
      %p274 = scmp.ne.s32.totalorder %s259, %s273
      %p275 = scmp.eq.s32.totalorder %s39, 0
      %p276 = por %p274, %p275
      %s278 = sadd.s32 %s277, 1
      %p281 = scmp.eq.s32.totalorder %s33, 1
      %p282 = scmp.ne.s32.totalorder %s277, %s279
      %p283 = scmp.eq.s32.totalorder %s33, 0
      %p284 = por %p282, %p283
      %p285 = scmp.ne.s32.totalorder %s277, %s279
      %p286 = scmp.eq.s32.totalorder %s38, 1
      %p287 = por %p285, %p286
      %p288 = scmp.ne.s32.totalorder %s279, %s280
      %p289 = scmp.eq.s32.totalorder %s38, 0
      %p290 = por %p288, %p289
      %p291 = scmp.ne.s32.totalorder %s279, %s280
      %p292 = scmp.eq.s32.totalorder %s39, 1
      %p293 = por %p291, %p292
      %p295 = scmp.ne.s32.totalorder %s280, %s294
      %p296 = scmp.eq.s32.totalorder %s39, 0
      %p297 = por %p295, %p296
      %s299 = sadd.s32 %s298, 1
      %p302 = scmp.eq.s32.totalorder %s33, 1
      %p303 = scmp.ne.s32.totalorder %s298, %s300
      %p304 = scmp.eq.s32.totalorder %s33, 0
      %p305 = por %p303, %p304
      %p306 = scmp.ne.s32.totalorder %s298, %s300
      %p307 = scmp.eq.s32.totalorder %s38, 1
      %p308 = por %p306, %p307
      %p309 = scmp.ne.s32.totalorder %s300, %s301
      %p310 = scmp.eq.s32.totalorder %s38, 0
      %p311 = por %p309, %p310
      %p312 = scmp.ne.s32.totalorder %s300, %s301
      %p313 = scmp.eq.s32.totalorder %s39, 1
      %p314 = por %p312, %p313
      %p316 = scmp.ne.s32.totalorder %s301, %s315
      %p317 = scmp.eq.s32.totalorder %s39, 0
      %p318 = por %p316, %p317
      %s320 = sadd.s32 %s319, 1
      %p323 = scmp.eq.s32.totalorder %s33, 1
      %p324 = scmp.ne.s32.totalorder %s319, %s321
      %p325 = scmp.eq.s32.totalorder %s33, 0
      %p326 = por %p324, %p325
      %p327 = scmp.ne.s32.totalorder %s319, %s321
      %p328 = scmp.eq.s32.totalorder %s38, 1
      %p329 = por %p327, %p328
      %p330 = scmp.ne.s32.totalorder %s321, %s322
      %p331 = scmp.eq.s32.totalorder %s38, 0
      %p332 = por %p330, %p331
      %p333 = scmp.ne.s32.totalorder %s321, %s322
      %p334 = scmp.eq.s32.totalorder %s39, 1
      %p335 = por %p333, %p334
      %p337 = scmp.ne.s32.totalorder %s322, %s336
      %p338 = scmp.eq.s32.totalorder %s39, 0
      %p339 = por %p337, %p338
      %s341 = sadd.s32 %s340, 1
      %p344 = scmp.eq.s32.totalorder %s33, 1
      %p345 = scmp.ne.s32.totalorder %s340, %s342
      %p346 = scmp.eq.s32.totalorder %s33, 0
      %p347 = por %p345, %p346
      %p348 = scmp.ne.s32.totalorder %s340, %s342
      %p349 = scmp.eq.s32.totalorder %s38, 1
      %p350 = por %p348, %p349
      %p351 = scmp.ne.s32.totalorder %s342, %s343
      %p352 = scmp.eq.s32.totalorder %s38, 0
      %p353 = por %p351, %p352
      %p354 = scmp.ne.s32.totalorder %s342, %s343
      %p355 = scmp.eq.s32.totalorder %s39, 1
      %p356 = por %p354, %p355
      %p358 = scmp.ne.s32.totalorder %s343, %s357
      %p359 = scmp.eq.s32.totalorder %s39, 0
      %p360 = por %p358, %p359
      %s362 = sadd.s32 %s361, 1
      %p365 = scmp.eq.s32.totalorder %s33, 1
      %p366 = scmp.ne.s32.totalorder %s361, %s363
      %p367 = scmp.eq.s32.totalorder %s33, 0
      %p368 = por %p366, %p367
      %p369 = scmp.ne.s32.totalorder %s361, %s363
      %p370 = scmp.eq.s32.totalorder %s38, 1
      %p371 = por %p369, %p370
      %p372 = scmp.ne.s32.totalorder %s363, %s364
      %p373 = scmp.eq.s32.totalorder %s38, 0
      %p374 = por %p372, %p373
      %p375 = scmp.ne.s32.totalorder %s363, %s364
      %p376 = scmp.eq.s32.totalorder %s39, 1
      %p377 = por %p375, %p376
      %p379 = scmp.ne.s32.totalorder %s364, %s378
      %p380 = scmp.eq.s32.totalorder %s39, 0
      %p381 = por %p379, %p380
      %s383 = sadd.s32 %s382, 1
      %p386 = scmp.eq.s32.totalorder %s33, 1
      %p387 = scmp.ne.s32.totalorder %s382, %s384
      %p388 = scmp.eq.s32.totalorder %s33, 0
      %p389 = por %p387, %p388
      %p390 = scmp.ne.s32.totalorder %s382, %s384
      %p391 = scmp.eq.s32.totalorder %s38, 1
      %p392 = por %p390, %p391
      %p393 = scmp.ne.s32.totalorder %s384, %s385
      %p394 = scmp.eq.s32.totalorder %s38, 0
      %p395 = por %p393, %p394
      %p396 = scmp.ne.s32.totalorder %s384, %s385
      %p397 = scmp.eq.s32.totalorder %s39, 1
      %p398 = por %p396, %p397
      %p400 = scmp.ne.s32.totalorder %s385, %s399
      %p401 = scmp.eq.s32.totalorder %s39, 0
      %p402 = por %p400, %p401
      %s404 = sadd.s32 %s403, 1
      %p407 = scmp.eq.s32.totalorder %s33, 1
      %p408 = scmp.ne.s32.totalorder %s403, %s405
      %p409 = scmp.eq.s32.totalorder %s33, 0
      %p410 = por %p408, %p409
      %p411 = scmp.ne.s32.totalorder %s403, %s405
      %p412 = scmp.eq.s32.totalorder %s38, 1
      %p413 = por %p411, %p412
      %p414 = scmp.ne.s32.totalorder %s405, %s406
      %p415 = scmp.eq.s32.totalorder %s38, 0
      %p416 = por %p414, %p415
      %p417 = scmp.ne.s32.totalorder %s405, %s406
      %p418 = scmp.eq.s32.totalorder %s39, 1
      %p419 = por %p417, %p418
      %p421 = scmp.ne.s32.totalorder %s406, %s420
      %p422 = scmp.eq.s32.totalorder %s39, 0
      %p423 = por %p421, %p422
      %s425 = sadd.s32 %s424, 1
      %p428 = scmp.eq.s32.totalorder %s33, 1
      %p429 = scmp.ne.s32.totalorder %s424, %s426
      %p430 = scmp.eq.s32.totalorder %s33, 0
      %p431 = por %p429, %p430
      %p432 = scmp.ne.s32.totalorder %s424, %s426
      %p433 = scmp.eq.s32.totalorder %s38, 1
      %p434 = por %p432, %p433
      %p435 = scmp.ne.s32.totalorder %s426, %s427
      %p436 = scmp.eq.s32.totalorder %s38, 0
      %p437 = por %p435, %p436
      %p438 = scmp.ne.s32.totalorder %s426, %s427
      %p439 = scmp.eq.s32.totalorder %s39, 1
      %p440 = por %p438, %p439
      %p442 = scmp.ne.s32.totalorder %s427, %s441
      %p443 = scmp.eq.s32.totalorder %s39, 0
      %p444 = por %p442, %p443
      %s446 = sadd.s32 %s445, 1
      %p449 = scmp.eq.s32.totalorder %s33, 1
      %p450 = scmp.ne.s32.totalorder %s445, %s447
      %p451 = scmp.eq.s32.totalorder %s33, 0
      %p452 = por %p450, %p451
      %p453 = scmp.ne.s32.totalorder %s445, %s447
      %p454 = scmp.eq.s32.totalorder %s38, 1
      %p455 = por %p453, %p454
      %p456 = scmp.ne.s32.totalorder %s447, %s448
      %p457 = scmp.eq.s32.totalorder %s38, 0
      %p458 = por %p456, %p457
      %p459 = scmp.ne.s32.totalorder %s447, %s448
      %p460 = scmp.eq.s32.totalorder %s39, 1
      %p461 = por %p459, %p460
      %p463 = scmp.ne.s32.totalorder %s448, %s462
      %p464 = scmp.eq.s32.totalorder %s39, 0
      %p465 = por %p463, %p464
      %s467 = sadd.s32 %s466, 1
      %p470 = scmp.eq.s32.totalorder %s33, 1
      %p471 = scmp.ne.s32.totalorder %s466, %s468
      %p472 = scmp.eq.s32.totalorder %s33, 0
      %p473 = por %p471, %p472
      %p474 = scmp.ne.s32.totalorder %s466, %s468
      %p475 = scmp.eq.s32.totalorder %s38, 1
      %p476 = por %p474, %p475
      %p477 = scmp.ne.s32.totalorder %s468, %s469
      %p478 = scmp.eq.s32.totalorder %s38, 0
      %p479 = por %p477, %p478
      %p480 = scmp.ne.s32.totalorder %s468, %s469
      %p481 = scmp.eq.s32.totalorder %s39, 1
      %p482 = por %p480, %p481
      %p484 = scmp.ne.s32.totalorder %s469, %s483
      %p485 = scmp.eq.s32.totalorder %s39, 0
      %p486 = por %p484, %p485
      %s488 = sadd.s32 %s487, 1
      %p491 = scmp.eq.s32.totalorder %s33, 1
      %p492 = scmp.ne.s32.totalorder %s487, %s489
      %p493 = scmp.eq.s32.totalorder %s33, 0
      %p494 = por %p492, %p493
      %p495 = scmp.ne.s32.totalorder %s487, %s489
      %p496 = scmp.eq.s32.totalorder %s38, 1
      %p497 = por %p495, %p496
      %p498 = scmp.ne.s32.totalorder %s489, %s490
      %p499 = scmp.eq.s32.totalorder %s38, 0
      %p500 = por %p498, %p499
      %p501 = scmp.ne.s32.totalorder %s489, %s490
      %p502 = scmp.eq.s32.totalorder %s39, 1
      %p503 = por %p501, %p502
      %p505 = scmp.ne.s32.totalorder %s490, %s504
      %p506 = scmp.eq.s32.totalorder %s39, 0
      %p507 = por %p505, %p506
      %s509 = sadd.s32 %s508, 1
      %p512 = scmp.eq.s32.totalorder %s33, 1
      %p513 = scmp.ne.s32.totalorder %s508, %s510
      %p514 = scmp.eq.s32.totalorder %s33, 0
      %p515 = por %p513, %p514
      %p516 = scmp.ne.s32.totalorder %s508, %s510
      %p517 = scmp.eq.s32.totalorder %s38, 1
      %p518 = por %p516, %p517
      %p519 = scmp.ne.s32.totalorder %s510, %s511
      %p520 = scmp.eq.s32.totalorder %s38, 0
      %p521 = por %p519, %p520
      %p522 = scmp.ne.s32.totalorder %s510, %s511
      %p523 = scmp.eq.s32.totalorder %s39, 1
      %p524 = por %p522, %p523
      %p526 = scmp.ne.s32.totalorder %s511, %s525
      %p527 = scmp.eq.s32.totalorder %s39, 0
      %p528 = por %p526, %p527
      %s530 = sadd.s32 %s529, 1
      %p533 = scmp.eq.s32.totalorder %s33, 1
      %p534 = scmp.ne.s32.totalorder %s529, %s531
      %p535 = scmp.eq.s32.totalorder %s33, 0
      %p536 = por %p534, %p535
      %p537 = scmp.ne.s32.totalorder %s529, %s531
      %p538 = scmp.eq.s32.totalorder %s38, 1
      %p539 = por %p537, %p538
      %p540 = scmp.ne.s32.totalorder %s531, %s532
      %p541 = scmp.eq.s32.totalorder %s38, 0
      %p542 = por %p540, %p541
      %p543 = scmp.ne.s32.totalorder %s531, %s532
      %p544 = scmp.eq.s32.totalorder %s39, 1
      %p545 = por %p543, %p544
      %p547 = scmp.ne.s32.totalorder %s532, %s546
      %p548 = scmp.eq.s32.totalorder %s39, 0
      %p549 = por %p547, %p548
      %s550 = ssub.s32 %s33, %s40
      %p551 = scmp.eq.s32.totalorder %s550, 0
      %s553 = sadd.s32 %s552, 1
      %s554 = scalar_select %p551, %s552, %s553
      %p557 = pneg %p551
      %p558 = scmp.eq.s32.totalorder %s33, 1
      %p559 = por %p557, %p558
      %p560 = scmp.ne.s32.totalorder %s552, %s555
      %p561 = scmp.eq.s32.totalorder %s33, 0
      %p562 = por %p560, %p561
      %p563 = scmp.ne.s32.totalorder %s552, %s555
      %p564 = scmp.eq.s32.totalorder %s38, 1
      %p565 = por %p563, %p564
      %p566 = scmp.ne.s32.totalorder %s555, %s556
      %p567 = scmp.eq.s32.totalorder %s38, 0
      %p568 = por %p566, %p567
      %p569 = scmp.ne.s32.totalorder %s555, %s556
      %p570 = scmp.eq.s32.totalorder %s39, 1
      %p571 = por %p569, %p570
      %p573 = scmp.ne.s32.totalorder %s556, %s572
      %p574 = scmp.eq.s32.totalorder %s39, 0
      %p575 = por %p573, %p574
      %p576 = scmp.le.s32.totalorder 1, %s33
      %p577 = scmp.lt.s32.totalorder %s33, 3
      %p578 = pnand %p576, %p577
      %p579 = pneg %p578
      // Predicated region
      $region9: #{_lambda_.1} parent=5 // pred_check
        _
      $region10: #{_lambda_.1} parent=5 // pred_check_branch
        %581 = sbr.rel (%p578) target = $region12
      $region11: #{_lambda_.1} parent=5 // pred_region
        %s582 = ssub.s32 %s33, 1
        // Predicated region
        $region13: #{_lambda_.1} parent=11 // pred_check
          %p583 = pneg %p80
        $region14: #{_lambda_.1} parent=11 // pred_check_branch
          %585 = sbr.rel (%p583) target = $region16
        $region15: #{_lambda_.1} parent=11 // pred_region
          _
        $region16: #{_lambda_.1} parent=11 // pred_fallthru
          _
        // Predicated region
        $region17: #{_lambda_.1} parent=11 // pred_check
          %p586 = pneg %p101
        $region18: #{_lambda_.1} parent=11 // pred_check_branch
          %588 = sbr.rel (%p586) target = $region20
        $region19: #{_lambda_.1} parent=11 // pred_region
          _
        $region20: #{_lambda_.1} parent=11 // pred_fallthru
          _
        // Predicated region
        $region21: #{_lambda_.1} parent=11 // pred_check
          %p589 = pneg %p122
        $region22: #{_lambda_.1} parent=11 // pred_check_branch
          %591 = sbr.rel (%p589) target = $region24
        $region23: #{_lambda_.1} parent=11 // pred_region
          _
        $region24: #{_lambda_.1} parent=11 // pred_fallthru
          _
        // Predicated region
        $region25: #{_lambda_.1} parent=11 // pred_check
          %p592 = pneg %p143
        $region26: #{_lambda_.1} parent=11 // pred_check_branch
          %594 = sbr.rel (%p592) target = $region28
        $region27: #{_lambda_.1} parent=11 // pred_region
          _
        $region28: #{_lambda_.1} parent=11 // pred_fallthru
          _
        // Predicated region
        $region29: #{_lambda_.1} parent=11 // pred_check
          %p595 = pneg %p164
        $region30: #{_lambda_.1} parent=11 // pred_check_branch
          %597 = sbr.rel (%p595) target = $region32
        $region31: #{_lambda_.1} parent=11 // pred_region
          _
        $region32: #{_lambda_.1} parent=11 // pred_fallthru
          _
        // Predicated region
        $region33: #{_lambda_.1} parent=11 // pred_check
          %p598 = pneg %p185
        $region34: #{_lambda_.1} parent=11 // pred_check_branch
          %600 = sbr.rel (%p598) target = $region36
        $region35: #{_lambda_.1} parent=11 // pred_region
          _
        $region36: #{_lambda_.1} parent=11 // pred_fallthru
          _
        // Predicated region
        $region37: #{_lambda_.1} parent=11 // pred_check
          %p601 = pneg %p206
        $region38: #{_lambda_.1} parent=11 // pred_check_branch
          %603 = sbr.rel (%p601) target = $region40
        $region39: #{_lambda_.1} parent=11 // pred_region
          _
        $region40: #{_lambda_.1} parent=11 // pred_fallthru
          _
        // Predicated region
        $region41: #{_lambda_.1} parent=11 // pred_check
          %p604 = pneg %p227
        $region42: #{_lambda_.1} parent=11 // pred_check_branch
          %606 = sbr.rel (%p604) target = $region44
        $region43: #{_lambda_.1} parent=11 // pred_region
          _
        $region44: #{_lambda_.1} parent=11 // pred_fallthru
          _
        // Predicated region
        $region45: #{_lambda_.1} parent=11 // pred_check
          %p607 = pneg %p248
        $region46: #{_lambda_.1} parent=11 // pred_check_branch
          %609 = sbr.rel (%p607) target = $region48
        $region47: #{_lambda_.1} parent=11 // pred_region
          _
        $region48: #{_lambda_.1} parent=11 // pred_fallthru
          _
        // Predicated region
        $region49: #{_lambda_.1} parent=11 // pred_check
          %p610 = pneg %p269
        $region50: #{_lambda_.1} parent=11 // pred_check_branch
          %612 = sbr.rel (%p610) target = $region52
        $region51: #{_lambda_.1} parent=11 // pred_region
          _
        $region52: #{_lambda_.1} parent=11 // pred_fallthru
          _
        // Predicated region
        $region53: #{_lambda_.1} parent=11 // pred_check
          %p613 = pneg %p290
        $region54: #{_lambda_.1} parent=11 // pred_check_branch
          %615 = sbr.rel (%p613) target = $region56
        $region55: #{_lambda_.1} parent=11 // pred_region
          _
        $region56: #{_lambda_.1} parent=11 // pred_fallthru
          _
        // Predicated region
        $region57: #{_lambda_.1} parent=11 // pred_check
          %p616 = pneg %p311
        $region58: #{_lambda_.1} parent=11 // pred_check_branch
          %618 = sbr.rel (%p616) target = $region60
        $region59: #{_lambda_.1} parent=11 // pred_region
          _
        $region60: #{_lambda_.1} parent=11 // pred_fallthru
          _
        // Predicated region
        $region61: #{_lambda_.1} parent=11 // pred_check
          %p619 = pneg %p332
        $region62: #{_lambda_.1} parent=11 // pred_check_branch
          %621 = sbr.rel (%p619) target = $region64
        $region63: #{_lambda_.1} parent=11 // pred_region
          _
        $region64: #{_lambda_.1} parent=11 // pred_fallthru
          _
        // Predicated region
        $region65: #{_lambda_.1} parent=11 // pred_check
          %p622 = pneg %p353
        $region66: #{_lambda_.1} parent=11 // pred_check_branch
          %624 = sbr.rel (%p622) target = $region68
        $region67: #{_lambda_.1} parent=11 // pred_region
          _
        $region68: #{_lambda_.1} parent=11 // pred_fallthru
          _
        // Predicated region
        $region69: #{_lambda_.1} parent=11 // pred_check
          %p625 = pneg %p374
        $region70: #{_lambda_.1} parent=11 // pred_check_branch
          %627 = sbr.rel (%p625) target = $region72
        $region71: #{_lambda_.1} parent=11 // pred_region
          _
        $region72: #{_lambda_.1} parent=11 // pred_fallthru
          _
        // Predicated region
        $region73: #{_lambda_.1} parent=11 // pred_check
          %p628 = pneg %p395
        $region74: #{_lambda_.1} parent=11 // pred_check_branch
          %630 = sbr.rel (%p628) target = $region76
        $region75: #{_lambda_.1} parent=11 // pred_region
          _
        $region76: #{_lambda_.1} parent=11 // pred_fallthru
          _
        // Predicated region
        $region77: #{_lambda_.1} parent=11 // pred_check
          %p631 = pneg %p416
        $region78: #{_lambda_.1} parent=11 // pred_check_branch
          %633 = sbr.rel (%p631) target = $region80
        $region79: #{_lambda_.1} parent=11 // pred_region
          _
        $region80: #{_lambda_.1} parent=11 // pred_fallthru
          _
        // Predicated region
        $region81: #{_lambda_.1} parent=11 // pred_check
          %p634 = pneg %p437
        $region82: #{_lambda_.1} parent=11 // pred_check_branch
          %636 = sbr.rel (%p634) target = $region84
        $region83: #{_lambda_.1} parent=11 // pred_region
          _
        $region84: #{_lambda_.1} parent=11 // pred_fallthru
          _
        // Predicated region
        $region85: #{_lambda_.1} parent=11 // pred_check
          %p637 = pneg %p458
        $region86: #{_lambda_.1} parent=11 // pred_check_branch
          %639 = sbr.rel (%p637) target = $region88
        $region87: #{_lambda_.1} parent=11 // pred_region
          _
        $region88: #{_lambda_.1} parent=11 // pred_fallthru
          _
        // Predicated region
        $region89: #{_lambda_.1} parent=11 // pred_check
          %p640 = pneg %p479
        $region90: #{_lambda_.1} parent=11 // pred_check_branch
          %642 = sbr.rel (%p640) target = $region92
        $region91: #{_lambda_.1} parent=11 // pred_region
          _
        $region92: #{_lambda_.1} parent=11 // pred_fallthru
          _
        // Predicated region
        $region93: #{_lambda_.1} parent=11 // pred_check
          %p643 = pneg %p500
        $region94: #{_lambda_.1} parent=11 // pred_check_branch
          %645 = sbr.rel (%p643) target = $region96
        $region95: #{_lambda_.1} parent=11 // pred_region
          _
        $region96: #{_lambda_.1} parent=11 // pred_fallthru
          _
        // Predicated region
        $region97: #{_lambda_.1} parent=11 // pred_check
          %p646 = pneg %p521
        $region98: #{_lambda_.1} parent=11 // pred_check_branch
          %648 = sbr.rel (%p646) target = $region100
        $region99: #{_lambda_.1} parent=11 // pred_region
          _
        $region100: #{_lambda_.1} parent=11 // pred_fallthru
          _
        // Predicated region
        $region101: #{_lambda_.1} parent=11 // pred_check
          %p649 = pneg %p542
        $region102: #{_lambda_.1} parent=11 // pred_check_branch
          %651 = sbr.rel (%p649) target = $region104
        $region103: #{_lambda_.1} parent=11 // pred_region
          _
        $region104: #{_lambda_.1} parent=11 // pred_fallthru
          _
      $region12: #{_lambda_.1} parent=5 // pred_fallthru
        _
      %p652 = scmp.lt.s32.totalorder %s33, 2
      // Predicated region
      $region105: #{_lambda_.1} parent=5 // pred_check
        %p653 = pneg %p652
      $region106: #{_lambda_.1} parent=5 // pred_check_branch
        %655 = sbr.rel (%p653) target = $region108
      $region107: #{_lambda_.1} parent=5 // pred_region
        // Predicated region
        $region109: #{_lambda_.1} parent=107 // pred_check
          %p656 = pneg %p53
        $region110: #{_lambda_.1} parent=107 // pred_check_branch
          %658 = sbr.rel (%p656) target = $region112
        $region111: #{_lambda_.1} parent=107 // pred_region
          %s659 = smul.u32 8, %s33
          %p660 = scmp.lt.s32.totalorder %s659, 15
          %s661 = scalar_select %p660, %s659, 15
          %s662 = smul.addr %s661, 8
          %s663 = scalar_lea.vmem %s0, %s662
          %s664 = smul.u32 8, %s33
        $region112: #{_lambda_.1} parent=107 // pred_fallthru
          _
      $region108: #{_lambda_.1} parent=5 // pred_fallthru
        _
      %p665 = scmp.le.s32.totalorder 1, %s33
      %p666 = scmp.lt.s32.totalorder %s33, 3
      %p667 = pnand %p665, %p666
      %p668 = pneg %p667
      // Predicated region
      $region113: #{_lambda_.1} parent=5 // pred_check
        _
      $region114: #{_lambda_.1} parent=5 // pred_check_branch
        %670 = sbr.rel (%p667) target = $region116
      $region115: #{_lambda_.1} parent=5 // pred_region
        %s671 = ssub.s32 %s33, 1
        %s672 = smul.u32 8, %s38
        %p673 = scmp.lt.s32.totalorder %s672, 15
        %s674 = scalar_select %p673, %s672, 15
        %s675 = smul.addr %s674, 8
        %s676 = scalar_lea.vmem %s0, %s675
        %p677 = pneg %p59
        %p678 = pneg %p56
        %p679 = pneg %p80
        %p680 = pneg %p77
        %p681 = pneg %p101
        %p682 = pneg %p98
        %p683 = pneg %p122
        %p684 = pneg %p119
        %p685 = pneg %p143
        %p686 = pneg %p140
        %p687 = pneg %p164
        %p688 = pneg %p161
        %p689 = pneg %p185
        %p690 = pneg %p182
        %p691 = pneg %p206
        %p692 = pneg %p203
        %p693 = pneg %p227
        %p694 = pneg %p224
        %p695 = pneg %p248
        %p696 = pneg %p245
        %p697 = pneg %p269
        %p698 = pneg %p266
        %p699 = pneg %p290
        %p700 = pneg %p287
        %p701 = pneg %p311
        %p702 = pneg %p308
        %p703 = pneg %p332
        %p704 = pneg %p329
        %p705 = pneg %p353
        %p706 = pneg %p350
        %p707 = pneg %p374
        %p708 = pneg %p371
        %p709 = pneg %p395
        %p710 = pneg %p392
        %p711 = pneg %p416
        %p712 = pneg %p413
        %p713 = pneg %p437
        %p714 = pneg %p434
        %p715 = pneg %p458
        %p716 = pneg %p455
        %p717 = pneg %p479
        %p718 = pneg %p476
        %p719 = pneg %p500
        %p720 = pneg %p497
        %p721 = pneg %p521
        %p722 = pneg %p518
        %p723 = pneg %p542
        %p724 = pneg %p539
        %p725 = pneg %p568
        %p726 = pneg %p565
        %s727 = sand.u32 %s555, 1
        %s728 = scalar_lea.sflag [#allocation7], %s727
        %s729 = sand.u32 %s555, 1
        %s730 = smul.addr %s729, 64
        %s731 = scalar_lea.vmem [#allocation6], %s730
        %s732 = smul.u32 8, %s38
        %p733 = scmp.lt.s32.totalorder %s732, 15
        %s734 = scalar_select %p733, %s732, 15
        %s735 = smul.addr %s734, 8
        %s736 = scalar_lea.vmem %s0, %s735
        %s737 = smul.u32 8, %s38
        %s738 = smul.u32 8, %s38
        %vm740 = vcmask 261120
        %741 = vst.msk [vmem:[#allocation4] sm:$0xff] %vm740, 0.0
        %742 = vst.msk [vmem:[#allocation4 + $0x8] sm:$0xff] %vm740, 0.0
        %743 = vst.msk [vmem:[#allocation4 + $0x10] sm:$0xff] %vm740, 0.0
        %744 = vst.msk [vmem:[#allocation4 + $0x18] sm:$0xff] %vm740, 0.0
        %745 = vst.msk [vmem:[#allocation4 + $0x20] sm:$0xff] %vm740, 0.0
        %746 = vst.msk [vmem:[#allocation4 + $0x28] sm:$0xff] %vm740, 0.0
        %747 = vst.msk [vmem:[#allocation4 + $0x30] sm:$0xff] %vm740, 0.0
        %748 = vst.msk [vmem:[#allocation4 + $0x38] sm:$0xff] %vm740, 0.0
        %749 = vst.msk [vmem:[#allocation4 + $0x40] sm:$0xff] %vm740, 0.0
        %750 = vst.msk [vmem:[#allocation4 + $0x48] sm:$0xff] %vm740, 0.0
        %751 = vst.msk [vmem:[#allocation4 + $0x50] sm:$0xff] %vm740, 0.0
        %752 = vst.msk [vmem:[#allocation4 + $0x58] sm:$0xff] %vm740, 0.0
        %v753 = vld [vmem:[%s1] sm:$0xff]
        %v754 = vld [vmem:[%s1 + $0x8] sm:$0xff]
        %v755 = vld [vmem:[%s1 + $0x10] sm:$0xff]
        %v756 = vld [vmem:[%s1 + $0x18] sm:$0xff]
        %v757 = vld [vmem:[%s1 + $0x20] sm:$0xff]
        %v758 = vld [vmem:[%s1 + $0x28] sm:$0xff]
        %v759 = vld [vmem:[%s1 + $0x30] sm:$0xff]
        %v760 = vld [vmem:[%s1 + $0x38] sm:$0xff]
        %v761 = vld [vmem:[%s2] sm:$0xff]
        %v762 = vld [vmem:[%s2 + $0x8] sm:$0xff]
        %v763 = vld [vmem:[%s2 + $0x10] sm:$0xff]
        %v764 = vld [vmem:[%s2 + $0x18] sm:$0xff]
        %v765 = vld [vmem:[%s2 + $0x20] sm:$0xff]
        %v766 = vld [vmem:[%s2 + $0x28] sm:$0xff]
        %v767 = vld [vmem:[%s2 + $0x30] sm:$0xff]
        %v768 = vld [vmem:[%s2 + $0x38] sm:$0xff]
        %v769 = vld [vmem:[%s2 + $0x40] sm:$0xff]
        %v770 = vld [vmem:[%s2 + $0x48] sm:$0xff]
        %v771 = vld [vmem:[%s2 + $0x50] sm:$0xff]
        %v772 = vld [vmem:[%s2 + $0x58] sm:$0xff]
        %v773 = vld [vmem:[%s2 + $0x60] sm:$0xff]
        %v774 = vld [vmem:[%s2 + $0x68] sm:$0xff]
        %v775 = vld [vmem:[%s2 + $0x70] sm:$0xff]
        %v776 = vld [vmem:[%s2 + $0x78] sm:$0xff]
        %v777 = vld [vmem:[%s2 + $0x80] sm:$0xff]
        %v778 = vld [vmem:[%s2 + $0x88] sm:$0xff]
        %v779 = vld [vmem:[%s2 + $0x90] sm:$0xff]
        %v780 = vld [vmem:[%s2 + $0x98] sm:$0xff]
        %v781 = vld [vmem:[%s2 + $0xa0] sm:$0xff]
        %v782 = vld [vmem:[%s2 + $0xa8] sm:$0xff]
        %v783 = vld [vmem:[%s2 + $0xb0] sm:$0xff]
        %v784 = vld [vmem:[%s2 + $0xb8] sm:$0xff]
        %v785 = vld [vmem:[%s736] sm:$0xff]
        %v786 = vld [vmem:[%s736 + $0x8] sm:$0xff]
        %v787 = vld [vmem:[%s736 + $0x10] sm:$0xff]
        %v788 = vld [vmem:[%s736 + $0x18] sm:$0xff]
        %v789 = vld [vmem:[%s736 + $0x20] sm:$0xff]
        %v790 = vld [vmem:[%s736 + $0x28] sm:$0xff]
        %v791 = vld [vmem:[%s736 + $0x30] sm:$0xff]
        %v792 = vld [vmem:[%s736 + $0x38] sm:$0xff]
        %v793 = vpack.c.bf16 %v786, %v785
        %v794 = vpack.c.bf16 %v788, %v787
        %v795 = vpack.c.bf16 %v790, %v789
        %v796 = vpack.c.bf16 %v792, %v791
        %v797 = vld [vmem:[%s3] sm:$0xf]
        %v798 = vld [vmem:[%s3 + $0x4] sm:$0xf]
        %v799 = vld [vmem:[%s3 + $0x8] sm:$0xf]
        %v800 = vld [vmem:[%s3 + $0xc] sm:$0xf]
        %v801 = vld [vmem:[%s3 + $0x10] sm:$0x3]
        %v802 = vld [vmem:[%s4] sm:$0x1]
        %v804 = vlaneseq
        %v805 = vshrl.u32 %v804, 7
        %v806 = vsub.s32 0, %v805
        %v807 = vrot.slane %v802, %v806
        %v814 = vunpack.c.l.b16 %v797
        %v815 = vunpack.c.l.b16 %v798
        %v816 = vunpack.c.l.b16 %v799
        %v817 = vunpack.c.l.b16 %v800
        %v818 = vunpack.c.l.b16 %v801
        %v819 = vpack.c.b16 %v815, %v814
        %v820 = vpack.c.b16 %v817, %v816
        %v821 = vpack.c.b16 %v818, %v818
        %vm824 = vcmask 293888
        %v826 = vsel %vm824, %v793, 0
        %v829 = vsel %vm824, %v794, 0
        %v832 = vsel %vm824, %v795, 0
        %v835 = vsel %vm824, %v796, 0
        %vm837 = vcmask 1041408
        %v839 = vsel %vm837, %v821, 0
        %841 = vmatprep.subr.bf16.mxu0 0
        %842 = vmatpush1.bf16.msra.mxu0 %v819
        %843 = vmatprep.subr.bf16.mxu0 0
        %844 = vmatpush1.bf16.msra.mxu0 %v820
        %845 = vmatprep.subr.bf16.mxu0 0
        %846 = vmatpush1.bf16.msra.mxu0 %v839
        %847 = vmatprep.subr.bf16.mxu0 0
        %848 = vmatpush1.bf16.msra.mxu0 0
        %849 = vmatprep.subr.bf16.mxu0 0
        %850 = vmatpush1.bf16.msra.mxu0 0
        %851 = vmatprep.subr.bf16.mxu0 0
        %852 = vmatpush1.bf16.msra.mxu0 0
        %853 = vmatprep.subr.bf16.mxu0 0
        %854 = vmatpush1.bf16.msra.mxu0 0
        %855 = vmatprep.subr.bf16.mxu0 0
        %856 = vmatpush1.bf16.msra.mxu0 0
        %857 = vmatprep.subr.bf16.mxu0 0
        %858 = vmatpush1.bf16.msra.mxu0 0
        %859 = vmatprep.subr.bf16.mxu0 0
        %860 = vmatpush1.bf16.msra.mxu0 0
        %861 = vmatprep.subr.bf16.mxu0 0
        %862 = vmatpush1.bf16.msra.mxu0 0
        %863 = vmatprep.subr.bf16.mxu0 0
        %864 = vmatpush1.bf16.msra.mxu0 0
        %865 = vmatprep.subr.bf16.mxu0 0
        %866 = vmatpush1.bf16.msra.mxu0 0
        %867 = vmatprep.subr.bf16.mxu0 0
        %868 = vmatpush1.bf16.msra.mxu0 0
        %869 = vmatprep.subr.bf16.mxu0 0
        %870 = vmatpush1.bf16.msra.mxu0 0
        %871 = vmatprep.subr.bf16.mxu0 0
        %872 = vmatpush1.bf16.msra.mxu0 0
        %873 = vmatprep.mubr.bf16.mxu0 0
        %874 = vmatmul.mubr.bf16.gmra.mrb[0].mxu0 %v826
        %v875 = vpop.f32.mrb[0].mxu0
        %v876 = vadd.f32 %v807, %v875
        %v877 = vpop.f32.mrb[0].mxu0
        %v878 = vpop.f32.mrb[0].mxu0
        %v879 = vadd.f32 %v807, %v878
        %v880 = vpop.f32.mrb[0].mxu0
        %881 = vmatprep.mubr.bf16.mxu0 0
        %882 = vmatmul.mubr.bf16.gmra.mrb[0].mxu0 %v829
        %v883 = vpop.f32.mrb[0].mxu0
        %v884 = vadd.f32 %v807, %v883
        %v885 = vpop.f32.mrb[0].mxu0
        %v886 = vpop.f32.mrb[0].mxu0
        %v887 = vadd.f32 %v807, %v886
        %v888 = vpop.f32.mrb[0].mxu0
        %889 = vmatprep.mubr.bf16.mxu0 0
        %890 = vmatmul.mubr.bf16.gmra.mrb[0].mxu0 %v832
        %v891 = vpop.f32.mrb[0].mxu0
        %v892 = vadd.f32 %v807, %v891
        %v893 = vpop.f32.mrb[0].mxu0
        %v894 = vpop.f32.mrb[0].mxu0
        %v895 = vadd.f32 %v807, %v894
        %v896 = vpop.f32.mrb[0].mxu0
        %897 = vmatprep.mubr.bf16.mxu0 0
        %898 = vmatmul.mubr.bf16.gmra.mrb[0].mxu0 %v835
        %v899 = vpop.f32.mrb[0].mxu0
        %v900 = vadd.f32 %v807, %v899
        %v901 = vpop.f32.mrb[0].mxu0
        %v902 = vpop.f32.mrb[0].mxu0
        %v903 = vadd.f32 %v807, %v902
        %v904 = vpop.f32.mrb[0].mxu0
        %905 = vdwg.mxu0
        %v906 = vld [vmem:[%s5] sm:$0x1]
        %v907 = vld [vmem:[%s6] sm:$0x1]
        %v908 = vsel %vm740, %v876, 0.0
        %909 = vadd.xlane.f32.xlu0 %v908
        %v910 = vpop.xlane.xlu0 %909
        %v911 = vsel %vm740, %v879, 0.0
        %912 = vadd.xlane.f32.xlu0 %v911
        %v913 = vpop.xlane.xlu0 %912
        %v914 = vsel %vm740, %v884, 0.0
        %915 = vadd.xlane.f32.xlu0 %v914
        %v916 = vpop.xlane.xlu0 %915
        %v917 = vsel %vm740, %v887, 0.0
        %918 = vadd.xlane.f32.xlu0 %v917
        %v919 = vpop.xlane.xlu0 %918
        %v920 = vsel %vm740, %v892, 0.0
        %921 = vadd.xlane.f32.xlu0 %v920
        %v922 = vpop.xlane.xlu0 %921
        %v923 = vsel %vm740, %v895, 0.0
        %924 = vadd.xlane.f32.xlu0 %v923
        %v925 = vpop.xlane.xlu0 %924
        %v926 = vsel %vm740, %v900, 0.0
        %927 = vadd.xlane.f32.xlu0 %v926
        %v928 = vpop.xlane.xlu0 %927
        %v929 = vsel %vm740, %v903, 0.0
        %930 = vadd.xlane.f32.xlu0 %v929
        %v931 = vpop.xlane.xlu0 %930
        %v932 = vrcp.pop 32.0
        %v933 = vmul.f32 %v910, %v932
        %v934 = vmul.f32 %v913, %v932
        %v935 = vmul.f32 %v916, %v932
        %v936 = vmul.f32 %v919, %v932
        %v937 = vmul.f32 %v922, %v932
        %v938 = vmul.f32 %v925, %v932
        %v939 = vmul.f32 %v928, %v932
        %v940 = vmul.f32 %v931, %v932
        %v941 = vsub.f32 %v876, %v933
        %v942 = vsub.f32 %v879, %v934
        %v943 = vsub.f32 %v884, %v935
        %v944 = vsub.f32 %v887, %v936
        %v945 = vsub.f32 %v892, %v937
        %v946 = vsub.f32 %v895, %v938
        %v947 = vsub.f32 %v900, %v939
        %v948 = vsub.f32 %v903, %v940
        %v949 = vmul.f32 %v941, %v941
        %v950 = vmul.f32 %v942, %v942
        %v951 = vmul.f32 %v943, %v943
        %v952 = vmul.f32 %v944, %v944
        %v953 = vmul.f32 %v945, %v945
        %v954 = vmul.f32 %v946, %v946
        %v955 = vmul.f32 %v947, %v947
        %v956 = vmul.f32 %v948, %v948
        %v957 = vsel %vm740, %v949, 0.0
        %958 = vadd.xlane.f32.xlu0 %v957
        %v959 = vpop.xlane.xlu0 %958
        %v960 = vsel %vm740, %v950, 0.0
        %961 = vadd.xlane.f32.xlu0 %v960
        %v962 = vpop.xlane.xlu0 %961
        %v963 = vsel %vm740, %v951, 0.0
        %964 = vadd.xlane.f32.xlu0 %v963
        %v965 = vpop.xlane.xlu0 %964
        %v966 = vsel %vm740, %v952, 0.0
        %967 = vadd.xlane.f32.xlu0 %v966
        %v968 = vpop.xlane.xlu0 %967
        %v969 = vsel %vm740, %v953, 0.0
        %970 = vadd.xlane.f32.xlu0 %v969
        %v971 = vpop.xlane.xlu0 %970
        %v972 = vsel %vm740, %v954, 0.0
        %973 = vadd.xlane.f32.xlu0 %v972
        %v974 = vpop.xlane.xlu0 %973
        %v975 = vsel %vm740, %v955, 0.0
        %976 = vadd.xlane.f32.xlu0 %v975
        %v977 = vpop.xlane.xlu0 %976
        %v978 = vsel %vm740, %v956, 0.0
        %979 = vadd.xlane.f32.xlu0 %v978
        %v980 = vpop.xlane.xlu0 %979
        %v981 = vmul.f32 %v959, %v932
        %v982 = vmul.f32 %v962, %v932
        %v983 = vmul.f32 %v965, %v932
        %v984 = vmul.f32 %v968, %v932
        %v985 = vmul.f32 %v971, %v932
        %v986 = vmul.f32 %v974, %v932
        %v987 = vmul.f32 %v977, %v932
        %v988 = vmul.f32 %v980, %v932
        %v989 = vadd.f32 %v981, 1e-05
        %v990 = vadd.f32 %v982, 1e-05
        %v991 = vadd.f32 %v983, 1e-05
        %v992 = vadd.f32 %v984, 1e-05
        %v993 = vadd.f32 %v985, 1e-05
        %v994 = vadd.f32 %v986, 1e-05
        %v995 = vadd.f32 %v987, 1e-05
        %v996 = vadd.f32 %v988, 1e-05
        %v997 = vrsqrt.pop %v989
        %v998 = vrsqrt.pop %v990
        %v999 = vrsqrt.pop %v991
        %v1000 = vrsqrt.pop %v992
        %v1001 = vrsqrt.pop %v993
        %v1002 = vrsqrt.pop %v994
        %v1003 = vrsqrt.pop %v995
        %v1004 = vrsqrt.pop %v996
        %v1005 = vmul.f32 %v941, %v997
        %v1006 = vmul.f32 %v942, %v998
        %v1007 = vmul.f32 %v943, %v999
        %v1008 = vmul.f32 %v944, %v1000
        %v1009 = vmul.f32 %v945, %v1001
        %v1010 = vmul.f32 %v946, %v1002
        %v1011 = vmul.f32 %v947, %v1003
        %v1012 = vmul.f32 %v948, %v1004
        %v1014 = vlaneseq
        %v1015 = vshrl.u32 %v1014, 7
        %v1016 = vsub.s32 0, %v1015
        %v1017 = vrot.slane %v906, %v1016
        %v1019 = vmul.f32 %v1005, %v1017
        %v1020 = vmul.f32 %v1006, %v1017
        %v1021 = vmul.f32 %v1007, %v1017
        %v1022 = vmul.f32 %v1008, %v1017
        %v1023 = vmul.f32 %v1009, %v1017
        %v1024 = vmul.f32 %v1010, %v1017
        %v1025 = vmul.f32 %v1011, %v1017
        %v1026 = vmul.f32 %v1012, %v1017
        %v1028 = vlaneseq
        %v1029 = vshrl.u32 %v1028, 7
        %v1030 = vsub.s32 0, %v1029
        %v1031 = vrot.slane %v907, %v1030
        %v1033 = vadd.f32 %v1019, %v1031
        %v1034 = vadd.f32 %v1020, %v1031
        %v1035 = vadd.f32 %v1021, %v1031
        %v1036 = vadd.f32 %v1022, %v1031
        %v1037 = vadd.f32 %v1023, %v1031
        %v1038 = vadd.f32 %v1024, %v1031
        %v1039 = vadd.f32 %v1025, %v1031
        %v1040 = vadd.f32 %v1026, %v1031
        %v1041 = vld [vmem:[%s7] sm:$0x1]
        %v1042 = vld [vmem:[%s8] sm:$0x1]
        %v1043 = vsel %vm740, %v1033, 0.0
        %1044 = vadd.xlane.f32.xlu0 %v1043
        %v1045 = vpop.xlane.xlu0 %1044
        %v1046 = vsel %vm740, %v1034, 0.0
        %1047 = vadd.xlane.f32.xlu0 %v1046
        %v1048 = vpop.xlane.xlu0 %1047
        %v1049 = vsel %vm740, %v1035, 0.0
        %1050 = vadd.xlane.f32.xlu0 %v1049
        %v1051 = vpop.xlane.xlu0 %1050
        %v1052 = vsel %vm740, %v1036, 0.0
        %1053 = vadd.xlane.f32.xlu0 %v1052
        %v1054 = vpop.xlane.xlu0 %1053
        %v1055 = vsel %vm740, %v1037, 0.0
        %1056 = vadd.xlane.f32.xlu0 %v1055
        %v1057 = vpop.xlane.xlu0 %1056
        %v1058 = vsel %vm740, %v1038, 0.0
        %1059 = vadd.xlane.f32.xlu0 %v1058
        %v1060 = vpop.xlane.xlu0 %1059
        %v1061 = vsel %vm740, %v1039, 0.0
        %1062 = vadd.xlane.f32.xlu0 %v1061
        %v1063 = vpop.xlane.xlu0 %1062
        %v1064 = vsel %vm740, %v1040, 0.0
        %1065 = vadd.xlane.f32.xlu0 %v1064
        %v1066 = vpop.xlane.xlu0 %1065
        %v1067 = vmul.f32 %v1045, %v932
        %v1068 = vmul.f32 %v1048, %v932
        %v1069 = vmul.f32 %v1051, %v932
        %v1070 = vmul.f32 %v1054, %v932
        %v1071 = vmul.f32 %v1057, %v932
        %v1072 = vmul.f32 %v1060, %v932
        %v1073 = vmul.f32 %v1063, %v932
        %v1074 = vmul.f32 %v1066, %v932
        %v1075 = vsub.f32 %v1033, %v1067
        %v1076 = vsub.f32 %v1034, %v1068
        %v1077 = vsub.f32 %v1035, %v1069
        %v1078 = vsub.f32 %v1036, %v1070
        %v1079 = vsub.f32 %v1037, %v1071
        %v1080 = vsub.f32 %v1038, %v1072
        %v1081 = vsub.f32 %v1039, %v1073
        %v1082 = vsub.f32 %v1040, %v1074
        %v1083 = vmul.f32 %v1075, %v1075
        %v1084 = vmul.f32 %v1076, %v1076
        %v1085 = vmul.f32 %v1077, %v1077
        %v1086 = vmul.f32 %v1078, %v1078
        %v1087 = vmul.f32 %v1079, %v1079
        %v1088 = vmul.f32 %v1080, %v1080
        %v1089 = vmul.f32 %v1081, %v1081
        %v1090 = vmul.f32 %v1082, %v1082
        %v1091 = vsel %vm740, %v1083, 0.0
        %1092 = vadd.xlane.f32.xlu0 %v1091
        %v1093 = vpop.xlane.xlu0 %1092
        %v1094 = vsel %vm740, %v1084, 0.0
        %1095 = vadd.xlane.f32.xlu0 %v1094
        %v1096 = vpop.xlane.xlu0 %1095
        %v1097 = vsel %vm740, %v1085, 0.0
        %1098 = vadd.xlane.f32.xlu0 %v1097
        %v1099 = vpop.xlane.xlu0 %1098
        %v1100 = vsel %vm740, %v1086, 0.0
        %1101 = vadd.xlane.f32.xlu0 %v1100
        %v1102 = vpop.xlane.xlu0 %1101
        %v1103 = vsel %vm740, %v1087, 0.0
        %1104 = vadd.xlane.f32.xlu0 %v1103
        %v1105 = vpop.xlane.xlu0 %1104
        %v1106 = vsel %vm740, %v1088, 0.0
        %1107 = vadd.xlane.f32.xlu0 %v1106
        %v1108 = vpop.xlane.xlu0 %1107
        %v1109 = vsel %vm740, %v1089, 0.0
        %1110 = vadd.xlane.f32.xlu0 %v1109
        %v1111 = vpop.xlane.xlu0 %1110
        %v1112 = vsel %vm740, %v1090, 0.0
        %1113 = vadd.xlane.f32.xlu0 %v1112
        %v1114 = vpop.xlane.xlu0 %1113
        %v1115 = vmul.f32 %v1093, %v932
        %v1116 = vmul.f32 %v1096, %v932
        %v1117 = vmul.f32 %v1099, %v932
        %v1118 = vmul.f32 %v1102, %v932
        %v1119 = vmul.f32 %v1105, %v932
        %v1120 = vmul.f32 %v1108, %v932
        %v1121 = vmul.f32 %v1111, %v932
        %v1122 = vmul.f32 %v1114, %v932
        %v1123 = vadd.f32 %v1115, 1e-05
        %v1124 = vadd.f32 %v1116, 1e-05
        %v1125 = vadd.f32 %v1117, 1e-05
        %v1126 = vadd.f32 %v1118, 1e-05
        %v1127 = vadd.f32 %v1119, 1e-05
        %v1128 = vadd.f32 %v1120, 1e-05
        %v1129 = vadd.f32 %v1121, 1e-05
        %v1130 = vadd.f32 %v1122, 1e-05
        %v1131 = vrsqrt.pop %v1123
        %v1132 = vrsqrt.pop %v1124
        %v1133 = vrsqrt.pop %v1125
        %v1134 = vrsqrt.pop %v1126
        %v1135 = vrsqrt.pop %v1127
        %v1136 = vrsqrt.pop %v1128
        %v1137 = vrsqrt.pop %v1129
        %v1138 = vrsqrt.pop %v1130
        %v1139 = vmul.f32 %v1075, %v1131
        %v1140 = vmul.f32 %v1076, %v1132
        %v1141 = vmul.f32 %v1077, %v1133
        %v1142 = vmul.f32 %v1078, %v1134
        %v1143 = vmul.f32 %v1079, %v1135
        %v1144 = vmul.f32 %v1080, %v1136
        %v1145 = vmul.f32 %v1081, %v1137
        %v1146 = vmul.f32 %v1082, %v1138
        %v1148 = vlaneseq
        %v1149 = vshrl.u32 %v1148, 7
        %v1150 = vsub.s32 0, %v1149
        %v1151 = vrot.slane %v1041, %v1150
        %v1153 = vmul.f32 %v1139, %v1151
        %v1154 = vmul.f32 %v1140, %v1151
        %v1155 = vmul.f32 %v1141, %v1151
        %v1156 = vmul.f32 %v1142, %v1151
        %v1157 = vmul.f32 %v1143, %v1151
        %v1158 = vmul.f32 %v1144, %v1151
        %v1159 = vmul.f32 %v1145, %v1151
        %v1160 = vmul.f32 %v1146, %v1151
        %v1162 = vlaneseq
        %v1163 = vshrl.u32 %v1162, 7
        %v1164 = vsub.s32 0, %v1163
        %v1165 = vrot.slane %v1042, %v1164
        %v1167 = vadd.f32 %v1153, %v1165
        %v1168 = vadd.f32 %v1154, %v1165
        %v1169 = vadd.f32 %v1155, %v1165
        %v1170 = vadd.f32 %v1156, %v1165
        %v1171 = vadd.f32 %v1157, %v1165
        %v1172 = vadd.f32 %v1158, %v1165
        %v1173 = vadd.f32 %v1159, %v1165
        %v1174 = vadd.f32 %v1160, %v1165
        %1175 = vst.msk [vmem:[#allocation2] sm:$0xff] %vm740, %v1167
        %1176 = vst.msk [vmem:[#allocation2 + $0x8] sm:$0xff] %vm740, %v1168
        %1177 = vst.msk [vmem:[#allocation2 + $0x10] sm:$0xff] %vm740, %v1169
        %1178 = vst.msk [vmem:[#allocation2 + $0x18] sm:$0xff] %vm740, %v1170
        %1179 = vst.msk [vmem:[#allocation2 + $0x20] sm:$0xff] %vm740, %v1171
        %1180 = vst.msk [vmem:[#allocation2 + $0x28] sm:$0xff] %vm740, %v1172
        %1181 = vst.msk [vmem:[#allocation2 + $0x30] sm:$0xff] %vm740, %v1173
        %1182 = vst.msk [vmem:[#allocation2 + $0x38] sm:$0xff] %vm740, %v1174
        %v1183 = vld [vmem:[#allocation2] ss:$8 sm:$0xf]
        %v1184 = vld [vmem:[#allocation2] ss:$8 sm:$0xf0]
        %v1185 = vor.u32 %v1183, %v1184
        %1186 = vst.msk [vmem:[#allocation3] sm:$0xff] %vm740, %v1185
        %s1187 = scalar_lea.vmem [#allocation2], 1
        %v1188 = vld [vmem:[%s1187] ss:$8 sm:$0xf]
        %v1189 = vld [vmem:[%s1187] ss:$8 sm:$0xf0]
        %v1190 = vor.u32 %v1188, %v1189
        %1192 = vrot.lane.b32.xlu0 %v1190, 32
        %v1193 = vpop.permute.xlu0 %1192
        %vm1195 = vcmask 523520
        %1196 = vst.msk [vmem:[#allocation3] sm:$0xff] %vm1195, %v1193
        %s1197 = scalar_lea.vmem [#allocation2], 2
        %v1198 = vld [vmem:[%s1197] ss:$8 sm:$0xf]
        %v1199 = vld [vmem:[%s1197] ss:$8 sm:$0xf0]
        %v1200 = vor.u32 %v1198, %v1199
        %1202 = vrot.lane.b32.xlu0 %v1200, 64
        %v1203 = vpop.permute.xlu0 %1202
        %vm1205 = vcmask 785920
        %1206 = vst.msk [vmem:[#allocation3] sm:$0xff] %vm1205, %v1203
        %s1207 = scalar_lea.vmem [#allocation2], 3
        %v1208 = vld [vmem:[%s1207] ss:$8 sm:$0xf]
        %v1209 = vld [vmem:[%s1207] ss:$8 sm:$0xf0]
        %v1210 = vor.u32 %v1208, %v1209
        %1212 = vrot.lane.b32.xlu0 %v1210, 96
        %v1213 = vpop.permute.xlu0 %1212
        %vm1215 = vcmask 1048320
        %1216 = vst.msk [vmem:[#allocation3] sm:$0xff] %vm1215, %v1213
        %s1217 = scalar_lea.vmem [#allocation2], 4
        %v1218 = vld [vmem:[%s1217] ss:$8 sm:$0xf]
        %v1219 = vld [vmem:[%s1217] ss:$8 sm:$0xf0]
        %v1220 = vor.u32 %v1218, %v1219
        %1221 = vst.msk [vmem:[#allocation3 + $0x8] sm:$0xff] %vm740, %v1220
        %s1222 = scalar_lea.vmem [#allocation2], 5
        %v1223 = vld [vmem:[%s1222] ss:$8 sm:$0xf]
        %v1224 = vld [vmem:[%s1222] ss:$8 sm:$0xf0]
        %v1225 = vor.u32 %v1223, %v1224
        %1227 = vrot.lane.b32.xlu0 %v1225, 32
        %v1228 = vpop.permute.xlu0 %1227
        %1230 = vst.msk [vmem:[#allocation3 + $0x8] sm:$0xff] %vm1195, %v1228
        %s1231 = scalar_lea.vmem [#allocation2], 6
        %v1232 = vld [vmem:[%s1231] ss:$8 sm:$0xf]
        %v1233 = vld [vmem:[%s1231] ss:$8 sm:$0xf0]
        %v1234 = vor.u32 %v1232, %v1233
        %1236 = vrot.lane.b32.xlu0 %v1234, 64
        %v1237 = vpop.permute.xlu0 %1236
        %1239 = vst.msk [vmem:[#allocation3 + $0x8] sm:$0xff] %vm1205, %v1237
        %s1240 = scalar_lea.vmem [#allocation2], 7
        %v1241 = vld [vmem:[%s1240] ss:$8 sm:$0xf]
        %v1242 = vld [vmem:[%s1240] ss:$8 sm:$0xf0]
        %v1243 = vor.u32 %v1241, %v1242
        %1245 = vrot.lane.b32.xlu0 %v1243, 96
        %v1246 = vpop.permute.xlu0 %1245
        %1248 = vst.msk [vmem:[#allocation3 + $0x8] sm:$0xff] %vm1215, %v1246
        %v1249 = vld [vmem:[#allocation3] sm:$0xff]
        %v1250 = vld [vmem:[#allocation3 + $0x8] sm:$0xff]
        %v1251 = vpack.c.bf16 %v1249, %v1249
        %v1252 = vpack.c.bf16 %v1250, %v1250
        %v1253 = vld [vmem:[%s11] sm:$0xf]
        %v1254 = vld [vmem:[%s11 + $0x4] sm:$0xf]
        %v1255 = vld [vmem:[%s11 + $0x8] sm:$0xf]
        %v1256 = vld [vmem:[%s11 + $0xc] sm:$0xf]
        %v1257 = vld [vmem:[%s11 + $0x10] sm:$0xf]
        %v1258 = vld [vmem:[%s11 + $0x14] sm:$0xf]
        %v1259 = vld [vmem:[%s11 + $0x18] sm:$0xf]
        %v1260 = vld [vmem:[%s11 + $0x1c] sm:$0xf]
        %v1261 = vld [vmem:[%s11 + $0x20] sm:$0xf]
        %v1262 = vld [vmem:[%s11 + $0x24] sm:$0xf]
        %v1263 = vld [vmem:[%s11 + $0x28] sm:$0xf]
        %v1264 = vld [vmem:[%s11 + $0x2c] sm:$0xf]
        %v1265 = vld [vmem:[%s11 + $0x30] sm:$0xf]
        %v1266 = vld [vmem:[%s11 + $0x34] sm:$0xf]
        %v1267 = vld [vmem:[%s11 + $0x38] sm:$0xf]
        %v1268 = vld [vmem:[%s11 + $0x3c] sm:$0xf]
        %v1269 = vld [vmem:[%s11 + $0x40] sm:$0xf]
        %v1270 = vld [vmem:[%s11 + $0x44] sm:$0xf]
        %v1271 = vld [vmem:[%s11 + $0x48] sm:$0xf]
        %v1272 = vld [vmem:[%s11 + $0x4c] sm:$0xf]
        %v1273 = vld [vmem:[%s11 + $0x50] sm:$0xf]
        %v1274 = vld [vmem:[%s11 + $0x54] sm:$0xf]
        %v1275 = vld [vmem:[%s11 + $0x58] sm:$0xf]
        %v1276 = vld [vmem:[%s11 + $0x5c] sm:$0xf]
        %v1277 = vld [vmem:[%s11 + $0x60] sm:$0xf]
        %v1278 = vld [vmem:[%s11 + $0x64] sm:$0xf]
        %v1279 = vld [vmem:[%s11 + $0x68] sm:$0xf]
        %v1280 = vld [vmem:[%s11 + $0x6c] sm:$0xf]
        %v1281 = vld [vmem:[%s11 + $0x70] sm:$0xf]
        %v1282 = vld [vmem:[%s11 + $0x74] sm:$0xf]
        %v1283 = vld [vmem:[%s11 + $0x78] sm:$0xf]
        %v1284 = vld [vmem:[%s11 + $0x7c] sm:$0xf]
        %v1317 = vunpack.c.l.b16 %v1253
        %v1318 = vunpack.c.l.b16 %v1254
        %v1319 = vunpack.c.l.b16 %v1255
        %v1320 = vunpack.c.l.b16 %v1256
        %v1321 = vunpack.c.l.b16 %v1257
        %v1322 = vunpack.c.l.b16 %v1258
        %v1323 = vunpack.c.l.b16 %v1259
        %v1324 = vunpack.c.l.b16 %v1260
        %v1325 = vunpack.c.l.b16 %v1261
        %v1326 = vunpack.c.l.b16 %v1262
        %v1327 = vunpack.c.l.b16 %v1263
        %v1328 = vunpack.c.l.b16 %v1264
        %v1329 = vunpack.c.l.b16 %v1265
        %v1330 = vunpack.c.l.b16 %v1266
        %v1331 = vunpack.c.l.b16 %v1267
        %v1332 = vunpack.c.l.b16 %v1268
        %v1333 = vunpack.c.l.b16 %v1269
        %v1334 = vunpack.c.l.b16 %v1270
        %v1335 = vunpack.c.l.b16 %v1271
        %v1336 = vunpack.c.l.b16 %v1272
        %v1337 = vunpack.c.l.b16 %v1273
        %v1338 = vunpack.c.l.b16 %v1274
        %v1339 = vunpack.c.l.b16 %v1275
        %v1340 = vunpack.c.l.b16 %v1276
        %v1341 = vunpack.c.l.b16 %v1277
        %v1342 = vunpack.c.l.b16 %v1278
        %v1343 = vunpack.c.l.b16 %v1279
        %v1344 = vunpack.c.l.b16 %v1280
        %v1345 = vunpack.c.l.b16 %v1281
        %v1346 = vunpack.c.l.b16 %v1282
        %v1347 = vunpack.c.l.b16 %v1283
        %v1348 = vunpack.c.l.b16 %v1284
        %v1349 = vpack.c.b16 %v1318, %v1317
        %v1350 = vpack.c.b16 %v1320, %v1319
        %v1351 = vpack.c.b16 %v1322, %v1321
        %v1352 = vpack.c.b16 %v1324, %v1323
        %v1353 = vpack.c.b16 %v1326, %v1325
        %v1354 = vpack.c.b16 %v1328, %v1327
        %v1355 = vpack.c.b16 %v1330, %v1329
        %v1356 = vpack.c.b16 %v1332, %v1331
        %v1357 = vpack.c.b16 %v1334, %v1333
        %v1358 = vpack.c.b16 %v1336, %v1335
        %v1359 = vpack.c.b16 %v1338, %v1337
        %v1360 = vpack.c.b16 %v1340, %v1339
        %v1361 = vpack.c.b16 %v1342, %v1341
        %v1362 = vpack.c.b16 %v1344, %v1343
        %v1363 = vpack.c.b16 %v1346, %v1345
        %v1364 = vpack.c.b16 %v1348, %v1347
        %1381 = vmatprep.subr.bf16.mxu0 0
        %1382 = vmatpush1.bf16.msra.mxu0 %v1349
        %1383 = vmatprep.subr.bf16.mxu0 0
        %1384 = vmatpush1.bf16.msra.mxu0 %v1350
        %1385 = vmatprep.subr.bf16.mxu0 0
        %1386 = vmatpush1.bf16.msra.mxu0 %v1351
        %1387 = vmatprep.subr.bf16.mxu0 0
        %1388 = vmatpush1.bf16.msra.mxu0 %v1352
        %1389 = vmatprep.subr.bf16.mxu0 0
        %1390 = vmatpush1.bf16.msra.mxu0 %v1353
        %1391 = vmatprep.subr.bf16.mxu0 0
        %1392 = vmatpush1.bf16.msra.mxu0 %v1354
        %1393 = vmatprep.subr.bf16.mxu0 0
        %1394 = vmatpush1.bf16.msra.mxu0 %v1355
        %1395 = vmatprep.subr.bf16.mxu0 0
        %1396 = vmatpush1.bf16.msra.mxu0 %v1356
        %1397 = vmatprep.subr.bf16.mxu0 0
        %1398 = vmatpush1.bf16.msra.mxu0 %v1357
        %1399 = vmatprep.subr.bf16.mxu0 0
        %1400 = vmatpush1.bf16.msra.mxu0 %v1358
        %1401 = vmatprep.subr.bf16.mxu0 0
        %1402 = vmatpush1.bf16.msra.mxu0 %v1359
        %1403 = vmatprep.subr.bf16.mxu0 0
        %1404 = vmatpush1.bf16.msra.mxu0 %v1360
        %1405 = vmatprep.subr.bf16.mxu0 0
        %1406 = vmatpush1.bf16.msra.mxu0 %v1361
        %1407 = vmatprep.subr.bf16.mxu0 0
        %1408 = vmatpush1.bf16.msra.mxu0 %v1362
        %1409 = vmatprep.subr.bf16.mxu0 0
        %1410 = vmatpush1.bf16.msra.mxu0 %v1363
        %1411 = vmatprep.subr.bf16.mxu0 0
        %1412 = vmatpush1.bf16.msra.mxu0 %v1364
        %1413 = vmatprep.mubr.bf16.mxu0 %v1252
        %1414 = vmatmul.mubr.bf16.gmra.mrb[0].mxu0 %v1251
        %v1415 = vpop.f32.mrb[0].mxu0
        %v1416 = vadd.f32 0.0, %v1415
        %v1417 = vpop.f32.mrb[0].mxu0
        %v1418 = vpop.f32.mrb[0].mxu0
        %v1419 = vpop.f32.mrb[0].mxu0
        %1420 = vdwg.mxu0
        %v1421 = vld [vmem:[%s9] sm:$0x1]
        %v1422 = vld [vmem:[%s10] sm:$0x1]
        %v1423 = vsel %vm740, %v1416, 0.0
        %1424 = vadd.xlane.f32.xlu0 %v1423
        %v1425 = vpop.xlane.xlu0 %1424
        %v1426 = vmul.f32 %v1425, %v932
        %v1427 = vsub.f32 %v1416, %v1426
        %v1428 = vmul.f32 %v1427, %v1427
        %v1429 = vsel %vm740, %v1428, 0.0
        %1430 = vadd.xlane.f32.xlu0 %v1429
        %v1431 = vpop.xlane.xlu0 %1430
        %v1432 = vmul.f32 %v1431, %v932
        %v1433 = vadd.f32 %v1432, 1e-05
        %v1434 = vrsqrt.pop %v1433
        %v1435 = vmul.f32 %v1427, %v1434
        %v1437 = vlaneseq
        %v1438 = vshrl.u32 %v1437, 7
        %v1439 = vsub.s32 0, %v1438
        %v1440 = vrot.slane %v1421, %v1439
        %v1442 = vmul.f32 %v1435, %v1440
        %v1444 = vlaneseq
        %v1445 = vshrl.u32 %v1444, 7
        %v1446 = vsub.s32 0, %v1445
        %v1447 = vrot.slane %v1422, %v1446
        %v1449 = vadd.f32 %v1442, %v1447
        %1451 = vrot.lane.b32.xlu0 %v1416, 96
        %v1452 = vpop.permute.xlu0 %1451
        %v1454 = vsel %vm740, %v1452, 0.0
        %1455 = vadd.xlane.f32.xlu0 %v1454
        %v1456 = vpop.xlane.xlu0 %1455
        %v1457 = vmul.f32 %v1456, %v932
        %v1458 = vsub.f32 %v1416, %v1457
        %v1459 = vmul.f32 %v1458, %v1458
        %1461 = vrot.lane.b32.xlu0 %v1459, 96
        %v1462 = vpop.permute.xlu0 %1461
        %v1464 = vsel %vm740, %v1462, 0.0
        %1465 = vadd.xlane.f32.xlu0 %v1464
        %v1466 = vpop.xlane.xlu0 %1465
        %v1467 = vmul.f32 %v1466, %v932
        %v1468 = vadd.f32 %v1467, 1e-05
        %v1469 = vrsqrt.pop %v1468
        %v1470 = vmul.f32 %v1458, %v1469
        %1471 = vrot.lane.b32.xlu0 %v1440, 32
        %v1472 = vpop.permute.xlu0 %1471
        %v1474 = vmul.f32 %v1470, %v1472
        %1475 = vrot.lane.b32.xlu0 %v1447, 32
        %v1476 = vpop.permute.xlu0 %1475
        %v1478 = vadd.f32 %v1474, %v1476
        %v1479 = vld [vmem:[%s12] sm:$0xf]
        %v1480 = vld [vmem:[%s12 + $0x4] sm:$0xf]
        %v1481 = vld [vmem:[%s12 + $0x8] sm:$0xf]
        %v1482 = vld [vmem:[%s12 + $0xc] sm:$0xf]
        %v1483 = vld [vmem:[%s12 + $0x10] sm:$0xf]
        %v1484 = vld [vmem:[%s12 + $0x14] sm:$0xf]
        %v1485 = vld [vmem:[%s12 + $0x18] sm:$0xf]
        %v1486 = vld [vmem:[%s12 + $0x1c] sm:$0xf]
        %v1487 = vpack.c.bf16 %v1168, %v1167
        %v1488 = vpack.c.bf16 %v1170, %v1169
        %v1489 = vpack.c.bf16 %v1172, %v1171
        %v1490 = vpack.c.bf16 %v1174, %v1173
        %v1499 = vunpack.c.l.b16 %v1479
        %v1500 = vunpack.c.l.b16 %v1480
        %v1501 = vunpack.c.l.b16 %v1481
        %v1502 = vunpack.c.l.b16 %v1482
        %v1503 = vunpack.c.l.b16 %v1483
        %v1504 = vunpack.c.l.b16 %v1484
        %v1505 = vunpack.c.l.b16 %v1485
        %v1506 = vunpack.c.l.b16 %v1486
        %v1507 = vpack.c.b16 %v1500, %v1499
        %v1508 = vpack.c.b16 %v1502, %v1501
        %v1509 = vpack.c.b16 %v1504, %v1503
        %v1510 = vpack.c.b16 %v1506, %v1505
        %vm1511 = vcmask 523264
        %v1513 = vsel %vm1511, %v1507, 0
        %v1516 = vsel %vm1511, %v1508, 0
        %v1519 = vsel %vm1511, %v1509, 0
        %v1522 = vsel %vm1511, %v1510, 0
        %1524 = vmatprep.subr.bf16.mxu0 0
        %1525 = vmatpush1.bf16.msra.mxu0 %v1487
        %1526 = vmatprep.subr.bf16.mxu0 0
        %1527 = vmatpush1.bf16.msra.mxu0 %v1488
        %1528 = vmatprep.subr.bf16.mxu0 0
        %1529 = vmatpush1.bf16.msra.mxu0 %v1489
        %1530 = vmatprep.subr.bf16.mxu0 0
        %1531 = vmatpush1.bf16.msra.mxu0 %v1490
        %1532 = vmatprep.subr.bf16.mxu0 0
        %1533 = vmatpush1.bf16.msra.mxu0 0
        %1534 = vmatprep.subr.bf16.mxu0 0
        %1535 = vmatpush1.bf16.msra.mxu0 0
        %1536 = vmatprep.subr.bf16.mxu0 0
        %1537 = vmatpush1.bf16.msra.mxu0 0
        %1538 = vmatprep.subr.bf16.mxu0 0
        %1539 = vmatpush1.bf16.msra.mxu0 0
        %1540 = vmatprep.subr.bf16.mxu0 0
        %1541 = vmatpush1.bf16.msra.mxu0 0
        %1542 = vmatprep.subr.bf16.mxu0 0
        %1543 = vmatpush1.bf16.msra.mxu0 0
        %1544 = vmatprep.subr.bf16.mxu0 0
        %1545 = vmatpush1.bf16.msra.mxu0 0
        %1546 = vmatprep.subr.bf16.mxu0 0
        %1547 = vmatpush1.bf16.msra.mxu0 0
        %1548 = vmatprep.subr.bf16.mxu0 0
        %1549 = vmatpush1.bf16.msra.mxu0 0
        %1550 = vmatprep.subr.bf16.mxu0 0
        %1551 = vmatpush1.bf16.msra.mxu0 0
        %1552 = vmatprep.subr.bf16.mxu0 0
        %1553 = vmatpush1.bf16.msra.mxu0 0
        %1554 = vmatprep.subr.bf16.mxu0 0
        %1555 = vmatpush1.bf16.msra.mxu0 0
        %1556 = vmatprep.mubr.bf16.mxu0 0
        %1557 = vmatmul.mubr.bf16.gmra.mrb[0].mxu0 %v1513
        %v1558 = vpop.f32.mrb[0].mxu0
        %v1559 = vadd.f32 0.0, %v1558
        %v1560 = vpop.f32.mrb[0].mxu0
        %v1561 = vpop.f32.mrb[0].mxu0
        %v1562 = vadd.f32 0.0, %v1561
        %v1563 = vpop.f32.mrb[0].mxu0
        %1564 = vmatprep.mubr.bf16.mxu0 0
        %1565 = vmatmul.mubr.bf16.gmra.mrb[0].mxu0 %v1516
        %v1566 = vpop.f32.mrb[0].mxu0
        %v1567 = vadd.f32 0.0, %v1566
        %v1568 = vpop.f32.mrb[0].mxu0
        %v1569 = vpop.f32.mrb[0].mxu0
        %v1570 = vadd.f32 0.0, %v1569
        %v1571 = vpop.f32.mrb[0].mxu0
        %1572 = vmatprep.mubr.bf16.mxu0 0
        %1573 = vmatmul.mubr.bf16.gmra.mrb[0].mxu0 %v1519
        %v1574 = vpop.f32.mrb[0].mxu0
        %v1575 = vadd.f32 0.0, %v1574
        %v1576 = vpop.f32.mrb[0].mxu0
        %v1577 = vpop.f32.mrb[0].mxu0
        %v1578 = vadd.f32 0.0, %v1577
        %v1579 = vpop.f32.mrb[0].mxu0
        %1580 = vmatprep.mubr.bf16.mxu0 0
        %1581 = vmatmul.mubr.bf16.gmra.mrb[0].mxu0 %v1522
        %v1582 = vpop.f32.mrb[0].mxu0
        %v1583 = vadd.f32 0.0, %v1582
        %v1584 = vpop.f32.mrb[0].mxu0
        %v1585 = vpop.f32.mrb[0].mxu0
        %v1586 = vadd.f32 0.0, %v1585
        %v1587 = vpop.f32.mrb[0].mxu0
        %1588 = vdwg.mxu0
        %v1589 = vld [vmem:[%s13] sm:$0xf]
        %v1590 = vpack.c.bf16 %v1449, %v1449
        %vm1591 = vcmask 64512
        %v1593 = vsel %vm1591, %v1589, 0
        %vm1595 = vcmask 1043456
        %v1597 = vsel %vm1595, %v1590, 0
        %1599 = vmatprep.subr.bf16.mxu0 0
        %1600 = vmatpush1.bf16.msra.mxu0 %v1597
        %1601 = vmatprep.subr.bf16.mxu0 0
        %1602 = vmatpush1.bf16.msra.mxu0 0
        %1603 = vmatprep.subr.bf16.mxu0 0
        %1604 = vmatpush1.bf16.msra.mxu0 0
        %1605 = vmatprep.subr.bf16.mxu0 0
        %1606 = vmatpush1.bf16.msra.mxu0 0
        %1607 = vmatprep.subr.bf16.mxu0 0
        %1608 = vmatpush1.bf16.msra.mxu0 0
        %1609 = vmatprep.subr.bf16.mxu0 0
        %1610 = vmatpush1.bf16.msra.mxu0 0
        %1611 = vmatprep.subr.bf16.mxu0 0
        %1612 = vmatpush1.bf16.msra.mxu0 0
        %1613 = vmatprep.subr.bf16.mxu0 0
        %1614 = vmatpush1.bf16.msra.mxu0 0
        %1615 = vmatprep.subr.bf16.mxu0 0
        %1616 = vmatpush1.bf16.msra.mxu0 0
        %1617 = vmatprep.subr.bf16.mxu0 0
        %1618 = vmatpush1.bf16.msra.mxu0 0
        %1619 = vmatprep.subr.bf16.mxu0 0
        %1620 = vmatpush1.bf16.msra.mxu0 0
        %1621 = vmatprep.subr.bf16.mxu0 0
        %1622 = vmatpush1.bf16.msra.mxu0 0
        %1623 = vmatprep.subr.bf16.mxu0 0
        %1624 = vmatpush1.bf16.msra.mxu0 0
        %1625 = vmatprep.subr.bf16.mxu0 0
        %1626 = vmatpush1.bf16.msra.mxu0 0
        %1627 = vmatprep.subr.bf16.mxu0 0
        %1628 = vmatpush1.bf16.msra.mxu0 0
        %1629 = vmatprep.subr.bf16.mxu0 0
        %1630 = vmatpush1.bf16.msra.mxu0 0
        %1631 = vmatprep.mubr.bf16.mxu0 0
        %1632 = vmatmul.mubr.bf16.gmra.mrb[0].mxu0 %v1593
        %v1633 = vpop.f32.mrb[0].mxu0
        %v1634 = vadd.f32 0.0, %v1633
        %v1635 = vpop.f32.mrb[0].mxu0
        %v1636 = vpop.f32.mrb[0].mxu0
        %v1637 = vpop.f32.mrb[0].mxu0
        %1638 = vdwg.mxu0
        %v1639 = vld [vmem:[%s14] sm:$0xf]
        %v1640 = vpack.c.bf16 %v1478, %v1478
        %1642 = vrot.lane.b32.xlu0 %v1640, 96
        %v1643 = vpop.permute.xlu0 %1642
        %v1645 = vsel %vm1591, %v1639, 0
        %v1648 = vsel %vm1595, %v1643, 0
        %1650 = vmatprep.subr.bf16.mxu0 0
        %1651 = vmatpush1.bf16.msra.mxu0 %v1648
        %1652 = vmatprep.subr.bf16.mxu0 0
        %1653 = vmatpush1.bf16.msra.mxu0 0
        %1654 = vmatprep.subr.bf16.mxu0 0
        %1655 = vmatpush1.bf16.msra.mxu0 0
        %1656 = vmatprep.subr.bf16.mxu0 0
        %1657 = vmatpush1.bf16.msra.mxu0 0
        %1658 = vmatprep.subr.bf16.mxu0 0
        %1659 = vmatpush1.bf16.msra.mxu0 0
        %1660 = vmatprep.subr.bf16.mxu0 0
        %1661 = vmatpush1.bf16.msra.mxu0 0
        %1662 = vmatprep.subr.bf16.mxu0 0
        %1663 = vmatpush1.bf16.msra.mxu0 0
        %1664 = vmatprep.subr.bf16.mxu0 0
        %1665 = vmatpush1.bf16.msra.mxu0 0
        %1666 = vmatprep.subr.bf16.mxu0 0
        %1667 = vmatpush1.bf16.msra.mxu0 0
        %1668 = vmatprep.subr.bf16.mxu0 0
        %1669 = vmatpush1.bf16.msra.mxu0 0
        %1670 = vmatprep.subr.bf16.mxu0 0
        %1671 = vmatpush1.bf16.msra.mxu0 0
        %1672 = vmatprep.subr.bf16.mxu0 0
        %1673 = vmatpush1.bf16.msra.mxu0 0
        %1674 = vmatprep.subr.bf16.mxu0 0
        %1675 = vmatpush1.bf16.msra.mxu0 0
        %1676 = vmatprep.subr.bf16.mxu0 0
        %1677 = vmatpush1.bf16.msra.mxu0 0
        %1678 = vmatprep.subr.bf16.mxu0 0
        %1679 = vmatpush1.bf16.msra.mxu0 0
        %1680 = vmatprep.subr.bf16.mxu0 0
        %1681 = vmatpush1.bf16.msra.mxu0 0
        %1682 = vmatprep.mubr.bf16.mxu0 0
        %1683 = vmatmul.mubr.bf16.gmra.mrb[0].mxu0 %v1645
        %v1684 = vpop.f32.mrb[0].mxu0
        %v1685 = vadd.f32 0.0, %v1684
        %v1686 = vpop.f32.mrb[0].mxu0
        %v1687 = vpop.f32.mrb[0].mxu0
        %v1688 = vpop.f32.mrb[0].mxu0
        %1689 = vdwg.mxu0
        %v1690 = vpack.c.bf16 %v1562, %v1559
        %v1691 = vpack.c.bf16 %v1570, %v1567
        %v1692 = vpack.c.bf16 %v1578, %v1575
        %v1693 = vpack.c.bf16 %v1586, %v1583
        %v1694 = vpack.c.bf16 %v1634, %v1634
        %v1696 = vsel %vm740, %v1690, 0
        %v1699 = vsel %vm740, %v1691, 0
        %v1702 = vsel %vm740, %v1692, 0
        %v1705 = vsel %vm740, %v1693, 0
        %v1708 = vsel %vm740, %v1694, 0
        %1710 = vmatprep.subr.bf16.mxu0 0
        %1711 = vmatpush1.bf16.xpose.msra.mxu0 %v1708
        %1712 = vmatprep.subr.bf16.mxu0 0
        %1713 = vmatpush1.bf16.xpose.msra.mxu0 0
        %1714 = vmatprep.subr.bf16.mxu0 0
        %1715 = vmatpush1.bf16.xpose.msra.mxu0 0
        %1716 = vmatprep.subr.bf16.mxu0 0
        %1717 = vmatpush1.bf16.xpose.msra.mxu0 0
        %1718 = vmatprep.subr.bf16.mxu0 0
        %1719 = vmatpush1.bf16.xpose.msra.mxu0 0
        %1720 = vmatprep.subr.bf16.mxu0 0
        %1721 = vmatpush1.bf16.xpose.msra.mxu0 0
        %1722 = vmatprep.subr.bf16.mxu0 0
        %1723 = vmatpush1.bf16.xpose.msra.mxu0 0
        %1724 = vmatprep.subr.bf16.mxu0 0
        %1725 = vmatpush1.bf16.xpose.msra.mxu0 0
        %1726 = vmatprep.subr.bf16.mxu0 0
        %1727 = vmatpush1.bf16.xpose.msra.mxu0 0
        %1728 = vmatprep.subr.bf16.mxu0 0
        %1729 = vmatpush1.bf16.xpose.msra.mxu0 0
        %1730 = vmatprep.subr.bf16.mxu0 0
        %1731 = vmatpush1.bf16.xpose.msra.mxu0 0
        %1732 = vmatprep.subr.bf16.mxu0 0
        %1733 = vmatpush1.bf16.xpose.msra.mxu0 0
        %1734 = vmatprep.subr.bf16.mxu0 0
        %1735 = vmatpush1.bf16.xpose.msra.mxu0 0
        %1736 = vmatprep.subr.bf16.mxu0 0
        %1737 = vmatpush1.bf16.xpose.msra.mxu0 0
        %1738 = vmatprep.subr.bf16.mxu0 0
        %1739 = vmatpush1.bf16.xpose.msra.mxu0 0
        %1740 = vmatprep.subr.bf16.mxu0 0
        %1741 = vmatpush1.bf16.xpose.msra.mxu0 0
        %1742 = vmatprep.mubr.bf16.mxu0 0
        %1743 = vmatmul.mubr.bf16.gmra.mrb[0].mxu0 %v1696
        %v1744 = vpop.f32.mrb[0].mxu0
        %v1745 = vadd.f32 0.0, %v1744
        %v1746 = vpop.f32.mrb[0].mxu0
        %v1747 = vpop.f32.mrb[0].mxu0
        %v1748 = vadd.f32 0.0, %v1747
        %v1749 = vpop.f32.mrb[0].mxu0
        %1750 = vmatprep.mubr.bf16.mxu0 0
        %1751 = vmatmul.mubr.bf16.gmra.mrb[0].mxu0 %v1699
        %v1752 = vpop.f32.mrb[0].mxu0
        %v1753 = vadd.f32 0.0, %v1752
        %v1754 = vpop.f32.mrb[0].mxu0
        %v1755 = vpop.f32.mrb[0].mxu0
        %v1756 = vadd.f32 0.0, %v1755
        %v1757 = vpop.f32.mrb[0].mxu0
        %1758 = vmatprep.mubr.bf16.mxu0 0
        %1759 = vmatmul.mubr.bf16.gmra.mrb[0].mxu0 %v1702
        %v1760 = vpop.f32.mrb[0].mxu0
        %v1761 = vadd.f32 0.0, %v1760
        %v1762 = vpop.f32.mrb[0].mxu0
        %v1763 = vpop.f32.mrb[0].mxu0
        %v1764 = vadd.f32 0.0, %v1763
        %v1765 = vpop.f32.mrb[0].mxu0
        %1766 = vmatprep.mubr.bf16.mxu0 0
        %1767 = vmatmul.mubr.bf16.gmra.mrb[0].mxu0 %v1705
        %v1768 = vpop.f32.mrb[0].mxu0
        %v1769 = vadd.f32 0.0, %v1768
        %v1770 = vpop.f32.mrb[0].mxu0
        %v1771 = vpop.f32.mrb[0].mxu0
        %v1772 = vadd.f32 0.0, %v1771
        %v1773 = vpop.f32.mrb[0].mxu0
        %1774 = vdwg.mxu0
        %v1775 = vmul.f32 %v1745, 0.17677669
        %v1776 = vmul.f32 %v1748, 0.17677669
        %v1777 = vmul.f32 %v1753, 0.17677669
        %v1778 = vmul.f32 %v1756, 0.17677669
        %v1779 = vmul.f32 %v1761, 0.17677669
        %v1780 = vmul.f32 %v1764, 0.17677669
        %v1781 = vmul.f32 %v1769, 0.17677669
        %v1782 = vmul.f32 %v1772, 0.17677669
        %v1783 = vadd.f32 %v1775, %v753
        %v1784 = vadd.f32 %v1776, %v754
        %v1785 = vadd.f32 %v1777, %v755
        %v1786 = vadd.f32 %v1778, %v756
        %v1787 = vadd.f32 %v1779, %v757
        %v1788 = vadd.f32 %v1780, %v758
        %v1789 = vadd.f32 %v1781, %v759
        %v1790 = vadd.f32 %v1782, %v760
        %v1791 = vsel %vm1591, %v1783, -inf
        %1792 = vmax.xlane.f32.xlu0 %v1791
        %v1793 = vpop.xlane.xlu0 %1792
        %v1794 = vsel %vm1591, %v1784, -inf
        %1795 = vmax.xlane.f32.xlu0 %v1794
        %v1796 = vpop.xlane.xlu0 %1795
        %v1797 = vsel %vm1591, %v1785, -inf
        %1798 = vmax.xlane.f32.xlu0 %v1797
        %v1799 = vpop.xlane.xlu0 %1798
        %v1800 = vsel %vm1591, %v1786, -inf
        %1801 = vmax.xlane.f32.xlu0 %v1800
        %v1802 = vpop.xlane.xlu0 %1801
        %v1803 = vsel %vm1591, %v1787, -inf
        %1804 = vmax.xlane.f32.xlu0 %v1803
        %v1805 = vpop.xlane.xlu0 %1804
        %v1806 = vsel %vm1591, %v1788, -inf
        %1807 = vmax.xlane.f32.xlu0 %v1806
        %v1808 = vpop.xlane.xlu0 %1807
        %v1809 = vsel %vm1591, %v1789, -inf
        %1810 = vmax.xlane.f32.xlu0 %v1809
        %v1811 = vpop.xlane.xlu0 %1810
        %v1812 = vsel %vm1591, %v1790, -inf
        %1813 = vmax.xlane.f32.xlu0 %v1812
        %v1814 = vpop.xlane.xlu0 %1813
        %v1815 = vsub.f32 %v1783, %v1793
        %v1816 = vsub.f32 %v1784, %v1796
        %v1817 = vsub.f32 %v1785, %v1799
        %v1818 = vsub.f32 %v1786, %v1802
        %v1819 = vsub.f32 %v1787, %v1805
        %v1820 = vsub.f32 %v1788, %v1808
        %v1821 = vsub.f32 %v1789, %v1811
        %v1822 = vsub.f32 %v1790, %v1814
        %v1823 = vmul.f32 %v1815, 1.442695
        %v1824 = vpow.pop %v1823
        %v1825 = vmul.f32 %v1816, 1.442695
        %v1826 = vpow.pop %v1825
        %v1827 = vmul.f32 %v1817, 1.442695
        %v1828 = vpow.pop %v1827
        %v1829 = vmul.f32 %v1818, 1.442695
        %v1830 = vpow.pop %v1829
        %v1831 = vmul.f32 %v1819, 1.442695
        %v1832 = vpow.pop %v1831
        %v1833 = vmul.f32 %v1820, 1.442695
        %v1834 = vpow.pop %v1833
        %v1835 = vmul.f32 %v1821, 1.442695
        %v1836 = vpow.pop %v1835
        %v1837 = vmul.f32 %v1822, 1.442695
        %v1838 = vpow.pop %v1837
        %v1839 = vsel %vm1591, %v1824, 0.0
        %1840 = vadd.xlane.f32.xlu0 %v1839
        %v1841 = vpop.xlane.xlu0 %1840
        %v1842 = vsel %vm1591, %v1826, 0.0
        %1843 = vadd.xlane.f32.xlu0 %v1842
        %v1844 = vpop.xlane.xlu0 %1843
        %v1845 = vsel %vm1591, %v1828, 0.0
        %1846 = vadd.xlane.f32.xlu0 %v1845
        %v1847 = vpop.xlane.xlu0 %1846
        %v1848 = vsel %vm1591, %v1830, 0.0
        %1849 = vadd.xlane.f32.xlu0 %v1848
        %v1850 = vpop.xlane.xlu0 %1849
        %v1851 = vsel %vm1591, %v1832, 0.0
        %1852 = vadd.xlane.f32.xlu0 %v1851
        %v1853 = vpop.xlane.xlu0 %1852
        %v1854 = vsel %vm1591, %v1834, 0.0
        %1855 = vadd.xlane.f32.xlu0 %v1854
        %v1856 = vpop.xlane.xlu0 %1855
        %v1857 = vsel %vm1591, %v1836, 0.0
        %1858 = vadd.xlane.f32.xlu0 %v1857
        %v1859 = vpop.xlane.xlu0 %1858
        %v1860 = vsel %vm1591, %v1838, 0.0
        %1861 = vadd.xlane.f32.xlu0 %v1860
        %v1862 = vpop.xlane.xlu0 %1861
        %v1863 = vrcp.pop %v1841
        %v1864 = vrcp.pop %v1844
        %v1865 = vrcp.pop %v1847
        %v1866 = vrcp.pop %v1850
        %v1867 = vrcp.pop %v1853
        %v1868 = vrcp.pop %v1856
        %v1869 = vrcp.pop %v1859
        %v1870 = vrcp.pop %v1862
        %v1871 = vmul.f32 %v1824, %v1863
        %v1872 = vmul.f32 %v1826, %v1864
        %v1873 = vmul.f32 %v1828, %v1865
        %v1874 = vmul.f32 %v1830, %v1866
        %v1875 = vmul.f32 %v1832, %v1867
        %v1876 = vmul.f32 %v1834, %v1868
        %v1877 = vmul.f32 %v1836, %v1869
        %v1878 = vmul.f32 %v1838, %v1870
        %v1879 = vpack.c.bf16 %v1872, %v1871
        %v1880 = vpack.c.bf16 %v1874, %v1873
        %v1881 = vpack.c.bf16 %v1876, %v1875
        %v1882 = vpack.c.bf16 %v1878, %v1877
        %v1883 = vpack.c.bf16 %v1685, %v1685
        %v1885 = vsel %vm1591, %v1879, 0
        %v1888 = vsel %vm1591, %v1880, 0
        %v1891 = vsel %vm1591, %v1881, 0
        %v1894 = vsel %vm1591, %v1882, 0
        %v1897 = vsel %vm1595, %v1883, 0
        %1899 = vmatprep.subr.bf16.mxu0 0
        %1900 = vmatpush1.bf16.msra.mxu0 %v1897
        %1901 = vmatprep.subr.bf16.mxu0 0
        %1902 = vmatpush1.bf16.msra.mxu0 0
        %1903 = vmatprep.subr.bf16.mxu0 0
        %1904 = vmatpush1.bf16.msra.mxu0 0
        %1905 = vmatprep.subr.bf16.mxu0 0
        %1906 = vmatpush1.bf16.msra.mxu0 0
        %1907 = vmatprep.subr.bf16.mxu0 0
        %1908 = vmatpush1.bf16.msra.mxu0 0
        %1909 = vmatprep.subr.bf16.mxu0 0
        %1910 = vmatpush1.bf16.msra.mxu0 0
        %1911 = vmatprep.subr.bf16.mxu0 0
        %1912 = vmatpush1.bf16.msra.mxu0 0
        %1913 = vmatprep.subr.bf16.mxu0 0
        %1914 = vmatpush1.bf16.msra.mxu0 0
        %1915 = vmatprep.subr.bf16.mxu0 0
        %1916 = vmatpush1.bf16.msra.mxu0 0
        %1917 = vmatprep.subr.bf16.mxu0 0
        %1918 = vmatpush1.bf16.msra.mxu0 0
        %1919 = vmatprep.subr.bf16.mxu0 0
        %1920 = vmatpush1.bf16.msra.mxu0 0
        %1921 = vmatprep.subr.bf16.mxu0 0
        %1922 = vmatpush1.bf16.msra.mxu0 0
        %1923 = vmatprep.subr.bf16.mxu0 0
        %1924 = vmatpush1.bf16.msra.mxu0 0
        %1925 = vmatprep.subr.bf16.mxu0 0
        %1926 = vmatpush1.bf16.msra.mxu0 0
        %1927 = vmatprep.subr.bf16.mxu0 0
        %1928 = vmatpush1.bf16.msra.mxu0 0
        %1929 = vmatprep.subr.bf16.mxu0 0
        %1930 = vmatpush1.bf16.msra.mxu0 0
        %1931 = vmatprep.mubr.bf16.mxu0 0
        %1932 = vmatmul.mubr.bf16.gmra.mrb[0].mxu0 %v1885
        %v1933 = vpop.f32.mrb[0].mxu0
        %v1934 = vadd.f32 0.0, %v1933
        %v1935 = vpop.f32.mrb[0].mxu0
        %v1936 = vpop.f32.mrb[0].mxu0
        %v1937 = vadd.f32 0.0, %v1936
        %v1938 = vpop.f32.mrb[0].mxu0
        %1939 = vmatprep.mubr.bf16.mxu0 0
        %1940 = vmatmul.mubr.bf16.gmra.mrb[0].mxu0 %v1888
        %v1941 = vpop.f32.mrb[0].mxu0
        %v1942 = vadd.f32 0.0, %v1941
        %v1943 = vpop.f32.mrb[0].mxu0
        %v1944 = vpop.f32.mrb[0].mxu0
        %v1945 = vadd.f32 0.0, %v1944
        %v1946 = vpop.f32.mrb[0].mxu0
        %1947 = vmatprep.mubr.bf16.mxu0 0
        %1948 = vmatmul.mubr.bf16.gmra.mrb[0].mxu0 %v1891
        %v1949 = vpop.f32.mrb[0].mxu0
        %v1950 = vadd.f32 0.0, %v1949
        %v1951 = vpop.f32.mrb[0].mxu0
        %v1952 = vpop.f32.mrb[0].mxu0
        %v1953 = vadd.f32 0.0, %v1952
        %v1954 = vpop.f32.mrb[0].mxu0
        %1955 = vmatprep.mubr.bf16.mxu0 0
        %1956 = vmatmul.mubr.bf16.gmra.mrb[0].mxu0 %v1894
        %v1957 = vpop.f32.mrb[0].mxu0
        %v1958 = vadd.f32 0.0, %v1957
        %v1959 = vpop.f32.mrb[0].mxu0
        %v1960 = vpop.f32.mrb[0].mxu0
        %v1961 = vadd.f32 0.0, %v1960
        %v1962 = vpop.f32.mrb[0].mxu0
        %1963 = vdwg.mxu0
        %v1964 = vld [vmem:[%s15] sm:$0xf]
        %v1965 = vld [vmem:[%s15 + $0x4] sm:$0xf]
        %v1966 = vld [vmem:[%s15 + $0x8] sm:$0xf]
        %v1967 = vld [vmem:[%s15 + $0xc] sm:$0xf]
        %v1968 = vld [vmem:[%s15 + $0x10] sm:$0xf]
        %v1969 = vld [vmem:[%s15 + $0x14] sm:$0xf]
        %v1970 = vld [vmem:[%s15 + $0x18] sm:$0xf]
        %v1971 = vld [vmem:[%s15 + $0x1c] sm:$0xf]
        %v1972 = vpack.c.bf16 %v1937, %v1934
        %v1973 = vpack.c.bf16 %v1945, %v1942
        %v1974 = vpack.c.bf16 %v1953, %v1950
        %v1975 = vpack.c.bf16 %v1961, %v1958
        %v1984 = vunpack.c.l.b16 %v1964
        %v1985 = vunpack.c.l.b16 %v1965
        %v1986 = vunpack.c.l.b16 %v1966
        %v1987 = vunpack.c.l.b16 %v1967
        %v1988 = vunpack.c.l.b16 %v1968
        %v1989 = vunpack.c.l.b16 %v1969
        %v1990 = vunpack.c.l.b16 %v1970
        %v1991 = vunpack.c.l.b16 %v1971
        %v1992 = vpack.c.b16 %v1985, %v1984
        %v1993 = vpack.c.b16 %v1987, %v1986
        %v1994 = vpack.c.b16 %v1989, %v1988
        %v1995 = vpack.c.b16 %v1991, %v1990
        %v1997 = vsel %vm1511, %v1992, 0
        %v2000 = vsel %vm1511, %v1993, 0
        %v2003 = vsel %vm1511, %v1994, 0
        %v2006 = vsel %vm1511, %v1995, 0
        %2008 = vmatprep.subr.bf16.mxu0 0
        %2009 = vmatpush1.bf16.msra.mxu0 %v1972
        %2010 = vmatprep.subr.bf16.mxu0 0
        %2011 = vmatpush1.bf16.msra.mxu0 %v1973
        %2012 = vmatprep.subr.bf16.mxu0 0
        %2013 = vmatpush1.bf16.msra.mxu0 %v1974
        %2014 = vmatprep.subr.bf16.mxu0 0
        %2015 = vmatpush1.bf16.msra.mxu0 %v1975
        %2016 = vmatprep.subr.bf16.mxu0 0
        %2017 = vmatpush1.bf16.msra.mxu0 0
        %2018 = vmatprep.subr.bf16.mxu0 0
        %2019 = vmatpush1.bf16.msra.mxu0 0
        %2020 = vmatprep.subr.bf16.mxu0 0
        %2021 = vmatpush1.bf16.msra.mxu0 0
        %2022 = vmatprep.subr.bf16.mxu0 0
        %2023 = vmatpush1.bf16.msra.mxu0 0
        %2024 = vmatprep.subr.bf16.mxu0 0
        %2025 = vmatpush1.bf16.msra.mxu0 0
        %2026 = vmatprep.subr.bf16.mxu0 0
        %2027 = vmatpush1.bf16.msra.mxu0 0
        %2028 = vmatprep.subr.bf16.mxu0 0
        %2029 = vmatpush1.bf16.msra.mxu0 0
        %2030 = vmatprep.subr.bf16.mxu0 0
        %2031 = vmatpush1.bf16.msra.mxu0 0
        %2032 = vmatprep.subr.bf16.mxu0 0
        %2033 = vmatpush1.bf16.msra.mxu0 0
        %2034 = vmatprep.subr.bf16.mxu0 0
        %2035 = vmatpush1.bf16.msra.mxu0 0
        %2036 = vmatprep.subr.bf16.mxu0 0
        %2037 = vmatpush1.bf16.msra.mxu0 0
        %2038 = vmatprep.subr.bf16.mxu0 0
        %2039 = vmatpush1.bf16.msra.mxu0 0
        %2040 = vmatprep.mubr.bf16.mxu0 0
        %2041 = vmatmul.mubr.bf16.gmra.mrb[0].mxu0 %v1997
        %v2042 = vpop.f32.mrb[0].mxu0
        %v2043 = vadd.f32 %v1033, %v2042
        %v2044 = vpop.f32.mrb[0].mxu0
        %v2045 = vpop.f32.mrb[0].mxu0
        %v2046 = vadd.f32 %v1034, %v2045
        %v2047 = vpop.f32.mrb[0].mxu0
        %2048 = vmatprep.mubr.bf16.mxu0 0
        %2049 = vmatmul.mubr.bf16.gmra.mrb[0].mxu0 %v2000
        %v2050 = vpop.f32.mrb[0].mxu0
        %v2051 = vadd.f32 %v1035, %v2050
        %v2052 = vpop.f32.mrb[0].mxu0
        %v2053 = vpop.f32.mrb[0].mxu0
        %v2054 = vadd.f32 %v1036, %v2053
        %v2055 = vpop.f32.mrb[0].mxu0
        %2056 = vmatprep.mubr.bf16.mxu0 0
        %2057 = vmatmul.mubr.bf16.gmra.mrb[0].mxu0 %v2003
        %v2058 = vpop.f32.mrb[0].mxu0
        %v2059 = vadd.f32 %v1037, %v2058
        %v2060 = vpop.f32.mrb[0].mxu0
        %v2061 = vpop.f32.mrb[0].mxu0
        %v2062 = vadd.f32 %v1038, %v2061
        %v2063 = vpop.f32.mrb[0].mxu0
        %2064 = vmatprep.mubr.bf16.mxu0 0
        %2065 = vmatmul.mubr.bf16.gmra.mrb[0].mxu0 %v2006
        %v2066 = vpop.f32.mrb[0].mxu0
        %v2067 = vadd.f32 %v1039, %v2066
        %v2068 = vpop.f32.mrb[0].mxu0
        %v2069 = vpop.f32.mrb[0].mxu0
        %v2070 = vadd.f32 %v1040, %v2069
        %v2071 = vpop.f32.mrb[0].mxu0
        %2072 = vdwg.mxu0
        %v2073 = vld [vmem:[%s16] sm:$0x1]
        %v2074 = vld [vmem:[%s17] sm:$0x1]
        %v2075 = vsel %vm740, %v2043, 0.0
        %2076 = vadd.xlane.f32.xlu0 %v2075
        %v2077 = vpop.xlane.xlu0 %2076
        %v2078 = vsel %vm740, %v2046, 0.0
        %2079 = vadd.xlane.f32.xlu0 %v2078
        %v2080 = vpop.xlane.xlu0 %2079
        %v2081 = vsel %vm740, %v2051, 0.0
        %2082 = vadd.xlane.f32.xlu0 %v2081
        %v2083 = vpop.xlane.xlu0 %2082
        %v2084 = vsel %vm740, %v2054, 0.0
        %2085 = vadd.xlane.f32.xlu0 %v2084
        %v2086 = vpop.xlane.xlu0 %2085
        %v2087 = vsel %vm740, %v2059, 0.0
        %2088 = vadd.xlane.f32.xlu0 %v2087
        %v2089 = vpop.xlane.xlu0 %2088
        %v2090 = vsel %vm740, %v2062, 0.0
        %2091 = vadd.xlane.f32.xlu0 %v2090
        %v2092 = vpop.xlane.xlu0 %2091
        %v2093 = vsel %vm740, %v2067, 0.0
        %2094 = vadd.xlane.f32.xlu0 %v2093
        %v2095 = vpop.xlane.xlu0 %2094
        %v2096 = vsel %vm740, %v2070, 0.0
        %2097 = vadd.xlane.f32.xlu0 %v2096
        %v2098 = vpop.xlane.xlu0 %2097
        %v2099 = vmul.f32 %v2077, %v932
        %v2100 = vmul.f32 %v2080, %v932
        %v2101 = vmul.f32 %v2083, %v932
        %v2102 = vmul.f32 %v2086, %v932
        %v2103 = vmul.f32 %v2089, %v932
        %v2104 = vmul.f32 %v2092, %v932
        %v2105 = vmul.f32 %v2095, %v932
        %v2106 = vmul.f32 %v2098, %v932
        %v2107 = vsub.f32 %v2043, %v2099
        %v2108 = vsub.f32 %v2046, %v2100
        %v2109 = vsub.f32 %v2051, %v2101
        %v2110 = vsub.f32 %v2054, %v2102
        %v2111 = vsub.f32 %v2059, %v2103
        %v2112 = vsub.f32 %v2062, %v2104
        %v2113 = vsub.f32 %v2067, %v2105
        %v2114 = vsub.f32 %v2070, %v2106
        %v2115 = vmul.f32 %v2107, %v2107
        %v2116 = vmul.f32 %v2108, %v2108
        %v2117 = vmul.f32 %v2109, %v2109
        %v2118 = vmul.f32 %v2110, %v2110
        %v2119 = vmul.f32 %v2111, %v2111
        %v2120 = vmul.f32 %v2112, %v2112
        %v2121 = vmul.f32 %v2113, %v2113
        %v2122 = vmul.f32 %v2114, %v2114
        %v2123 = vsel %vm740, %v2115, 0.0
        %2124 = vadd.xlane.f32.xlu0 %v2123
        %v2125 = vpop.xlane.xlu0 %2124
        %v2126 = vsel %vm740, %v2116, 0.0
        %2127 = vadd.xlane.f32.xlu0 %v2126
        %v2128 = vpop.xlane.xlu0 %2127
        %v2129 = vsel %vm740, %v2117, 0.0
        %2130 = vadd.xlane.f32.xlu0 %v2129
        %v2131 = vpop.xlane.xlu0 %2130
        %v2132 = vsel %vm740, %v2118, 0.0
        %2133 = vadd.xlane.f32.xlu0 %v2132
        %v2134 = vpop.xlane.xlu0 %2133
        %v2135 = vsel %vm740, %v2119, 0.0
        %2136 = vadd.xlane.f32.xlu0 %v2135
        %v2137 = vpop.xlane.xlu0 %2136
        %v2138 = vsel %vm740, %v2120, 0.0
        %2139 = vadd.xlane.f32.xlu0 %v2138
        %v2140 = vpop.xlane.xlu0 %2139
        %v2141 = vsel %vm740, %v2121, 0.0
        %2142 = vadd.xlane.f32.xlu0 %v2141
        %v2143 = vpop.xlane.xlu0 %2142
        %v2144 = vsel %vm740, %v2122, 0.0
        %2145 = vadd.xlane.f32.xlu0 %v2144
        %v2146 = vpop.xlane.xlu0 %2145
        %v2147 = vmul.f32 %v2125, %v932
        %v2148 = vmul.f32 %v2128, %v932
        %v2149 = vmul.f32 %v2131, %v932
        %v2150 = vmul.f32 %v2134, %v932
        %v2151 = vmul.f32 %v2137, %v932
        %v2152 = vmul.f32 %v2140, %v932
        %v2153 = vmul.f32 %v2143, %v932
        %v2154 = vmul.f32 %v2146, %v932
        %v2155 = vadd.f32 %v2147, 1e-05
        %v2156 = vadd.f32 %v2148, 1e-05
        %v2157 = vadd.f32 %v2149, 1e-05
        %v2158 = vadd.f32 %v2150, 1e-05
        %v2159 = vadd.f32 %v2151, 1e-05
        %v2160 = vadd.f32 %v2152, 1e-05
        %v2161 = vadd.f32 %v2153, 1e-05
        %v2162 = vadd.f32 %v2154, 1e-05
        %v2163 = vrsqrt.pop %v2155
        %v2164 = vrsqrt.pop %v2156
        %v2165 = vrsqrt.pop %v2157
        %v2166 = vrsqrt.pop %v2158
        %v2167 = vrsqrt.pop %v2159
        %v2168 = vrsqrt.pop %v2160
        %v2169 = vrsqrt.pop %v2161
        %v2170 = vrsqrt.pop %v2162
        %v2171 = vmul.f32 %v2107, %v2163
        %v2172 = vmul.f32 %v2108, %v2164
        %v2173 = vmul.f32 %v2109, %v2165
        %v2174 = vmul.f32 %v2110, %v2166
        %v2175 = vmul.f32 %v2111, %v2167
        %v2176 = vmul.f32 %v2112, %v2168
        %v2177 = vmul.f32 %v2113, %v2169
        %v2178 = vmul.f32 %v2114, %v2170
        %v2180 = vlaneseq
        %v2181 = vshrl.u32 %v2180, 7
        %v2182 = vsub.s32 0, %v2181
        %v2183 = vrot.slane %v2073, %v2182
        %v2185 = vmul.f32 %v2171, %v2183
        %v2186 = vmul.f32 %v2172, %v2183
        %v2187 = vmul.f32 %v2173, %v2183
        %v2188 = vmul.f32 %v2174, %v2183
        %v2189 = vmul.f32 %v2175, %v2183
        %v2190 = vmul.f32 %v2176, %v2183
        %v2191 = vmul.f32 %v2177, %v2183
        %v2192 = vmul.f32 %v2178, %v2183
        %v2194 = vlaneseq
        %v2195 = vshrl.u32 %v2194, 7
        %v2196 = vsub.s32 0, %v2195
        %v2197 = vrot.slane %v2074, %v2196
        %v2199 = vadd.f32 %v2185, %v2197
        %v2200 = vadd.f32 %v2186, %v2197
        %v2201 = vadd.f32 %v2187, %v2197
        %v2202 = vadd.f32 %v2188, %v2197
        %v2203 = vadd.f32 %v2189, %v2197
        %v2204 = vadd.f32 %v2190, %v2197
        %v2205 = vadd.f32 %v2191, %v2197
        %v2206 = vadd.f32 %v2192, %v2197
        %v2207 = vpack.c.bf16 %v2200, %v2199
        %v2208 = vpack.c.bf16 %v2202, %v2201
        %v2209 = vpack.c.bf16 %v2204, %v2203
        %v2210 = vpack.c.bf16 %v2206, %v2205
        %v2211 = vld [vmem:[%s18] sm:$0xf]
        %v2212 = vld [vmem:[%s18 + $0x4] sm:$0xf]
        %v2213 = vld [vmem:[%s18 + $0x8] sm:$0xf]
        %v2214 = vld [vmem:[%s18 + $0xc] sm:$0xf]
        %v2215 = vld [vmem:[%s19] sm:$0x1]
        %v2217 = vlaneseq
        %v2218 = vshrl.u32 %v2217, 7
        %v2219 = vsub.s32 0, %v2218
        %v2220 = vrot.slane %v2215, %v2219
        %v2226 = vunpack.c.l.b16 %v2211
        %v2227 = vunpack.c.l.b16 %v2212
        %v2228 = vunpack.c.l.b16 %v2213
        %v2229 = vunpack.c.l.b16 %v2214
        %v2230 = vpack.c.b16 %v2227, %v2226
        %v2231 = vpack.c.b16 %v2229, %v2228
        %v2235 = vsel %vm740, %v2207, 0
        %v2238 = vsel %vm740, %v2208, 0
        %v2241 = vsel %vm740, %v2209, 0
        %v2244 = vsel %vm740, %v2210, 0
        %2246 = vmatprep.subr.bf16.mxu0 0
        %2247 = vmatpush1.bf16.msra.mxu0 %v2230
        %2248 = vmatprep.subr.bf16.mxu0 0
        %2249 = vmatpush1.bf16.msra.mxu0 %v2231
        %2250 = vmatprep.subr.bf16.mxu0 0
        %2251 = vmatpush1.bf16.msra.mxu0 0
        %2252 = vmatprep.subr.bf16.mxu0 0
        %2253 = vmatpush1.bf16.msra.mxu0 0
        %2254 = vmatprep.subr.bf16.mxu0 0
        %2255 = vmatpush1.bf16.msra.mxu0 0
        %2256 = vmatprep.subr.bf16.mxu0 0
        %2257 = vmatpush1.bf16.msra.mxu0 0
        %2258 = vmatprep.subr.bf16.mxu0 0
        %2259 = vmatpush1.bf16.msra.mxu0 0
        %2260 = vmatprep.subr.bf16.mxu0 0
        %2261 = vmatpush1.bf16.msra.mxu0 0
        %2262 = vmatprep.subr.bf16.mxu0 0
        %2263 = vmatpush1.bf16.msra.mxu0 0
        %2264 = vmatprep.subr.bf16.mxu0 0
        %2265 = vmatpush1.bf16.msra.mxu0 0
        %2266 = vmatprep.subr.bf16.mxu0 0
        %2267 = vmatpush1.bf16.msra.mxu0 0
        %2268 = vmatprep.subr.bf16.mxu0 0
        %2269 = vmatpush1.bf16.msra.mxu0 0
        %2270 = vmatprep.subr.bf16.mxu0 0
        %2271 = vmatpush1.bf16.msra.mxu0 0
        %2272 = vmatprep.subr.bf16.mxu0 0
        %2273 = vmatpush1.bf16.msra.mxu0 0
        %2274 = vmatprep.subr.bf16.mxu0 0
        %2275 = vmatpush1.bf16.msra.mxu0 0
        %2276 = vmatprep.subr.bf16.mxu0 0
        %2277 = vmatpush1.bf16.msra.mxu0 0
        %2278 = vmatprep.mubr.bf16.mxu0 0
        %2279 = vmatmul.mubr.bf16.gmra.mrb[0].mxu0 %v2235
        %v2280 = vpop.f32.mrb[0].mxu0
        %v2281 = vadd.f32 %v2220, %v2280
        %v2282 = vpop.f32.mrb[0].mxu0
        %v2283 = vpop.f32.mrb[0].mxu0
        %v2284 = vadd.f32 %v2220, %v2283
        %v2285 = vpop.f32.mrb[0].mxu0
        %2286 = vmatprep.mubr.bf16.mxu0 0
        %2287 = vmatmul.mubr.bf16.gmra.mrb[0].mxu0 %v2238
        %v2288 = vpop.f32.mrb[0].mxu0
        %v2289 = vadd.f32 %v2220, %v2288
        %v2290 = vpop.f32.mrb[0].mxu0
        %v2291 = vpop.f32.mrb[0].mxu0
        %v2292 = vadd.f32 %v2220, %v2291
        %v2293 = vpop.f32.mrb[0].mxu0
        %2294 = vmatprep.mubr.bf16.mxu0 0
        %2295 = vmatmul.mubr.bf16.gmra.mrb[0].mxu0 %v2241
        %v2296 = vpop.f32.mrb[0].mxu0
        %v2297 = vadd.f32 %v2220, %v2296
        %v2298 = vpop.f32.mrb[0].mxu0
        %v2299 = vpop.f32.mrb[0].mxu0
        %v2300 = vadd.f32 %v2220, %v2299
        %v2301 = vpop.f32.mrb[0].mxu0
        %2302 = vmatprep.mubr.bf16.mxu0 0
        %2303 = vmatmul.mubr.bf16.gmra.mrb[0].mxu0 %v2244
        %v2304 = vpop.f32.mrb[0].mxu0
        %v2305 = vadd.f32 %v2220, %v2304
        %v2306 = vpop.f32.mrb[0].mxu0
        %v2307 = vpop.f32.mrb[0].mxu0
        %v2308 = vadd.f32 %v2220, %v2307
        %v2309 = vpop.f32.mrb[0].mxu0
        %2310 = vdwg.mxu0
        %v2311 = vmul.f32 %v2281, 0.5
        %v2312 = vmul.f32 %v2284, 0.5
        %v2313 = vmul.f32 %v2289, 0.5
        %v2314 = vmul.f32 %v2292, 0.5
        %v2315 = vmul.f32 %v2297, 0.5
        %v2316 = vmul.f32 %v2300, 0.5
        %v2317 = vmul.f32 %v2305, 0.5
        %v2318 = vmul.f32 %v2308, 0.5
        %v2319 = vrcp.pop 1.4142135
        %v2320 = vmul.f32 %v2281, %v2319
        %v2321 = vmul.f32 %v2284, %v2319
        %v2322 = vmul.f32 %v2289, %v2319
        %v2323 = vmul.f32 %v2292, %v2319
        %v2324 = vmul.f32 %v2297, %v2319
        %v2325 = vmul.f32 %v2300, %v2319
        %v2326 = vmul.f32 %v2305, %v2319
        %v2327 = vmul.f32 %v2308, %v2319
        %v2328 = verf.f32.pop %v2320
        %v2329 = verf.f32.pop %v2321
        %v2330 = verf.f32.pop %v2322
        %v2331 = verf.f32.pop %v2323
        %v2332 = verf.f32.pop %v2324
        %v2333 = verf.f32.pop %v2325
        %v2334 = verf.f32.pop %v2326
        %v2335 = verf.f32.pop %v2327
        %v2336 = vadd.f32 %v2328, 1.0
        %v2337 = vadd.f32 %v2329, 1.0
        %v2338 = vadd.f32 %v2330, 1.0
        %v2339 = vadd.f32 %v2331, 1.0
        %v2340 = vadd.f32 %v2332, 1.0
        %v2341 = vadd.f32 %v2333, 1.0
        %v2342 = vadd.f32 %v2334, 1.0
        %v2343 = vadd.f32 %v2335, 1.0
        %v2344 = vmul.f32 %v2311, %v2336
        %v2345 = vmul.f32 %v2312, %v2337
        %v2346 = vmul.f32 %v2313, %v2338
        %v2347 = vmul.f32 %v2314, %v2339
        %v2348 = vmul.f32 %v2315, %v2340
        %v2349 = vmul.f32 %v2316, %v2341
        %v2350 = vmul.f32 %v2317, %v2342
        %v2351 = vmul.f32 %v2318, %v2343
        %2352 = vst.msk [vmem:[#allocation4 + $0x10] sm:$0xff] %vm740, %v2344
        %2353 = vst.msk [vmem:[#allocation4 + $0x18] sm:$0xff] %vm740, %v2345
        %2354 = vst.msk [vmem:[#allocation4 + $0x20] sm:$0xff] %vm740, %v2346
        %2355 = vst.msk [vmem:[#allocation4 + $0x28] sm:$0xff] %vm740, %v2347
        %2356 = vst.msk [vmem:[#allocation4 + $0x30] sm:$0xff] %vm740, %v2348
        %2357 = vst.msk [vmem:[#allocation4 + $0x38] sm:$0xff] %vm740, %v2349
        %2358 = vst.msk [vmem:[#allocation4 + $0x40] sm:$0xff] %vm740, %v2350
        %2359 = vst.msk [vmem:[#allocation4 + $0x48] sm:$0xff] %vm740, %v2351
        %v2360 = vld [vmem:[#allocation4 + $0x7] sm:$0xff]
        %v2361 = vld [vmem:[#allocation4 + $0xf] sm:$0xff]
        %v2362 = vld [vmem:[#allocation4 + $0x17] sm:$0xff]
        %v2363 = vld [vmem:[#allocation4 + $0x1f] sm:$0xff]
        %v2364 = vld [vmem:[#allocation4 + $0x27] sm:$0xff]
        %v2365 = vld [vmem:[#allocation4 + $0x2f] sm:$0xff]
        %v2366 = vld [vmem:[#allocation4 + $0x37] sm:$0xff]
        %v2367 = vld [vmem:[#allocation4 + $0x3f] sm:$0xff]
        %2368 = vst.msk [vmem:[#allocation5] sm:$0xff] %vm740, %v2360
        %2369 = vst.msk [vmem:[#allocation5 + $0x18] sm:$0xff] %vm740, %v2361
        %2370 = vst.msk [vmem:[#allocation5 + $0x30] sm:$0xff] %vm740, %v2362
        %2371 = vst.msk [vmem:[#allocation5 + $0x48] sm:$0xff] %vm740, %v2363
        %2372 = vst.msk [vmem:[#allocation5 + $0x60] sm:$0xff] %vm740, %v2364
        %2373 = vst.msk [vmem:[#allocation5 + $0x78] sm:$0xff] %vm740, %v2365
        %2374 = vst.msk [vmem:[#allocation5 + $0x90] sm:$0xff] %vm740, %v2366
        %2375 = vst.msk [vmem:[#allocation5 + $0xa8] sm:$0xff] %vm740, %v2367
        %v2376 = vld [vmem:[#allocation4 + $0x8] sm:$0xff]
        %v2377 = vld [vmem:[#allocation4 + $0x10] sm:$0xff]
        %v2378 = vld [vmem:[#allocation4 + $0x18] sm:$0xff]
        %v2379 = vld [vmem:[#allocation4 + $0x20] sm:$0xff]
        %v2380 = vld [vmem:[#allocation4 + $0x28] sm:$0xff]
        %v2381 = vld [vmem:[#allocation4 + $0x30] sm:$0xff]
        %v2382 = vld [vmem:[#allocation4 + $0x38] sm:$0xff]
        %v2383 = vld [vmem:[#allocation4 + $0x40] sm:$0xff]
        %2392 = vrot.lane.b32.xlu0 %v2376, 32
        %v2393 = vpop.permute.xlu0 %2392
        %2394 = vrot.lane.b32.xlu0 %v2377, 32
        %v2395 = vpop.permute.xlu0 %2394
        %2396 = vrot.lane.b32.xlu0 %v2378, 32
        %v2397 = vpop.permute.xlu0 %2396
        %2398 = vrot.lane.b32.xlu0 %v2379, 32
        %v2399 = vpop.permute.xlu0 %2398
        %2400 = vrot.lane.b32.xlu0 %v2380, 32
        %v2401 = vpop.permute.xlu0 %2400
        %2402 = vrot.lane.b32.xlu0 %v2381, 32
        %v2403 = vpop.permute.xlu0 %2402
        %2404 = vrot.lane.b32.xlu0 %v2382, 32
        %v2405 = vpop.permute.xlu0 %2404
        %2406 = vrot.lane.b32.xlu0 %v2383, 32
        %v2407 = vpop.permute.xlu0 %2406
        %2416 = vst.msk [vmem:[#allocation5] sm:$0xff] %vm1195, %v2393
        %2417 = vst.msk [vmem:[#allocation5 + $0x18] sm:$0xff] %vm1195, %v2395
        %2418 = vst.msk [vmem:[#allocation5 + $0x30] sm:$0xff] %vm1195, %v2397
        %2419 = vst.msk [vmem:[#allocation5 + $0x48] sm:$0xff] %vm1195, %v2399
        %2420 = vst.msk [vmem:[#allocation5 + $0x60] sm:$0xff] %vm1195, %v2401
        %2421 = vst.msk [vmem:[#allocation5 + $0x78] sm:$0xff] %vm1195, %v2403
        %2422 = vst.msk [vmem:[#allocation5 + $0x90] sm:$0xff] %vm1195, %v2405
        %2423 = vst.msk [vmem:[#allocation5 + $0xa8] sm:$0xff] %vm1195, %v2407
        %v2424 = vld [vmem:[#allocation4 + $0x9] sm:$0xff]
        %v2425 = vld [vmem:[#allocation4 + $0x11] sm:$0xff]
        %v2426 = vld [vmem:[#allocation4 + $0x19] sm:$0xff]
        %v2427 = vld [vmem:[#allocation4 + $0x21] sm:$0xff]
        %v2428 = vld [vmem:[#allocation4 + $0x29] sm:$0xff]
        %v2429 = vld [vmem:[#allocation4 + $0x31] sm:$0xff]
        %v2430 = vld [vmem:[#allocation4 + $0x39] sm:$0xff]
        %v2431 = vld [vmem:[#allocation4 + $0x41] sm:$0xff]
        %2440 = vrot.lane.b32.xlu0 %v2424, 64
        %v2441 = vpop.permute.xlu0 %2440
        %2442 = vrot.lane.b32.xlu0 %v2425, 64
        %v2443 = vpop.permute.xlu0 %2442
        %2444 = vrot.lane.b32.xlu0 %v2426, 64
        %v2445 = vpop.permute.xlu0 %2444
        %2446 = vrot.lane.b32.xlu0 %v2427, 64
        %v2447 = vpop.permute.xlu0 %2446
        %2448 = vrot.lane.b32.xlu0 %v2428, 64
        %v2449 = vpop.permute.xlu0 %2448
        %2450 = vrot.lane.b32.xlu0 %v2429, 64
        %v2451 = vpop.permute.xlu0 %2450
        %2452 = vrot.lane.b32.xlu0 %v2430, 64
        %v2453 = vpop.permute.xlu0 %2452
        %2454 = vrot.lane.b32.xlu0 %v2431, 64
        %v2455 = vpop.permute.xlu0 %2454
        %2464 = vst.msk [vmem:[#allocation5] sm:$0xff] %vm1205, %v2441
        %2465 = vst.msk [vmem:[#allocation5 + $0x18] sm:$0xff] %vm1205, %v2443
        %2466 = vst.msk [vmem:[#allocation5 + $0x30] sm:$0xff] %vm1205, %v2445
        %2467 = vst.msk [vmem:[#allocation5 + $0x48] sm:$0xff] %vm1205, %v2447
        %2468 = vst.msk [vmem:[#allocation5 + $0x60] sm:$0xff] %vm1205, %v2449
        %2469 = vst.msk [vmem:[#allocation5 + $0x78] sm:$0xff] %vm1205, %v2451
        %2470 = vst.msk [vmem:[#allocation5 + $0x90] sm:$0xff] %vm1205, %v2453
        %2471 = vst.msk [vmem:[#allocation5 + $0xa8] sm:$0xff] %vm1205, %v2455
        %v2472 = vld [vmem:[#allocation4 + $0xf] sm:$0xff]
        %v2473 = vld [vmem:[#allocation4 + $0x17] sm:$0xff]
        %v2474 = vld [vmem:[#allocation4 + $0x1f] sm:$0xff]
        %v2475 = vld [vmem:[#allocation4 + $0x27] sm:$0xff]
        %v2476 = vld [vmem:[#allocation4 + $0x2f] sm:$0xff]
        %v2477 = vld [vmem:[#allocation4 + $0x37] sm:$0xff]
        %v2478 = vld [vmem:[#allocation4 + $0x3f] sm:$0xff]
        %v2479 = vld [vmem:[#allocation4 + $0x47] sm:$0xff]
        %2488 = vrot.lane.b32.xlu0 %v2472, 96
        %v2489 = vpop.permute.xlu0 %2488
        %2490 = vrot.lane.b32.xlu0 %v2473, 96
        %v2491 = vpop.permute.xlu0 %2490
        %2492 = vrot.lane.b32.xlu0 %v2474, 96
        %v2493 = vpop.permute.xlu0 %2492
        %2494 = vrot.lane.b32.xlu0 %v2475, 96
        %v2495 = vpop.permute.xlu0 %2494
        %2496 = vrot.lane.b32.xlu0 %v2476, 96
        %v2497 = vpop.permute.xlu0 %2496
        %2498 = vrot.lane.b32.xlu0 %v2477, 96
        %v2499 = vpop.permute.xlu0 %2498
        %2500 = vrot.lane.b32.xlu0 %v2478, 96
        %v2501 = vpop.permute.xlu0 %2500
        %2502 = vrot.lane.b32.xlu0 %v2479, 96
        %v2503 = vpop.permute.xlu0 %2502
        %2512 = vst.msk [vmem:[#allocation5] sm:$0xff] %vm1215, %v2489
        %2513 = vst.msk [vmem:[#allocation5 + $0x18] sm:$0xff] %vm1215, %v2491
        %2514 = vst.msk [vmem:[#allocation5 + $0x30] sm:$0xff] %vm1215, %v2493
        %2515 = vst.msk [vmem:[#allocation5 + $0x48] sm:$0xff] %vm1215, %v2495
        %2516 = vst.msk [vmem:[#allocation5 + $0x60] sm:$0xff] %vm1215, %v2497
        %2517 = vst.msk [vmem:[#allocation5 + $0x78] sm:$0xff] %vm1215, %v2499
        %2518 = vst.msk [vmem:[#allocation5 + $0x90] sm:$0xff] %vm1215, %v2501
        %2519 = vst.msk [vmem:[#allocation5 + $0xa8] sm:$0xff] %vm1215, %v2503
        %v2520 = vld [vmem:[#allocation4 + $0x10] sm:$0xff]
        %v2521 = vld [vmem:[#allocation4 + $0x18] sm:$0xff]
        %v2522 = vld [vmem:[#allocation4 + $0x20] sm:$0xff]
        %v2523 = vld [vmem:[#allocation4 + $0x28] sm:$0xff]
        %v2524 = vld [vmem:[#allocation4 + $0x30] sm:$0xff]
        %v2525 = vld [vmem:[#allocation4 + $0x38] sm:$0xff]
        %v2526 = vld [vmem:[#allocation4 + $0x40] sm:$0xff]
        %v2527 = vld [vmem:[#allocation4 + $0x48] sm:$0xff]
        %2528 = vst.msk [vmem:[#allocation5 + $0x8] sm:$0xff] %vm740, %v2520
        %2529 = vst.msk [vmem:[#allocation5 + $0x20] sm:$0xff] %vm740, %v2521
        %2530 = vst.msk [vmem:[#allocation5 + $0x38] sm:$0xff] %vm740, %v2522
        %2531 = vst.msk [vmem:[#allocation5 + $0x50] sm:$0xff] %vm740, %v2523
        %2532 = vst.msk [vmem:[#allocation5 + $0x68] sm:$0xff] %vm740, %v2524
        %2533 = vst.msk [vmem:[#allocation5 + $0x80] sm:$0xff] %vm740, %v2525
        %2534 = vst.msk [vmem:[#allocation5 + $0x98] sm:$0xff] %vm740, %v2526
        %2535 = vst.msk [vmem:[#allocation5 + $0xb0] sm:$0xff] %vm740, %v2527
        %v2536 = vld [vmem:[#allocation4 + $0x11] sm:$0xff]
        %v2537 = vld [vmem:[#allocation4 + $0x19] sm:$0xff]
        %v2538 = vld [vmem:[#allocation4 + $0x21] sm:$0xff]
        %v2539 = vld [vmem:[#allocation4 + $0x29] sm:$0xff]
        %v2540 = vld [vmem:[#allocation4 + $0x31] sm:$0xff]
        %v2541 = vld [vmem:[#allocation4 + $0x39] sm:$0xff]
        %v2542 = vld [vmem:[#allocation4 + $0x41] sm:$0xff]
        %v2543 = vld [vmem:[#allocation4 + $0x49] sm:$0xff]
        %2552 = vrot.lane.b32.xlu0 %v2536, 32
        %v2553 = vpop.permute.xlu0 %2552
        %2554 = vrot.lane.b32.xlu0 %v2537, 32
        %v2555 = vpop.permute.xlu0 %2554
        %2556 = vrot.lane.b32.xlu0 %v2538, 32
        %v2557 = vpop.permute.xlu0 %2556
        %2558 = vrot.lane.b32.xlu0 %v2539, 32
        %v2559 = vpop.permute.xlu0 %2558
        %2560 = vrot.lane.b32.xlu0 %v2540, 32
        %v2561 = vpop.permute.xlu0 %2560
        %2562 = vrot.lane.b32.xlu0 %v2541, 32
        %v2563 = vpop.permute.xlu0 %2562
        %2564 = vrot.lane.b32.xlu0 %v2542, 32
        %v2565 = vpop.permute.xlu0 %2564
        %2566 = vrot.lane.b32.xlu0 %v2543, 32
        %v2567 = vpop.permute.xlu0 %2566
        %2576 = vst.msk [vmem:[#allocation5 + $0x8] sm:$0xff] %vm1195, %v2553
        %2577 = vst.msk [vmem:[#allocation5 + $0x20] sm:$0xff] %vm1195, %v2555
        %2578 = vst.msk [vmem:[#allocation5 + $0x38] sm:$0xff] %vm1195, %v2557
        %2579 = vst.msk [vmem:[#allocation5 + $0x50] sm:$0xff] %vm1195, %v2559
        %2580 = vst.msk [vmem:[#allocation5 + $0x68] sm:$0xff] %vm1195, %v2561
        %2581 = vst.msk [vmem:[#allocation5 + $0x80] sm:$0xff] %vm1195, %v2563
        %2582 = vst.msk [vmem:[#allocation5 + $0x98] sm:$0xff] %vm1195, %v2565
        %2583 = vst.msk [vmem:[#allocation5 + $0xb0] sm:$0xff] %vm1195, %v2567
        %v2584 = vld [vmem:[#allocation4 + $0x17] sm:$0xff]
        %v2585 = vld [vmem:[#allocation4 + $0x1f] sm:$0xff]
        %v2586 = vld [vmem:[#allocation4 + $0x27] sm:$0xff]
        %v2587 = vld [vmem:[#allocation4 + $0x2f] sm:$0xff]
        %v2588 = vld [vmem:[#allocation4 + $0x37] sm:$0xff]
        %v2589 = vld [vmem:[#allocation4 + $0x3f] sm:$0xff]
        %v2590 = vld [vmem:[#allocation4 + $0x47] sm:$0xff]
        %v2591 = vld [vmem:[#allocation4 + $0x4f] sm:$0xff]
        %2600 = vrot.lane.b32.xlu0 %v2584, 64
        %v2601 = vpop.permute.xlu0 %2600
        %2602 = vrot.lane.b32.xlu0 %v2585, 64
        %v2603 = vpop.permute.xlu0 %2602
        %2604 = vrot.lane.b32.xlu0 %v2586, 64
        %v2605 = vpop.permute.xlu0 %2604
        %2606 = vrot.lane.b32.xlu0 %v2587, 64
        %v2607 = vpop.permute.xlu0 %2606
        %2608 = vrot.lane.b32.xlu0 %v2588, 64
        %v2609 = vpop.permute.xlu0 %2608
        %2610 = vrot.lane.b32.xlu0 %v2589, 64
        %v2611 = vpop.permute.xlu0 %2610
        %2612 = vrot.lane.b32.xlu0 %v2590, 64
        %v2613 = vpop.permute.xlu0 %2612
        %2614 = vrot.lane.b32.xlu0 %v2591, 64
        %v2615 = vpop.permute.xlu0 %2614
        %2624 = vst.msk [vmem:[#allocation5 + $0x8] sm:$0xff] %vm1205, %v2601
        %2625 = vst.msk [vmem:[#allocation5 + $0x20] sm:$0xff] %vm1205, %v2603
        %2626 = vst.msk [vmem:[#allocation5 + $0x38] sm:$0xff] %vm1205, %v2605
        %2627 = vst.msk [vmem:[#allocation5 + $0x50] sm:$0xff] %vm1205, %v2607
        %2628 = vst.msk [vmem:[#allocation5 + $0x68] sm:$0xff] %vm1205, %v2609
        %2629 = vst.msk [vmem:[#allocation5 + $0x80] sm:$0xff] %vm1205, %v2611
        %2630 = vst.msk [vmem:[#allocation5 + $0x98] sm:$0xff] %vm1205, %v2613
        %2631 = vst.msk [vmem:[#allocation5 + $0xb0] sm:$0xff] %vm1205, %v2615
        %v2632 = vld [vmem:[#allocation4 + $0x18] sm:$0xff]
        %v2633 = vld [vmem:[#allocation4 + $0x20] sm:$0xff]
        %v2634 = vld [vmem:[#allocation4 + $0x28] sm:$0xff]
        %v2635 = vld [vmem:[#allocation4 + $0x30] sm:$0xff]
        %v2636 = vld [vmem:[#allocation4 + $0x38] sm:$0xff]
        %v2637 = vld [vmem:[#allocation4 + $0x40] sm:$0xff]
        %v2638 = vld [vmem:[#allocation4 + $0x48] sm:$0xff]
        %v2639 = vld [vmem:[#allocation4 + $0x50] sm:$0xff]
        %2648 = vrot.lane.b32.xlu0 %v2632, 96
        %v2649 = vpop.permute.xlu0 %2648
        %2650 = vrot.lane.b32.xlu0 %v2633, 96
        %v2651 = vpop.permute.xlu0 %2650
        %2652 = vrot.lane.b32.xlu0 %v2634, 96
        %v2653 = vpop.permute.xlu0 %2652
        %2654 = vrot.lane.b32.xlu0 %v2635, 96
        %v2655 = vpop.permute.xlu0 %2654
        %2656 = vrot.lane.b32.xlu0 %v2636, 96
        %v2657 = vpop.permute.xlu0 %2656
        %2658 = vrot.lane.b32.xlu0 %v2637, 96
        %v2659 = vpop.permute.xlu0 %2658
        %2660 = vrot.lane.b32.xlu0 %v2638, 96
        %v2661 = vpop.permute.xlu0 %2660
        %2662 = vrot.lane.b32.xlu0 %v2639, 96
        %v2663 = vpop.permute.xlu0 %2662
        %2672 = vst.msk [vmem:[#allocation5 + $0x8] sm:$0xff] %vm1215, %v2649
        %2673 = vst.msk [vmem:[#allocation5 + $0x20] sm:$0xff] %vm1215, %v2651
        %2674 = vst.msk [vmem:[#allocation5 + $0x38] sm:$0xff] %vm1215, %v2653
        %2675 = vst.msk [vmem:[#allocation5 + $0x50] sm:$0xff] %vm1215, %v2655
        %2676 = vst.msk [vmem:[#allocation5 + $0x68] sm:$0xff] %vm1215, %v2657
        %2677 = vst.msk [vmem:[#allocation5 + $0x80] sm:$0xff] %vm1215, %v2659
        %2678 = vst.msk [vmem:[#allocation5 + $0x98] sm:$0xff] %vm1215, %v2661
        %2679 = vst.msk [vmem:[#allocation5 + $0xb0] sm:$0xff] %vm1215, %v2663
        %v2680 = vld [vmem:[#allocation4 + $0x19] sm:$0xff]
        %v2681 = vld [vmem:[#allocation4 + $0x21] sm:$0xff]
        %v2682 = vld [vmem:[#allocation4 + $0x29] sm:$0xff]
        %v2683 = vld [vmem:[#allocation4 + $0x31] sm:$0xff]
        %v2684 = vld [vmem:[#allocation4 + $0x39] sm:$0xff]
        %v2685 = vld [vmem:[#allocation4 + $0x41] sm:$0xff]
        %v2686 = vld [vmem:[#allocation4 + $0x49] sm:$0xff]
        %v2687 = vld [vmem:[#allocation4 + $0x51] sm:$0xff]
        %2688 = vst.msk [vmem:[#allocation5 + $0x10] sm:$0xff] %vm740, %v2680
        %2689 = vst.msk [vmem:[#allocation5 + $0x28] sm:$0xff] %vm740, %v2681
        %2690 = vst.msk [vmem:[#allocation5 + $0x40] sm:$0xff] %vm740, %v2682
        %2691 = vst.msk [vmem:[#allocation5 + $0x58] sm:$0xff] %vm740, %v2683
        %2692 = vst.msk [vmem:[#allocation5 + $0x70] sm:$0xff] %vm740, %v2684
        %2693 = vst.msk [vmem:[#allocation5 + $0x88] sm:$0xff] %vm740, %v2685
        %2694 = vst.msk [vmem:[#allocation5 + $0xa0] sm:$0xff] %vm740, %v2686
        %2695 = vst.msk [vmem:[#allocation5 + $0xb8] sm:$0xff] %vm740, %v2687
        %v2696 = vld [vmem:[#allocation5] sm:$0xff]
        %v2697 = vld [vmem:[#allocation5 + $0x8] sm:$0xff]
        %v2698 = vld [vmem:[#allocation5 + $0x10] sm:$0xff]
        %v2699 = vld [vmem:[#allocation5 + $0x18] sm:$0xff]
        %v2700 = vld [vmem:[#allocation5 + $0x20] sm:$0xff]
        %v2701 = vld [vmem:[#allocation5 + $0x28] sm:$0xff]
        %v2702 = vld [vmem:[#allocation5 + $0x30] sm:$0xff]
        %v2703 = vld [vmem:[#allocation5 + $0x38] sm:$0xff]
        %v2704 = vld [vmem:[#allocation5 + $0x40] sm:$0xff]
        %v2705 = vld [vmem:[#allocation5 + $0x48] sm:$0xff]
        %v2706 = vld [vmem:[#allocation5 + $0x50] sm:$0xff]
        %v2707 = vld [vmem:[#allocation5 + $0x58] sm:$0xff]
        %v2708 = vld [vmem:[#allocation5 + $0x60] sm:$0xff]
        %v2709 = vld [vmem:[#allocation5 + $0x68] sm:$0xff]
        %v2710 = vld [vmem:[#allocation5 + $0x70] sm:$0xff]
        %v2711 = vld [vmem:[#allocation5 + $0x78] sm:$0xff]
        %v2712 = vld [vmem:[#allocation5 + $0x80] sm:$0xff]
        %v2713 = vld [vmem:[#allocation5 + $0x88] sm:$0xff]
        %v2714 = vld [vmem:[#allocation5 + $0x90] sm:$0xff]
        %v2715 = vld [vmem:[#allocation5 + $0x98] sm:$0xff]
        %v2716 = vld [vmem:[#allocation5 + $0xa0] sm:$0xff]
        %v2717 = vld [vmem:[#allocation5 + $0xa8] sm:$0xff]
        %v2718 = vld [vmem:[#allocation5 + $0xb0] sm:$0xff]
        %v2719 = vld [vmem:[#allocation5 + $0xb8] sm:$0xff]
        %v2720 = vmul.f32 %v2696, %v761
        %v2721 = vmul.f32 %v2697, %v762
        %v2722 = vmul.f32 %v2698, %v763
        %v2723 = vmul.f32 %v2699, %v764
        %v2724 = vmul.f32 %v2700, %v765
        %v2725 = vmul.f32 %v2701, %v766
        %v2726 = vmul.f32 %v2702, %v767
        %v2727 = vmul.f32 %v2703, %v768
        %v2728 = vmul.f32 %v2704, %v769
        %v2729 = vmul.f32 %v2705, %v770
        %v2730 = vmul.f32 %v2706, %v771
        %v2731 = vmul.f32 %v2707, %v772
        %v2732 = vmul.f32 %v2708, %v773
        %v2733 = vmul.f32 %v2709, %v774
        %v2734 = vmul.f32 %v2710, %v775
        %v2735 = vmul.f32 %v2711, %v776
        %v2736 = vmul.f32 %v2712, %v777
        %v2737 = vmul.f32 %v2713, %v778
        %v2738 = vmul.f32 %v2714, %v779
        %v2739 = vmul.f32 %v2715, %v780
        %v2740 = vmul.f32 %v2716, %v781
        %v2741 = vmul.f32 %v2717, %v782
        %v2742 = vmul.f32 %v2718, %v783
        %v2743 = vmul.f32 %v2719, %v784
        %v2744 = vpack.c.bf16 %v2723, %v2720
        %v2745 = vpack.c.bf16 %v2724, %v2721
        %v2746 = vpack.c.bf16 %v2725, %v2722
        %v2747 = vpack.c.bf16 %v2729, %v2726
        %v2748 = vpack.c.bf16 %v2730, %v2727
        %v2749 = vpack.c.bf16 %v2731, %v2728
        %v2750 = vpack.c.bf16 %v2735, %v2732
        %v2751 = vpack.c.bf16 %v2736, %v2733
        %v2752 = vpack.c.bf16 %v2737, %v2734
        %v2753 = vpack.c.bf16 %v2741, %v2738
        %v2754 = vpack.c.bf16 %v2742, %v2739
        %v2755 = vpack.c.bf16 %v2743, %v2740
        %v2756 = vld [vmem:[%s20] sm:$0xf]
        %v2757 = vld [vmem:[%s20 + $0x4] sm:$0xf]
        %v2758 = vld [vmem:[%s20 + $0x8] sm:$0xf]
        %v2759 = vld [vmem:[%s20 + $0xc] sm:$0xf]
        %v2760 = vld [vmem:[%s20 + $0x10] sm:$0xf]
        %v2761 = vld [vmem:[%s20 + $0x14] sm:$0xf]
        %v2762 = vld [vmem:[%s20 + $0x18] sm:$0xf]
        %v2763 = vld [vmem:[%s20 + $0x1c] sm:$0xf]
        %v2764 = vld [vmem:[%s20 + $0x20] sm:$0xf]
        %v2765 = vld [vmem:[%s20 + $0x24] sm:$0xf]
        %v2766 = vld [vmem:[%s20 + $0x28] sm:$0xf]
        %v2767 = vld [vmem:[%s20 + $0x2c] sm:$0xf]
        %v2768 = vld [vmem:[%s20 + $0x30] sm:$0xf]
        %v2769 = vld [vmem:[%s20 + $0x34] sm:$0xf]
        %v2770 = vld [vmem:[%s20 + $0x38] sm:$0xf]
        %v2771 = vld [vmem:[%s20 + $0x3c] sm:$0xf]
        %v2772 = vld [vmem:[%s20 + $0x40] sm:$0xf]
        %v2773 = vld [vmem:[%s20 + $0x44] sm:$0xf]
        %v2774 = vld [vmem:[%s20 + $0x48] sm:$0xf]
        %v2775 = vld [vmem:[%s20 + $0x4c] sm:$0xf]
        %v2776 = vld [vmem:[%s20 + $0x50] sm:$0xf]
        %v2777 = vld [vmem:[%s20 + $0x54] sm:$0xf]
        %v2778 = vld [vmem:[%s20 + $0x58] sm:$0xf]
        %v2779 = vld [vmem:[%s20 + $0x5c] sm:$0xf]
        %v2780 = vld [vmem:[%s20 + $0x60] sm:$0xf]
        %v2781 = vld [vmem:[%s20 + $0x64] sm:$0xf]
        %v2782 = vld [vmem:[%s20 + $0x68] sm:$0xf]
        %v2783 = vld [vmem:[%s20 + $0x6c] sm:$0xf]
        %v2784 = vld [vmem:[%s20 + $0x70] sm:$0xf]
        %v2785 = vld [vmem:[%s20 + $0x74] sm:$0xf]
        %v2786 = vld [vmem:[%s20 + $0x78] sm:$0xf]
        %v2787 = vld [vmem:[%s20 + $0x7c] sm:$0xf]
        %v2788 = vld [vmem:[%s20 + $0x80] sm:$0xf]
        %v2789 = vld [vmem:[%s20 + $0x84] sm:$0xf]
        %v2790 = vld [vmem:[%s20 + $0x88] sm:$0xf]
        %v2791 = vld [vmem:[%s20 + $0x8c] sm:$0xf]
        %v2792 = vld [vmem:[%s21] sm:$0x1]
        %v2794 = vlaneseq
        %v2795 = vshrl.u32 %v2794, 7
        %v2796 = vsub.s32 0, %v2795
        %v2797 = vrot.slane %v2792, %v2796
        %v2835 = vunpack.c.l.b16 %v2756
        %v2836 = vunpack.c.l.b16 %v2757
        %v2837 = vunpack.c.l.b16 %v2758
        %v2838 = vunpack.c.l.b16 %v2759
        %v2839 = vunpack.c.l.b16 %v2760
        %v2840 = vunpack.c.l.b16 %v2761
        %v2841 = vunpack.c.l.b16 %v2762
        %v2842 = vunpack.c.l.b16 %v2763
        %v2843 = vunpack.c.l.b16 %v2764
        %v2844 = vunpack.c.l.b16 %v2765
        %v2845 = vunpack.c.l.b16 %v2766
        %v2846 = vunpack.c.l.b16 %v2767
        %v2847 = vunpack.c.l.b16 %v2768
        %v2848 = vunpack.c.l.b16 %v2769
        %v2849 = vunpack.c.l.b16 %v2770
        %v2850 = vunpack.c.l.b16 %v2771
        %v2851 = vunpack.c.l.b16 %v2772
        %v2852 = vunpack.c.l.b16 %v2773
        %v2853 = vunpack.c.l.b16 %v2774
        %v2854 = vunpack.c.l.b16 %v2775
        %v2855 = vunpack.c.l.b16 %v2776
        %v2856 = vunpack.c.l.b16 %v2777
        %v2857 = vunpack.c.l.b16 %v2778
        %v2858 = vunpack.c.l.b16 %v2779
        %v2859 = vunpack.c.l.b16 %v2780
        %v2860 = vunpack.c.l.b16 %v2781
        %v2861 = vunpack.c.l.b16 %v2782
        %v2862 = vunpack.c.l.b16 %v2783
        %v2863 = vunpack.c.l.b16 %v2784
        %v2864 = vunpack.c.l.b16 %v2785
        %v2865 = vunpack.c.l.b16 %v2786
        %v2866 = vunpack.c.l.b16 %v2787
        %v2867 = vunpack.c.l.b16 %v2788
        %v2868 = vunpack.c.l.b16 %v2789
        %v2869 = vunpack.c.l.b16 %v2790
        %v2870 = vunpack.c.l.b16 %v2791
        %v2871 = vpack.c.b16 %v2836, %v2835
        %v2872 = vpack.c.b16 %v2838, %v2837
        %v2873 = vpack.c.b16 %v2840, %v2839
        %v2874 = vpack.c.b16 %v2842, %v2841
        %v2875 = vpack.c.b16 %v2844, %v2843
        %v2876 = vpack.c.b16 %v2846, %v2845
        %v2877 = vpack.c.b16 %v2848, %v2847
        %v2878 = vpack.c.b16 %v2850, %v2849
        %v2879 = vpack.c.b16 %v2852, %v2851
        %v2880 = vpack.c.b16 %v2854, %v2853
        %v2881 = vpack.c.b16 %v2856, %v2855
        %v2882 = vpack.c.b16 %v2858, %v2857
        %v2883 = vpack.c.b16 %v2860, %v2859
        %v2884 = vpack.c.b16 %v2862, %v2861
        %v2885 = vpack.c.b16 %v2864, %v2863
        %v2886 = vpack.c.b16 %v2866, %v2865
        %v2887 = vpack.c.b16 %v2868, %v2867
        %v2888 = vpack.c.b16 %v2870, %v2869
        %v2908 = vsel %vm740, %v2746, 0
        %v2911 = vsel %vm740, %v2749, 0
        %v2914 = vsel %vm740, %v2752, 0
        %v2917 = vsel %vm740, %v2755, 0
        %2919 = vmatprep.subr.bf16.mxu0 0
        %2920 = vmatpush1.bf16.msra.mxu0 %v2871
        %2921 = vmatprep.subr.bf16.mxu0 0
        %2922 = vmatpush1.bf16.msra.mxu0 %v2872
        %2923 = vmatprep.subr.bf16.mxu0 0
        %2924 = vmatpush1.bf16.msra.mxu0 %v2873
        %2925 = vmatprep.subr.bf16.mxu0 0
        %2926 = vmatpush1.bf16.msra.mxu0 %v2874
        %2927 = vmatprep.subr.bf16.mxu0 0
        %2928 = vmatpush1.bf16.msra.mxu0 %v2875
        %2929 = vmatprep.subr.bf16.mxu0 0
        %2930 = vmatpush1.bf16.msra.mxu0 %v2876
        %2931 = vmatprep.subr.bf16.mxu0 0
        %2932 = vmatpush1.bf16.msra.mxu0 %v2877
        %2933 = vmatprep.subr.bf16.mxu0 0
        %2934 = vmatpush1.bf16.msra.mxu0 %v2878
        %2935 = vmatprep.subr.bf16.mxu0 0
        %2936 = vmatpush1.bf16.msra.mxu0 %v2879
        %2937 = vmatprep.subr.bf16.mxu0 0
        %2938 = vmatpush1.bf16.msra.mxu0 %v2880
        %2939 = vmatprep.subr.bf16.mxu0 0
        %2940 = vmatpush1.bf16.msra.mxu0 %v2881
        %2941 = vmatprep.subr.bf16.mxu0 0
        %2942 = vmatpush1.bf16.msra.mxu0 %v2882
        %2943 = vmatprep.subr.bf16.mxu0 0
        %2944 = vmatpush1.bf16.msra.mxu0 %v2883
        %2945 = vmatprep.subr.bf16.mxu0 0
        %2946 = vmatpush1.bf16.msra.mxu0 %v2884
        %2947 = vmatprep.subr.bf16.mxu0 0
        %2948 = vmatpush1.bf16.msra.mxu0 %v2885
        %2949 = vmatprep.subr.bf16.mxu0 0
        %2950 = vmatpush1.bf16.msra.mxu0 %v2886
        %2951 = vmatprep.mubr.bf16.mxu0 %v2745
        %2952 = vmatmul.mubr.bf16.gmra.mrb[0].mxu0 %v2744
        %v2953 = vpop.f32.mrb[0].mxu0
        %v2954 = vadd.f32 %v2797, %v2953
        %v2955 = vpop.f32.mrb[0].mxu0
        %v2956 = vpop.f32.mrb[0].mxu0
        %v2957 = vadd.f32 %v2797, %v2956
        %v2958 = vpop.f32.mrb[0].mxu0
        %2959 = vmatprep.mubr.bf16.mxu0 %v2748
        %2960 = vmatmul.mubr.bf16.gmra.mrb[0].mxu0 %v2747
        %v2961 = vpop.f32.mrb[0].mxu0
        %v2962 = vadd.f32 %v2797, %v2961
        %v2963 = vpop.f32.mrb[0].mxu0
        %v2964 = vpop.f32.mrb[0].mxu0
        %v2965 = vadd.f32 %v2797, %v2964
        %v2966 = vpop.f32.mrb[0].mxu0
        %2967 = vmatprep.mubr.bf16.mxu0 %v2751
        %2968 = vmatmul.mubr.bf16.gmra.mrb[0].mxu0 %v2750
        %v2969 = vpop.f32.mrb[0].mxu0
        %v2970 = vadd.f32 %v2797, %v2969
        %v2971 = vpop.f32.mrb[0].mxu0
        %v2972 = vpop.f32.mrb[0].mxu0
        %v2973 = vadd.f32 %v2797, %v2972
        %v2974 = vpop.f32.mrb[0].mxu0
        %2975 = vmatprep.mubr.bf16.mxu0 %v2754
        %2976 = vmatmul.mubr.bf16.gmra.mrb[0].mxu0 %v2753
        %v2977 = vpop.f32.mrb[0].mxu0
        %v2978 = vadd.f32 %v2797, %v2977
        %v2979 = vpop.f32.mrb[0].mxu0
        %v2980 = vpop.f32.mrb[0].mxu0
        %v2981 = vadd.f32 %v2797, %v2980
        %v2982 = vpop.f32.mrb[0].mxu0
        %2983 = vdwg.mxu0
        %2984 = vmatprep.subr.bf16.mxu0 0
        %2985 = vmatpush1.bf16.msra.mxu0 %v2887
        %2986 = vmatprep.subr.bf16.mxu0 0
        %2987 = vmatpush1.bf16.msra.mxu0 %v2888
        %2988 = vmatprep.subr.bf16.mxu0 0
        %2989 = vmatpush1.bf16.msra.mxu0 0
        %2990 = vmatprep.subr.bf16.mxu0 0
        %2991 = vmatpush1.bf16.msra.mxu0 0
        %2992 = vmatprep.subr.bf16.mxu0 0
        %2993 = vmatpush1.bf16.msra.mxu0 0
        %2994 = vmatprep.subr.bf16.mxu0 0
        %2995 = vmatpush1.bf16.msra.mxu0 0
        %2996 = vmatprep.subr.bf16.mxu0 0
        %2997 = vmatpush1.bf16.msra.mxu0 0
        %2998 = vmatprep.subr.bf16.mxu0 0
        %2999 = vmatpush1.bf16.msra.mxu0 0
        %3000 = vmatprep.subr.bf16.mxu0 0
        %3001 = vmatpush1.bf16.msra.mxu0 0
        %3002 = vmatprep.subr.bf16.mxu0 0
        %3003 = vmatpush1.bf16.msra.mxu0 0
        %3004 = vmatprep.subr.bf16.mxu0 0
        %3005 = vmatpush1.bf16.msra.mxu0 0
        %3006 = vmatprep.subr.bf16.mxu0 0
        %3007 = vmatpush1.bf16.msra.mxu0 0
        %3008 = vmatprep.subr.bf16.mxu0 0
        %3009 = vmatpush1.bf16.msra.mxu0 0
        %3010 = vmatprep.subr.bf16.mxu0 0
        %3011 = vmatpush1.bf16.msra.mxu0 0
        %3012 = vmatprep.subr.bf16.mxu0 0
        %3013 = vmatpush1.bf16.msra.mxu0 0
        %3014 = vmatprep.subr.bf16.mxu0 0
        %3015 = vmatpush1.bf16.msra.mxu0 0
        %3016 = vmatprep.mubr.bf16.mxu0 0
        %3017 = vmatmul.mubr.bf16.gmra.mrb[0].mxu0 %v2908
        %v3018 = vpop.f32.mrb[0].mxu0
        %v3019 = vadd.f32 %v2954, %v3018
        %v3020 = vpop.f32.mrb[0].mxu0
        %v3021 = vpop.f32.mrb[0].mxu0
        %v3022 = vadd.f32 %v2957, %v3021
        %v3023 = vpop.f32.mrb[0].mxu0
        %3024 = vmatprep.mubr.bf16.mxu0 0
        %3025 = vmatmul.mubr.bf16.gmra.mrb[0].mxu0 %v2911
        %v3026 = vpop.f32.mrb[0].mxu0
        %v3027 = vadd.f32 %v2962, %v3026
        %v3028 = vpop.f32.mrb[0].mxu0
        %v3029 = vpop.f32.mrb[0].mxu0
        %v3030 = vadd.f32 %v2965, %v3029
        %v3031 = vpop.f32.mrb[0].mxu0
        %3032 = vmatprep.mubr.bf16.mxu0 0
        %3033 = vmatmul.mubr.bf16.gmra.mrb[0].mxu0 %v2914
        %v3034 = vpop.f32.mrb[0].mxu0
        %v3035 = vadd.f32 %v2970, %v3034
        %v3036 = vpop.f32.mrb[0].mxu0
        %v3037 = vpop.f32.mrb[0].mxu0
        %v3038 = vadd.f32 %v2973, %v3037
        %v3039 = vpop.f32.mrb[0].mxu0
        %3040 = vmatprep.mubr.bf16.mxu0 0
        %3041 = vmatmul.mubr.bf16.gmra.mrb[0].mxu0 %v2917
        %v3042 = vpop.f32.mrb[0].mxu0
        %v3043 = vadd.f32 %v2978, %v3042
        %v3044 = vpop.f32.mrb[0].mxu0
        %v3045 = vpop.f32.mrb[0].mxu0
        %v3046 = vadd.f32 %v2981, %v3045
        %v3047 = vpop.f32.mrb[0].mxu0
        %3048 = vdwg.mxu0
        %v3049 = vmul.f32 %v3019, 0.5
        %v3050 = vmul.f32 %v3022, 0.5
        %v3051 = vmul.f32 %v3027, 0.5
        %v3052 = vmul.f32 %v3030, 0.5
        %v3053 = vmul.f32 %v3035, 0.5
        %v3054 = vmul.f32 %v3038, 0.5
        %v3055 = vmul.f32 %v3043, 0.5
        %v3056 = vmul.f32 %v3046, 0.5
        %v3057 = vmul.f32 %v3019, %v2319
        %v3058 = vmul.f32 %v3022, %v2319
        %v3059 = vmul.f32 %v3027, %v2319
        %v3060 = vmul.f32 %v3030, %v2319
        %v3061 = vmul.f32 %v3035, %v2319
        %v3062 = vmul.f32 %v3038, %v2319
        %v3063 = vmul.f32 %v3043, %v2319
        %v3064 = vmul.f32 %v3046, %v2319
        %v3065 = verf.f32.pop %v3057
        %v3066 = verf.f32.pop %v3058
        %v3067 = verf.f32.pop %v3059
        %v3068 = verf.f32.pop %v3060
        %v3069 = verf.f32.pop %v3061
        %v3070 = verf.f32.pop %v3062
        %v3071 = verf.f32.pop %v3063
        %v3072 = verf.f32.pop %v3064
        %v3073 = vadd.f32 %v3065, 1.0
        %v3074 = vadd.f32 %v3066, 1.0
        %v3075 = vadd.f32 %v3067, 1.0
        %v3076 = vadd.f32 %v3068, 1.0
        %v3077 = vadd.f32 %v3069, 1.0
        %v3078 = vadd.f32 %v3070, 1.0
        %v3079 = vadd.f32 %v3071, 1.0
        %v3080 = vadd.f32 %v3072, 1.0
        %v3081 = vmul.f32 %v3049, %v3073
        %v3082 = vmul.f32 %v3050, %v3074
        %v3083 = vmul.f32 %v3051, %v3075
        %v3084 = vmul.f32 %v3052, %v3076
        %v3085 = vmul.f32 %v3053, %v3077
        %v3086 = vmul.f32 %v3054, %v3078
        %v3087 = vmul.f32 %v3055, %v3079
        %v3088 = vmul.f32 %v3056, %v3080
        %v3089 = vpack.c.bf16 %v3082, %v3081
        %v3090 = vpack.c.bf16 %v3084, %v3083
        %v3091 = vpack.c.bf16 %v3086, %v3085
        %v3092 = vpack.c.bf16 %v3088, %v3087
        %v3093 = vld [vmem:[%s22] sm:$0xf]
        %v3094 = vld [vmem:[%s22 + $0x4] sm:$0xf]
        %v3095 = vld [vmem:[%s22 + $0x8] sm:$0xf]
        %v3096 = vld [vmem:[%s22 + $0xc] sm:$0xf]
        %v3097 = vld [vmem:[%s22 + $0x10] sm:$0xf]
        %v3098 = vld [vmem:[%s22 + $0x14] sm:$0xf]
        %v3099 = vld [vmem:[%s22 + $0x18] sm:$0xf]
        %v3100 = vld [vmem:[%s22 + $0x1c] sm:$0xf]
        %v3101 = vld [vmem:[%s23] sm:$0x1]
        %v3103 = vlaneseq
        %v3104 = vshrl.u32 %v3103, 7
        %v3105 = vsub.s32 0, %v3104
        %v3106 = vrot.slane %v3101, %v3105
        %v3116 = vunpack.c.l.b16 %v3093
        %v3117 = vunpack.c.l.b16 %v3094
        %v3118 = vunpack.c.l.b16 %v3095
        %v3119 = vunpack.c.l.b16 %v3096
        %v3120 = vunpack.c.l.b16 %v3097
        %v3121 = vunpack.c.l.b16 %v3098
        %v3122 = vunpack.c.l.b16 %v3099
        %v3123 = vunpack.c.l.b16 %v3100
        %v3124 = vpack.c.b16 %v3117, %v3116
        %v3125 = vpack.c.b16 %v3119, %v3118
        %v3126 = vpack.c.b16 %v3121, %v3120
        %v3127 = vpack.c.b16 %v3123, %v3122
        %v3133 = vsel %vm1511, %v3089, 0
        %v3136 = vsel %vm1511, %v3090, 0
        %v3139 = vsel %vm1511, %v3091, 0
        %v3142 = vsel %vm1511, %v3092, 0
        %3144 = vmatprep.subr.bf16.mxu0 0
        %3145 = vmatpush1.bf16.msra.mxu0 %v3124
        %3146 = vmatprep.subr.bf16.mxu0 0
        %3147 = vmatpush1.bf16.msra.mxu0 %v3125
        %3148 = vmatprep.subr.bf16.mxu0 0
        %3149 = vmatpush1.bf16.msra.mxu0 %v3126
        %3150 = vmatprep.subr.bf16.mxu0 0
        %3151 = vmatpush1.bf16.msra.mxu0 %v3127
        %3152 = vmatprep.subr.bf16.mxu0 0
        %3153 = vmatpush1.bf16.msra.mxu0 0
        %3154 = vmatprep.subr.bf16.mxu0 0
        %3155 = vmatpush1.bf16.msra.mxu0 0
        %3156 = vmatprep.subr.bf16.mxu0 0
        %3157 = vmatpush1.bf16.msra.mxu0 0
        %3158 = vmatprep.subr.bf16.mxu0 0
        %3159 = vmatpush1.bf16.msra.mxu0 0
        %3160 = vmatprep.subr.bf16.mxu0 0
        %3161 = vmatpush1.bf16.msra.mxu0 0
        %3162 = vmatprep.subr.bf16.mxu0 0
        %3163 = vmatpush1.bf16.msra.mxu0 0
        %3164 = vmatprep.subr.bf16.mxu0 0
        %3165 = vmatpush1.bf16.msra.mxu0 0
        %3166 = vmatprep.subr.bf16.mxu0 0
        %3167 = vmatpush1.bf16.msra.mxu0 0
        %3168 = vmatprep.subr.bf16.mxu0 0
        %3169 = vmatpush1.bf16.msra.mxu0 0
        %3170 = vmatprep.subr.bf16.mxu0 0
        %3171 = vmatpush1.bf16.msra.mxu0 0
        %3172 = vmatprep.subr.bf16.mxu0 0
        %3173 = vmatpush1.bf16.msra.mxu0 0
        %3174 = vmatprep.subr.bf16.mxu0 0
        %3175 = vmatpush1.bf16.msra.mxu0 0
        %3176 = vmatprep.mubr.bf16.mxu0 0
        %3177 = vmatmul.mubr.bf16.gmra.mrb[0].mxu0 %v3133
        %v3178 = vpop.f32.mrb[0].mxu0
        %v3179 = vadd.f32 %v3106, %v3178
        %v3180 = vpop.f32.mrb[0].mxu0
        %v3181 = vpop.f32.mrb[0].mxu0
        %v3182 = vadd.f32 %v3106, %v3181
        %v3183 = vpop.f32.mrb[0].mxu0
        %3184 = vmatprep.mubr.bf16.mxu0 0
        %3185 = vmatmul.mubr.bf16.gmra.mrb[0].mxu0 %v3136
        %v3186 = vpop.f32.mrb[0].mxu0
        %v3187 = vadd.f32 %v3106, %v3186
        %v3188 = vpop.f32.mrb[0].mxu0
        %v3189 = vpop.f32.mrb[0].mxu0
        %v3190 = vadd.f32 %v3106, %v3189
        %v3191 = vpop.f32.mrb[0].mxu0
        %3192 = vmatprep.mubr.bf16.mxu0 0
        %3193 = vmatmul.mubr.bf16.gmra.mrb[0].mxu0 %v3139
        %v3194 = vpop.f32.mrb[0].mxu0
        %v3195 = vadd.f32 %v3106, %v3194
        %v3196 = vpop.f32.mrb[0].mxu0
        %v3197 = vpop.f32.mrb[0].mxu0
        %v3198 = vadd.f32 %v3106, %v3197
        %v3199 = vpop.f32.mrb[0].mxu0
        %3200 = vmatprep.mubr.bf16.mxu0 0
        %3201 = vmatmul.mubr.bf16.gmra.mrb[0].mxu0 %v3142
        %v3202 = vpop.f32.mrb[0].mxu0
        %v3203 = vadd.f32 %v3106, %v3202
        %v3204 = vpop.f32.mrb[0].mxu0
        %v3205 = vpop.f32.mrb[0].mxu0
        %v3206 = vadd.f32 %v3106, %v3205
        %v3207 = vpop.f32.mrb[0].mxu0
        %3208 = vdwg.mxu0
        %v3209 = vadd.f32 %v3179, %v2043
        %v3210 = vadd.f32 %v3182, %v2046
        %v3211 = vadd.f32 %v3187, %v2051
        %v3212 = vadd.f32 %v3190, %v2054
        %v3213 = vadd.f32 %v3195, %v2059
        %v3214 = vadd.f32 %v3198, %v2062
        %v3215 = vadd.f32 %v3203, %v2067
        %v3216 = vadd.f32 %v3206, %v2070
        %s3217 = scalar_lea.vmem %s7, 1
        %v3218 = vld [vmem:[%s3217] sm:$0x1]
        %s3219 = scalar_lea.vmem %s8, 1
        %v3220 = vld [vmem:[%s3219] sm:$0x1]
        %v3221 = vsel %vm740, %v3209, 0.0
        %3222 = vadd.xlane.f32.xlu0 %v3221
        %v3223 = vpop.xlane.xlu0 %3222
        %v3224 = vsel %vm740, %v3210, 0.0
        %3225 = vadd.xlane.f32.xlu0 %v3224
        %v3226 = vpop.xlane.xlu0 %3225
        %v3227 = vsel %vm740, %v3211, 0.0
        %3228 = vadd.xlane.f32.xlu0 %v3227
        %v3229 = vpop.xlane.xlu0 %3228
        %v3230 = vsel %vm740, %v3212, 0.0
        %3231 = vadd.xlane.f32.xlu0 %v3230
        %v3232 = vpop.xlane.xlu0 %3231
        %v3233 = vsel %vm740, %v3213, 0.0
        %3234 = vadd.xlane.f32.xlu0 %v3233
        %v3235 = vpop.xlane.xlu0 %3234
        %v3236 = vsel %vm740, %v3214, 0.0
        %3237 = vadd.xlane.f32.xlu0 %v3236
        %v3238 = vpop.xlane.xlu0 %3237
        %v3239 = vsel %vm740, %v3215, 0.0
        %3240 = vadd.xlane.f32.xlu0 %v3239
        %v3241 = vpop.xlane.xlu0 %3240
        %v3242 = vsel %vm740, %v3216, 0.0
        %3243 = vadd.xlane.f32.xlu0 %v3242
        %v3244 = vpop.xlane.xlu0 %3243
        %v3245 = vmul.f32 %v3223, %v932
        %v3246 = vmul.f32 %v3226, %v932
        %v3247 = vmul.f32 %v3229, %v932
        %v3248 = vmul.f32 %v3232, %v932
        %v3249 = vmul.f32 %v3235, %v932
        %v3250 = vmul.f32 %v3238, %v932
        %v3251 = vmul.f32 %v3241, %v932
        %v3252 = vmul.f32 %v3244, %v932
        %v3253 = vsub.f32 %v3209, %v3245
        %v3254 = vsub.f32 %v3210, %v3246
        %v3255 = vsub.f32 %v3211, %v3247
        %v3256 = vsub.f32 %v3212, %v3248
        %v3257 = vsub.f32 %v3213, %v3249
        %v3258 = vsub.f32 %v3214, %v3250
        %v3259 = vsub.f32 %v3215, %v3251
        %v3260 = vsub.f32 %v3216, %v3252
        %v3261 = vmul.f32 %v3253, %v3253
        %v3262 = vmul.f32 %v3254, %v3254
        %v3263 = vmul.f32 %v3255, %v3255
        %v3264 = vmul.f32 %v3256, %v3256
        %v3265 = vmul.f32 %v3257, %v3257
        %v3266 = vmul.f32 %v3258, %v3258
        %v3267 = vmul.f32 %v3259, %v3259
        %v3268 = vmul.f32 %v3260, %v3260
        %v3269 = vsel %vm740, %v3261, 0.0
        %3270 = vadd.xlane.f32.xlu0 %v3269
        %v3271 = vpop.xlane.xlu0 %3270
        %v3272 = vsel %vm740, %v3262, 0.0
        %3273 = vadd.xlane.f32.xlu0 %v3272
        %v3274 = vpop.xlane.xlu0 %3273
        %v3275 = vsel %vm740, %v3263, 0.0
        %3276 = vadd.xlane.f32.xlu0 %v3275
        %v3277 = vpop.xlane.xlu0 %3276
        %v3278 = vsel %vm740, %v3264, 0.0
        %3279 = vadd.xlane.f32.xlu0 %v3278
        %v3280 = vpop.xlane.xlu0 %3279
        %v3281 = vsel %vm740, %v3265, 0.0
        %3282 = vadd.xlane.f32.xlu0 %v3281
        %v3283 = vpop.xlane.xlu0 %3282
        %v3284 = vsel %vm740, %v3266, 0.0
        %3285 = vadd.xlane.f32.xlu0 %v3284
        %v3286 = vpop.xlane.xlu0 %3285
        %v3287 = vsel %vm740, %v3267, 0.0
        %3288 = vadd.xlane.f32.xlu0 %v3287
        %v3289 = vpop.xlane.xlu0 %3288
        %v3290 = vsel %vm740, %v3268, 0.0
        %3291 = vadd.xlane.f32.xlu0 %v3290
        %v3292 = vpop.xlane.xlu0 %3291
        %v3293 = vmul.f32 %v3271, %v932
        %v3294 = vmul.f32 %v3274, %v932
        %v3295 = vmul.f32 %v3277, %v932
        %v3296 = vmul.f32 %v3280, %v932
        %v3297 = vmul.f32 %v3283, %v932
        %v3298 = vmul.f32 %v3286, %v932
        %v3299 = vmul.f32 %v3289, %v932
        %v3300 = vmul.f32 %v3292, %v932
        %v3301 = vadd.f32 %v3293, 1e-05
        %v3302 = vadd.f32 %v3294, 1e-05
        %v3303 = vadd.f32 %v3295, 1e-05
        %v3304 = vadd.f32 %v3296, 1e-05
        %v3305 = vadd.f32 %v3297, 1e-05
        %v3306 = vadd.f32 %v3298, 1e-05
        %v3307 = vadd.f32 %v3299, 1e-05
        %v3308 = vadd.f32 %v3300, 1e-05
        %v3309 = vrsqrt.pop %v3301
        %v3310 = vrsqrt.pop %v3302
        %v3311 = vrsqrt.pop %v3303
        %v3312 = vrsqrt.pop %v3304
        %v3313 = vrsqrt.pop %v3305
        %v3314 = vrsqrt.pop %v3306
        %v3315 = vrsqrt.pop %v3307
        %v3316 = vrsqrt.pop %v3308
        %v3317 = vmul.f32 %v3253, %v3309
        %v3318 = vmul.f32 %v3254, %v3310
        %v3319 = vmul.f32 %v3255, %v3311
        %v3320 = vmul.f32 %v3256, %v3312
        %v3321 = vmul.f32 %v3257, %v3313
        %v3322 = vmul.f32 %v3258, %v3314
        %v3323 = vmul.f32 %v3259, %v3315
        %v3324 = vmul.f32 %v3260, %v3316
        %v3326 = vlaneseq
        %v3327 = vshrl.u32 %v3326, 7
        %v3328 = vsub.s32 0, %v3327
        %v3329 = vrot.slane %v3218, %v3328
        %v3331 = vmul.f32 %v3317, %v3329
        %v3332 = vmul.f32 %v3318, %v3329
        %v3333 = vmul.f32 %v3319, %v3329
        %v3334 = vmul.f32 %v3320, %v3329
        %v3335 = vmul.f32 %v3321, %v3329
        %v3336 = vmul.f32 %v3322, %v3329
        %v3337 = vmul.f32 %v3323, %v3329
        %v3338 = vmul.f32 %v3324, %v3329
        %v3340 = vlaneseq
        %v3341 = vshrl.u32 %v3340, 7
        %v3342 = vsub.s32 0, %v3341
        %v3343 = vrot.slane %v3220, %v3342
        %v3345 = vadd.f32 %v3331, %v3343
        %v3346 = vadd.f32 %v3332, %v3343
        %v3347 = vadd.f32 %v3333, %v3343
        %v3348 = vadd.f32 %v3334, %v3343
        %v3349 = vadd.f32 %v3335, %v3343
        %v3350 = vadd.f32 %v3336, %v3343
        %v3351 = vadd.f32 %v3337, %v3343
        %v3352 = vadd.f32 %v3338, %v3343
        %3353 = vst.msk [vmem:[#allocation2] sm:$0xff] %vm740, %v3345
        %3354 = vst.msk [vmem:[#allocation2 + $0x8] sm:$0xff] %vm740, %v3346
        %3355 = vst.msk [vmem:[#allocation2 + $0x10] sm:$0xff] %vm740, %v3347
        %3356 = vst.msk [vmem:[#allocation2 + $0x18] sm:$0xff] %vm740, %v3348
        %3357 = vst.msk [vmem:[#allocation2 + $0x20] sm:$0xff] %vm740, %v3349
        %3358 = vst.msk [vmem:[#allocation2 + $0x28] sm:$0xff] %vm740, %v3350
        %3359 = vst.msk [vmem:[#allocation2 + $0x30] sm:$0xff] %vm740, %v3351
        %3360 = vst.msk [vmem:[#allocation2 + $0x38] sm:$0xff] %vm740, %v3352
        %v3361 = vld [vmem:[#allocation2] ss:$8 sm:$0xf]
        %v3362 = vld [vmem:[#allocation2] ss:$8 sm:$0xf0]
        %v3363 = vor.u32 %v3361, %v3362
        %3364 = vst.msk [vmem:[#allocation3] sm:$0xff] %vm740, %v3363
        %v3365 = vld [vmem:[%s1187] ss:$8 sm:$0xf]
        %v3366 = vld [vmem:[%s1187] ss:$8 sm:$0xf0]
        %v3367 = vor.u32 %v3365, %v3366
        %3369 = vrot.lane.b32.xlu0 %v3367, 32
        %v3370 = vpop.permute.xlu0 %3369
        %3372 = vst.msk [vmem:[#allocation3] sm:$0xff] %vm1195, %v3370
        %v3373 = vld [vmem:[%s1197] ss:$8 sm:$0xf]
        %v3374 = vld [vmem:[%s1197] ss:$8 sm:$0xf0]
        %v3375 = vor.u32 %v3373, %v3374
        %3377 = vrot.lane.b32.xlu0 %v3375, 64
        %v3378 = vpop.permute.xlu0 %3377
        %3380 = vst.msk [vmem:[#allocation3] sm:$0xff] %vm1205, %v3378
        %v3381 = vld [vmem:[%s1207] ss:$8 sm:$0xf]
        %v3382 = vld [vmem:[%s1207] ss:$8 sm:$0xf0]
        %v3383 = vor.u32 %v3381, %v3382
        %3385 = vrot.lane.b32.xlu0 %v3383, 96
        %v3386 = vpop.permute.xlu0 %3385
        %3388 = vst.msk [vmem:[#allocation3] sm:$0xff] %vm1215, %v3386
        %v3389 = vld [vmem:[%s1217] ss:$8 sm:$0xf]
        %v3390 = vld [vmem:[%s1217] ss:$8 sm:$0xf0]
        %v3391 = vor.u32 %v3389, %v3390
        %3392 = vst.msk [vmem:[#allocation3 + $0x8] sm:$0xff] %vm740, %v3391
        %v3393 = vld [vmem:[%s1222] ss:$8 sm:$0xf]
        %v3394 = vld [vmem:[%s1222] ss:$8 sm:$0xf0]
        %v3395 = vor.u32 %v3393, %v3394
        %3397 = vrot.lane.b32.xlu0 %v3395, 32
        %v3398 = vpop.permute.xlu0 %3397
        %3400 = vst.msk [vmem:[#allocation3 + $0x8] sm:$0xff] %vm1195, %v3398
        %v3401 = vld [vmem:[%s1231] ss:$8 sm:$0xf]
        %v3402 = vld [vmem:[%s1231] ss:$8 sm:$0xf0]
        %v3403 = vor.u32 %v3401, %v3402
        %3405 = vrot.lane.b32.xlu0 %v3403, 64
        %v3406 = vpop.permute.xlu0 %3405
        %3408 = vst.msk [vmem:[#allocation3 + $0x8] sm:$0xff] %vm1205, %v3406
        %v3409 = vld [vmem:[%s1240] ss:$8 sm:$0xf]
        %v3410 = vld [vmem:[%s1240] ss:$8 sm:$0xf0]
        %v3411 = vor.u32 %v3409, %v3410
        %3413 = vrot.lane.b32.xlu0 %v3411, 96
        %v3414 = vpop.permute.xlu0 %3413
        %3416 = vst.msk [vmem:[#allocation3 + $0x8] sm:$0xff] %vm1215, %v3414
        %v3417 = vld [vmem:[#allocation3] sm:$0xff]
        %v3418 = vld [vmem:[#allocation3 + $0x8] sm:$0xff]
        %v3419 = vpack.c.bf16 %v3417, %v3417
        %v3420 = vpack.c.bf16 %v3418, %v3418
        %s3421 = scalar_lea.vmem %s11, 128
        %v3422 = vld [vmem:[%s3421] sm:$0xf]
        %v3423 = vld [vmem:[%s3421 + $0x4] sm:$0xf]
        %v3424 = vld [vmem:[%s3421 + $0x8] sm:$0xf]
        %v3425 = vld [vmem:[%s3421 + $0xc] sm:$0xf]
        %v3426 = vld [vmem:[%s3421 + $0x10] sm:$0xf]
        %v3427 = vld [vmem:[%s3421 + $0x14] sm:$0xf]
        %v3428 = vld [vmem:[%s3421 + $0x18] sm:$0xf]
        %v3429 = vld [vmem:[%s3421 + $0x1c] sm:$0xf]
        %v3430 = vld [vmem:[%s3421 + $0x20] sm:$0xf]
        %v3431 = vld [vmem:[%s3421 + $0x24] sm:$0xf]
        %v3432 = vld [vmem:[%s3421 + $0x28] sm:$0xf]
        %v3433 = vld [vmem:[%s3421 + $0x2c] sm:$0xf]
        %v3434 = vld [vmem:[%s3421 + $0x30] sm:$0xf]
        %v3435 = vld [vmem:[%s3421 + $0x34] sm:$0xf]
        %v3436 = vld [vmem:[%s3421 + $0x38] sm:$0xf]
        %v3437 = vld [vmem:[%s3421 + $0x3c] sm:$0xf]
        %v3438 = vld [vmem:[%s3421 + $0x40] sm:$0xf]
        %v3439 = vld [vmem:[%s3421 + $0x44] sm:$0xf]
        %v3440 = vld [vmem:[%s3421 + $0x48] sm:$0xf]
        %v3441 = vld [vmem:[%s3421 + $0x4c] sm:$0xf]
        %v3442 = vld [vmem:[%s3421 + $0x50] sm:$0xf]
        %v3443 = vld [vmem:[%s3421 + $0x54] sm:$0xf]
        %v3444 = vld [vmem:[%s3421 + $0x58] sm:$0xf]
        %v3445 = vld [vmem:[%s3421 + $0x5c] sm:$0xf]
        %v3446 = vld [vmem:[%s3421 + $0x60] sm:$0xf]
        %v3447 = vld [vmem:[%s3421 + $0x64] sm:$0xf]
        %v3448 = vld [vmem:[%s3421 + $0x68] sm:$0xf]
        %v3449 = vld [vmem:[%s3421 + $0x6c] sm:$0xf]
        %v3450 = vld [vmem:[%s3421 + $0x70] sm:$0xf]
        %v3451 = vld [vmem:[%s3421 + $0x74] sm:$0xf]
        %v3452 = vld [vmem:[%s3421 + $0x78] sm:$0xf]
        %v3453 = vld [vmem:[%s3421 + $0x7c] sm:$0xf]
        %v3486 = vunpack.c.l.b16 %v3422
        %v3487 = vunpack.c.l.b16 %v3423
        %v3488 = vunpack.c.l.b16 %v3424
        %v3489 = vunpack.c.l.b16 %v3425
        %v3490 = vunpack.c.l.b16 %v3426
        %v3491 = vunpack.c.l.b16 %v3427
        %v3492 = vunpack.c.l.b16 %v3428
        %v3493 = vunpack.c.l.b16 %v3429
        %v3494 = vunpack.c.l.b16 %v3430
        %v3495 = vunpack.c.l.b16 %v3431
        %v3496 = vunpack.c.l.b16 %v3432
        %v3497 = vunpack.c.l.b16 %v3433
        %v3498 = vunpack.c.l.b16 %v3434
        %v3499 = vunpack.c.l.b16 %v3435
        %v3500 = vunpack.c.l.b16 %v3436
        %v3501 = vunpack.c.l.b16 %v3437
        %v3502 = vunpack.c.l.b16 %v3438
        %v3503 = vunpack.c.l.b16 %v3439
        %v3504 = vunpack.c.l.b16 %v3440
        %v3505 = vunpack.c.l.b16 %v3441
        %v3506 = vunpack.c.l.b16 %v3442
        %v3507 = vunpack.c.l.b16 %v3443
        %v3508 = vunpack.c.l.b16 %v3444
        %v3509 = vunpack.c.l.b16 %v3445
        %v3510 = vunpack.c.l.b16 %v3446
        %v3511 = vunpack.c.l.b16 %v3447
        %v3512 = vunpack.c.l.b16 %v3448
        %v3513 = vunpack.c.l.b16 %v3449
        %v3514 = vunpack.c.l.b16 %v3450
        %v3515 = vunpack.c.l.b16 %v3451
        %v3516 = vunpack.c.l.b16 %v3452
        %v3517 = vunpack.c.l.b16 %v3453
        %v3518 = vpack.c.b16 %v3487, %v3486
        %v3519 = vpack.c.b16 %v3489, %v3488
        %v3520 = vpack.c.b16 %v3491, %v3490
        %v3521 = vpack.c.b16 %v3493, %v3492
        %v3522 = vpack.c.b16 %v3495, %v3494
        %v3523 = vpack.c.b16 %v3497, %v3496
        %v3524 = vpack.c.b16 %v3499, %v3498
        %v3525 = vpack.c.b16 %v3501, %v3500
        %v3526 = vpack.c.b16 %v3503, %v3502
        %v3527 = vpack.c.b16 %v3505, %v3504
        %v3528 = vpack.c.b16 %v3507, %v3506
        %v3529 = vpack.c.b16 %v3509, %v3508
        %v3530 = vpack.c.b16 %v3511, %v3510
        %v3531 = vpack.c.b16 %v3513, %v3512
        %v3532 = vpack.c.b16 %v3515, %v3514
        %v3533 = vpack.c.b16 %v3517, %v3516
        %3550 = vmatprep.subr.bf16.mxu0 0
        %3551 = vmatpush1.bf16.msra.mxu0 %v3518
        %3552 = vmatprep.subr.bf16.mxu0 0
        %3553 = vmatpush1.bf16.msra.mxu0 %v3519
        %3554 = vmatprep.subr.bf16.mxu0 0
        %3555 = vmatpush1.bf16.msra.mxu0 %v3520
        %3556 = vmatprep.subr.bf16.mxu0 0
        %3557 = vmatpush1.bf16.msra.mxu0 %v3521
        %3558 = vmatprep.subr.bf16.mxu0 0
        %3559 = vmatpush1.bf16.msra.mxu0 %v3522
        %3560 = vmatprep.subr.bf16.mxu0 0
        %3561 = vmatpush1.bf16.msra.mxu0 %v3523
        %3562 = vmatprep.subr.bf16.mxu0 0
        %3563 = vmatpush1.bf16.msra.mxu0 %v3524
        %3564 = vmatprep.subr.bf16.mxu0 0
        %3565 = vmatpush1.bf16.msra.mxu0 %v3525
        %3566 = vmatprep.subr.bf16.mxu0 0
        %3567 = vmatpush1.bf16.msra.mxu0 %v3526
        %3568 = vmatprep.subr.bf16.mxu0 0
        %3569 = vmatpush1.bf16.msra.mxu0 %v3527
        %3570 = vmatprep.subr.bf16.mxu0 0
        %3571 = vmatpush1.bf16.msra.mxu0 %v3528
        %3572 = vmatprep.subr.bf16.mxu0 0
        %3573 = vmatpush1.bf16.msra.mxu0 %v3529
        %3574 = vmatprep.subr.bf16.mxu0 0
        %3575 = vmatpush1.bf16.msra.mxu0 %v3530
        %3576 = vmatprep.subr.bf16.mxu0 0
        %3577 = vmatpush1.bf16.msra.mxu0 %v3531
        %3578 = vmatprep.subr.bf16.mxu0 0
        %3579 = vmatpush1.bf16.msra.mxu0 %v3532
        %3580 = vmatprep.subr.bf16.mxu0 0
        %3581 = vmatpush1.bf16.msra.mxu0 %v3533
        %3582 = vmatprep.mubr.bf16.mxu0 %v3420
        %3583 = vmatmul.mubr.bf16.gmra.mrb[0].mxu0 %v3419
        %v3584 = vpop.f32.mrb[0].mxu0
        %v3585 = vadd.f32 0.0, %v3584
        %v3586 = vpop.f32.mrb[0].mxu0
        %v3587 = vpop.f32.mrb[0].mxu0
        %v3588 = vpop.f32.mrb[0].mxu0
        %3589 = vdwg.mxu0
        %s3590 = scalar_lea.vmem %s9, 1
        %v3591 = vld [vmem:[%s3590] sm:$0x1]
        %s3592 = scalar_lea.vmem %s10, 1
        %v3593 = vld [vmem:[%s3592] sm:$0x1]
        %v3594 = vsel %vm740, %v3585, 0.0
        %3595 = vadd.xlane.f32.xlu0 %v3594
        %v3596 = vpop.xlane.xlu0 %3595
        %v3597 = vmul.f32 %v3596, %v932
        %v3598 = vsub.f32 %v3585, %v3597
        %v3599 = vmul.f32 %v3598, %v3598
        %v3600 = vsel %vm740, %v3599, 0.0
        %3601 = vadd.xlane.f32.xlu0 %v3600
        %v3602 = vpop.xlane.xlu0 %3601
        %v3603 = vmul.f32 %v3602, %v932
        %v3604 = vadd.f32 %v3603, 1e-05
        %v3605 = vrsqrt.pop %v3604
        %v3606 = vmul.f32 %v3598, %v3605
        %v3608 = vlaneseq
        %v3609 = vshrl.u32 %v3608, 7
        %v3610 = vsub.s32 0, %v3609
        %v3611 = vrot.slane %v3591, %v3610
        %v3613 = vmul.f32 %v3606, %v3611
        %v3615 = vlaneseq
        %v3616 = vshrl.u32 %v3615, 7
        %v3617 = vsub.s32 0, %v3616
        %v3618 = vrot.slane %v3593, %v3617
        %v3620 = vadd.f32 %v3613, %v3618
        %3622 = vrot.lane.b32.xlu0 %v3585, 96
        %v3623 = vpop.permute.xlu0 %3622
        %v3625 = vsel %vm740, %v3623, 0.0
        %3626 = vadd.xlane.f32.xlu0 %v3625
        %v3627 = vpop.xlane.xlu0 %3626
        %v3628 = vmul.f32 %v3627, %v932
        %v3629 = vsub.f32 %v3585, %v3628
        %v3630 = vmul.f32 %v3629, %v3629
        %3632 = vrot.lane.b32.xlu0 %v3630, 96
        %v3633 = vpop.permute.xlu0 %3632
        %v3635 = vsel %vm740, %v3633, 0.0
        %3636 = vadd.xlane.f32.xlu0 %v3635
        %v3637 = vpop.xlane.xlu0 %3636
        %v3638 = vmul.f32 %v3637, %v932
        %v3639 = vadd.f32 %v3638, 1e-05
        %v3640 = vrsqrt.pop %v3639
        %v3641 = vmul.f32 %v3629, %v3640
        %3642 = vrot.lane.b32.xlu0 %v3611, 32
        %v3643 = vpop.permute.xlu0 %3642
        %v3645 = vmul.f32 %v3641, %v3643
        %3646 = vrot.lane.b32.xlu0 %v3618, 32
        %v3647 = vpop.permute.xlu0 %3646
        %v3649 = vadd.f32 %v3645, %v3647
        %s3650 = scalar_lea.vmem %s12, 32
        %v3651 = vld [vmem:[%s3650] sm:$0xf]
        %v3652 = vld [vmem:[%s3650 + $0x4] sm:$0xf]
        %v3653 = vld [vmem:[%s3650 + $0x8] sm:$0xf]
        %v3654 = vld [vmem:[%s3650 + $0xc] sm:$0xf]
        %v3655 = vld [vmem:[%s3650 + $0x10] sm:$0xf]
        %v3656 = vld [vmem:[%s3650 + $0x14] sm:$0xf]
        %v3657 = vld [vmem:[%s3650 + $0x18] sm:$0xf]
        %v3658 = vld [vmem:[%s3650 + $0x1c] sm:$0xf]
        %v3659 = vpack.c.bf16 %v3346, %v3345
        %v3660 = vpack.c.bf16 %v3348, %v3347
        %v3661 = vpack.c.bf16 %v3350, %v3349
        %v3662 = vpack.c.bf16 %v3352, %v3351
        %v3671 = vunpack.c.l.b16 %v3651
        %v3672 = vunpack.c.l.b16 %v3652
        %v3673 = vunpack.c.l.b16 %v3653
        %v3674 = vunpack.c.l.b16 %v3654
        %v3675 = vunpack.c.l.b16 %v3655
        %v3676 = vunpack.c.l.b16 %v3656
        %v3677 = vunpack.c.l.b16 %v3657
        %v3678 = vunpack.c.l.b16 %v3658
        %v3679 = vpack.c.b16 %v3672, %v3671
        %v3680 = vpack.c.b16 %v3674, %v3673
        %v3681 = vpack.c.b16 %v3676, %v3675
        %v3682 = vpack.c.b16 %v3678, %v3677
        %v3684 = vsel %vm1511, %v3679, 0
        %v3687 = vsel %vm1511, %v3680, 0
        %v3690 = vsel %vm1511, %v3681, 0
        %v3693 = vsel %vm1511, %v3682, 0
        %3695 = vmatprep.subr.bf16.mxu0 0
        %3696 = vmatpush1.bf16.msra.mxu0 %v3659
        %3697 = vmatprep.subr.bf16.mxu0 0
        %3698 = vmatpush1.bf16.msra.mxu0 %v3660
        %3699 = vmatprep.subr.bf16.mxu0 0
        %3700 = vmatpush1.bf16.msra.mxu0 %v3661
        %3701 = vmatprep.subr.bf16.mxu0 0
        %3702 = vmatpush1.bf16.msra.mxu0 %v3662
        %3703 = vmatprep.subr.bf16.mxu0 0
        %3704 = vmatpush1.bf16.msra.mxu0 0
        %3705 = vmatprep.subr.bf16.mxu0 0
        %3706 = vmatpush1.bf16.msra.mxu0 0
        %3707 = vmatprep.subr.bf16.mxu0 0
        %3708 = vmatpush1.bf16.msra.mxu0 0
        %3709 = vmatprep.subr.bf16.mxu0 0
        %3710 = vmatpush1.bf16.msra.mxu0 0
        %3711 = vmatprep.subr.bf16.mxu0 0
        %3712 = vmatpush1.bf16.msra.mxu0 0
        %3713 = vmatprep.subr.bf16.mxu0 0
        %3714 = vmatpush1.bf16.msra.mxu0 0
        %3715 = vmatprep.subr.bf16.mxu0 0
        %3716 = vmatpush1.bf16.msra.mxu0 0
        %3717 = vmatprep.subr.bf16.mxu0 0
        %3718 = vmatpush1.bf16.msra.mxu0 0
        %3719 = vmatprep.subr.bf16.mxu0 0
        %3720 = vmatpush1.bf16.msra.mxu0 0
        %3721 = vmatprep.subr.bf16.mxu0 0
        %3722 = vmatpush1.bf16.msra.mxu0 0
        %3723 = vmatprep.subr.bf16.mxu0 0
        %3724 = vmatpush1.bf16.msra.mxu0 0
        %3725 = vmatprep.subr.bf16.mxu0 0
        %3726 = vmatpush1.bf16.msra.mxu0 0
        %3727 = vmatprep.mubr.bf16.mxu0 0
        %3728 = vmatmul.mubr.bf16.gmra.mrb[0].mxu0 %v3684
        %v3729 = vpop.f32.mrb[0].mxu0
        %v3730 = vadd.f32 0.0, %v3729
        %v3731 = vpop.f32.mrb[0].mxu0
        %v3732 = vpop.f32.mrb[0].mxu0
        %v3733 = vadd.f32 0.0, %v3732
        %v3734 = vpop.f32.mrb[0].mxu0
        %3735 = vmatprep.mubr.bf16.mxu0 0
        %3736 = vmatmul.mubr.bf16.gmra.mrb[0].mxu0 %v3687
        %v3737 = vpop.f32.mrb[0].mxu0
        %v3738 = vadd.f32 0.0, %v3737
        %v3739 = vpop.f32.mrb[0].mxu0
        %v3740 = vpop.f32.mrb[0].mxu0
        %v3741 = vadd.f32 0.0, %v3740
        %v3742 = vpop.f32.mrb[0].mxu0
        %3743 = vmatprep.mubr.bf16.mxu0 0
        %3744 = vmatmul.mubr.bf16.gmra.mrb[0].mxu0 %v3690
        %v3745 = vpop.f32.mrb[0].mxu0
        %v3746 = vadd.f32 0.0, %v3745
        %v3747 = vpop.f32.mrb[0].mxu0
        %v3748 = vpop.f32.mrb[0].mxu0
        %v3749 = vadd.f32 0.0, %v3748
        %v3750 = vpop.f32.mrb[0].mxu0
        %3751 = vmatprep.mubr.bf16.mxu0 0
        %3752 = vmatmul.mubr.bf16.gmra.mrb[0].mxu0 %v3693
        %v3753 = vpop.f32.mrb[0].mxu0
        %v3754 = vadd.f32 0.0, %v3753
        %v3755 = vpop.f32.mrb[0].mxu0
        %v3756 = vpop.f32.mrb[0].mxu0
        %v3757 = vadd.f32 0.0, %v3756
        %v3758 = vpop.f32.mrb[0].mxu0
        %3759 = vdwg.mxu0
        %s3760 = scalar_lea.vmem %s13, 4
        %v3761 = vld [vmem:[%s3760] sm:$0xf]
        %v3762 = vpack.c.bf16 %v3620, %v3620
        %v3764 = vsel %vm1591, %v3761, 0
        %v3767 = vsel %vm1595, %v3762, 0
        %3769 = vmatprep.subr.bf16.mxu0 0
        %3770 = vmatpush1.bf16.msra.mxu0 %v3767
        %3771 = vmatprep.subr.bf16.mxu0 0
        %3772 = vmatpush1.bf16.msra.mxu0 0
        %3773 = vmatprep.subr.bf16.mxu0 0
        %3774 = vmatpush1.bf16.msra.mxu0 0
        %3775 = vmatprep.subr.bf16.mxu0 0
        %3776 = vmatpush1.bf16.msra.mxu0 0
        %3777 = vmatprep.subr.bf16.mxu0 0
        %3778 = vmatpush1.bf16.msra.mxu0 0
        %3779 = vmatprep.subr.bf16.mxu0 0
        %3780 = vmatpush1.bf16.msra.mxu0 0
        %3781 = vmatprep.subr.bf16.mxu0 0
        %3782 = vmatpush1.bf16.msra.mxu0 0
        %3783 = vmatprep.subr.bf16.mxu0 0
        %3784 = vmatpush1.bf16.msra.mxu0 0
        %3785 = vmatprep.subr.bf16.mxu0 0
        %3786 = vmatpush1.bf16.msra.mxu0 0
        %3787 = vmatprep.subr.bf16.mxu0 0
        %3788 = vmatpush1.bf16.msra.mxu0 0
        %3789 = vmatprep.subr.bf16.mxu0 0
        %3790 = vmatpush1.bf16.msra.mxu0 0
        %3791 = vmatprep.subr.bf16.mxu0 0
        %3792 = vmatpush1.bf16.msra.mxu0 0
        %3793 = vmatprep.subr.bf16.mxu0 0
        %3794 = vmatpush1.bf16.msra.mxu0 0
        %3795 = vmatprep.subr.bf16.mxu0 0
        %3796 = vmatpush1.bf16.msra.mxu0 0
        %3797 = vmatprep.subr.bf16.mxu0 0
        %3798 = vmatpush1.bf16.msra.mxu0 0
        %3799 = vmatprep.subr.bf16.mxu0 0
        %3800 = vmatpush1.bf16.msra.mxu0 0
        %3801 = vmatprep.mubr.bf16.mxu0 0
        %3802 = vmatmul.mubr.bf16.gmra.mrb[0].mxu0 %v3764
        %v3803 = vpop.f32.mrb[0].mxu0
        %v3804 = vadd.f32 0.0, %v3803
        %v3805 = vpop.f32.mrb[0].mxu0
        %v3806 = vpop.f32.mrb[0].mxu0
        %v3807 = vpop.f32.mrb[0].mxu0
        %3808 = vdwg.mxu0
        %s3809 = scalar_lea.vmem %s14, 4
        %v3810 = vld [vmem:[%s3809] sm:$0xf]
        %v3811 = vpack.c.bf16 %v3649, %v3649
        %3813 = vrot.lane.b32.xlu0 %v3811, 96
        %v3814 = vpop.permute.xlu0 %3813
        %v3816 = vsel %vm1591, %v3810, 0
        %v3819 = vsel %vm1595, %v3814, 0
        %3821 = vmatprep.subr.bf16.mxu0 0
        %3822 = vmatpush1.bf16.msra.mxu0 %v3819
        %3823 = vmatprep.subr.bf16.mxu0 0
        %3824 = vmatpush1.bf16.msra.mxu0 0
        %3825 = vmatprep.subr.bf16.mxu0 0
        %3826 = vmatpush1.bf16.msra.mxu0 0
        %3827 = vmatprep.subr.bf16.mxu0 0
        %3828 = vmatpush1.bf16.msra.mxu0 0
        %3829 = vmatprep.subr.bf16.mxu0 0
        %3830 = vmatpush1.bf16.msra.mxu0 0
        %3831 = vmatprep.subr.bf16.mxu0 0
        %3832 = vmatpush1.bf16.msra.mxu0 0
        %3833 = vmatprep.subr.bf16.mxu0 0
        %3834 = vmatpush1.bf16.msra.mxu0 0
        %3835 = vmatprep.subr.bf16.mxu0 0
        %3836 = vmatpush1.bf16.msra.mxu0 0
        %3837 = vmatprep.subr.bf16.mxu0 0
        %3838 = vmatpush1.bf16.msra.mxu0 0
        %3839 = vmatprep.subr.bf16.mxu0 0
        %3840 = vmatpush1.bf16.msra.mxu0 0
        %3841 = vmatprep.subr.bf16.mxu0 0
        %3842 = vmatpush1.bf16.msra.mxu0 0
        %3843 = vmatprep.subr.bf16.mxu0 0
        %3844 = vmatpush1.bf16.msra.mxu0 0
        %3845 = vmatprep.subr.bf16.mxu0 0
        %3846 = vmatpush1.bf16.msra.mxu0 0
        %3847 = vmatprep.subr.bf16.mxu0 0
        %3848 = vmatpush1.bf16.msra.mxu0 0
        %3849 = vmatprep.subr.bf16.mxu0 0
        %3850 = vmatpush1.bf16.msra.mxu0 0
        %3851 = vmatprep.subr.bf16.mxu0 0
        %3852 = vmatpush1.bf16.msra.mxu0 0
        %3853 = vmatprep.mubr.bf16.mxu0 0
        %3854 = vmatmul.mubr.bf16.gmra.mrb[0].mxu0 %v3816
        %v3855 = vpop.f32.mrb[0].mxu0
        %v3856 = vadd.f32 0.0, %v3855
        %v3857 = vpop.f32.mrb[0].mxu0
        %v3858 = vpop.f32.mrb[0].mxu0
        %v3859 = vpop.f32.mrb[0].mxu0
        %3860 = vdwg.mxu0
        %v3861 = vpack.c.bf16 %v3733, %v3730
        %v3862 = vpack.c.bf16 %v3741, %v3738
        %v3863 = vpack.c.bf16 %v3749, %v3746
        %v3864 = vpack.c.bf16 %v3757, %v3754
        %v3865 = vpack.c.bf16 %v3804, %v3804
        %v3867 = vsel %vm740, %v3861, 0
        %v3870 = vsel %vm740, %v3862, 0
        %v3873 = vsel %vm740, %v3863, 0
        %v3876 = vsel %vm740, %v3864, 0
        %v3879 = vsel %vm740, %v3865, 0
        %3881 = vmatprep.subr.bf16.mxu0 0
        %3882 = vmatpush1.bf16.xpose.msra.mxu0 %v3879
        %3883 = vmatprep.subr.bf16.mxu0 0
        %3884 = vmatpush1.bf16.xpose.msra.mxu0 0
        %3885 = vmatprep.subr.bf16.mxu0 0
        %3886 = vmatpush1.bf16.xpose.msra.mxu0 0
        %3887 = vmatprep.subr.bf16.mxu0 0
        %3888 = vmatpush1.bf16.xpose.msra.mxu0 0
        %3889 = vmatprep.subr.bf16.mxu0 0
        %3890 = vmatpush1.bf16.xpose.msra.mxu0 0
        %3891 = vmatprep.subr.bf16.mxu0 0
        %3892 = vmatpush1.bf16.xpose.msra.mxu0 0
        %3893 = vmatprep.subr.bf16.mxu0 0
        %3894 = vmatpush1.bf16.xpose.msra.mxu0 0
        %3895 = vmatprep.subr.bf16.mxu0 0
        %3896 = vmatpush1.bf16.xpose.msra.mxu0 0
        %3897 = vmatprep.subr.bf16.mxu0 0
        %3898 = vmatpush1.bf16.xpose.msra.mxu0 0
        %3899 = vmatprep.subr.bf16.mxu0 0
        %3900 = vmatpush1.bf16.xpose.msra.mxu0 0
        %3901 = vmatprep.subr.bf16.mxu0 0
        %3902 = vmatpush1.bf16.xpose.msra.mxu0 0
        %3903 = vmatprep.subr.bf16.mxu0 0
        %3904 = vmatpush1.bf16.xpose.msra.mxu0 0
        %3905 = vmatprep.subr.bf16.mxu0 0
        %3906 = vmatpush1.bf16.xpose.msra.mxu0 0
        %3907 = vmatprep.subr.bf16.mxu0 0
        %3908 = vmatpush1.bf16.xpose.msra.mxu0 0
        %3909 = vmatprep.subr.bf16.mxu0 0
        %3910 = vmatpush1.bf16.xpose.msra.mxu0 0
        %3911 = vmatprep.subr.bf16.mxu0 0
        %3912 = vmatpush1.bf16.xpose.msra.mxu0 0
        %3913 = vmatprep.mubr.bf16.mxu0 0
        %3914 = vmatmul.mubr.bf16.gmra.mrb[0].mxu0 %v3867
        %v3915 = vpop.f32.mrb[0].mxu0
        %v3916 = vadd.f32 0.0, %v3915
        %v3917 = vpop.f32.mrb[0].mxu0
        %v3918 = vpop.f32.mrb[0].mxu0
        %v3919 = vadd.f32 0.0, %v3918
        %v3920 = vpop.f32.mrb[0].mxu0
        %3921 = vmatprep.mubr.bf16.mxu0 0
        %3922 = vmatmul.mubr.bf16.gmra.mrb[0].mxu0 %v3870
        %v3923 = vpop.f32.mrb[0].mxu0
        %v3924 = vadd.f32 0.0, %v3923
        %v3925 = vpop.f32.mrb[0].mxu0
        %v3926 = vpop.f32.mrb[0].mxu0
        %v3927 = vadd.f32 0.0, %v3926
        %v3928 = vpop.f32.mrb[0].mxu0
        %3929 = vmatprep.mubr.bf16.mxu0 0
        %3930 = vmatmul.mubr.bf16.gmra.mrb[0].mxu0 %v3873
        %v3931 = vpop.f32.mrb[0].mxu0
        %v3932 = vadd.f32 0.0, %v3931
        %v3933 = vpop.f32.mrb[0].mxu0
        %v3934 = vpop.f32.mrb[0].mxu0
        %v3935 = vadd.f32 0.0, %v3934
        %v3936 = vpop.f32.mrb[0].mxu0
        %3937 = vmatprep.mubr.bf16.mxu0 0
        %3938 = vmatmul.mubr.bf16.gmra.mrb[0].mxu0 %v3876
        %v3939 = vpop.f32.mrb[0].mxu0
        %v3940 = vadd.f32 0.0, %v3939
        %v3941 = vpop.f32.mrb[0].mxu0
        %v3942 = vpop.f32.mrb[0].mxu0
        %v3943 = vadd.f32 0.0, %v3942
        %v3944 = vpop.f32.mrb[0].mxu0
        %3945 = vdwg.mxu0
        %v3946 = vmul.f32 %v3916, 0.17677669
        %v3947 = vmul.f32 %v3919, 0.17677669
        %v3948 = vmul.f32 %v3924, 0.17677669
        %v3949 = vmul.f32 %v3927, 0.17677669
        %v3950 = vmul.f32 %v3932, 0.17677669
        %v3951 = vmul.f32 %v3935, 0.17677669
        %v3952 = vmul.f32 %v3940, 0.17677669
        %v3953 = vmul.f32 %v3943, 0.17677669
        %v3954 = vadd.f32 %v3946, %v753
        %v3955 = vadd.f32 %v3947, %v754
        %v3956 = vadd.f32 %v3948, %v755
        %v3957 = vadd.f32 %v3949, %v756
        %v3958 = vadd.f32 %v3950, %v757
        %v3959 = vadd.f32 %v3951, %v758
        %v3960 = vadd.f32 %v3952, %v759
        %v3961 = vadd.f32 %v3953, %v760
        %v3962 = vsel %vm1591, %v3954, -inf
        %3963 = vmax.xlane.f32.xlu0 %v3962
        %v3964 = vpop.xlane.xlu0 %3963
        %v3965 = vsel %vm1591, %v3955, -inf
        %3966 = vmax.xlane.f32.xlu0 %v3965
        %v3967 = vpop.xlane.xlu0 %3966
        %v3968 = vsel %vm1591, %v3956, -inf
        %3969 = vmax.xlane.f32.xlu0 %v3968
        %v3970 = vpop.xlane.xlu0 %3969
        %v3971 = vsel %vm1591, %v3957, -inf
        %3972 = vmax.xlane.f32.xlu0 %v3971
        %v3973 = vpop.xlane.xlu0 %3972
        %v3974 = vsel %vm1591, %v3958, -inf
        %3975 = vmax.xlane.f32.xlu0 %v3974
        %v3976 = vpop.xlane.xlu0 %3975
        %v3977 = vsel %vm1591, %v3959, -inf
        %3978 = vmax.xlane.f32.xlu0 %v3977
        %v3979 = vpop.xlane.xlu0 %3978
        %v3980 = vsel %vm1591, %v3960, -inf
        %3981 = vmax.xlane.f32.xlu0 %v3980
        %v3982 = vpop.xlane.xlu0 %3981
        %v3983 = vsel %vm1591, %v3961, -inf
        %3984 = vmax.xlane.f32.xlu0 %v3983
        %v3985 = vpop.xlane.xlu0 %3984
        %v3986 = vsub.f32 %v3954, %v3964
        %v3987 = vsub.f32 %v3955, %v3967
        %v3988 = vsub.f32 %v3956, %v3970
        %v3989 = vsub.f32 %v3957, %v3973
        %v3990 = vsub.f32 %v3958, %v3976
        %v3991 = vsub.f32 %v3959, %v3979
        %v3992 = vsub.f32 %v3960, %v3982
        %v3993 = vsub.f32 %v3961, %v3985
        %v3994 = vmul.f32 %v3986, 1.442695
        %v3995 = vpow.pop %v3994
        %v3996 = vmul.f32 %v3987, 1.442695
        %v3997 = vpow.pop %v3996
        %v3998 = vmul.f32 %v3988, 1.442695
        %v3999 = vpow.pop %v3998
        %v4000 = vmul.f32 %v3989, 1.442695
        %v4001 = vpow.pop %v4000
        %v4002 = vmul.f32 %v3990, 1.442695
        %v4003 = vpow.pop %v4002
        %v4004 = vmul.f32 %v3991, 1.442695
        %v4005 = vpow.pop %v4004
        %v4006 = vmul.f32 %v3992, 1.442695
        %v4007 = vpow.pop %v4006
        %v4008 = vmul.f32 %v3993, 1.442695
        %v4009 = vpow.pop %v4008
        %v4010 = vsel %vm1591, %v3995, 0.0
        %4011 = vadd.xlane.f32.xlu0 %v4010
        %v4012 = vpop.xlane.xlu0 %4011
        %v4013 = vsel %vm1591, %v3997, 0.0
        %4014 = vadd.xlane.f32.xlu0 %v4013
        %v4015 = vpop.xlane.xlu0 %4014
        %v4016 = vsel %vm1591, %v3999, 0.0
        %4017 = vadd.xlane.f32.xlu0 %v4016
        %v4018 = vpop.xlane.xlu0 %4017
        %v4019 = vsel %vm1591, %v4001, 0.0
        %4020 = vadd.xlane.f32.xlu0 %v4019
        %v4021 = vpop.xlane.xlu0 %4020
        %v4022 = vsel %vm1591, %v4003, 0.0
        %4023 = vadd.xlane.f32.xlu0 %v4022
        %v4024 = vpop.xlane.xlu0 %4023
        %v4025 = vsel %vm1591, %v4005, 0.0
        %4026 = vadd.xlane.f32.xlu0 %v4025
        %v4027 = vpop.xlane.xlu0 %4026
        %v4028 = vsel %vm1591, %v4007, 0.0
        %4029 = vadd.xlane.f32.xlu0 %v4028
        %v4030 = vpop.xlane.xlu0 %4029
        %v4031 = vsel %vm1591, %v4009, 0.0
        %4032 = vadd.xlane.f32.xlu0 %v4031
        %v4033 = vpop.xlane.xlu0 %4032
        %v4034 = vrcp.pop %v4012
        %v4035 = vrcp.pop %v4015
        %v4036 = vrcp.pop %v4018
        %v4037 = vrcp.pop %v4021
        %v4038 = vrcp.pop %v4024
        %v4039 = vrcp.pop %v4027
        %v4040 = vrcp.pop %v4030
        %v4041 = vrcp.pop %v4033
        %v4042 = vmul.f32 %v3995, %v4034
        %v4043 = vmul.f32 %v3997, %v4035
        %v4044 = vmul.f32 %v3999, %v4036
        %v4045 = vmul.f32 %v4001, %v4037
        %v4046 = vmul.f32 %v4003, %v4038
        %v4047 = vmul.f32 %v4005, %v4039
        %v4048 = vmul.f32 %v4007, %v4040
        %v4049 = vmul.f32 %v4009, %v4041
        %v4050 = vpack.c.bf16 %v4043, %v4042
        %v4051 = vpack.c.bf16 %v4045, %v4044
        %v4052 = vpack.c.bf16 %v4047, %v4046
        %v4053 = vpack.c.bf16 %v4049, %v4048
        %v4054 = vpack.c.bf16 %v3856, %v3856
        %v4056 = vsel %vm1591, %v4050, 0
        %v4059 = vsel %vm1591, %v4051, 0
        %v4062 = vsel %vm1591, %v4052, 0
        %v4065 = vsel %vm1591, %v4053, 0
        %v4068 = vsel %vm1595, %v4054, 0
        %4070 = vmatprep.subr.bf16.mxu0 0
        %4071 = vmatpush1.bf16.msra.mxu0 %v4068
        %4072 = vmatprep.subr.bf16.mxu0 0
        %4073 = vmatpush1.bf16.msra.mxu0 0
        %4074 = vmatprep.subr.bf16.mxu0 0
        %4075 = vmatpush1.bf16.msra.mxu0 0
        %4076 = vmatprep.subr.bf16.mxu0 0
        %4077 = vmatpush1.bf16.msra.mxu0 0
        %4078 = vmatprep.subr.bf16.mxu0 0
        %4079 = vmatpush1.bf16.msra.mxu0 0
        %4080 = vmatprep.subr.bf16.mxu0 0
        %4081 = vmatpush1.bf16.msra.mxu0 0
        %4082 = vmatprep.subr.bf16.mxu0 0
        %4083 = vmatpush1.bf16.msra.mxu0 0
        %4084 = vmatprep.subr.bf16.mxu0 0
        %4085 = vmatpush1.bf16.msra.mxu0 0
        %4086 = vmatprep.subr.bf16.mxu0 0
        %4087 = vmatpush1.bf16.msra.mxu0 0
        %4088 = vmatprep.subr.bf16.mxu0 0
        %4089 = vmatpush1.bf16.msra.mxu0 0
        %4090 = vmatprep.subr.bf16.mxu0 0
        %4091 = vmatpush1.bf16.msra.mxu0 0
        %4092 = vmatprep.subr.bf16.mxu0 0
        %4093 = vmatpush1.bf16.msra.mxu0 0
        %4094 = vmatprep.subr.bf16.mxu0 0
        %4095 = vmatpush1.bf16.msra.mxu0 0
        %4096 = vmatprep.subr.bf16.mxu0 0
        %4097 = vmatpush1.bf16.msra.mxu0 0
        %4098 = vmatprep.subr.bf16.mxu0 0
        %4099 = vmatpush1.bf16.msra.mxu0 0
        %4100 = vmatprep.subr.bf16.mxu0 0
        %4101 = vmatpush1.bf16.msra.mxu0 0
        %4102 = vmatprep.mubr.bf16.mxu0 0
        %4103 = vmatmul.mubr.bf16.gmra.mrb[0].mxu0 %v4056
        %v4104 = vpop.f32.mrb[0].mxu0
        %v4105 = vadd.f32 0.0, %v4104
        %v4106 = vpop.f32.mrb[0].mxu0
        %v4107 = vpop.f32.mrb[0].mxu0
        %v4108 = vadd.f32 0.0, %v4107
        %v4109 = vpop.f32.mrb[0].mxu0
        %4110 = vmatprep.mubr.bf16.mxu0 0
        %4111 = vmatmul.mubr.bf16.gmra.mrb[0].mxu0 %v4059
        %v4112 = vpop.f32.mrb[0].mxu0
        %v4113 = vadd.f32 0.0, %v4112
        %v4114 = vpop.f32.mrb[0].mxu0
        %v4115 = vpop.f32.mrb[0].mxu0
        %v4116 = vadd.f32 0.0, %v4115
        %v4117 = vpop.f32.mrb[0].mxu0
        %4118 = vmatprep.mubr.bf16.mxu0 0
        %4119 = vmatmul.mubr.bf16.gmra.mrb[0].mxu0 %v4062
        %v4120 = vpop.f32.mrb[0].mxu0
        %v4121 = vadd.f32 0.0, %v4120
        %v4122 = vpop.f32.mrb[0].mxu0
        %v4123 = vpop.f32.mrb[0].mxu0
        %v4124 = vadd.f32 0.0, %v4123
        %v4125 = vpop.f32.mrb[0].mxu0
        %4126 = vmatprep.mubr.bf16.mxu0 0
        %4127 = vmatmul.mubr.bf16.gmra.mrb[0].mxu0 %v4065
        %v4128 = vpop.f32.mrb[0].mxu0
        %v4129 = vadd.f32 0.0, %v4128
        %v4130 = vpop.f32.mrb[0].mxu0
        %v4131 = vpop.f32.mrb[0].mxu0
        %v4132 = vadd.f32 0.0, %v4131
        %v4133 = vpop.f32.mrb[0].mxu0
        %4134 = vdwg.mxu0
        %s4135 = scalar_lea.vmem %s15, 32
        %v4136 = vld [vmem:[%s4135] sm:$0xf]
        %v4137 = vld [vmem:[%s4135 + $0x4] sm:$0xf]
        %v4138 = vld [vmem:[%s4135 + $0x8] sm:$0xf]
        %v4139 = vld [vmem:[%s4135 + $0xc] sm:$0xf]
        %v4140 = vld [vmem:[%s4135 + $0x10] sm:$0xf]
        %v4141 = vld [vmem:[%s4135 + $0x14] sm:$0xf]
        %v4142 = vld [vmem:[%s4135 + $0x18] sm:$0xf]
        %v4143 = vld [vmem:[%s4135 + $0x1c] sm:$0xf]
        %v4144 = vpack.c.bf16 %v4108, %v4105
        %v4145 = vpack.c.bf16 %v4116, %v4113
        %v4146 = vpack.c.bf16 %v4124, %v4121
        %v4147 = vpack.c.bf16 %v4132, %v4129
        %v4156 = vunpack.c.l.b16 %v4136
        %v4157 = vunpack.c.l.b16 %v4137
        %v4158 = vunpack.c.l.b16 %v4138
        %v4159 = vunpack.c.l.b16 %v4139
        %v4160 = vunpack.c.l.b16 %v4140
        %v4161 = vunpack.c.l.b16 %v4141
        %v4162 = vunpack.c.l.b16 %v4142
        %v4163 = vunpack.c.l.b16 %v4143
        %v4164 = vpack.c.b16 %v4157, %v4156
        %v4165 = vpack.c.b16 %v4159, %v4158
        %v4166 = vpack.c.b16 %v4161, %v4160
        %v4167 = vpack.c.b16 %v4163, %v4162
        %v4169 = vsel %vm1511, %v4164, 0
        %v4172 = vsel %vm1511, %v4165, 0
        %v4175 = vsel %vm1511, %v4166, 0
        %v4178 = vsel %vm1511, %v4167, 0
        %4180 = vmatprep.subr.bf16.mxu0 0
        %4181 = vmatpush1.bf16.msra.mxu0 %v4144
        %4182 = vmatprep.subr.bf16.mxu0 0
        %4183 = vmatpush1.bf16.msra.mxu0 %v4145
        %4184 = vmatprep.subr.bf16.mxu0 0
        %4185 = vmatpush1.bf16.msra.mxu0 %v4146
        %4186 = vmatprep.subr.bf16.mxu0 0
        %4187 = vmatpush1.bf16.msra.mxu0 %v4147
        %4188 = vmatprep.subr.bf16.mxu0 0
        %4189 = vmatpush1.bf16.msra.mxu0 0
        %4190 = vmatprep.subr.bf16.mxu0 0
        %4191 = vmatpush1.bf16.msra.mxu0 0
        %4192 = vmatprep.subr.bf16.mxu0 0
        %4193 = vmatpush1.bf16.msra.mxu0 0
        %4194 = vmatprep.subr.bf16.mxu0 0
        %4195 = vmatpush1.bf16.msra.mxu0 0
        %4196 = vmatprep.subr.bf16.mxu0 0
        %4197 = vmatpush1.bf16.msra.mxu0 0
        %4198 = vmatprep.subr.bf16.mxu0 0
        %4199 = vmatpush1.bf16.msra.mxu0 0
        %4200 = vmatprep.subr.bf16.mxu0 0
        %4201 = vmatpush1.bf16.msra.mxu0 0
        %4202 = vmatprep.subr.bf16.mxu0 0
        %4203 = vmatpush1.bf16.msra.mxu0 0
        %4204 = vmatprep.subr.bf16.mxu0 0
        %4205 = vmatpush1.bf16.msra.mxu0 0
        %4206 = vmatprep.subr.bf16.mxu0 0
        %4207 = vmatpush1.bf16.msra.mxu0 0
        %4208 = vmatprep.subr.bf16.mxu0 0
        %4209 = vmatpush1.bf16.msra.mxu0 0
        %4210 = vmatprep.subr.bf16.mxu0 0
        %4211 = vmatpush1.bf16.msra.mxu0 0
        %4212 = vmatprep.mubr.bf16.mxu0 0
        %4213 = vmatmul.mubr.bf16.gmra.mrb[0].mxu0 %v4169
        %v4214 = vpop.f32.mrb[0].mxu0
        %v4215 = vadd.f32 %v3209, %v4214
        %v4216 = vpop.f32.mrb[0].mxu0
        %v4217 = vpop.f32.mrb[0].mxu0
        %v4218 = vadd.f32 %v3210, %v4217
        %v4219 = vpop.f32.mrb[0].mxu0
        %4220 = vmatprep.mubr.bf16.mxu0 0
        %4221 = vmatmul.mubr.bf16.gmra.mrb[0].mxu0 %v4172
        %v4222 = vpop.f32.mrb[0].mxu0
        %v4223 = vadd.f32 %v3211, %v4222
        %v4224 = vpop.f32.mrb[0].mxu0
        %v4225 = vpop.f32.mrb[0].mxu0
        %v4226 = vadd.f32 %v3212, %v4225
        %v4227 = vpop.f32.mrb[0].mxu0
        %4228 = vmatprep.mubr.bf16.mxu0 0
        %4229 = vmatmul.mubr.bf16.gmra.mrb[0].mxu0 %v4175
        %v4230 = vpop.f32.mrb[0].mxu0
        %v4231 = vadd.f32 %v3213, %v4230
        %v4232 = vpop.f32.mrb[0].mxu0
        %v4233 = vpop.f32.mrb[0].mxu0
        %v4234 = vadd.f32 %v3214, %v4233
        %v4235 = vpop.f32.mrb[0].mxu0
        %4236 = vmatprep.mubr.bf16.mxu0 0
        %4237 = vmatmul.mubr.bf16.gmra.mrb[0].mxu0 %v4178
        %v4238 = vpop.f32.mrb[0].mxu0
        %v4239 = vadd.f32 %v3215, %v4238
        %v4240 = vpop.f32.mrb[0].mxu0
        %v4241 = vpop.f32.mrb[0].mxu0
        %v4242 = vadd.f32 %v3216, %v4241
        %v4243 = vpop.f32.mrb[0].mxu0
        %4244 = vdwg.mxu0
        %s4245 = scalar_lea.vmem %s16, 1
        %v4246 = vld [vmem:[%s4245] sm:$0x1]
        %s4247 = scalar_lea.vmem %s17, 1
        %v4248 = vld [vmem:[%s4247] sm:$0x1]
        %v4249 = vsel %vm740, %v4215, 0.0
        %4250 = vadd.xlane.f32.xlu0 %v4249
        %v4251 = vpop.xlane.xlu0 %4250
        %v4252 = vsel %vm740, %v4218, 0.0
        %4253 = vadd.xlane.f32.xlu0 %v4252
        %v4254 = vpop.xlane.xlu0 %4253
        %v4255 = vsel %vm740, %v4223, 0.0
        %4256 = vadd.xlane.f32.xlu0 %v4255
        %v4257 = vpop.xlane.xlu0 %4256
        %v4258 = vsel %vm740, %v4226, 0.0
        %4259 = vadd.xlane.f32.xlu0 %v4258
        %v4260 = vpop.xlane.xlu0 %4259
        %v4261 = vsel %vm740, %v4231, 0.0
        %4262 = vadd.xlane.f32.xlu0 %v4261
        %v4263 = vpop.xlane.xlu0 %4262
        %v4264 = vsel %vm740, %v4234, 0.0
        %4265 = vadd.xlane.f32.xlu0 %v4264
        %v4266 = vpop.xlane.xlu0 %4265
        %v4267 = vsel %vm740, %v4239, 0.0
        %4268 = vadd.xlane.f32.xlu0 %v4267
        %v4269 = vpop.xlane.xlu0 %4268
        %v4270 = vsel %vm740, %v4242, 0.0
        %4271 = vadd.xlane.f32.xlu0 %v4270
        %v4272 = vpop.xlane.xlu0 %4271
        %v4273 = vmul.f32 %v4251, %v932
        %v4274 = vmul.f32 %v4254, %v932
        %v4275 = vmul.f32 %v4257, %v932
        %v4276 = vmul.f32 %v4260, %v932
        %v4277 = vmul.f32 %v4263, %v932
        %v4278 = vmul.f32 %v4266, %v932
        %v4279 = vmul.f32 %v4269, %v932
        %v4280 = vmul.f32 %v4272, %v932
        %v4281 = vsub.f32 %v4215, %v4273
        %v4282 = vsub.f32 %v4218, %v4274
        %v4283 = vsub.f32 %v4223, %v4275
        %v4284 = vsub.f32 %v4226, %v4276
        %v4285 = vsub.f32 %v4231, %v4277
        %v4286 = vsub.f32 %v4234, %v4278
        %v4287 = vsub.f32 %v4239, %v4279
        %v4288 = vsub.f32 %v4242, %v4280
        %v4289 = vmul.f32 %v4281, %v4281
        %v4290 = vmul.f32 %v4282, %v4282
        %v4291 = vmul.f32 %v4283, %v4283
        %v4292 = vmul.f32 %v4284, %v4284
        %v4293 = vmul.f32 %v4285, %v4285
        %v4294 = vmul.f32 %v4286, %v4286
        %v4295 = vmul.f32 %v4287, %v4287
        %v4296 = vmul.f32 %v4288, %v4288
        %v4297 = vsel %vm740, %v4289, 0.0
        %4298 = vadd.xlane.f32.xlu0 %v4297
        %v4299 = vpop.xlane.xlu0 %4298
        %v4300 = vsel %vm740, %v4290, 0.0
        %4301 = vadd.xlane.f32.xlu0 %v4300
        %v4302 = vpop.xlane.xlu0 %4301
        %v4303 = vsel %vm740, %v4291, 0.0
        %4304 = vadd.xlane.f32.xlu0 %v4303
        %v4305 = vpop.xlane.xlu0 %4304
        %v4306 = vsel %vm740, %v4292, 0.0
        %4307 = vadd.xlane.f32.xlu0 %v4306
        %v4308 = vpop.xlane.xlu0 %4307
        %v4309 = vsel %vm740, %v4293, 0.0
        %4310 = vadd.xlane.f32.xlu0 %v4309
        %v4311 = vpop.xlane.xlu0 %4310
        %v4312 = vsel %vm740, %v4294, 0.0
        %4313 = vadd.xlane.f32.xlu0 %v4312
        %v4314 = vpop.xlane.xlu0 %4313
        %v4315 = vsel %vm740, %v4295, 0.0
        %4316 = vadd.xlane.f32.xlu0 %v4315
        %v4317 = vpop.xlane.xlu0 %4316
        %v4318 = vsel %vm740, %v4296, 0.0
        %4319 = vadd.xlane.f32.xlu0 %v4318
        %v4320 = vpop.xlane.xlu0 %4319
        %v4321 = vmul.f32 %v4299, %v932
        %v4322 = vmul.f32 %v4302, %v932
        %v4323 = vmul.f32 %v4305, %v932
        %v4324 = vmul.f32 %v4308, %v932
        %v4325 = vmul.f32 %v4311, %v932
        %v4326 = vmul.f32 %v4314, %v932
        %v4327 = vmul.f32 %v4317, %v932
        %v4328 = vmul.f32 %v4320, %v932
        %v4329 = vadd.f32 %v4321, 1e-05
        %v4330 = vadd.f32 %v4322, 1e-05
        %v4331 = vadd.f32 %v4323, 1e-05
        %v4332 = vadd.f32 %v4324, 1e-05
        %v4333 = vadd.f32 %v4325, 1e-05
        %v4334 = vadd.f32 %v4326, 1e-05
        %v4335 = vadd.f32 %v4327, 1e-05
        %v4336 = vadd.f32 %v4328, 1e-05
        %v4337 = vrsqrt.pop %v4329
        %v4338 = vrsqrt.pop %v4330
        %v4339 = vrsqrt.pop %v4331
        %v4340 = vrsqrt.pop %v4332
        %v4341 = vrsqrt.pop %v4333
        %v4342 = vrsqrt.pop %v4334
        %v4343 = vrsqrt.pop %v4335
        %v4344 = vrsqrt.pop %v4336
        %v4345 = vmul.f32 %v4281, %v4337
        %v4346 = vmul.f32 %v4282, %v4338
        %v4347 = vmul.f32 %v4283, %v4339
        %v4348 = vmul.f32 %v4284, %v4340
        %v4349 = vmul.f32 %v4285, %v4341
        %v4350 = vmul.f32 %v4286, %v4342
        %v4351 = vmul.f32 %v4287, %v4343
        %v4352 = vmul.f32 %v4288, %v4344
        %v4354 = vlaneseq
        %v4355 = vshrl.u32 %v4354, 7
        %v4356 = vsub.s32 0, %v4355
        %v4357 = vrot.slane %v4246, %v4356
        %v4359 = vmul.f32 %v4345, %v4357
        %v4360 = vmul.f32 %v4346, %v4357
        %v4361 = vmul.f32 %v4347, %v4357
        %v4362 = vmul.f32 %v4348, %v4357
        %v4363 = vmul.f32 %v4349, %v4357
        %v4364 = vmul.f32 %v4350, %v4357
        %v4365 = vmul.f32 %v4351, %v4357
        %v4366 = vmul.f32 %v4352, %v4357
        %v4368 = vlaneseq
        %v4369 = vshrl.u32 %v4368, 7
        %v4370 = vsub.s32 0, %v4369
        %v4371 = vrot.slane %v4248, %v4370
        %v4373 = vadd.f32 %v4359, %v4371
        %v4374 = vadd.f32 %v4360, %v4371
        %v4375 = vadd.f32 %v4361, %v4371
        %v4376 = vadd.f32 %v4362, %v4371
        %v4377 = vadd.f32 %v4363, %v4371
        %v4378 = vadd.f32 %v4364, %v4371
        %v4379 = vadd.f32 %v4365, %v4371
        %v4380 = vadd.f32 %v4366, %v4371
        %v4381 = vpack.c.bf16 %v4374, %v4373
        %v4382 = vpack.c.bf16 %v4376, %v4375
        %v4383 = vpack.c.bf16 %v4378, %v4377
        %v4384 = vpack.c.bf16 %v4380, %v4379
        %s4385 = scalar_lea.vmem %s18, 16
        %v4386 = vld [vmem:[%s4385] sm:$0xf]
        %v4387 = vld [vmem:[%s4385 + $0x4] sm:$0xf]
        %v4388 = vld [vmem:[%s4385 + $0x8] sm:$0xf]
        %v4389 = vld [vmem:[%s4385 + $0xc] sm:$0xf]
        %s4390 = scalar_lea.vmem %s19, 1
        %v4391 = vld [vmem:[%s4390] sm:$0x1]
        %v4393 = vlaneseq
        %v4394 = vshrl.u32 %v4393, 7
        %v4395 = vsub.s32 0, %v4394
        %v4396 = vrot.slane %v4391, %v4395
        %v4402 = vunpack.c.l.b16 %v4386
        %v4403 = vunpack.c.l.b16 %v4387
        %v4404 = vunpack.c.l.b16 %v4388
        %v4405 = vunpack.c.l.b16 %v4389
        %v4406 = vpack.c.b16 %v4403, %v4402
        %v4407 = vpack.c.b16 %v4405, %v4404
        %v4411 = vsel %vm740, %v4381, 0
        %v4414 = vsel %vm740, %v4382, 0
        %v4417 = vsel %vm740, %v4383, 0
        %v4420 = vsel %vm740, %v4384, 0
        %4422 = vmatprep.subr.bf16.mxu0 0
        %4423 = vmatpush1.bf16.msra.mxu0 %v4406
        %4424 = vmatprep.subr.bf16.mxu0 0
        %4425 = vmatpush1.bf16.msra.mxu0 %v4407
        %4426 = vmatprep.subr.bf16.mxu0 0
        %4427 = vmatpush1.bf16.msra.mxu0 0
        %4428 = vmatprep.subr.bf16.mxu0 0
        %4429 = vmatpush1.bf16.msra.mxu0 0
        %4430 = vmatprep.subr.bf16.mxu0 0
        %4431 = vmatpush1.bf16.msra.mxu0 0
        %4432 = vmatprep.subr.bf16.mxu0 0
        %4433 = vmatpush1.bf16.msra.mxu0 0
        %4434 = vmatprep.subr.bf16.mxu0 0
        %4435 = vmatpush1.bf16.msra.mxu0 0
        %4436 = vmatprep.subr.bf16.mxu0 0
        %4437 = vmatpush1.bf16.msra.mxu0 0
        %4438 = vmatprep.subr.bf16.mxu0 0
        %4439 = vmatpush1.bf16.msra.mxu0 0
        %4440 = vmatprep.subr.bf16.mxu0 0
        %4441 = vmatpush1.bf16.msra.mxu0 0
        %4442 = vmatprep.subr.bf16.mxu0 0
        %4443 = vmatpush1.bf16.msra.mxu0 0
        %4444 = vmatprep.subr.bf16.mxu0 0
        %4445 = vmatpush1.bf16.msra.mxu0 0
        %4446 = vmatprep.subr.bf16.mxu0 0
        %4447 = vmatpush1.bf16.msra.mxu0 0
        %4448 = vmatprep.subr.bf16.mxu0 0
        %4449 = vmatpush1.bf16.msra.mxu0 0
        %4450 = vmatprep.subr.bf16.mxu0 0
        %4451 = vmatpush1.bf16.msra.mxu0 0
        %4452 = vmatprep.subr.bf16.mxu0 0
        %4453 = vmatpush1.bf16.msra.mxu0 0
        %4454 = vmatprep.mubr.bf16.mxu0 0
        %4455 = vmatmul.mubr.bf16.gmra.mrb[0].mxu0 %v4411
        %v4456 = vpop.f32.mrb[0].mxu0
        %v4457 = vadd.f32 %v4396, %v4456
        %v4458 = vpop.f32.mrb[0].mxu0
        %v4459 = vpop.f32.mrb[0].mxu0
        %v4460 = vadd.f32 %v4396, %v4459
        %v4461 = vpop.f32.mrb[0].mxu0
        %4462 = vmatprep.mubr.bf16.mxu0 0
        %4463 = vmatmul.mubr.bf16.gmra.mrb[0].mxu0 %v4414
        %v4464 = vpop.f32.mrb[0].mxu0
        %v4465 = vadd.f32 %v4396, %v4464
        %v4466 = vpop.f32.mrb[0].mxu0
        %v4467 = vpop.f32.mrb[0].mxu0
        %v4468 = vadd.f32 %v4396, %v4467
        %v4469 = vpop.f32.mrb[0].mxu0
        %4470 = vmatprep.mubr.bf16.mxu0 0
        %4471 = vmatmul.mubr.bf16.gmra.mrb[0].mxu0 %v4417
        %v4472 = vpop.f32.mrb[0].mxu0
        %v4473 = vadd.f32 %v4396, %v4472
        %v4474 = vpop.f32.mrb[0].mxu0
        %v4475 = vpop.f32.mrb[0].mxu0
        %v4476 = vadd.f32 %v4396, %v4475
        %v4477 = vpop.f32.mrb[0].mxu0
        %4478 = vmatprep.mubr.bf16.mxu0 0
        %4479 = vmatmul.mubr.bf16.gmra.mrb[0].mxu0 %v4420
        %v4480 = vpop.f32.mrb[0].mxu0
        %v4481 = vadd.f32 %v4396, %v4480
        %v4482 = vpop.f32.mrb[0].mxu0
        %v4483 = vpop.f32.mrb[0].mxu0
        %v4484 = vadd.f32 %v4396, %v4483
        %v4485 = vpop.f32.mrb[0].mxu0
        %4486 = vdwg.mxu0
        %v4487 = vmul.f32 %v4457, 0.5
        %v4488 = vmul.f32 %v4460, 0.5
        %v4489 = vmul.f32 %v4465, 0.5
        %v4490 = vmul.f32 %v4468, 0.5
        %v4491 = vmul.f32 %v4473, 0.5
        %v4492 = vmul.f32 %v4476, 0.5
        %v4493 = vmul.f32 %v4481, 0.5
        %v4494 = vmul.f32 %v4484, 0.5
        %v4495 = vmul.f32 %v4457, %v2319
        %v4496 = vmul.f32 %v4460, %v2319
        %v4497 = vmul.f32 %v4465, %v2319
        %v4498 = vmul.f32 %v4468, %v2319
        %v4499 = vmul.f32 %v4473, %v2319
        %v4500 = vmul.f32 %v4476, %v2319
        %v4501 = vmul.f32 %v4481, %v2319
        %v4502 = vmul.f32 %v4484, %v2319
        %v4503 = verf.f32.pop %v4495
        %v4504 = verf.f32.pop %v4496
        %v4505 = verf.f32.pop %v4497
        %v4506 = verf.f32.pop %v4498
        %v4507 = verf.f32.pop %v4499
        %v4508 = verf.f32.pop %v4500
        %v4509 = verf.f32.pop %v4501
        %v4510 = verf.f32.pop %v4502
        %v4511 = vadd.f32 %v4503, 1.0
        %v4512 = vadd.f32 %v4504, 1.0
        %v4513 = vadd.f32 %v4505, 1.0
        %v4514 = vadd.f32 %v4506, 1.0
        %v4515 = vadd.f32 %v4507, 1.0
        %v4516 = vadd.f32 %v4508, 1.0
        %v4517 = vadd.f32 %v4509, 1.0
        %v4518 = vadd.f32 %v4510, 1.0
        %v4519 = vmul.f32 %v4487, %v4511
        %v4520 = vmul.f32 %v4488, %v4512
        %v4521 = vmul.f32 %v4489, %v4513
        %v4522 = vmul.f32 %v4490, %v4514
        %v4523 = vmul.f32 %v4491, %v4515
        %v4524 = vmul.f32 %v4492, %v4516
        %v4525 = vmul.f32 %v4493, %v4517
        %v4526 = vmul.f32 %v4494, %v4518
        %4527 = vst.msk [vmem:[#allocation4 + $0x10] sm:$0xff] %vm740, %v4519
        %4528 = vst.msk [vmem:[#allocation4 + $0x18] sm:$0xff] %vm740, %v4520
        %4529 = vst.msk [vmem:[#allocation4 + $0x20] sm:$0xff] %vm740, %v4521
        %4530 = vst.msk [vmem:[#allocation4 + $0x28] sm:$0xff] %vm740, %v4522
        %4531 = vst.msk [vmem:[#allocation4 + $0x30] sm:$0xff] %vm740, %v4523
        %4532 = vst.msk [vmem:[#allocation4 + $0x38] sm:$0xff] %vm740, %v4524
        %4533 = vst.msk [vmem:[#allocation4 + $0x40] sm:$0xff] %vm740, %v4525
        %4534 = vst.msk [vmem:[#allocation4 + $0x48] sm:$0xff] %vm740, %v4526
        %v4535 = vld [vmem:[#allocation4 + $0x7] sm:$0xff]
        %v4536 = vld [vmem:[#allocation4 + $0xf] sm:$0xff]
        %v4537 = vld [vmem:[#allocation4 + $0x17] sm:$0xff]
        %v4538 = vld [vmem:[#allocation4 + $0x1f] sm:$0xff]
        %v4539 = vld [vmem:[#allocation4 + $0x27] sm:$0xff]
        %v4540 = vld [vmem:[#allocation4 + $0x2f] sm:$0xff]
        %v4541 = vld [vmem:[#allocation4 + $0x37] sm:$0xff]
        %v4542 = vld [vmem:[#allocation4 + $0x3f] sm:$0xff]
        %4543 = vst.msk [vmem:[#allocation5] sm:$0xff] %vm740, %v4535
        %4544 = vst.msk [vmem:[#allocation5 + $0x18] sm:$0xff] %vm740, %v4536
        %4545 = vst.msk [vmem:[#allocation5 + $0x30] sm:$0xff] %vm740, %v4537
        %4546 = vst.msk [vmem:[#allocation5 + $0x48] sm:$0xff] %vm740, %v4538
        %4547 = vst.msk [vmem:[#allocation5 + $0x60] sm:$0xff] %vm740, %v4539
        %4548 = vst.msk [vmem:[#allocation5 + $0x78] sm:$0xff] %vm740, %v4540
        %4549 = vst.msk [vmem:[#allocation5 + $0x90] sm:$0xff] %vm740, %v4541
        %4550 = vst.msk [vmem:[#allocation5 + $0xa8] sm:$0xff] %vm740, %v4542
        %v4551 = vld [vmem:[#allocation4 + $0x8] sm:$0xff]
        %v4552 = vld [vmem:[#allocation4 + $0x10] sm:$0xff]
        %v4553 = vld [vmem:[#allocation4 + $0x18] sm:$0xff]
        %v4554 = vld [vmem:[#allocation4 + $0x20] sm:$0xff]
        %v4555 = vld [vmem:[#allocation4 + $0x28] sm:$0xff]
        %v4556 = vld [vmem:[#allocation4 + $0x30] sm:$0xff]
        %v4557 = vld [vmem:[#allocation4 + $0x38] sm:$0xff]
        %v4558 = vld [vmem:[#allocation4 + $0x40] sm:$0xff]
        %4567 = vrot.lane.b32.xlu0 %v4551, 32
        %v4568 = vpop.permute.xlu0 %4567
        %4569 = vrot.lane.b32.xlu0 %v4552, 32
        %v4570 = vpop.permute.xlu0 %4569
        %4571 = vrot.lane.b32.xlu0 %v4553, 32
        %v4572 = vpop.permute.xlu0 %4571
        %4573 = vrot.lane.b32.xlu0 %v4554, 32
        %v4574 = vpop.permute.xlu0 %4573
        %4575 = vrot.lane.b32.xlu0 %v4555, 32
        %v4576 = vpop.permute.xlu0 %4575
        %4577 = vrot.lane.b32.xlu0 %v4556, 32
        %v4578 = vpop.permute.xlu0 %4577
        %4579 = vrot.lane.b32.xlu0 %v4557, 32
        %v4580 = vpop.permute.xlu0 %4579
        %4581 = vrot.lane.b32.xlu0 %v4558, 32
        %v4582 = vpop.permute.xlu0 %4581
        %4591 = vst.msk [vmem:[#allocation5] sm:$0xff] %vm1195, %v4568
        %4592 = vst.msk [vmem:[#allocation5 + $0x18] sm:$0xff] %vm1195, %v4570
        %4593 = vst.msk [vmem:[#allocation5 + $0x30] sm:$0xff] %vm1195, %v4572
        %4594 = vst.msk [vmem:[#allocation5 + $0x48] sm:$0xff] %vm1195, %v4574
        %4595 = vst.msk [vmem:[#allocation5 + $0x60] sm:$0xff] %vm1195, %v4576
        %4596 = vst.msk [vmem:[#allocation5 + $0x78] sm:$0xff] %vm1195, %v4578
        %4597 = vst.msk [vmem:[#allocation5 + $0x90] sm:$0xff] %vm1195, %v4580
        %4598 = vst.msk [vmem:[#allocation5 + $0xa8] sm:$0xff] %vm1195, %v4582
        %v4599 = vld [vmem:[#allocation4 + $0x9] sm:$0xff]
        %v4600 = vld [vmem:[#allocation4 + $0x11] sm:$0xff]
        %v4601 = vld [vmem:[#allocation4 + $0x19] sm:$0xff]
        %v4602 = vld [vmem:[#allocation4 + $0x21] sm:$0xff]
        %v4603 = vld [vmem:[#allocation4 + $0x29] sm:$0xff]
        %v4604 = vld [vmem:[#allocation4 + $0x31] sm:$0xff]
        %v4605 = vld [vmem:[#allocation4 + $0x39] sm:$0xff]
        %v4606 = vld [vmem:[#allocation4 + $0x41] sm:$0xff]
        %4615 = vrot.lane.b32.xlu0 %v4599, 64
        %v4616 = vpop.permute.xlu0 %4615
        %4617 = vrot.lane.b32.xlu0 %v4600, 64
        %v4618 = vpop.permute.xlu0 %4617
        %4619 = vrot.lane.b32.xlu0 %v4601, 64
        %v4620 = vpop.permute.xlu0 %4619
        %4621 = vrot.lane.b32.xlu0 %v4602, 64
        %v4622 = vpop.permute.xlu0 %4621
        %4623 = vrot.lane.b32.xlu0 %v4603, 64
        %v4624 = vpop.permute.xlu0 %4623
        %4625 = vrot.lane.b32.xlu0 %v4604, 64
        %v4626 = vpop.permute.xlu0 %4625
        %4627 = vrot.lane.b32.xlu0 %v4605, 64
        %v4628 = vpop.permute.xlu0 %4627
        %4629 = vrot.lane.b32.xlu0 %v4606, 64
        %v4630 = vpop.permute.xlu0 %4629
        %4639 = vst.msk [vmem:[#allocation5] sm:$0xff] %vm1205, %v4616
        %4640 = vst.msk [vmem:[#allocation5 + $0x18] sm:$0xff] %vm1205, %v4618
        %4641 = vst.msk [vmem:[#allocation5 + $0x30] sm:$0xff] %vm1205, %v4620
        %4642 = vst.msk [vmem:[#allocation5 + $0x48] sm:$0xff] %vm1205, %v4622
        %4643 = vst.msk [vmem:[#allocation5 + $0x60] sm:$0xff] %vm1205, %v4624
        %4644 = vst.msk [vmem:[#allocation5 + $0x78] sm:$0xff] %vm1205, %v4626
        %4645 = vst.msk [vmem:[#allocation5 + $0x90] sm:$0xff] %vm1205, %v4628
        %4646 = vst.msk [vmem:[#allocation5 + $0xa8] sm:$0xff] %vm1205, %v4630
        %v4647 = vld [vmem:[#allocation4 + $0xf] sm:$0xff]
        %v4648 = vld [vmem:[#allocation4 + $0x17] sm:$0xff]
        %v4649 = vld [vmem:[#allocation4 + $0x1f] sm:$0xff]
        %v4650 = vld [vmem:[#allocation4 + $0x27] sm:$0xff]
        %v4651 = vld [vmem:[#allocation4 + $0x2f] sm:$0xff]
        %v4652 = vld [vmem:[#allocation4 + $0x37] sm:$0xff]
        %v4653 = vld [vmem:[#allocation4 + $0x3f] sm:$0xff]
        %v4654 = vld [vmem:[#allocation4 + $0x47] sm:$0xff]
        %4663 = vrot.lane.b32.xlu0 %v4647, 96
        %v4664 = vpop.permute.xlu0 %4663
        %4665 = vrot.lane.b32.xlu0 %v4648, 96
        %v4666 = vpop.permute.xlu0 %4665
        %4667 = vrot.lane.b32.xlu0 %v4649, 96
        %v4668 = vpop.permute.xlu0 %4667
        %4669 = vrot.lane.b32.xlu0 %v4650, 96
        %v4670 = vpop.permute.xlu0 %4669
        %4671 = vrot.lane.b32.xlu0 %v4651, 96
        %v4672 = vpop.permute.xlu0 %4671
        %4673 = vrot.lane.b32.xlu0 %v4652, 96
        %v4674 = vpop.permute.xlu0 %4673
        %4675 = vrot.lane.b32.xlu0 %v4653, 96
        %v4676 = vpop.permute.xlu0 %4675
        %4677 = vrot.lane.b32.xlu0 %v4654, 96
        %v4678 = vpop.permute.xlu0 %4677
        %4687 = vst.msk [vmem:[#allocation5] sm:$0xff] %vm1215, %v4664
        %4688 = vst.msk [vmem:[#allocation5 + $0x18] sm:$0xff] %vm1215, %v4666
        %4689 = vst.msk [vmem:[#allocation5 + $0x30] sm:$0xff] %vm1215, %v4668
        %4690 = vst.msk [vmem:[#allocation5 + $0x48] sm:$0xff] %vm1215, %v4670
        %4691 = vst.msk [vmem:[#allocation5 + $0x60] sm:$0xff] %vm1215, %v4672
        %4692 = vst.msk [vmem:[#allocation5 + $0x78] sm:$0xff] %vm1215, %v4674
        %4693 = vst.msk [vmem:[#allocation5 + $0x90] sm:$0xff] %vm1215, %v4676
        %4694 = vst.msk [vmem:[#allocation5 + $0xa8] sm:$0xff] %vm1215, %v4678
        %v4695 = vld [vmem:[#allocation4 + $0x10] sm:$0xff]
        %v4696 = vld [vmem:[#allocation4 + $0x18] sm:$0xff]
        %v4697 = vld [vmem:[#allocation4 + $0x20] sm:$0xff]
        %v4698 = vld [vmem:[#allocation4 + $0x28] sm:$0xff]
        %v4699 = vld [vmem:[#allocation4 + $0x30] sm:$0xff]
        %v4700 = vld [vmem:[#allocation4 + $0x38] sm:$0xff]
        %v4701 = vld [vmem:[#allocation4 + $0x40] sm:$0xff]
        %v4702 = vld [vmem:[#allocation4 + $0x48] sm:$0xff]
        %4703 = vst.msk [vmem:[#allocation5 + $0x8] sm:$0xff] %vm740, %v4695
        %4704 = vst.msk [vmem:[#allocation5 + $0x20] sm:$0xff] %vm740, %v4696
        %4705 = vst.msk [vmem:[#allocation5 + $0x38] sm:$0xff] %vm740, %v4697
        %4706 = vst.msk [vmem:[#allocation5 + $0x50] sm:$0xff] %vm740, %v4698
        %4707 = vst.msk [vmem:[#allocation5 + $0x68] sm:$0xff] %vm740, %v4699
        %4708 = vst.msk [vmem:[#allocation5 + $0x80] sm:$0xff] %vm740, %v4700
        %4709 = vst.msk [vmem:[#allocation5 + $0x98] sm:$0xff] %vm740, %v4701
        %4710 = vst.msk [vmem:[#allocation5 + $0xb0] sm:$0xff] %vm740, %v4702
        %v4711 = vld [vmem:[#allocation4 + $0x11] sm:$0xff]
        %v4712 = vld [vmem:[#allocation4 + $0x19] sm:$0xff]
        %v4713 = vld [vmem:[#allocation4 + $0x21] sm:$0xff]
        %v4714 = vld [vmem:[#allocation4 + $0x29] sm:$0xff]
        %v4715 = vld [vmem:[#allocation4 + $0x31] sm:$0xff]
        %v4716 = vld [vmem:[#allocation4 + $0x39] sm:$0xff]
        %v4717 = vld [vmem:[#allocation4 + $0x41] sm:$0xff]
        %v4718 = vld [vmem:[#allocation4 + $0x49] sm:$0xff]
        %4727 = vrot.lane.b32.xlu0 %v4711, 32
        %v4728 = vpop.permute.xlu0 %4727
        %4729 = vrot.lane.b32.xlu0 %v4712, 32
        %v4730 = vpop.permute.xlu0 %4729
        %4731 = vrot.lane.b32.xlu0 %v4713, 32
        %v4732 = vpop.permute.xlu0 %4731
        %4733 = vrot.lane.b32.xlu0 %v4714, 32
        %v4734 = vpop.permute.xlu0 %4733
        %4735 = vrot.lane.b32.xlu0 %v4715, 32
        %v4736 = vpop.permute.xlu0 %4735
        %4737 = vrot.lane.b32.xlu0 %v4716, 32
        %v4738 = vpop.permute.xlu0 %4737
        %4739 = vrot.lane.b32.xlu0 %v4717, 32
        %v4740 = vpop.permute.xlu0 %4739
        %4741 = vrot.lane.b32.xlu0 %v4718, 32
        %v4742 = vpop.permute.xlu0 %4741
        %4751 = vst.msk [vmem:[#allocation5 + $0x8] sm:$0xff] %vm1195, %v4728
        %4752 = vst.msk [vmem:[#allocation5 + $0x20] sm:$0xff] %vm1195, %v4730
        %4753 = vst.msk [vmem:[#allocation5 + $0x38] sm:$0xff] %vm1195, %v4732
        %4754 = vst.msk [vmem:[#allocation5 + $0x50] sm:$0xff] %vm1195, %v4734
        %4755 = vst.msk [vmem:[#allocation5 + $0x68] sm:$0xff] %vm1195, %v4736
        %4756 = vst.msk [vmem:[#allocation5 + $0x80] sm:$0xff] %vm1195, %v4738
        %4757 = vst.msk [vmem:[#allocation5 + $0x98] sm:$0xff] %vm1195, %v4740
        %4758 = vst.msk [vmem:[#allocation5 + $0xb0] sm:$0xff] %vm1195, %v4742
        %v4759 = vld [vmem:[#allocation4 + $0x17] sm:$0xff]
        %v4760 = vld [vmem:[#allocation4 + $0x1f] sm:$0xff]
        %v4761 = vld [vmem:[#allocation4 + $0x27] sm:$0xff]
        %v4762 = vld [vmem:[#allocation4 + $0x2f] sm:$0xff]
        %v4763 = vld [vmem:[#allocation4 + $0x37] sm:$0xff]
        %v4764 = vld [vmem:[#allocation4 + $0x3f] sm:$0xff]
        %v4765 = vld [vmem:[#allocation4 + $0x47] sm:$0xff]
        %v4766 = vld [vmem:[#allocation4 + $0x4f] sm:$0xff]
        %4775 = vrot.lane.b32.xlu0 %v4759, 64
        %v4776 = vpop.permute.xlu0 %4775
        %4777 = vrot.lane.b32.xlu0 %v4760, 64
        %v4778 = vpop.permute.xlu0 %4777
        %4779 = vrot.lane.b32.xlu0 %v4761, 64
        %v4780 = vpop.permute.xlu0 %4779
        %4781 = vrot.lane.b32.xlu0 %v4762, 64
        %v4782 = vpop.permute.xlu0 %4781
        %4783 = vrot.lane.b32.xlu0 %v4763, 64
        %v4784 = vpop.permute.xlu0 %4783
        %4785 = vrot.lane.b32.xlu0 %v4764, 64
        %v4786 = vpop.permute.xlu0 %4785
        %4787 = vrot.lane.b32.xlu0 %v4765, 64
        %v4788 = vpop.permute.xlu0 %4787
        %4789 = vrot.lane.b32.xlu0 %v4766, 64
        %v4790 = vpop.permute.xlu0 %4789
        %4799 = vst.msk [vmem:[#allocation5 + $0x8] sm:$0xff] %vm1205, %v4776
        %4800 = vst.msk [vmem:[#allocation5 + $0x20] sm:$0xff] %vm1205, %v4778
        %4801 = vst.msk [vmem:[#allocation5 + $0x38] sm:$0xff] %vm1205, %v4780
        %4802 = vst.msk [vmem:[#allocation5 + $0x50] sm:$0xff] %vm1205, %v4782
        %4803 = vst.msk [vmem:[#allocation5 + $0x68] sm:$0xff] %vm1205, %v4784
        %4804 = vst.msk [vmem:[#allocation5 + $0x80] sm:$0xff] %vm1205, %v4786
        %4805 = vst.msk [vmem:[#allocation5 + $0x98] sm:$0xff] %vm1205, %v4788
        %4806 = vst.msk [vmem:[#allocation5 + $0xb0] sm:$0xff] %vm1205, %v4790
        %v4807 = vld [vmem:[#allocation4 + $0x18] sm:$0xff]
        %v4808 = vld [vmem:[#allocation4 + $0x20] sm:$0xff]
        %v4809 = vld [vmem:[#allocation4 + $0x28] sm:$0xff]
        %v4810 = vld [vmem:[#allocation4 + $0x30] sm:$0xff]
        %v4811 = vld [vmem:[#allocation4 + $0x38] sm:$0xff]
        %v4812 = vld [vmem:[#allocation4 + $0x40] sm:$0xff]
        %v4813 = vld [vmem:[#allocation4 + $0x48] sm:$0xff]
        %v4814 = vld [vmem:[#allocation4 + $0x50] sm:$0xff]
        %4823 = vrot.lane.b32.xlu0 %v4807, 96
        %v4824 = vpop.permute.xlu0 %4823
        %4825 = vrot.lane.b32.xlu0 %v4808, 96
        %v4826 = vpop.permute.xlu0 %4825
        %4827 = vrot.lane.b32.xlu0 %v4809, 96
        %v4828 = vpop.permute.xlu0 %4827
        %4829 = vrot.lane.b32.xlu0 %v4810, 96
        %v4830 = vpop.permute.xlu0 %4829
        %4831 = vrot.lane.b32.xlu0 %v4811, 96
        %v4832 = vpop.permute.xlu0 %4831
        %4833 = vrot.lane.b32.xlu0 %v4812, 96
        %v4834 = vpop.permute.xlu0 %4833
        %4835 = vrot.lane.b32.xlu0 %v4813, 96
        %v4836 = vpop.permute.xlu0 %4835
        %4837 = vrot.lane.b32.xlu0 %v4814, 96
        %v4838 = vpop.permute.xlu0 %4837
        %4847 = vst.msk [vmem:[#allocation5 + $0x8] sm:$0xff] %vm1215, %v4824
        %4848 = vst.msk [vmem:[#allocation5 + $0x20] sm:$0xff] %vm1215, %v4826
        %4849 = vst.msk [vmem:[#allocation5 + $0x38] sm:$0xff] %vm1215, %v4828
        %4850 = vst.msk [vmem:[#allocation5 + $0x50] sm:$0xff] %vm1215, %v4830
        %4851 = vst.msk [vmem:[#allocation5 + $0x68] sm:$0xff] %vm1215, %v4832
        %4852 = vst.msk [vmem:[#allocation5 + $0x80] sm:$0xff] %vm1215, %v4834
        %4853 = vst.msk [vmem:[#allocation5 + $0x98] sm:$0xff] %vm1215, %v4836
        %4854 = vst.msk [vmem:[#allocation5 + $0xb0] sm:$0xff] %vm1215, %v4838
        %v4855 = vld [vmem:[#allocation4 + $0x19] sm:$0xff]
        %v4856 = vld [vmem:[#allocation4 + $0x21] sm:$0xff]
        %v4857 = vld [vmem:[#allocation4 + $0x29] sm:$0xff]
        %v4858 = vld [vmem:[#allocation4 + $0x31] sm:$0xff]
        %v4859 = vld [vmem:[#allocation4 + $0x39] sm:$0xff]
        %v4860 = vld [vmem:[#allocation4 + $0x41] sm:$0xff]
        %v4861 = vld [vmem:[#allocation4 + $0x49] sm:$0xff]
        %v4862 = vld [vmem:[#allocation4 + $0x51] sm:$0xff]
        %4863 = vst.msk [vmem:[#allocation5 + $0x10] sm:$0xff] %vm740, %v4855
        %4864 = vst.msk [vmem:[#allocation5 + $0x28] sm:$0xff] %vm740, %v4856
        %4865 = vst.msk [vmem:[#allocation5 + $0x40] sm:$0xff] %vm740, %v4857
        %4866 = vst.msk [vmem:[#allocation5 + $0x58] sm:$0xff] %vm740, %v4858
        %4867 = vst.msk [vmem:[#allocation5 + $0x70] sm:$0xff] %vm740, %v4859
        %4868 = vst.msk [vmem:[#allocation5 + $0x88] sm:$0xff] %vm740, %v4860
        %4869 = vst.msk [vmem:[#allocation5 + $0xa0] sm:$0xff] %vm740, %v4861
        %4870 = vst.msk [vmem:[#allocation5 + $0xb8] sm:$0xff] %vm740, %v4862
        %v4871 = vld [vmem:[#allocation5] sm:$0xff]
        %v4872 = vld [vmem:[#allocation5 + $0x8] sm:$0xff]
        %v4873 = vld [vmem:[#allocation5 + $0x10] sm:$0xff]
        %v4874 = vld [vmem:[#allocation5 + $0x18] sm:$0xff]
        %v4875 = vld [vmem:[#allocation5 + $0x20] sm:$0xff]
        %v4876 = vld [vmem:[#allocation5 + $0x28] sm:$0xff]
        %v4877 = vld [vmem:[#allocation5 + $0x30] sm:$0xff]
        %v4878 = vld [vmem:[#allocation5 + $0x38] sm:$0xff]
        %v4879 = vld [vmem:[#allocation5 + $0x40] sm:$0xff]
        %v4880 = vld [vmem:[#allocation5 + $0x48] sm:$0xff]
        %v4881 = vld [vmem:[#allocation5 + $0x50] sm:$0xff]
        %v4882 = vld [vmem:[#allocation5 + $0x58] sm:$0xff]
        %v4883 = vld [vmem:[#allocation5 + $0x60] sm:$0xff]
        %v4884 = vld [vmem:[#allocation5 + $0x68] sm:$0xff]
        %v4885 = vld [vmem:[#allocation5 + $0x70] sm:$0xff]
        %v4886 = vld [vmem:[#allocation5 + $0x78] sm:$0xff]
        %v4887 = vld [vmem:[#allocation5 + $0x80] sm:$0xff]
        %v4888 = vld [vmem:[#allocation5 + $0x88] sm:$0xff]
        %v4889 = vld [vmem:[#allocation5 + $0x90] sm:$0xff]
        %v4890 = vld [vmem:[#allocation5 + $0x98] sm:$0xff]
        %v4891 = vld [vmem:[#allocation5 + $0xa0] sm:$0xff]
        %v4892 = vld [vmem:[#allocation5 + $0xa8] sm:$0xff]
        %v4893 = vld [vmem:[#allocation5 + $0xb0] sm:$0xff]
        %v4894 = vld [vmem:[#allocation5 + $0xb8] sm:$0xff]
        %v4895 = vmul.f32 %v4871, %v761
        %v4896 = vmul.f32 %v4872, %v762
        %v4897 = vmul.f32 %v4873, %v763
        %v4898 = vmul.f32 %v4874, %v764
        %v4899 = vmul.f32 %v4875, %v765
        %v4900 = vmul.f32 %v4876, %v766
        %v4901 = vmul.f32 %v4877, %v767
        %v4902 = vmul.f32 %v4878, %v768
        %v4903 = vmul.f32 %v4879, %v769
        %v4904 = vmul.f32 %v4880, %v770
        %v4905 = vmul.f32 %v4881, %v771
        %v4906 = vmul.f32 %v4882, %v772
        %v4907 = vmul.f32 %v4883, %v773
        %v4908 = vmul.f32 %v4884, %v774
        %v4909 = vmul.f32 %v4885, %v775
        %v4910 = vmul.f32 %v4886, %v776
        %v4911 = vmul.f32 %v4887, %v777
        %v4912 = vmul.f32 %v4888, %v778
        %v4913 = vmul.f32 %v4889, %v779
        %v4914 = vmul.f32 %v4890, %v780
        %v4915 = vmul.f32 %v4891, %v781
        %v4916 = vmul.f32 %v4892, %v782
        %v4917 = vmul.f32 %v4893, %v783
        %v4918 = vmul.f32 %v4894, %v784
        %v4919 = vpack.c.bf16 %v4898, %v4895
        %v4920 = vpack.c.bf16 %v4899, %v4896
        %v4921 = vpack.c.bf16 %v4900, %v4897
        %v4922 = vpack.c.bf16 %v4904, %v4901
        %v4923 = vpack.c.bf16 %v4905, %v4902
        %v4924 = vpack.c.bf16 %v4906, %v4903
        %v4925 = vpack.c.bf16 %v4910, %v4907
        %v4926 = vpack.c.bf16 %v4911, %v4908
        %v4927 = vpack.c.bf16 %v4912, %v4909
        %v4928 = vpack.c.bf16 %v4916, %v4913
        %v4929 = vpack.c.bf16 %v4917, %v4914
        %v4930 = vpack.c.bf16 %v4918, %v4915
        %s4931 = scalar_lea.vmem %s20, 144
        %v4932 = vld [vmem:[%s4931] sm:$0xf]
        %v4933 = vld [vmem:[%s4931 + $0x4] sm:$0xf]
        %v4934 = vld [vmem:[%s4931 + $0x8] sm:$0xf]
        %v4935 = vld [vmem:[%s4931 + $0xc] sm:$0xf]
        %v4936 = vld [vmem:[%s4931 + $0x10] sm:$0xf]
        %v4937 = vld [vmem:[%s4931 + $0x14] sm:$0xf]
        %v4938 = vld [vmem:[%s4931 + $0x18] sm:$0xf]
        %v4939 = vld [vmem:[%s4931 + $0x1c] sm:$0xf]
        %v4940 = vld [vmem:[%s4931 + $0x20] sm:$0xf]
        %v4941 = vld [vmem:[%s4931 + $0x24] sm:$0xf]
        %v4942 = vld [vmem:[%s4931 + $0x28] sm:$0xf]
        %v4943 = vld [vmem:[%s4931 + $0x2c] sm:$0xf]
        %v4944 = vld [vmem:[%s4931 + $0x30] sm:$0xf]
        %v4945 = vld [vmem:[%s4931 + $0x34] sm:$0xf]
        %v4946 = vld [vmem:[%s4931 + $0x38] sm:$0xf]
        %v4947 = vld [vmem:[%s4931 + $0x3c] sm:$0xf]
        %v4948 = vld [vmem:[%s4931 + $0x40] sm:$0xf]
        %v4949 = vld [vmem:[%s4931 + $0x44] sm:$0xf]
        %v4950 = vld [vmem:[%s4931 + $0x48] sm:$0xf]
        %v4951 = vld [vmem:[%s4931 + $0x4c] sm:$0xf]
        %v4952 = vld [vmem:[%s4931 + $0x50] sm:$0xf]
        %v4953 = vld [vmem:[%s4931 + $0x54] sm:$0xf]
        %v4954 = vld [vmem:[%s4931 + $0x58] sm:$0xf]
        %v4955 = vld [vmem:[%s4931 + $0x5c] sm:$0xf]
        %v4956 = vld [vmem:[%s4931 + $0x60] sm:$0xf]
        %v4957 = vld [vmem:[%s4931 + $0x64] sm:$0xf]
        %v4958 = vld [vmem:[%s4931 + $0x68] sm:$0xf]
        %v4959 = vld [vmem:[%s4931 + $0x6c] sm:$0xf]
        %v4960 = vld [vmem:[%s4931 + $0x70] sm:$0xf]
        %v4961 = vld [vmem:[%s4931 + $0x74] sm:$0xf]
        %v4962 = vld [vmem:[%s4931 + $0x78] sm:$0xf]
        %v4963 = vld [vmem:[%s4931 + $0x7c] sm:$0xf]
        %v4964 = vld [vmem:[%s4931 + $0x80] sm:$0xf]
        %v4965 = vld [vmem:[%s4931 + $0x84] sm:$0xf]
        %v4966 = vld [vmem:[%s4931 + $0x88] sm:$0xf]
        %v4967 = vld [vmem:[%s4931 + $0x8c] sm:$0xf]
        %s4968 = scalar_lea.vmem %s21, 1
        %v4969 = vld [vmem:[%s4968] sm:$0x1]
        %v4971 = vlaneseq
        %v4972 = vshrl.u32 %v4971, 7
        %v4973 = vsub.s32 0, %v4972
        %v4974 = vrot.slane %v4969, %v4973
        %v5012 = vunpack.c.l.b16 %v4932
        %v5013 = vunpack.c.l.b16 %v4933
        %v5014 = vunpack.c.l.b16 %v4934
        %v5015 = vunpack.c.l.b16 %v4935
        %v5016 = vunpack.c.l.b16 %v4936
        %v5017 = vunpack.c.l.b16 %v4937
        %v5018 = vunpack.c.l.b16 %v4938
        %v5019 = vunpack.c.l.b16 %v4939
        %v5020 = vunpack.c.l.b16 %v4940
        %v5021 = vunpack.c.l.b16 %v4941
        %v5022 = vunpack.c.l.b16 %v4942
        %v5023 = vunpack.c.l.b16 %v4943
        %v5024 = vunpack.c.l.b16 %v4944
        %v5025 = vunpack.c.l.b16 %v4945
        %v5026 = vunpack.c.l.b16 %v4946
        %v5027 = vunpack.c.l.b16 %v4947
        %v5028 = vunpack.c.l.b16 %v4948
        %v5029 = vunpack.c.l.b16 %v4949
        %v5030 = vunpack.c.l.b16 %v4950
        %v5031 = vunpack.c.l.b16 %v4951
        %v5032 = vunpack.c.l.b16 %v4952
        %v5033 = vunpack.c.l.b16 %v4953
        %v5034 = vunpack.c.l.b16 %v4954
        %v5035 = vunpack.c.l.b16 %v4955
        %v5036 = vunpack.c.l.b16 %v4956
        %v5037 = vunpack.c.l.b16 %v4957
        %v5038 = vunpack.c.l.b16 %v4958
        %v5039 = vunpack.c.l.b16 %v4959
        %v5040 = vunpack.c.l.b16 %v4960
        %v5041 = vunpack.c.l.b16 %v4961
        %v5042 = vunpack.c.l.b16 %v4962
        %v5043 = vunpack.c.l.b16 %v4963
        %v5044 = vunpack.c.l.b16 %v4964
        %v5045 = vunpack.c.l.b16 %v4965
        %v5046 = vunpack.c.l.b16 %v4966
        %v5047 = vunpack.c.l.b16 %v4967
        %v5048 = vpack.c.b16 %v5013, %v5012
        %v5049 = vpack.c.b16 %v5015, %v5014
        %v5050 = vpack.c.b16 %v5017, %v5016
        %v5051 = vpack.c.b16 %v5019, %v5018
        %v5052 = vpack.c.b16 %v5021, %v5020
        %v5053 = vpack.c.b16 %v5023, %v5022
        %v5054 = vpack.c.b16 %v5025, %v5024
        %v5055 = vpack.c.b16 %v5027, %v5026
        %v5056 = vpack.c.b16 %v5029, %v5028
        %v5057 = vpack.c.b16 %v5031, %v5030
        %v5058 = vpack.c.b16 %v5033, %v5032
        %v5059 = vpack.c.b16 %v5035, %v5034
        %v5060 = vpack.c.b16 %v5037, %v5036
        %v5061 = vpack.c.b16 %v5039, %v5038
        %v5062 = vpack.c.b16 %v5041, %v5040
        %v5063 = vpack.c.b16 %v5043, %v5042
        %v5064 = vpack.c.b16 %v5045, %v5044
        %v5065 = vpack.c.b16 %v5047, %v5046
        %v5085 = vsel %vm740, %v4921, 0
        %v5088 = vsel %vm740, %v4924, 0
        %v5091 = vsel %vm740, %v4927, 0
        %v5094 = vsel %vm740, %v4930, 0
        %5096 = vmatprep.subr.bf16.mxu0 0
        %5097 = vmatpush1.bf16.msra.mxu0 %v5048
        %5098 = vmatprep.subr.bf16.mxu0 0
        %5099 = vmatpush1.bf16.msra.mxu0 %v5049
        %5100 = vmatprep.subr.bf16.mxu0 0
        %5101 = vmatpush1.bf16.msra.mxu0 %v5050
        %5102 = vmatprep.subr.bf16.mxu0 0
        %5103 = vmatpush1.bf16.msra.mxu0 %v5051
        %5104 = vmatprep.subr.bf16.mxu0 0
        %5105 = vmatpush1.bf16.msra.mxu0 %v5052
        %5106 = vmatprep.subr.bf16.mxu0 0
        %5107 = vmatpush1.bf16.msra.mxu0 %v5053
        %5108 = vmatprep.subr.bf16.mxu0 0
        %5109 = vmatpush1.bf16.msra.mxu0 %v5054
        %5110 = vmatprep.subr.bf16.mxu0 0
        %5111 = vmatpush1.bf16.msra.mxu0 %v5055
        %5112 = vmatprep.subr.bf16.mxu0 0
        %5113 = vmatpush1.bf16.msra.mxu0 %v5056
        %5114 = vmatprep.subr.bf16.mxu0 0
        %5115 = vmatpush1.bf16.msra.mxu0 %v5057
        %5116 = vmatprep.subr.bf16.mxu0 0
        %5117 = vmatpush1.bf16.msra.mxu0 %v5058
        %5118 = vmatprep.subr.bf16.mxu0 0
        %5119 = vmatpush1.bf16.msra.mxu0 %v5059
        %5120 = vmatprep.subr.bf16.mxu0 0
        %5121 = vmatpush1.bf16.msra.mxu0 %v5060
        %5122 = vmatprep.subr.bf16.mxu0 0
        %5123 = vmatpush1.bf16.msra.mxu0 %v5061
        %5124 = vmatprep.subr.bf16.mxu0 0
        %5125 = vmatpush1.bf16.msra.mxu0 %v5062
        %5126 = vmatprep.subr.bf16.mxu0 0
        %5127 = vmatpush1.bf16.msra.mxu0 %v5063
        %5128 = vmatprep.mubr.bf16.mxu0 %v4920
        %5129 = vmatmul.mubr.bf16.gmra.mrb[0].mxu0 %v4919
        %v5130 = vpop.f32.mrb[0].mxu0
        %v5131 = vadd.f32 %v4974, %v5130
        %v5132 = vpop.f32.mrb[0].mxu0
        %v5133 = vpop.f32.mrb[0].mxu0
        %v5134 = vadd.f32 %v4974, %v5133
        %v5135 = vpop.f32.mrb[0].mxu0
        %5136 = vmatprep.mubr.bf16.mxu0 %v4923
        %5137 = vmatmul.mubr.bf16.gmra.mrb[0].mxu0 %v4922
        %v5138 = vpop.f32.mrb[0].mxu0
        %v5139 = vadd.f32 %v4974, %v5138
        %v5140 = vpop.f32.mrb[0].mxu0
        %v5141 = vpop.f32.mrb[0].mxu0
        %v5142 = vadd.f32 %v4974, %v5141
        %v5143 = vpop.f32.mrb[0].mxu0
        %5144 = vmatprep.mubr.bf16.mxu0 %v4926
        %5145 = vmatmul.mubr.bf16.gmra.mrb[0].mxu0 %v4925
        %v5146 = vpop.f32.mrb[0].mxu0
        %v5147 = vadd.f32 %v4974, %v5146
        %v5148 = vpop.f32.mrb[0].mxu0
        %v5149 = vpop.f32.mrb[0].mxu0
        %v5150 = vadd.f32 %v4974, %v5149
        %v5151 = vpop.f32.mrb[0].mxu0
        %5152 = vmatprep.mubr.bf16.mxu0 %v4929
        %5153 = vmatmul.mubr.bf16.gmra.mrb[0].mxu0 %v4928
        %v5154 = vpop.f32.mrb[0].mxu0
        %v5155 = vadd.f32 %v4974, %v5154
        %v5156 = vpop.f32.mrb[0].mxu0
        %v5157 = vpop.f32.mrb[0].mxu0
        %v5158 = vadd.f32 %v4974, %v5157
        %v5159 = vpop.f32.mrb[0].mxu0
        %5160 = vdwg.mxu0
        %5161 = vmatprep.subr.bf16.mxu0 0
        %5162 = vmatpush1.bf16.msra.mxu0 %v5064
        %5163 = vmatprep.subr.bf16.mxu0 0
        %5164 = vmatpush1.bf16.msra.mxu0 %v5065
        %5165 = vmatprep.subr.bf16.mxu0 0
        %5166 = vmatpush1.bf16.msra.mxu0 0
        %5167 = vmatprep.subr.bf16.mxu0 0
        %5168 = vmatpush1.bf16.msra.mxu0 0
        %5169 = vmatprep.subr.bf16.mxu0 0
        %5170 = vmatpush1.bf16.msra.mxu0 0
        %5171 = vmatprep.subr.bf16.mxu0 0
        %5172 = vmatpush1.bf16.msra.mxu0 0
        %5173 = vmatprep.subr.bf16.mxu0 0
        %5174 = vmatpush1.bf16.msra.mxu0 0
        %5175 = vmatprep.subr.bf16.mxu0 0
        %5176 = vmatpush1.bf16.msra.mxu0 0
        %5177 = vmatprep.subr.bf16.mxu0 0
        %5178 = vmatpush1.bf16.msra.mxu0 0
        %5179 = vmatprep.subr.bf16.mxu0 0
        %5180 = vmatpush1.bf16.msra.mxu0 0
        %5181 = vmatprep.subr.bf16.mxu0 0
        %5182 = vmatpush1.bf16.msra.mxu0 0
        %5183 = vmatprep.subr.bf16.mxu0 0
        %5184 = vmatpush1.bf16.msra.mxu0 0
        %5185 = vmatprep.subr.bf16.mxu0 0
        %5186 = vmatpush1.bf16.msra.mxu0 0
        %5187 = vmatprep.subr.bf16.mxu0 0
        %5188 = vmatpush1.bf16.msra.mxu0 0
        %5189 = vmatprep.subr.bf16.mxu0 0
        %5190 = vmatpush1.bf16.msra.mxu0 0
        %5191 = vmatprep.subr.bf16.mxu0 0
        %5192 = vmatpush1.bf16.msra.mxu0 0
        %5193 = vmatprep.mubr.bf16.mxu0 0
        %5194 = vmatmul.mubr.bf16.gmra.mrb[0].mxu0 %v5085
        %v5195 = vpop.f32.mrb[0].mxu0
        %v5196 = vadd.f32 %v5131, %v5195
        %v5197 = vpop.f32.mrb[0].mxu0
        %v5198 = vpop.f32.mrb[0].mxu0
        %v5199 = vadd.f32 %v5134, %v5198
        %v5200 = vpop.f32.mrb[0].mxu0
        %5201 = vmatprep.mubr.bf16.mxu0 0
        %5202 = vmatmul.mubr.bf16.gmra.mrb[0].mxu0 %v5088
        %v5203 = vpop.f32.mrb[0].mxu0
        %v5204 = vadd.f32 %v5139, %v5203
        %v5205 = vpop.f32.mrb[0].mxu0
        %v5206 = vpop.f32.mrb[0].mxu0
        %v5207 = vadd.f32 %v5142, %v5206
        %v5208 = vpop.f32.mrb[0].mxu0
        %5209 = vmatprep.mubr.bf16.mxu0 0
        %5210 = vmatmul.mubr.bf16.gmra.mrb[0].mxu0 %v5091
        %v5211 = vpop.f32.mrb[0].mxu0
        %v5212 = vadd.f32 %v5147, %v5211
        %v5213 = vpop.f32.mrb[0].mxu0
        %v5214 = vpop.f32.mrb[0].mxu0
        %v5215 = vadd.f32 %v5150, %v5214
        %v5216 = vpop.f32.mrb[0].mxu0
        %5217 = vmatprep.mubr.bf16.mxu0 0
        %5218 = vmatmul.mubr.bf16.gmra.mrb[0].mxu0 %v5094
        %v5219 = vpop.f32.mrb[0].mxu0
        %v5220 = vadd.f32 %v5155, %v5219
        %v5221 = vpop.f32.mrb[0].mxu0
        %v5222 = vpop.f32.mrb[0].mxu0
        %v5223 = vadd.f32 %v5158, %v5222
        %v5224 = vpop.f32.mrb[0].mxu0
        %5225 = vdwg.mxu0
        %v5226 = vmul.f32 %v5196, 0.5
        %v5227 = vmul.f32 %v5199, 0.5
        %v5228 = vmul.f32 %v5204, 0.5
        %v5229 = vmul.f32 %v5207, 0.5
        %v5230 = vmul.f32 %v5212, 0.5
        %v5231 = vmul.f32 %v5215, 0.5
        %v5232 = vmul.f32 %v5220, 0.5
        %v5233 = vmul.f32 %v5223, 0.5
        %v5234 = vmul.f32 %v5196, %v2319
        %v5235 = vmul.f32 %v5199, %v2319
        %v5236 = vmul.f32 %v5204, %v2319
        %v5237 = vmul.f32 %v5207, %v2319
        %v5238 = vmul.f32 %v5212, %v2319
        %v5239 = vmul.f32 %v5215, %v2319
        %v5240 = vmul.f32 %v5220, %v2319
        %v5241 = vmul.f32 %v5223, %v2319
        %v5242 = verf.f32.pop %v5234
        %v5243 = verf.f32.pop %v5235
        %v5244 = verf.f32.pop %v5236
        %v5245 = verf.f32.pop %v5237
        %v5246 = verf.f32.pop %v5238
        %v5247 = verf.f32.pop %v5239
        %v5248 = verf.f32.pop %v5240
        %v5249 = verf.f32.pop %v5241
        %v5250 = vadd.f32 %v5242, 1.0
        %v5251 = vadd.f32 %v5243, 1.0
        %v5252 = vadd.f32 %v5244, 1.0
        %v5253 = vadd.f32 %v5245, 1.0
        %v5254 = vadd.f32 %v5246, 1.0
        %v5255 = vadd.f32 %v5247, 1.0
        %v5256 = vadd.f32 %v5248, 1.0
        %v5257 = vadd.f32 %v5249, 1.0
        %v5258 = vmul.f32 %v5226, %v5250
        %v5259 = vmul.f32 %v5227, %v5251
        %v5260 = vmul.f32 %v5228, %v5252
        %v5261 = vmul.f32 %v5229, %v5253
        %v5262 = vmul.f32 %v5230, %v5254
        %v5263 = vmul.f32 %v5231, %v5255
        %v5264 = vmul.f32 %v5232, %v5256
        %v5265 = vmul.f32 %v5233, %v5257
        %v5266 = vpack.c.bf16 %v5259, %v5258
        %v5267 = vpack.c.bf16 %v5261, %v5260
        %v5268 = vpack.c.bf16 %v5263, %v5262
        %v5269 = vpack.c.bf16 %v5265, %v5264
        %s5270 = scalar_lea.vmem %s22, 32
        %v5271 = vld [vmem:[%s5270] sm:$0xf]
        %v5272 = vld [vmem:[%s5270 + $0x4] sm:$0xf]
        %v5273 = vld [vmem:[%s5270 + $0x8] sm:$0xf]
        %v5274 = vld [vmem:[%s5270 + $0xc] sm:$0xf]
        %v5275 = vld [vmem:[%s5270 + $0x10] sm:$0xf]
        %v5276 = vld [vmem:[%s5270 + $0x14] sm:$0xf]
        %v5277 = vld [vmem:[%s5270 + $0x18] sm:$0xf]
        %v5278 = vld [vmem:[%s5270 + $0x1c] sm:$0xf]
        %s5279 = scalar_lea.vmem %s23, 1
        %v5280 = vld [vmem:[%s5279] sm:$0x1]
        %v5282 = vlaneseq
        %v5283 = vshrl.u32 %v5282, 7
        %v5284 = vsub.s32 0, %v5283
        %v5285 = vrot.slane %v5280, %v5284
        %v5295 = vunpack.c.l.b16 %v5271
        %v5296 = vunpack.c.l.b16 %v5272
        %v5297 = vunpack.c.l.b16 %v5273
        %v5298 = vunpack.c.l.b16 %v5274
        %v5299 = vunpack.c.l.b16 %v5275
        %v5300 = vunpack.c.l.b16 %v5276
        %v5301 = vunpack.c.l.b16 %v5277
        %v5302 = vunpack.c.l.b16 %v5278
        %v5303 = vpack.c.b16 %v5296, %v5295
        %v5304 = vpack.c.b16 %v5298, %v5297
        %v5305 = vpack.c.b16 %v5300, %v5299
        %v5306 = vpack.c.b16 %v5302, %v5301
        %v5312 = vsel %vm1511, %v5266, 0
        %v5315 = vsel %vm1511, %v5267, 0
        %v5318 = vsel %vm1511, %v5268, 0
        %v5321 = vsel %vm1511, %v5269, 0
        %5323 = vmatprep.subr.bf16.mxu0 0
        %5324 = vmatpush1.bf16.msra.mxu0 %v5303
        %5325 = vmatprep.subr.bf16.mxu0 0
        %5326 = vmatpush1.bf16.msra.mxu0 %v5304
        %5327 = vmatprep.subr.bf16.mxu0 0
        %5328 = vmatpush1.bf16.msra.mxu0 %v5305
        %5329 = vmatprep.subr.bf16.mxu0 0
        %5330 = vmatpush1.bf16.msra.mxu0 %v5306
        %5331 = vmatprep.subr.bf16.mxu0 0
        %5332 = vmatpush1.bf16.msra.mxu0 0
        %5333 = vmatprep.subr.bf16.mxu0 0
        %5334 = vmatpush1.bf16.msra.mxu0 0
        %5335 = vmatprep.subr.bf16.mxu0 0
        %5336 = vmatpush1.bf16.msra.mxu0 0
        %5337 = vmatprep.subr.bf16.mxu0 0
        %5338 = vmatpush1.bf16.msra.mxu0 0
        %5339 = vmatprep.subr.bf16.mxu0 0
        %5340 = vmatpush1.bf16.msra.mxu0 0
        %5341 = vmatprep.subr.bf16.mxu0 0
        %5342 = vmatpush1.bf16.msra.mxu0 0
        %5343 = vmatprep.subr.bf16.mxu0 0
        %5344 = vmatpush1.bf16.msra.mxu0 0
        %5345 = vmatprep.subr.bf16.mxu0 0
        %5346 = vmatpush1.bf16.msra.mxu0 0
        %5347 = vmatprep.subr.bf16.mxu0 0
        %5348 = vmatpush1.bf16.msra.mxu0 0
        %5349 = vmatprep.subr.bf16.mxu0 0
        %5350 = vmatpush1.bf16.msra.mxu0 0
        %5351 = vmatprep.subr.bf16.mxu0 0
        %5352 = vmatpush1.bf16.msra.mxu0 0
        %5353 = vmatprep.subr.bf16.mxu0 0
        %5354 = vmatpush1.bf16.msra.mxu0 0
        %5355 = vmatprep.mubr.bf16.mxu0 0
        %5356 = vmatmul.mubr.bf16.gmra.mrb[0].mxu0 %v5312
        %v5357 = vpop.f32.mrb[0].mxu0
        %v5358 = vadd.f32 %v5285, %v5357
        %v5359 = vpop.f32.mrb[0].mxu0
        %v5360 = vpop.f32.mrb[0].mxu0
        %v5361 = vadd.f32 %v5285, %v5360
        %v5362 = vpop.f32.mrb[0].mxu0
        %5363 = vmatprep.mubr.bf16.mxu0 0
        %5364 = vmatmul.mubr.bf16.gmra.mrb[0].mxu0 %v5315
        %v5365 = vpop.f32.mrb[0].mxu0
        %v5366 = vadd.f32 %v5285, %v5365
        %v5367 = vpop.f32.mrb[0].mxu0
        %v5368 = vpop.f32.mrb[0].mxu0
        %v5369 = vadd.f32 %v5285, %v5368
        %v5370 = vpop.f32.mrb[0].mxu0
        %5371 = vmatprep.mubr.bf16.mxu0 0
        %5372 = vmatmul.mubr.bf16.gmra.mrb[0].mxu0 %v5318
        %v5373 = vpop.f32.mrb[0].mxu0
        %v5374 = vadd.f32 %v5285, %v5373
        %v5375 = vpop.f32.mrb[0].mxu0
        %v5376 = vpop.f32.mrb[0].mxu0
        %v5377 = vadd.f32 %v5285, %v5376
        %v5378 = vpop.f32.mrb[0].mxu0
        %5379 = vmatprep.mubr.bf16.mxu0 0
        %5380 = vmatmul.mubr.bf16.gmra.mrb[0].mxu0 %v5321
        %v5381 = vpop.f32.mrb[0].mxu0
        %v5382 = vadd.f32 %v5285, %v5381
        %v5383 = vpop.f32.mrb[0].mxu0
        %v5384 = vpop.f32.mrb[0].mxu0
        %v5385 = vadd.f32 %v5285, %v5384
        %v5386 = vpop.f32.mrb[0].mxu0
        %5387 = vdwg.mxu0
        %v5388 = vadd.f32 %v5358, %v4215
        %v5389 = vadd.f32 %v5361, %v4218
        %v5390 = vadd.f32 %v5366, %v4223
        %v5391 = vadd.f32 %v5369, %v4226
        %v5392 = vadd.f32 %v5374, %v4231
        %v5393 = vadd.f32 %v5377, %v4234
        %v5394 = vadd.f32 %v5382, %v4239
        %v5395 = vadd.f32 %v5385, %v4242
        %5396 = vst.msk [vmem:[%s731] sm:$0xff] %vm740, %v5388
        %5397 = vst.msk [vmem:[%s731 + $0x8] sm:$0xff] %vm740, %v5389
        %5398 = vst.msk [vmem:[%s731 + $0x10] sm:$0xff] %vm740, %v5390
        %5399 = vst.msk [vmem:[%s731 + $0x18] sm:$0xff] %vm740, %v5391
        %5400 = vst.msk [vmem:[%s731 + $0x20] sm:$0xff] %vm740, %v5392
        %5401 = vst.msk [vmem:[%s731 + $0x28] sm:$0xff] %vm740, %v5393
        %5402 = vst.msk [vmem:[%s731 + $0x30] sm:$0xff] %vm740, %v5394
        %5403 = vst.msk [vmem:[%s731 + $0x38] sm:$0xff] %vm740, %v5395
        %s5404 = sand.u32 %s555, 1
        %s5405 = scalar_lea.sflag [#allocation7], %s5404
        %s5406 = sand.u32 %s555, 1
        %s5407 = smul.addr %s5406, 64
        %s5408 = scalar_lea.vmem [#allocation6], %s5407
        // Predicated region
        $region117: #{_lambda_.1} parent=115 // pred_check
          %p5409 = pneg %p565
        $region118: #{_lambda_.1} parent=115 // pred_check_branch
          %5411 = sbr.rel (%p5409) target = $region120
        $region119: #{_lambda_.1} parent=115 // pred_region
          %s5412 = smul.u32 8, %s38
          %s5414 = ssub.s32 1024, 1024
          %5415 = vsyncadd %s5405, %s5414
          %s5416 = smul.addr %s5412, 128
          %s5417 = scalar_lea.hbm %s24, %s5416
          %s5418 = sshll.u32 %s5408, 4
          %s5419 = int_to_ptr.vmem [resolvable:$true] %s5418
          %5424 = dma.vmem_to_hbm [thread:$0]  %s5419, 1024, %s5417, %s5405, 128, 128, 8
        $region120: #{_lambda_.1} parent=115 // pred_fallthru
          _
      $region116: #{_lambda_.1} parent=5 // pred_fallthru
        _
      %p5425 = scmp.le.s32.totalorder 2, %s33
      // Predicated region
      $region121: #{_lambda_.1} parent=5 // pred_check
        %p5426 = pneg %p5425
      $region122: #{_lambda_.1} parent=5 // pred_check_branch
        %5428 = sbr.rel (%p5426) target = $region124
      $region123: #{_lambda_.1} parent=5 // pred_region
        %s5429 = ssub.s32 %s33, 2
        // Predicated region
        $region125: #{_lambda_.1} parent=123 // pred_check
          %p5430 = pneg %p571
        $region126: #{_lambda_.1} parent=123 // pred_check_branch
          %5432 = sbr.rel (%p5430) target = $region128
        $region127: #{_lambda_.1} parent=123 // pred_region
          %s5433 = sand.u32 %s556, 1
          %s5434 = scalar_lea.sflag [#allocation7], %s5433
          %s5435 = sand.u32 %s556, 1
          %s5436 = smul.addr %s5435, 64
          %s5437 = scalar_lea.vmem [#allocation6], %s5436
          %5438 = dma.done %s5434, 1024
        $region128: #{_lambda_.1} parent=123 // pred_fallthru
          _
      $region124: #{_lambda_.1} parent=5 // pred_fallthru
        _
    $region6: #{_lambda_.1} parent=1 // loop_footer
      %s37 = sadd.s32 1, %s33
    $region7: #{_lambda_.1} parent=1 // loop_footer_branch
      %32 = sbr.rel target = $region3
    $region8: #{_lambda_.1} parent=1 // loop_exit
      _
    %5439 = vsyncpa [#allocation7], 1
    %s5440 = scalar_lea.sflag [#allocation7], 1
    %5441 = vsyncpa %s5440, 1

</llo_original>
